<compile_context>
chip_gen: v6e
topology: v6e:2x2x1
jax: 0.10.0
libtpu: 0.0.40
codegen_flags: <defaults>
</compile_context>

<pallas_src>
import numpy as np
import jax
import jax.numpy as jnp
from jax import lax
from jax.experimental import pallas as pl
from jax.experimental.pallas import tpu as pltpu

TAU = 2.0       # spikingjelly LIFNode defaults (hard reset, v_reset = 0)
V_TH = 1.0
BN_EPS = 1e-5

ROW_TILE = 256            # rows per matmul/LIF tile (conservative for v7x VMEM)
DW_BUDGET = 1 << 20       # VMEM budget for one dwconv input block (bytes)
MLP_BUDGET = 512 * 1024   # VMEM budget for one fused-MLP channel block (bytes)


# --------------------------------------------------------------------------
# tile pickers (all return divisors so grids tile exactly)
# --------------------------------------------------------------------------

def _row_tile(M, tmax=ROW_TILE):
    if M <= tmax:
        return M
    for d in range(tmax - tmax % 8, 7, -8):
        if M % d == 0:
            return d
    return M                      # fallback: single block (still correct)


def _img_tile(N, H, W, C):
    per = (H + 2) * (W + 2) * C * 4
    nb = max(1, min(N, DW_BUDGET // max(per, 1)))
    while N % nb:
        nb -= 1
    return nb


def _chan_tile(C, T, M2, Hd):
    per = T * M2 * Hd * 4
    cb = max(1, min(C, MLP_BUDGET // max(per, 1)))
    while C % cb:
        cb -= 1
    return cb


# --------------------------------------------------------------------------
# Pallas kernels
# --------------------------------------------------------------------------

def _linear_lif_kernel(x_ref, w_ref, b_ref, o_ref, st_ref):
    # x: (T, TM, K) f32, w: (K, N) bf16, b: (1, N) f32
    # o: (T, TM, N) spikes, st: (1, 1, N) per-tile spike counts
    T = x_ref.shape[0]
    N = w_ref.shape[1]
    v = jnp.zeros((x_ref.shape[1], N), jnp.float32)
    cnt = jnp.zeros((1, N), jnp.float32)
    for t in range(T):
        z = jnp.dot(x_ref[t].astype(jnp.bfloat16), w_ref[...],
                    preferred_element_type=jnp.float32) + b_ref[...]
        v = v + (z - v) * (1.0 / TAU)
        s = (v >= V_TH).astype(jnp.float32)
        o_ref[t] = s
        v = v * (1.0 - s)
        cnt = cnt + jnp.sum(s, axis=0, keepdims=True)
    st_ref[...] = cnt.reshape(1, 1, N)


def _dwconv_kernel(xp_ref, m_ref, s_ref, t_ref, k_ref, b_ref, o_ref, ss_ref, sq_ref):
    # xp: (NB, H+2, W+2, C) zero-padded raw input; m: (1, H+2, W+2, 1) interior mask
    # s, t: pre-BN scale/shift (1, C); k: (9, C) depthwise taps; b: (1, C) conv bias
    # o: (NB, H, W, C) conv output; ss/sq: (1, 1, C) per-tile sum / sum-of-squares
    NB, Hp2, Wp2, C = xp_ref.shape
    H, W = Hp2 - 2, Wp2 - 2
    scale = s_ref[...].reshape(1, 1, 1, C)
    shift = t_ref[...].reshape(1, 1, 1, C)
    # pre-BN affine fused in; padding ring must stay exactly zero -> mask the shift
    xn = xp_ref[...] * scale + shift * m_ref[...]
    kk = k_ref[...]
    acc = jnp.zeros((NB, H, W, C), jnp.float32) + b_ref[...].reshape(1, 1, 1, C)
    for dh in range(3):
        for dw in range(3):
            tap = kk[dh * 3 + dw:dh * 3 + dw + 1, :].reshape(1, 1, 1, C)
            acc = acc + xn[:, dh:dh + H, dw:dw + W, :] * tap
    o_ref[...] = acc
    ssum = jnp.sum(jnp.sum(jnp.sum(acc, axis=2, keepdims=True),
                           axis=1, keepdims=True), axis=0, keepdims=True)
    ssq = jnp.sum(jnp.sum(jnp.sum(acc * acc, axis=2, keepdims=True),
                          axis=1, keepdims=True), axis=0, keepdims=True)
    ss_ref[...] = ssum.reshape(1, 1, C)
    sq_ref[...] = ssq.reshape(1, 1, C)


def _bnres_lif_kernel(x_ref, d_ref, s0_ref, t0_ref, s1_ref, t1_ref, o_ref):
    # out = LIF_T( bn2(d) + bn1(x) )   with bn's precomputed as scale/shift
    T = x_ref.shape[0]
    v = jnp.zeros(x_ref.shape[1:], jnp.float32)
    for t in range(T):
        h = x_ref[t] * s0_ref[...] + t0_ref[...]
        y = d_ref[t] * s1_ref[...] + t1_ref[...] + h
        v = v + (y - v) * (1.0 / TAU)
        s = (v >= V_TH).astype(jnp.float32)
        o_ref[t] = s
        v = v * (1.0 - s)


def _mlp_kernel(x_ref, w1_ref, b1_ref, g1_ref, be1_ref,
                w2_ref, b2_ref, g2_ref, be2_ref, o_ref):
    # Whole SNNMlpBlock for a block of channels:
    #   fc1 -> bn1 -> (residual) -> lif1 -> fc2 -> bn2 -> +residual -> lif2
    # x: (T, CB, M2, Hd); gamma/beta refs hold the full (C, 1) vectors.
    T, CB, M2, Hd = x_ref.shape
    cnt = float(T * M2 * Hd)
    cb0 = pl.program_id(0) * CB

    def cpar(ref):                       # (C,1) -> this block's (CB,1,1)
        return ref[pl.ds(cb0, CB), :].reshape(CB, 1, 1)

    g1, be1 = cpar(g1_ref), cpar(be1_ref)
    g2, be2 = cpar(g2_ref), cpar(be2_ref)

    def per_c(z):                        # (T, CB, M2, Hd) -> (CB, 1, 1)
        s = jnp.sum(z, axis=3, keepdims=True)
        s = jnp.sum(s, axis=2, keepdims=True)
        return jnp.sum(s, axis=0)

    x = x_ref[...]
    z1 = jnp.dot(x.reshape(T * CB * M2, Hd).astype(jnp.bfloat16), w1_ref[...],
                 preferred_element_type=jnp.float32).reshape(T, CB, M2, Hd)
    z1 = z1 + b1_ref[...].reshape(1, 1, 1, Hd)
    m1 = per_c(z1) / cnt
    var1 = per_c(z1 * z1) / cnt - m1 * m1
    inv1 = lax.rsqrt(jnp.maximum(var1, 0.0) + BN_EPS) * g1
    y1 = (z1 - m1) * inv1 + be1          # bn1 output (also the residual)

    v = jnp.zeros((CB, M2, Hd), jnp.float32)
    z2s = []
    s2 = jnp.zeros((CB, 1, 1), jnp.float32)
    q2 = jnp.zeros((CB, 1, 1), jnp.float32)
    for t in range(T):                   # lif1 + fc2, accumulate bn2 stats
        v = v + (y1[t] - v) * (1.0 / TAU)
        sp = (v >= V_TH).astype(jnp.float32)
        v = v * (1.0 - sp)
        z2 = jnp.dot(sp.reshape(CB * M2, Hd).astype(jnp.bfloat16), w2_ref[...],
                     preferred_element_type=jnp.float32).reshape(CB, M2, Hd)
        z2 = z2 + b2_ref[...].reshape(1, 1, Hd)
        z2s.append(z2)
        s2 = s2 + jnp.sum(jnp.sum(z2, axis=2, keepdims=True), axis=1, keepdims=True)
        q2 = q2 + jnp.sum(jnp.sum(z2 * z2, axis=2, keepdims=True), axis=1, keepdims=True)
    m2 = s2 / cnt
    var2 = q2 / cnt - m2 * m2
    inv2 = lax.rsqrt(jnp.maximum(var2, 0.0) + BN_EPS) * g2

    v = jnp.zeros((CB, M2, Hd), jnp.float32)
    for t in range(T):                   # bn2 + residual + lif2
        y2 = (z2s[t] - m2) * inv2 + be2 + y1[t]
        v = v + (y2 - v) * (1.0 / TAU)
        sp = (v >= V_TH).astype(jnp.float32)
        v = v * (1.0 - sp)
        o_ref[t] = sp


def _outmix_kernel(xh_ref, xw_ref, xid_ref, wa_ref, wb_ref, wc_ref, boc_ref,
                   w1_ref, b1_ref, w2_ref, b2_ref, o_ref, st_ref):
    # Fused: out_conv (cat -> 1x1 conv, concat eliminated by splitting the weight)
    #        + the whole SNNChannelMixingBlock.  Also emits spike counts for the
    #        next block's pre-BN.
    T, TM, C = xh_ref.shape
    v1 = jnp.zeros((TM, C), jnp.float32)
    v2 = jnp.zeros((TM, C), jnp.float32)
    cnt = jnp.zeros((1, C), jnp.float32)
    for t in range(T):
        y = (jnp.dot(xh_ref[t].astype(jnp.bfloat16), wa_ref[...],
                     preferred_element_type=jnp.float32)
             + jnp.dot(xw_ref[t].astype(jnp.bfloat16), wb_ref[...],
                       preferred_element_type=jnp.float32)
             + jnp.dot(xid_ref[t].astype(jnp.bfloat16), wc_ref[...],
                       preferred_element_type=jnp.float32)
             + boc_ref[...])
        a = jnp.dot(y.astype(jnp.bfloat16), w1_ref[...],
                    preferred_element_type=jnp.float32) + b1_ref[...]
        v1 = v1 + (a - v1) * (1.0 / TAU)
        s1 = (v1 >= V_TH).astype(jnp.float32)
        v1 = v1 * (1.0 - s1)
        z = jnp.dot(s1.astype(jnp.bfloat16), w2_ref[...],
                    preferred_element_type=jnp.float32) + b2_ref[...] + a
        v2 = v2 + (z - v2) * (1.0 / TAU)
        s2 = (v2 >= V_TH).astype(jnp.float32)
        v2 = v2 * (1.0 - s2)
        o_ref[t] = s2
        cnt = cnt + jnp.sum(s2, axis=0, keepdims=True)
    st_ref[...] = cnt.reshape(1, 1, C)


# --------------------------------------------------------------------------
# pallas_call wrappers
# --------------------------------------------------------------------------

_PAR = pltpu.CompilerParams(dimension_semantics=("parallel",))


def pallas_linear_lif(x3, w, b=None):
    # x3: [T, M, K] -> spikes [T, M, N] and per-channel spike counts [N]
    T, M, K = x3.shape
    N = w.shape[1]
    TM = _row_tile(M)
    G = M // TM
    bias = (jnp.zeros((1, N), jnp.float32) if b is None
            else b.reshape(1, N).astype(jnp.float32))
    out, st = pl.pallas_call(
        _linear_lif_kernel,
        out_shape=(jax.ShapeDtypeStruct((T, M, N), jnp.float32),
                   jax.ShapeDtypeStruct((G, 1, N), jnp.float32)),
        grid=(G,),
        in_specs=[pl.BlockSpec((T, TM, K), lambda g: (0, g, 0)),
                  pl.BlockSpec((K, N), lambda g: (0, 0)),
                  pl.BlockSpec((1, N), lambda g: (0, 0))],
        out_specs=(pl.BlockSpec((T, TM, N), lambda g: (0, g, 0)),
                   pl.BlockSpec((1, 1, N), lambda g: (g, 0, 0))),
        compiler_params=_PAR,
    )(x3.astype(jnp.float32), w.astype(jnp.bfloat16), bias)
    return out, jnp.sum(st, axis=(0, 1))


def pallas_dwconv_bn(x4, scale, shift, dwk, dwb):
    # x4: [N, H, W, C] raw spikes; pre-BN scale/shift fused into the conv kernel
    N, H, W, C = x4.shape
    xp = jnp.pad(x4, ((0, 0), (1, 1), (1, 1), (0, 0)))
    mask = jnp.pad(jnp.ones((1, H, W, 1), jnp.float32),
                   ((0, 0), (1, 1), (1, 1), (0, 0)))
    NB = _img_tile(N, H, W, C)
    G = N // NB
    d, ss, sq = pl.pallas_call(
        _dwconv_kernel,
        out_shape=(jax.ShapeDtypeStruct((N, H, W, C), jnp.float32),
                   jax.ShapeDtypeStruct((G, 1, C), jnp.float32),
                   jax.ShapeDtypeStruct((G, 1, C), jnp.float32)),
        grid=(G,),
        in_specs=[pl.BlockSpec((NB, H + 2, W + 2, C), lambda g: (g, 0, 0, 0)),
                  pl.BlockSpec((1, H + 2, W + 2, 1), lambda g: (0, 0, 0, 0)),
                  pl.BlockSpec((1, C), lambda g: (0, 0)),
                  pl.BlockSpec((1, C), lambda g: (0, 0)),
                  pl.BlockSpec((9, C), lambda g: (0, 0)),
                  pl.BlockSpec((1, C), lambda g: (0, 0))],
        out_specs=(pl.BlockSpec((NB, H, W, C), lambda g: (g, 0, 0, 0)),
                   pl.BlockSpec((1, 1, C), lambda g: (g, 0, 0)),
                   pl.BlockSpec((1, 1, C), lambda g: (g, 0, 0))),
        compiler_params=_PAR,
    )(xp, mask,
      scale.reshape(1, C).astype(jnp.float32), shift.reshape(1, C).astype(jnp.float32),
      dwk.reshape(9, C).astype(jnp.float32), dwb.reshape(1, C).astype(jnp.float32))
    return d, jnp.sum(ss, axis=(0, 1)), jnp.sum(sq, axis=(0, 1))


def pallas_bnres_lif(x3, d3, s0, t0, s1, t1):
    T, M, C = x3.shape
    TM = _row_tile(M)
    G = M // TM
    return pl.pallas_call(
        _bnres_lif_kernel,
        out_shape=jax.ShapeDtypeStruct((T, M, C), jnp.float32),
        grid=(G,),
        in_specs=[pl.BlockSpec((T, TM, C), lambda g: (0, g, 0)),
                  pl.BlockSpec((T, TM, C), lambda g: (0, g, 0)),
                  pl.BlockSpec((1, C), lambda g: (0, 0)),
                  pl.BlockSpec((1, C), lambda g: (0, 0)),
                  pl.BlockSpec((1, C), lambda g: (0, 0)),
                  pl.BlockSpec((1, C), lambda g: (0, 0))],
        out_specs=pl.BlockSpec((T, TM, C), lambda g: (0, g, 0)),
        compiler_params=_PAR,
    )(x3, d3,
      s0.reshape(1, C).astype(jnp.float32), t0.reshape(1, C).astype(jnp.float32),
      s1.reshape(1, C).astype(jnp.float32), t1.reshape(1, C).astype(jnp.float32))


def pallas_mlp_block(xb, p):
    # xb: [T, C, M2, Hd] -> fully fused SNNMlpBlock, grid over channel blocks
    T, C, M2, Hd = xb.shape
    CB = _chan_tile(C, T, M2, Hd)
    G = C // CB
    return pl.pallas_call(
        _mlp_kernel,
        out_shape=jax.ShapeDtypeStruct((T, C, M2, Hd), jnp.float32),
        grid=(G,),
        in_specs=[pl.BlockSpec((T, CB, M2, Hd), lambda g: (0, g, 0, 0)),
                  pl.BlockSpec((Hd, Hd), lambda g: (0, 0)),
                  pl.BlockSpec((1, Hd), lambda g: (0, 0)),
                  pl.BlockSpec((C, 1), lambda g: (0, 0)),
                  pl.BlockSpec((C, 1), lambda g: (0, 0)),
                  pl.BlockSpec((Hd, Hd), lambda g: (0, 0)),
                  pl.BlockSpec((1, Hd), lambda g: (0, 0)),
                  pl.BlockSpec((C, 1), lambda g: (0, 0)),
                  pl.BlockSpec((C, 1), lambda g: (0, 0))],
        out_specs=pl.BlockSpec((T, CB, M2, Hd), lambda g: (0, g, 0, 0)),
        compiler_params=_PAR,
    )(xb,
      p['w1'].astype(jnp.bfloat16), p['b1'].reshape(1, Hd).astype(jnp.float32),
      p['g1'].reshape(C, 1).astype(jnp.float32), p['be1'].reshape(C, 1).astype(jnp.float32),
      p['w2'].astype(jnp.bfloat16), p['b2'].reshape(1, Hd).astype(jnp.float32),
      p['g2'].reshape(C, 1).astype(jnp.float32), p['be2'].reshape(C, 1).astype(jnp.float32))


def pallas_outmix(xh3, xw3, xid3, wa, wb, wc, boc, w1, b1, w2, b2):
    T, M, C = xh3.shape
    TM = _row_tile(M)
    G = M // TM
    rs = lambda: pl.BlockSpec((T, TM, C), lambda g: (0, g, 0))
    ws = lambda: pl.BlockSpec((C, C), lambda g: (0, 0))
    bs = lambda: pl.BlockSpec((1, C), lambda g: (0, 0))
    out, st = pl.pallas_call(
        _outmix_kernel,
        out_shape=(jax.ShapeDtypeStruct((T, M, C), jnp.float32),
                   jax.ShapeDtypeStruct((G, 1, C), jnp.float32)),
        grid=(G,),
        in_specs=[rs(), rs(), rs(), ws(), ws(), ws(), bs(), ws(), bs(), ws(), bs()],
        out_specs=(rs(), pl.BlockSpec((1, 1, C), lambda g: (g, 0, 0))),
        compiler_params=_PAR,
    )(xh3, xw3, xid3,
      wa.astype(jnp.bfloat16), wb.astype(jnp.bfloat16), wc.astype(jnp.bfloat16),
      boc.reshape(1, C).astype(jnp.float32),
      w1.astype(jnp.bfloat16), b1.reshape(1, C).astype(jnp.float32),
      w2.astype(jnp.bfloat16), b2.reshape(1, C).astype(jnp.float32))
    return out, jnp.sum(st, axis=(0, 1))


# --------------------------------------------------------------------------
# module forward (thin glue around the fused kernels)
# --------------------------------------------------------------------------

def _bn_affine(gamma, beta, mean, var):
    scale = gamma * lax.rsqrt(jnp.maximum(var, 0.0) + BN_EPS)
    shift = beta - mean * scale
    return scale, shift


def patch_merging(x, merge_w):
    # x: [T, B, C, H, W] -> channel-last spikes [T, B, H/2, W/2, 2C] + spike counts
    T, B, C, H, W = x.shape
    H2, W2 = H // 2, W // 2
    xc = jnp.transpose(x, (0, 1, 3, 4, 2))                 # [T,B,H,W,C]
    xc = xc.reshape(T, B, H2, 2, W2, 2, C)
    # flatten the 2x2 neighbourhood in torch.cat([x0,x1,x2,x3]) order: (wp, hp, c)
    xc = jnp.transpose(xc, (0, 1, 2, 4, 5, 3, 6)).reshape(T, B * H2 * W2, 4 * C)
    spikes, spike_sum = pallas_linear_lif(xc, merge_w, None)
    return spikes.reshape(T, B, H2, W2, 2 * C), spike_sum


def token_mixing(xcl, spike_sum, p):
    # xcl: channel-last spikes [T, B, H, W, C]; spike_sum: per-channel spike counts
    T, B, H, W, C = xcl.shape
    n_bn = float(T * B * H * W)
    # pre_bn batch stats (input is {0,1} -> E[x^2] == E[x], exact)
    mean0 = spike_sum / n_bn
    var0 = mean0 - mean0 * mean0
    s0, t0 = _bn_affine(p['pre_g'], p['pre_b'], mean0, var0)
    # depthwise 3x3 conv with fused pre-BN affine; also returns conv-output BN stats
    d4, dsum, dsq = pallas_dwconv_bn(xcl.reshape(T * B, H, W, C), s0, t0,
                                     p['dw_k'], p['dw_b'])
    dmean = dsum / n_bn
    dvar = dsq / n_bn - dmean * dmean
    s1, t1 = _bn_affine(p['dw_g'], p['dw_be'], dmean, dvar)
    # BN-apply + residual + LIF -> token-mixing spikes x_id
    M = B * H * W
    xid3 = pallas_bnres_lif(xcl.reshape(T, M, C), d4.reshape(T, M, C), s0, t0, s1, t1)
    xid = xid3.reshape(T, B, H, W, C)
    # fully fused MLP blocks over the two spatial axes (channel-blocked layout)
    xw_in = jnp.transpose(xid, (0, 4, 1, 2, 3)).reshape(T, C, B * H, W)
    x_w = pallas_mlp_block(xw_in, p['mlp_w']).reshape(T, C, B, H, W)
    x_w = jnp.transpose(x_w, (0, 2, 3, 4, 1))
    xh_in = jnp.transpose(xid, (0, 4, 1, 3, 2)).reshape(T, C, B * W, H)
    x_h = pallas_mlp_block(xh_in, p['mlp_h']).reshape(T, C, B, W, H)
    x_h = jnp.transpose(x_h, (0, 2, 4, 3, 1))
    return x_h, x_w, xid


def token_out_channel_mix(x_h, x_w, x_id, p_tok, p_ch):
    # Fused 1x1 out_conv (oc_w split per branch, no concat) + SNNChannelMixingBlock
    T, B, H, W, C = x_id.shape
    M = B * H * W
    out3, spike_sum = pallas_outmix(
        x_h.reshape(T, M, C), x_w.reshape(T, M, C), x_id.reshape(T, M, C),
        p_tok['oc_w'][0:C], p_tok['oc_w'][C:2 * C], p_tok['oc_w'][2 * C:3 * C],
        p_tok['oc_b'], p_ch['w1'], p_ch['b1'], p_ch['w2'], p_ch['b2'])
    return out3.reshape(T, B, H, W, C), spike_sum


def snn_stage_block(x, params):
    xcl, spike_sum = patch_merging(x, params['merge_w'])
    for blk in params['blocks']:
        x_h, x_w, x_id = token_mixing(xcl, spike_sum, blk['token'])
        xcl, spike_sum = token_out_channel_mix(x_h, x_w, x_id,
                                               blk['token'], blk['channel'])
    return jnp.transpose(xcl, (0, 1, 4, 2, 3))   # back to [T, B, 2C, H/2, W/2]


# --------------------------------------------------------------------------
# deterministic parameter initialization (mirrors the nn.Module shapes)
# --------------------------------------------------------------------------

def _linear_params(key, fan_in, fan_out, bias=True):
    k1, k2 = jax.random.split(key)
    bound = 1.0 / np.sqrt(fan_in)
    w = jax.random.uniform(k1, (fan_in, fan_out), jnp.float32, -bound, bound)
    b = (jax.random.uniform(k2, (fan_out,), jnp.float32, -bound, bound)
         if bias else None)
    return w, b


def _dwconv_params(key, C):
    k1, k2 = jax.random.split(key)
    bound = 1.0 / np.sqrt(9.0)   # groups=C -> fan_in = 1*3*3
    k = jax.random.uniform(k1, (3, 3, C), jnp.float32, -bound, bound)
    b = jax.random.uniform(k2, (C,), jnp.float32, -bound, bound)
    return k, b


def _mlp_params(key, hidden, C):
    k1, k2 = jax.random.split(key)
    w1, b1 = _linear_params(k1, hidden, hidden)
    w2, b2 = _linear_params(k2, hidden, hidden)
    return dict(w1=w1, b1=b1, g1=jnp.ones(C), be1=jnp.zeros(C),
                w2=w2, b2=b2, g2=jnp.ones(C), be2=jnp.zeros(C))


def init_params(key, height, width, channels, depth):
    H2, W2, C2 = height // 2, width // 2, channels * 2
    keys = jax.random.split(key, 1 + depth)
    merge_w, _ = _linear_params(keys[0], 4 * channels, 2 * channels, bias=False)
    blocks = []
    for d in range(depth):
        bk = jax.random.split(keys[1 + d], 6)
        dw_k, dw_b = _dwconv_params(bk[0], C2)
        oc_w, oc_b = _linear_params(bk[1], 3 * C2, C2)
        token = dict(pre_g=jnp.ones(C2), pre_b=jnp.zeros(C2),
                     dw_k=dw_k, dw_b=dw_b,
                     dw_g=jnp.ones(C2), dw_be=jnp.zeros(C2),
                     mlp_h=_mlp_params(bk[2], H2, C2),
                     mlp_w=_mlp_params(bk[3], W2, C2),
                     oc_w=oc_w, oc_b=oc_b)
        cw1, cb1 = _linear_params(bk[4], C2, C2)
        cw2, cb2 = _linear_params(bk[5], C2, C2)
        channel = dict(w1=cw1, b1=cb1, w2=cw2, b2=cb2)
        blocks.append(dict(token=token, channel=channel))
    return dict(merge_w=merge_w, blocks=blocks)


# --------------------------------------------------------------------------

if __name__ == "__main__":
    T, B, C, H, W, DEPTH = 2, 2, 4, 16, 16, 1
    key = jax.random.PRNGKey(0)
    kx, kp = jax.random.split(key)
    # feature_map: [T, B, C, H, W]  (time-major NCHW, spikingjelly multi-step)
    feature_map = jax.random.normal(kx, (T, B, C, H, W), jnp.float32) * 3.0
    params = init_params(kp, H, W, C, DEPTH)

    fwd = jax.jit(snn_stage_block)
    out = jax.block_until_ready(fwd(feature_map, params))

    assert out.shape == (T, B, 2 * C, H // 2, W // 2), out.shape
    assert out.dtype == jnp.float32
    assert bool(jnp.all(jnp.isfinite(out)))
    print("KERNEL_OK")
</pallas_src>

<mosaic_0001>
module attributes {stable_mosaic.version = 11 : i64} {
  func.func @_dwconv_kernel(%arg0: i32, %arg1: memref<4x10x10x8xf32, #tpu.memory_space<vmem>>, %arg2: memref<1x10x10x1xf32, #tpu.memory_space<vmem>>, %arg3: memref<1x8xf32, #tpu.memory_space<vmem>>, %arg4: memref<1x8xf32, #tpu.memory_space<vmem>>, %arg5: memref<9x8xf32, #tpu.memory_space<vmem>>, %arg6: memref<1x8xf32, #tpu.memory_space<vmem>>, %arg7: memref<4x8x8x8xf32, #tpu.memory_space<vmem>>, %arg8: memref<1x1x8xf32, #tpu.memory_space<vmem>>, %arg9: memref<1x1x8xf32, #tpu.memory_space<vmem>>) attributes {dimension_semantics = [#tpu.dimension_semantics<parallel>], iteration_bounds = array<i64: 1>, scalar_prefetch = 0 : i64, scratch_operands = 0 : i64, tpu.core_type = #tpu.core_type<tc>, window_params = [{transform_indices = @transform_0, window_bounds = array<i64: 4, 10, 10, 8>}, {pipeline_mode = #tpu.pipeline_mode<synchronous>, transform_indices = @transform_1, window_bounds = array<i64: 1, 10, 10, 1>}, {pipeline_mode = #tpu.pipeline_mode<synchronous>, transform_indices = @transform_2, window_bounds = array<i64: 1, 8>}, {pipeline_mode = #tpu.pipeline_mode<synchronous>, transform_indices = @transform_3, window_bounds = array<i64: 1, 8>}, {pipeline_mode = #tpu.pipeline_mode<synchronous>, transform_indices = @transform_4, window_bounds = array<i64: 9, 8>}, {pipeline_mode = #tpu.pipeline_mode<synchronous>, transform_indices = @transform_5, window_bounds = array<i64: 1, 8>}, {transform_indices = @transform_6, window_bounds = array<i64: 4, 8, 8, 8>}, {transform_indices = @transform_7, window_bounds = array<i64: 1, 1, 8>}, {transform_indices = @transform_8, window_bounds = array<i64: 1, 1, 8>}]} {
    %c0 = arith.constant 0 : index
    %c0_0 = arith.constant 0 : index
    %0 = vector.load %arg3[%c0, %c0_0] : memref<1x8xf32, #tpu.memory_space<vmem>>, vector<1x8xf32>
    %1 = vector.shape_cast %0 : vector<1x8xf32> to vector<1x1x1x8xf32>
    %c0_1 = arith.constant 0 : index
    %c0_2 = arith.constant 0 : index
    %2 = vector.load %arg4[%c0_1, %c0_2] : memref<1x8xf32, #tpu.memory_space<vmem>>, vector<1x8xf32>
    %3 = vector.shape_cast %2 : vector<1x8xf32> to vector<1x1x1x8xf32>
    %c0_3 = arith.constant 0 : index
    %c0_4 = arith.constant 0 : index
    %c0_5 = arith.constant 0 : index
    %c0_6 = arith.constant 0 : index
    %4 = vector.load %arg1[%c0_3, %c0_4, %c0_5, %c0_6] : memref<4x10x10x8xf32, #tpu.memory_space<vmem>>, vector<4x10x10x8xf32>
    %5 = vector.broadcast %1 : vector<1x1x1x8xf32> to vector<4x10x10x8xf32>
    %6 = arith.mulf %4, %5 : vector<4x10x10x8xf32>
    %c0_7 = arith.constant 0 : index
    %c0_8 = arith.constant 0 : index
    %c0_9 = arith.constant 0 : index
    %c0_10 = arith.constant 0 : index
    %7 = vector.load %arg2[%c0_7, %c0_8, %c0_9, %c0_10] : memref<1x10x10x1xf32, #tpu.memory_space<vmem>>, vector<1x10x10x1xf32>
    %8 = vector.broadcast %3 : vector<1x1x1x8xf32> to vector<1x10x10x8xf32>
    %9 = vector.broadcast %7 : vector<1x10x10x1xf32> to vector<1x10x10x8xf32>
    %10 = arith.mulf %8, %9 : vector<1x10x10x8xf32>
    %11 = vector.broadcast %10 : vector<1x10x10x8xf32> to vector<4x10x10x8xf32>
    %12 = arith.addf %6, %11 : vector<4x10x10x8xf32>
    %c0_11 = arith.constant 0 : index
    %c0_12 = arith.constant 0 : index
    %13 = vector.load %arg5[%c0_11, %c0_12] : memref<9x8xf32, #tpu.memory_space<vmem>>, vector<9x8xf32>
    %cst = arith.constant 0.000000e+00 : f32
    %14 = vector.broadcast %cst : f32 to vector<4x8x8x8xf32>
    %c0_13 = arith.constant 0 : index
    %c0_14 = arith.constant 0 : index
    %15 = vector.load %arg6[%c0_13, %c0_14] : memref<1x8xf32, #tpu.memory_space<vmem>>, vector<1x8xf32>
    %16 = vector.shape_cast %15 : vector<1x8xf32> to vector<1x1x1x8xf32>
    %17 = vector.broadcast %16 : vector<1x1x1x8xf32> to vector<4x8x8x8xf32>
    %18 = arith.addf %14, %17 : vector<4x8x8x8xf32>
    %19 = vector.extract_strided_slice %13 {offsets = [0, 0], sizes = [1, 8], strides = [1, 1]} : vector<9x8xf32> to vector<1x8xf32>
    %20 = vector.shape_cast %19 : vector<1x8xf32> to vector<1x1x1x8xf32>
    %21 = vector.extract_strided_slice %12 {offsets = [0, 0, 0, 0], sizes = [4, 8, 8, 8], strides = [1, 1, 1, 1]} : vector<4x10x10x8xf32> to vector<4x8x8x8xf32>
    %22 = vector.broadcast %20 : vector<1x1x1x8xf32> to vector<4x8x8x8xf32>
    %23 = arith.mulf %21, %22 : vector<4x8x8x8xf32>
    %24 = arith.addf %18, %23 : vector<4x8x8x8xf32>
    %25 = vector.extract_strided_slice %13 {offsets = [1, 0], sizes = [1, 8], strides = [1, 1]} : vector<9x8xf32> to vector<1x8xf32>
    %26 = vector.shape_cast %25 : vector<1x8xf32> to vector<1x1x1x8xf32>
    %27 = vector.extract_strided_slice %12 {offsets = [0, 0, 1, 0], sizes = [4, 8, 8, 8], strides = [1, 1, 1, 1]} : vector<4x10x10x8xf32> to vector<4x8x8x8xf32>
    %28 = vector.broadcast %26 : vector<1x1x1x8xf32> to vector<4x8x8x8xf32>
    %29 = arith.mulf %27, %28 : vector<4x8x8x8xf32>
    %30 = arith.addf %24, %29 : vector<4x8x8x8xf32>
    %31 = vector.extract_strided_slice %13 {offsets = [2, 0], sizes = [1, 8], strides = [1, 1]} : vector<9x8xf32> to vector<1x8xf32>
    %32 = vector.shape_cast %31 : vector<1x8xf32> to vector<1x1x1x8xf32>
    %33 = vector.extract_strided_slice %12 {offsets = [0, 0, 2, 0], sizes = [4, 8, 8, 8], strides = [1, 1, 1, 1]} : vector<4x10x10x8xf32> to vector<4x8x8x8xf32>
    %34 = vector.broadcast %32 : vector<1x1x1x8xf32> to vector<4x8x8x8xf32>
    %35 = arith.mulf %33, %34 : vector<4x8x8x8xf32>
    %36 = arith.addf %30, %35 : vector<4x8x8x8xf32>
    %37 = vector.extract_strided_slice %13 {offsets = [3, 0], sizes = [1, 8], strides = [1, 1]} : vector<9x8xf32> to vector<1x8xf32>
    %38 = vector.shape_cast %37 : vector<1x8xf32> to vector<1x1x1x8xf32>
    %39 = vector.extract_strided_slice %12 {offsets = [0, 1, 0, 0], sizes = [4, 8, 8, 8], strides = [1, 1, 1, 1]} : vector<4x10x10x8xf32> to vector<4x8x8x8xf32>
    %40 = vector.broadcast %38 : vector<1x1x1x8xf32> to vector<4x8x8x8xf32>
    %41 = arith.mulf %39, %40 : vector<4x8x8x8xf32>
    %42 = arith.addf %36, %41 : vector<4x8x8x8xf32>
    %43 = vector.extract_strided_slice %13 {offsets = [4, 0], sizes = [1, 8], strides = [1, 1]} : vector<9x8xf32> to vector<1x8xf32>
    %44 = vector.shape_cast %43 : vector<1x8xf32> to vector<1x1x1x8xf32>
    %45 = vector.extract_strided_slice %12 {offsets = [0, 1, 1, 0], sizes = [4, 8, 8, 8], strides = [1, 1, 1, 1]} : vector<4x10x10x8xf32> to vector<4x8x8x8xf32>
    %46 = vector.broadcast %44 : vector<1x1x1x8xf32> to vector<4x8x8x8xf32>
    %47 = arith.mulf %45, %46 : vector<4x8x8x8xf32>
    %48 = arith.addf %42, %47 : vector<4x8x8x8xf32>
    %49 = vector.extract_strided_slice %13 {offsets = [5, 0], sizes = [1, 8], strides = [1, 1]} : vector<9x8xf32> to vector<1x8xf32>
    %50 = vector.shape_cast %49 : vector<1x8xf32> to vector<1x1x1x8xf32>
    %51 = vector.extract_strided_slice %12 {offsets = [0, 1, 2, 0], sizes = [4, 8, 8, 8], strides = [1, 1, 1, 1]} : vector<4x10x10x8xf32> to vector<4x8x8x8xf32>
    %52 = vector.broadcast %50 : vector<1x1x1x8xf32> to vector<4x8x8x8xf32>
    %53 = arith.mulf %51, %52 : vector<4x8x8x8xf32>
    %54 = arith.addf %48, %53 : vector<4x8x8x8xf32>
    %55 = vector.extract_strided_slice %13 {offsets = [6, 0], sizes = [1, 8], strides = [1, 1]} : vector<9x8xf32> to vector<1x8xf32>
    %56 = vector.shape_cast %55 : vector<1x8xf32> to vector<1x1x1x8xf32>
    %57 = vector.extract_strided_slice %12 {offsets = [0, 2, 0, 0], sizes = [4, 8, 8, 8], strides = [1, 1, 1, 1]} : vector<4x10x10x8xf32> to vector<4x8x8x8xf32>
    %58 = vector.broadcast %56 : vector<1x1x1x8xf32> to vector<4x8x8x8xf32>
    %59 = arith.mulf %57, %58 : vector<4x8x8x8xf32>
    %60 = arith.addf %54, %59 : vector<4x8x8x8xf32>
    %61 = vector.extract_strided_slice %13 {offsets = [7, 0], sizes = [1, 8], strides = [1, 1]} : vector<9x8xf32> to vector<1x8xf32>
    %62 = vector.shape_cast %61 : vector<1x8xf32> to vector<1x1x1x8xf32>
    %63 = vector.extract_strided_slice %12 {offsets = [0, 2, 1, 0], sizes = [4, 8, 8, 8], strides = [1, 1, 1, 1]} : vector<4x10x10x8xf32> to vector<4x8x8x8xf32>
    %64 = vector.broadcast %62 : vector<1x1x1x8xf32> to vector<4x8x8x8xf32>
    %65 = arith.mulf %63, %64 : vector<4x8x8x8xf32>
    %66 = arith.addf %60, %65 : vector<4x8x8x8xf32>
    %67 = vector.extract_strided_slice %13 {offsets = [8, 0], sizes = [1, 8], strides = [1, 1]} : vector<9x8xf32> to vector<1x8xf32>
    %68 = vector.shape_cast %67 : vector<1x8xf32> to vector<1x1x1x8xf32>
    %69 = vector.extract_strided_slice %12 {offsets = [0, 2, 2, 0], sizes = [4, 8, 8, 8], strides = [1, 1, 1, 1]} : vector<4x10x10x8xf32> to vector<4x8x8x8xf32>
    %70 = vector.broadcast %68 : vector<1x1x1x8xf32> to vector<4x8x8x8xf32>
    %71 = arith.mulf %69, %70 : vector<4x8x8x8xf32>
    %72 = arith.addf %66, %71 : vector<4x8x8x8xf32>
    %c0_15 = arith.constant 0 : index
    %c0_16 = arith.constant 0 : index
    %c0_17 = arith.constant 0 : index
    %c0_18 = arith.constant 0 : index
    %73 = vector.load %arg7[%c0_15, %c0_16, %c0_17, %c0_18] : memref<4x8x8x8xf32, #tpu.memory_space<vmem>>, vector<4x8x8x8xf32>
    tpu.vector_store %arg7[%c0_15, %c0_16, %c0_17, %c0_18], %72 {strides = array<i32>} : memref<4x8x8x8xf32, #tpu.memory_space<vmem>>, vector<4x8x8x8xf32>,
    %cst_19 = arith.constant dense<0.000000e+00> : vector<4x8x8xf32>
    %74 = vector.multi_reduction <add>, %72, %cst_19 [2] : vector<4x8x8x8xf32> to vector<4x8x8xf32>
    %75 = vector.shape_cast %74 : vector<4x8x8xf32> to vector<4x8x1x8xf32>
    %cst_20 = arith.constant dense<0.000000e+00> : vector<4x1x8xf32>
    %76 = vector.multi_reduction <add>, %75, %cst_20 [1] : vector<4x8x1x8xf32> to vector<4x1x8xf32>
    %77 = vector.shape_cast %76 : vector<4x1x8xf32> to vector<4x1x1x8xf32>
    %cst_21 = arith.constant dense<0.000000e+00> : vector<1x1x8xf32>
    %78 = vector.multi_reduction <add>, %77, %cst_21 [0] : vector<4x1x1x8xf32> to vector<1x1x8xf32>
    %79 = vector.shape_cast %78 : vector<1x1x8xf32> to vector<1x1x1x8xf32>
    %80 = arith.mulf %72, %72 : vector<4x8x8x8xf32>
    %cst_22 = arith.constant dense<0.000000e+00> : vector<4x8x8xf32>
    %81 = vector.multi_reduction <add>, %80, %cst_22 [2] : vector<4x8x8x8xf32> to vector<4x8x8xf32>
    %82 = vector.shape_cast %81 : vector<4x8x8xf32> to vector<4x8x1x8xf32>
    %cst_23 = arith.constant dense<0.000000e+00> : vector<4x1x8xf32>
    %83 = vector.multi_reduction <add>, %82, %cst_23 [1] : vector<4x8x1x8xf32> to vector<4x1x8xf32>
    %84 = vector.shape_cast %83 : vector<4x1x8xf32> to vector<4x1x1x8xf32>
    %cst_24 = arith.constant dense<0.000000e+00> : vector<1x1x8xf32>
    %85 = vector.multi_reduction <add>, %84, %cst_24 [0] : vector<4x1x1x8xf32> to vector<1x1x8xf32>
    %86 = vector.shape_cast %85 : vector<1x1x8xf32> to vector<1x1x1x8xf32>
    %87 = vector.shape_cast %79 : vector<1x1x1x8xf32> to vector<1x1x8xf32>
    %c0_25 = arith.constant 0 : index
    %c0_26 = arith.constant 0 : index
    %c0_27 = arith.constant 0 : index
    %88 = vector.load %arg8[%c0_25, %c0_26, %c0_27] : memref<1x1x8xf32, #tpu.memory_space<vmem>>, vector<1x1x8xf32>
    tpu.vector_store %arg8[%c0_25, %c0_26, %c0_27], %87 {strides = array<i32>} : memref<1x1x8xf32, #tpu.memory_space<vmem>>, vector<1x1x8xf32>,
    %89 = vector.shape_cast %86 : vector<1x1x1x8xf32> to vector<1x1x8xf32>
    %c0_28 = arith.constant 0 : index
    %c0_29 = arith.constant 0 : index
    %c0_30 = arith.constant 0 : index
    %90 = vector.load %arg9[%c0_28, %c0_29, %c0_30] : memref<1x1x8xf32, #tpu.memory_space<vmem>>, vector<1x1x8xf32>
    tpu.vector_store %arg9[%c0_28, %c0_29, %c0_30], %89 {strides = array<i32>} : memref<1x1x8xf32, #tpu.memory_space<vmem>>, vector<1x1x8xf32>,
    return
  }
  func.func @transform_0(%arg0: i32) -> (i32, i32, i32, i32) {
    %c0_i32 = arith.constant 0 : i32
    %c0_i32_0 = arith.constant 0 : i32
    %c0_i32_1 = arith.constant 0 : i32
    %c0_i32_2 = arith.constant 0 : i32
    return %arg0, %c0_i32, %c0_i32_0, %c0_i32_1 : i32, i32, i32, i32
  }
  func.func @transform_1(%arg0: i32) -> (i32, i32, i32, i32) {
    %c0_i32 = arith.constant 0 : i32
    %c0_i32_0 = arith.constant 0 : i32
    %c0_i32_1 = arith.constant 0 : i32
    %c0_i32_2 = arith.constant 0 : i32
    %c0_i32_3 = arith.constant 0 : i32
    return %c0_i32, %c0_i32_0, %c0_i32_1, %c0_i32_2 : i32, i32, i32, i32
  }
  func.func @transform_2(%arg0: i32) -> (i32, i32) {
    %c0_i32 = arith.constant 0 : i32
    %c0_i32_0 = arith.constant 0 : i32
    %c0_i32_1 = arith.constant 0 : i32
    return %c0_i32, %c0_i32_0 : i32, i32
  }
  func.func @transform_3(%arg0: i32) -> (i32, i32) {
    %c0_i32 = arith.constant 0 : i32
    %c0_i32_0 = arith.constant 0 : i32
    %c0_i32_1 = arith.constant 0 : i32
    return %c0_i32, %c0_i32_0 : i32, i32
  }
  func.func @transform_4(%arg0: i32) -> (i32, i32) {
    %c0_i32 = arith.constant 0 : i32
    %c0_i32_0 = arith.constant 0 : i32
    %c0_i32_1 = arith.constant 0 : i32
    return %c0_i32, %c0_i32_0 : i32, i32
  }
  func.func @transform_5(%arg0: i32) -> (i32, i32) {
    %c0_i32 = arith.constant 0 : i32
    %c0_i32_0 = arith.constant 0 : i32
    %c0_i32_1 = arith.constant 0 : i32
    return %c0_i32, %c0_i32_0 : i32, i32
  }
  func.func @transform_6(%arg0: i32) -> (i32, i32, i32, i32) {
    %c0_i32 = arith.constant 0 : i32
    %c0_i32_0 = arith.constant 0 : i32
    %c0_i32_1 = arith.constant 0 : i32
    %c0_i32_2 = arith.constant 0 : i32
    return %arg0, %c0_i32, %c0_i32_0, %c0_i32_1 : i32, i32, i32, i32
  }
  func.func @transform_7(%arg0: i32) -> (i32, i32, i32) {
    %c0_i32 = arith.constant 0 : i32
    %c0_i32_0 = arith.constant 0 : i32
    %c0_i32_1 = arith.constant 0 : i32
    return %arg0, %c0_i32, %c0_i32_0 : i32, i32, i32
  }
  func.func @transform_8(%arg0: i32) -> (i32, i32, i32) {
    %c0_i32 = arith.constant 0 : i32
    %c0_i32_0 = arith.constant 0 : i32
    %c0_i32_1 = arith.constant 0 : i32
    return %arg0, %c0_i32, %c0_i32_0 : i32, i32, i32
  }
}

module attributes {stable_mosaic.version = 11 : i64} {
  func.func @_linear_lif_kernel(%arg0: i32, %arg1: memref<2x128x16xf32, #tpu.memory_space<vmem>>, %arg2: memref<16x8xbf16, #tpu.memory_space<vmem>>, %arg3: memref<1x8xf32, #tpu.memory_space<vmem>>, %arg4: memref<2x128x8xf32, #tpu.memory_space<vmem>>, %arg5: memref<1x1x8xf32, #tpu.memory_space<vmem>>) attributes {dimension_semantics = [#tpu.dimension_semantics<parallel>], iteration_bounds = array<i64: 1>, scalar_prefetch = 0 : i64, scratch_operands = 0 : i64, tpu.core_type = #tpu.core_type<tc>, window_params = [{transform_indices = @transform_0, window_bounds = array<i64: 2, 128, 16>}, {pipeline_mode = #tpu.pipeline_mode<synchronous>, transform_indices = @transform_1, window_bounds = array<i64: 16, 8>}, {pipeline_mode = #tpu.pipeline_mode<synchronous>, transform_indices = @transform_2, window_bounds = array<i64: 1, 8>}, {transform_indices = @transform_3, window_bounds = array<i64: 2, 128, 8>}, {transform_indices = @transform_4, window_bounds = array<i64: 1, 1, 8>}]} {
    %cst = arith.constant 0.000000e+00 : f32
    %0 = vector.broadcast %cst : f32 to vector<128x8xf32>
    %cst_0 = arith.constant 0.000000e+00 : f32
    %1 = vector.broadcast %cst_0 : f32 to vector<1x8xf32>
    %c0 = arith.constant 0 : index
    %c0_1 = arith.constant 0 : index
    %c0_2 = arith.constant 0 : index
    %2 = vector.load %arg1[%c0, %c0_1, %c0_2] : memref<2x128x16xf32, #tpu.memory_space<vmem>>, vector<1x128x16xf32>
    %3 = vector.shape_cast %2 : vector<1x128x16xf32> to vector<128x16xf32>
    %4 = arith.truncf %3 : vector<128x16xf32> to vector<128x16xbf16>
    %c0_3 = arith.constant 0 : index
    %c0_4 = arith.constant 0 : index
    %5 = vector.load %arg2[%c0_3, %c0_4] : memref<16x8xbf16, #tpu.memory_space<vmem>>, vector<16x8xbf16>
    %cst_5 = arith.constant dense<0.000000e+00> : vector<128x8xf32>
    %6 = tpu.matmul %4, %5, %cst_5 {dimension_numbers = #tpu.dot_dimension_numbers<[1], [0], [0], [1], [0, 0, 1, 1], [], []>} : vector<128x16xbf16>, vector<16x8xbf16>, vector<128x8xf32> -> vector<128x8xf32>
    %c0_6 = arith.constant 0 : index
    %c0_7 = arith.constant 0 : index
    %7 = vector.load %arg3[%c0_6, %c0_7] : memref<1x8xf32, #tpu.memory_space<vmem>>, vector<1x8xf32>
    %8 = vector.broadcast %7 : vector<1x8xf32> to vector<128x8xf32>
    %9 = arith.addf %6, %8 : vector<128x8xf32>
    %10 = arith.subf %9, %0 : vector<128x8xf32>
    %cst_8 = arith.constant 5.000000e-01 : f32
    %11 = vector.broadcast %cst_8 : f32 to vector<128x8xf32>
    %12 = arith.mulf %10, %11 : vector<128x8xf32>
    %13 = arith.addf %0, %12 : vector<128x8xf32>
    %cst_9 = arith.constant 1.000000e+00 : f32
    %14 = vector.broadcast %cst_9 : f32 to vector<128x8xf32>
    %15 = arith.cmpf oge, %13, %14 : vector<128x8xf32>
    %16 = arith.extui %15 : vector<128x8xi1> to vector<128x8xi32>
    %17 = arith.sitofp %16 : vector<128x8xi32> to vector<128x8xf32>
    %c0_10 = arith.constant 0 : index
    %c0_11 = arith.constant 0 : index
    %c0_12 = arith.constant 0 : index
    %18 = vector.load %arg4[%c0_10, %c0_11, %c0_12] : memref<2x128x8xf32, #tpu.memory_space<vmem>>, vector<1x128x8xf32>
    %19 = vector.shape_cast %18 : vector<1x128x8xf32> to vector<128x8xf32>
    %20 = vector.shape_cast %17 : vector<128x8xf32> to vector<1x128x8xf32>
    tpu.vector_store %arg4[%c0_10, %c0_11, %c0_12], %20 {strides = array<i32>} : memref<2x128x8xf32, #tpu.memory_space<vmem>>, vector<1x128x8xf32>,
    %cst_13 = arith.constant 1.000000e+00 : f32
    %21 = vector.broadcast %cst_13 : f32 to vector<128x8xf32>
    %22 = arith.subf %21, %17 : vector<128x8xf32>
    %23 = arith.mulf %13, %22 : vector<128x8xf32>
    %cst_14 = arith.constant dense<0.000000e+00> : vector<8xf32>
    %24 = vector.multi_reduction <add>, %17, %cst_14 [0] : vector<128x8xf32> to vector<8xf32>
    %25 = vector.shape_cast %24 : vector<8xf32> to vector<1x8xf32>
    %26 = arith.addf %1, %25 : vector<1x8xf32>
    %c1 = arith.constant 1 : index
    %c0_15 = arith.constant 0 : index
    %c0_16 = arith.constant 0 : index
    %27 = vector.load %arg1[%c1, %c0_15, %c0_16] : memref<2x128x16xf32, #tpu.memory_space<vmem>>, vector<1x128x16xf32>
    %28 = vector.shape_cast %27 : vector<1x128x16xf32> to vector<128x16xf32>
    %29 = arith.truncf %28 : vector<128x16xf32> to vector<128x16xbf16>
    %c0_17 = arith.constant 0 : index
    %c0_18 = arith.constant 0 : index
    %30 = vector.load %arg2[%c0_17, %c0_18] : memref<16x8xbf16, #tpu.memory_space<vmem>>, vector<16x8xbf16>
    %cst_19 = arith.constant dense<0.000000e+00> : vector<128x8xf32>
    %31 = tpu.matmul %29, %30, %cst_19 {dimension_numbers = #tpu.dot_dimension_numbers<[1], [0], [0], [1], [0, 0, 1, 1], [], []>} : vector<128x16xbf16>, vector<16x8xbf16>, vector<128x8xf32> -> vector<128x8xf32>
    %c0_20 = arith.constant 0 : index
    %c0_21 = arith.constant 0 : index
    %32 = vector.load %arg3[%c0_20, %c0_21] : memref<1x8xf32, #tpu.memory_space<vmem>>, vector<1x8xf32>
    %33 = vector.broadcast %32 : vector<1x8xf32> to vector<128x8xf32>
    %34 = arith.addf %31, %33 : vector<128x8xf32>
    %35 = arith.subf %34, %23 : vector<128x8xf32>
    %cst_22 = arith.constant 5.000000e-01 : f32
    %36 = vector.broadcast %cst_22 : f32 to vector<128x8xf32>
    %37 = arith.mulf %35, %36 : vector<128x8xf32>
    %38 = arith.addf %23, %37 : vector<128x8xf32>
    %cst_23 = arith.constant 1.000000e+00 : f32
    %39 = vector.broadcast %cst_23 : f32 to vector<128x8xf32>
    %40 = arith.cmpf oge, %38, %39 : vector<128x8xf32>
    %41 = arith.extui %40 : vector<128x8xi1> to vector<128x8xi32>
    %42 = arith.sitofp %41 : vector<128x8xi32> to vector<128x8xf32>
    %c1_24 = arith.constant 1 : index
    %c0_25 = arith.constant 0 : index
    %c0_26 = arith.constant 0 : index
    %43 = vector.load %arg4[%c1_24, %c0_25, %c0_26] : memref<2x128x8xf32, #tpu.memory_space<vmem>>, vector<1x128x8xf32>
    %44 = vector.shape_cast %43 : vector<1x128x8xf32> to vector<128x8xf32>
    %45 = vector.shape_cast %42 : vector<128x8xf32> to vector<1x128x8xf32>
    tpu.vector_store %arg4[%c1_24, %c0_25, %c0_26], %45 {strides = array<i32>} : memref<2x128x8xf32, #tpu.memory_space<vmem>>, vector<1x128x8xf32>,
    %cst_27 = arith.constant dense<0.000000e+00> : vector<8xf32>
    %46 = vector.multi_reduction <add>, %42, %cst_27 [0] : vector<128x8xf32> to vector<8xf32>
    %47 = vector.shape_cast %46 : vector<8xf32> to vector<1x8xf32>
    %48 = arith.addf %26, %47 : vector<1x8xf32>
    %49 = vector.shape_cast %48 : vector<1x8xf32> to vector<1x1x8xf32>
    %c0_28 = arith.constant 0 : index
    %c0_29 = arith.constant 0 : index
    %c0_30 = arith.constant 0 : index
    %50 = vector.load %arg5[%c0_28, %c0_29, %c0_30] : memref<1x1x8xf32, #tpu.memory_space<vmem>>, vector<1x1x8xf32>
    tpu.vector_store %arg5[%c0_28, %c0_29, %c0_30], %49 {strides = array<i32>} : memref<1x1x8xf32, #tpu.memory_space<vmem>>, vector<1x1x8xf32>,
    return
  }
  func.func @transform_0(%arg0: i32) -> (i32, i32, i32) {
    %c0_i32 = arith.constant 0 : i32
    %c0_i32_0 = arith.constant 0 : i32
    %c0_i32_1 = arith.constant 0 : i32
    return %c0_i32, %arg0, %c0_i32_0 : i32, i32, i32
  }
  func.func @transform_1(%arg0: i32) -> (i32, i32) {
    %c0_i32 = arith.constant 0 : i32
    %c0_i32_0 = arith.constant 0 : i32
    %c0_i32_1 = arith.constant 0 : i32
    return %c0_i32, %c0_i32_0 : i32, i32
  }
  func.func @transform_2(%arg0: i32) -> (i32, i32) {
    %c0_i32 = arith.constant 0 : i32
    %c0_i32_0 = arith.constant 0 : i32
    %c0_i32_1 = arith.constant 0 : i32
    return %c0_i32, %c0_i32_0 : i32, i32
  }
  func.func @transform_3(%arg0: i32) -> (i32, i32, i32) {
    %c0_i32 = arith.constant 0 : i32
    %c0_i32_0 = arith.constant 0 : i32
    %c0_i32_1 = arith.constant 0 : i32
    return %c0_i32, %arg0, %c0_i32_0 : i32, i32, i32
  }
  func.func @transform_4(%arg0: i32) -> (i32, i32, i32) {
    %c0_i32 = arith.constant 0 : i32
    %c0_i32_0 = arith.constant 0 : i32
    %c0_i32_1 = arith.constant 0 : i32
    return %arg0, %c0_i32, %c0_i32_0 : i32, i32, i32
  }
}

module attributes {stable_mosaic.version = 11 : i64} {
  func.func @_bnres_lif_kernel(%arg0: i32, %arg1: memref<2x128x8xf32, #tpu.memory_space<vmem>>, %arg2: memref<2x128x8xf32, #tpu.memory_space<vmem>>, %arg3: memref<1x8xf32, #tpu.memory_space<vmem>>, %arg4: memref<1x8xf32, #tpu.memory_space<vmem>>, %arg5: memref<1x8xf32, #tpu.memory_space<vmem>>, %arg6: memref<1x8xf32, #tpu.memory_space<vmem>>, %arg7: memref<2x128x8xf32, #tpu.memory_space<vmem>>) attributes {dimension_semantics = [#tpu.dimension_semantics<parallel>], iteration_bounds = array<i64: 1>, scalar_prefetch = 0 : i64, scratch_operands = 0 : i64, tpu.core_type = #tpu.core_type<tc>, window_params = [{transform_indices = @transform_0, window_bounds = array<i64: 2, 128, 8>}, {transform_indices = @transform_1, window_bounds = array<i64: 2, 128, 8>}, {pipeline_mode = #tpu.pipeline_mode<synchronous>, transform_indices = @transform_2, window_bounds = array<i64: 1, 8>}, {pipeline_mode = #tpu.pipeline_mode<synchronous>, transform_indices = @transform_3, window_bounds = array<i64: 1, 8>}, {pipeline_mode = #tpu.pipeline_mode<synchronous>, transform_indices = @transform_4, window_bounds = array<i64: 1, 8>}, {pipeline_mode = #tpu.pipeline_mode<synchronous>, transform_indices = @transform_5, window_bounds = array<i64: 1, 8>}, {transform_indices = @transform_6, window_bounds = array<i64: 2, 128, 8>}]} {
    %cst = arith.constant 0.000000e+00 : f32
    %0 = vector.broadcast %cst : f32 to vector<128x8xf32>
    %c0 = arith.constant 0 : index
    %c0_0 = arith.constant 0 : index
    %c0_1 = arith.constant 0 : index
    %1 = vector.load %arg1[%c0, %c0_0, %c0_1] : memref<2x128x8xf32, #tpu.memory_space<vmem>>, vector<1x128x8xf32>
    %2 = vector.shape_cast %1 : vector<1x128x8xf32> to vector<128x8xf32>
    %c0_2 = arith.constant 0 : index
    %c0_3 = arith.constant 0 : index
    %3 = vector.load %arg3[%c0_2, %c0_3] : memref<1x8xf32, #tpu.memory_space<vmem>>, vector<1x8xf32>
    %4 = vector.broadcast %3 : vector<1x8xf32> to vector<128x8xf32>
    %5 = arith.mulf %2, %4 : vector<128x8xf32>
    %c0_4 = arith.constant 0 : index
    %c0_5 = arith.constant 0 : index
    %6 = vector.load %arg4[%c0_4, %c0_5] : memref<1x8xf32, #tpu.memory_space<vmem>>, vector<1x8xf32>
    %7 = vector.broadcast %6 : vector<1x8xf32> to vector<128x8xf32>
    %8 = arith.addf %5, %7 : vector<128x8xf32>
    %c0_6 = arith.constant 0 : index
    %c0_7 = arith.constant 0 : index
    %c0_8 = arith.constant 0 : index
    %9 = vector.load %arg2[%c0_6, %c0_7, %c0_8] : memref<2x128x8xf32, #tpu.memory_space<vmem>>, vector<1x128x8xf32>
    %10 = vector.shape_cast %9 : vector<1x128x8xf32> to vector<128x8xf32>
    %c0_9 = arith.constant 0 : index
    %c0_10 = arith.constant 0 : index
    %11 = vector.load %arg5[%c0_9, %c0_10] : memref<1x8xf32, #tpu.memory_space<vmem>>, vector<1x8xf32>
    %12 = vector.broadcast %11 : vector<1x8xf32> to vector<128x8xf32>
    %13 = arith.mulf %10, %12 : vector<128x8xf32>
    %c0_11 = arith.constant 0 : index
    %c0_12 = arith.constant 0 : index
    %14 = vector.load %arg6[%c0_11, %c0_12] : memref<1x8xf32, #tpu.memory_space<vmem>>, vector<1x8xf32>
    %15 = vector.broadcast %14 : vector<1x8xf32> to vector<128x8xf32>
    %16 = arith.addf %13, %15 : vector<128x8xf32>
    %17 = arith.addf %16, %8 : vector<128x8xf32>
    %18 = arith.subf %17, %0 : vector<128x8xf32>
    %cst_13 = arith.constant 5.000000e-01 : f32
    %19 = vector.broadcast %cst_13 : f32 to vector<128x8xf32>
    %20 = arith.mulf %18, %19 : vector<128x8xf32>
    %21 = arith.addf %0, %20 : vector<128x8xf32>
    %cst_14 = arith.constant 1.000000e+00 : f32
    %22 = vector.broadcast %cst_14 : f32 to vector<128x8xf32>
    %23 = arith.cmpf oge, %21, %22 : vector<128x8xf32>
    %24 = arith.extui %23 : vector<128x8xi1> to vector<128x8xi32>
    %25 = arith.sitofp %24 : vector<128x8xi32> to vector<128x8xf32>
    %c0_15 = arith.constant 0 : index
    %c0_16 = arith.constant 0 : index
    %c0_17 = arith.constant 0 : index
    %26 = vector.load %arg7[%c0_15, %c0_16, %c0_17] : memref<2x128x8xf32, #tpu.memory_space<vmem>>, vector<1x128x8xf32>
    %27 = vector.shape_cast %26 : vector<1x128x8xf32> to vector<128x8xf32>
    %28 = vector.shape_cast %25 : vector<128x8xf32> to vector<1x128x8xf32>
    tpu.vector_store %arg7[%c0_15, %c0_16, %c0_17], %28 {strides = array<i32>} : memref<2x128x8xf32, #tpu.memory_space<vmem>>, vector<1x128x8xf32>,
    %cst_18 = arith.constant 1.000000e+00 : f32
    %29 = vector.broadcast %cst_18 : f32 to vector<128x8xf32>
    %30 = arith.subf %29, %25 : vector<128x8xf32>
    %31 = arith.mulf %21, %30 : vector<128x8xf32>
    %c1 = arith.constant 1 : index
    %c0_19 = arith.constant 0 : index
    %c0_20 = arith.constant 0 : index
    %32 = vector.load %arg1[%c1, %c0_19, %c0_20] : memref<2x128x8xf32, #tpu.memory_space<vmem>>, vector<1x128x8xf32>
    %33 = vector.shape_cast %32 : vector<1x128x8xf32> to vector<128x8xf32>
    %c0_21 = arith.constant 0 : index
    %c0_22 = arith.constant 0 : index
    %34 = vector.load %arg3[%c0_21, %c0_22] : memref<1x8xf32, #tpu.memory_space<vmem>>, vector<1x8xf32>
    %35 = vector.broadcast %34 : vector<1x8xf32> to vector<128x8xf32>
    %36 = arith.mulf %33, %35 : vector<128x8xf32>
    %c0_23 = arith.constant 0 : index
    %c0_24 = arith.constant 0 : index
    %37 = vector.load %arg4[%c0_23, %c0_24] : memref<1x8xf32, #tpu.memory_space<vmem>>, vector<1x8xf32>
    %38 = vector.broadcast %37 : vector<1x8xf32> to vector<128x8xf32>
    %39 = arith.addf %36, %38 : vector<128x8xf32>
    %c1_25 = arith.constant 1 : index
    %c0_26 = arith.constant 0 : index
    %c0_27 = arith.constant 0 : index
    %40 = vector.load %arg2[%c1_25, %c0_26, %c0_27] : memref<2x128x8xf32, #tpu.memory_space<vmem>>, vector<1x128x8xf32>
    %41 = vector.shape_cast %40 : vector<1x128x8xf32> to vector<128x8xf32>
    %c0_28 = arith.constant 0 : index
    %c0_29 = arith.constant 0 : index
    %42 = vector.load %arg5[%c0_28, %c0_29] : memref<1x8xf32, #tpu.memory_space<vmem>>, vector<1x8xf32>
    %43 = vector.broadcast %42 : vector<1x8xf32> to vector<128x8xf32>
    %44 = arith.mulf %41, %43 : vector<128x8xf32>
    %c0_30 = arith.constant 0 : index
    %c0_31 = arith.constant 0 : index
    %45 = vector.load %arg6[%c0_30, %c0_31] : memref<1x8xf32, #tpu.memory_space<vmem>>, vector<1x8xf32>
    %46 = vector.broadcast %45 : vector<1x8xf32> to vector<128x8xf32>
    %47 = arith.addf %44, %46 : vector<128x8xf32>
    %48 = arith.addf %47, %39 : vector<128x8xf32>
    %49 = arith.subf %48, %31 : vector<128x8xf32>
    %cst_32 = arith.constant 5.000000e-01 : f32
    %50 = vector.broadcast %cst_32 : f32 to vector<128x8xf32>
    %51 = arith.mulf %49, %50 : vector<128x8xf32>
    %52 = arith.addf %31, %51 : vector<128x8xf32>
    %cst_33 = arith.constant 1.000000e+00 : f32
    %53 = vector.broadcast %cst_33 : f32 to vector<128x8xf32>
    %54 = arith.cmpf oge, %52, %53 : vector<128x8xf32>
    %55 = arith.extui %54 : vector<128x8xi1> to vector<128x8xi32>
    %56 = arith.sitofp %55 : vector<128x8xi32> to vector<128x8xf32>
    %c1_34 = arith.constant 1 : index
    %c0_35 = arith.constant 0 : index
    %c0_36 = arith.constant 0 : index
    %57 = vector.load %arg7[%c1_34, %c0_35, %c0_36] : memref<2x128x8xf32, #tpu.memory_space<vmem>>, vector<1x128x8xf32>
    %58 = vector.shape_cast %57 : vector<1x128x8xf32> to vector<128x8xf32>
    %59 = vector.shape_cast %56 : vector<128x8xf32> to vector<1x128x8xf32>
    tpu.vector_store %arg7[%c1_34, %c0_35, %c0_36], %59 {strides = array<i32>} : memref<2x128x8xf32, #tpu.memory_space<vmem>>, vector<1x128x8xf32>,
    return
  }
  func.func @transform_0(%arg0: i32) -> (i32, i32, i32) {
    %c0_i32 = arith.constant 0 : i32
    %c0_i32_0 = arith.constant 0 : i32
    %c0_i32_1 = arith.constant 0 : i32
    return %c0_i32, %arg0, %c0_i32_0 : i32, i32, i32
  }
  func.func @transform_1(%arg0: i32) -> (i32, i32, i32) {
    %c0_i32 = arith.constant 0 : i32
    %c0_i32_0 = arith.constant 0 : i32
    %c0_i32_1 = arith.constant 0 : i32
    return %c0_i32, %arg0, %c0_i32_0 : i32, i32, i32
  }
  func.func @transform_2(%arg0: i32) -> (i32, i32) {
    %c0_i32 = arith.constant 0 : i32
    %c0_i32_0 = arith.constant 0 : i32
    %c0_i32_1 = arith.constant 0 : i32
    return %c0_i32, %c0_i32_0 : i32, i32
  }
  func.func @transform_3(%arg0: i32) -> (i32, i32) {
    %c0_i32 = arith.constant 0 : i32
    %c0_i32_0 = arith.constant 0 : i32
    %c0_i32_1 = arith.constant 0 : i32
    return %c0_i32, %c0_i32_0 : i32, i32
  }
  func.func @transform_4(%arg0: i32) -> (i32, i32) {
    %c0_i32 = arith.constant 0 : i32
    %c0_i32_0 = arith.constant 0 : i32
    %c0_i32_1 = arith.constant 0 : i32
    return %c0_i32, %c0_i32_0 : i32, i32
  }
  func.func @transform_5(%arg0: i32) -> (i32, i32) {
    %c0_i32 = arith.constant 0 : i32
    %c0_i32_0 = arith.constant 0 : i32
    %c0_i32_1 = arith.constant 0 : i32
    return %c0_i32, %c0_i32_0 : i32, i32
  }
  func.func @transform_6(%arg0: i32) -> (i32, i32, i32) {
    %c0_i32 = arith.constant 0 : i32
    %c0_i32_0 = arith.constant 0 : i32
    %c0_i32_1 = arith.constant 0 : i32
    return %c0_i32, %arg0, %c0_i32_0 : i32, i32, i32
  }
}

module attributes {stable_mosaic.version = 11 : i64} {
  func.func @_mlp_kernel(%arg0: i32, %arg1: memref<2x8x16x8xf32, #tpu.memory_space<vmem>>, %arg2: memref<8x8xbf16, #tpu.memory_space<vmem>>, %arg3: memref<1x8xf32, #tpu.memory_space<vmem>>, %arg4: memref<8x1xf32, #tpu.memory_space<vmem>>, %arg5: memref<8x1xf32, #tpu.memory_space<vmem>>, %arg6: memref<8x8xbf16, #tpu.memory_space<vmem>>, %arg7: memref<1x8xf32, #tpu.memory_space<vmem>>, %arg8: memref<8x1xf32, #tpu.memory_space<vmem>>, %arg9: memref<8x1xf32, #tpu.memory_space<vmem>>, %arg10: memref<2x8x16x8xf32, #tpu.memory_space<vmem>>) attributes {dimension_semantics = [#tpu.dimension_semantics<parallel>], iteration_bounds = array<i64: 1>, scalar_prefetch = 0 : i64, scratch_operands = 0 : i64, tpu.core_type = #tpu.core_type<tc>, window_params = [{transform_indices = @transform_0, window_bounds = array<i64: 2, 8, 16, 8>}, {pipeline_mode = #tpu.pipeline_mode<synchronous>, transform_indices = @transform_1, window_bounds = array<i64: 8, 8>}, {pipeline_mode = #tpu.pipeline_mode<synchronous>, transform_indices = @transform_2, window_bounds = array<i64: 1, 8>}, {pipeline_mode = #tpu.pipeline_mode<synchronous>, transform_indices = @transform_3, window_bounds = array<i64: 8, 1>}, {pipeline_mode = #tpu.pipeline_mode<synchronous>, transform_indices = @transform_4, window_bounds = array<i64: 8, 1>}, {pipeline_mode = #tpu.pipeline_mode<synchronous>, transform_indices = @transform_5, window_bounds = array<i64: 8, 8>}, {pipeline_mode = #tpu.pipeline_mode<synchronous>, transform_indices = @transform_6, window_bounds = array<i64: 1, 8>}, {pipeline_mode = #tpu.pipeline_mode<synchronous>, transform_indices = @transform_7, window_bounds = array<i64: 8, 1>}, {pipeline_mode = #tpu.pipeline_mode<synchronous>, transform_indices = @transform_8, window_bounds = array<i64: 8, 1>}, {transform_indices = @transform_9, window_bounds = array<i64: 2, 8, 16, 8>}]} {
    %c8_i32 = arith.constant 8 : i32
    %0 = arith.muli %arg0, %c8_i32 : i32
    %1 = arith.index_cast %0 : i32 to index
    %c0 = arith.constant 0 : index
    %2 = vector.load %arg4[%1, %c0] : memref<8x1xf32, #tpu.memory_space<vmem>>, vector<8x1xf32>
    %3 = vector.shape_cast %2 : vector<8x1xf32> to vector<8x1x1xf32>
    %4 = arith.index_cast %0 : i32 to index
    %c0_0 = arith.constant 0 : index
    %5 = vector.load %arg5[%4, %c0_0] : memref<8x1xf32, #tpu.memory_space<vmem>>, vector<8x1xf32>
    %6 = vector.shape_cast %5 : vector<8x1xf32> to vector<8x1x1xf32>
    %7 = arith.index_cast %0 : i32 to index
    %c0_1 = arith.constant 0 : index
    %8 = vector.load %arg8[%7, %c0_1] : memref<8x1xf32, #tpu.memory_space<vmem>>, vector<8x1xf32>
    %9 = vector.shape_cast %8 : vector<8x1xf32> to vector<8x1x1xf32>
    %10 = arith.index_cast %0 : i32 to index
    %c0_2 = arith.constant 0 : index
    %11 = vector.load %arg9[%10, %c0_2] : memref<8x1xf32, #tpu.memory_space<vmem>>, vector<8x1xf32>
    %12 = vector.shape_cast %11 : vector<8x1xf32> to vector<8x1x1xf32>
    %c0_3 = arith.constant 0 : index
    %c0_4 = arith.constant 0 : index
    %c0_5 = arith.constant 0 : index
    %c0_6 = arith.constant 0 : index
    %13 = vector.load %arg1[%c0_3, %c0_4, %c0_5, %c0_6] : memref<2x8x16x8xf32, #tpu.memory_space<vmem>>, vector<2x8x16x8xf32>
    %14 = vector.shape_cast %13 : vector<2x8x16x8xf32> to vector<256x8xf32>
    %15 = arith.truncf %14 : vector<256x8xf32> to vector<256x8xbf16>
    %c0_7 = arith.constant 0 : index
    %c0_8 = arith.constant 0 : index
    %16 = vector.load %arg2[%c0_7, %c0_8] : memref<8x8xbf16, #tpu.memory_space<vmem>>, vector<8x8xbf16>
    %cst = arith.constant dense<0.000000e+00> : vector<256x8xf32>
    %17 = tpu.matmul %15, %16, %cst {dimension_numbers = #tpu.dot_dimension_numbers<[1], [0], [0], [1], [0, 0, 1, 1], [], []>} : vector<256x8xbf16>, vector<8x8xbf16>, vector<256x8xf32> -> vector<256x8xf32>
    %18 = vector.shape_cast %17 : vector<256x8xf32> to vector<2x8x16x8xf32>
    %c0_9 = arith.constant 0 : index
    %c0_10 = arith.constant 0 : index
    %19 = vector.load %arg3[%c0_9, %c0_10] : memref<1x8xf32, #tpu.memory_space<vmem>>, vector<1x8xf32>
    %20 = vector.shape_cast %19 : vector<1x8xf32> to vector<1x1x1x8xf32>
    %21 = vector.broadcast %20 : vector<1x1x1x8xf32> to vector<2x8x16x8xf32>
    %22 = arith.addf %18, %21 : vector<2x8x16x8xf32>
    %cst_11 = arith.constant dense<0.000000e+00> : vector<2x8x16xf32>
    %23 = vector.multi_reduction <add>, %22, %cst_11 [3] : vector<2x8x16x8xf32> to vector<2x8x16xf32>
    %24 = vector.shape_cast %23 : vector<2x8x16xf32> to vector<2x8x16x1xf32>
    %cst_12 = arith.constant dense<0.000000e+00> : vector<2x8x1xf32>
    %25 = vector.multi_reduction <add>, %24, %cst_12 [2] : vector<2x8x16x1xf32> to vector<2x8x1xf32>
    %26 = vector.shape_cast %25 : vector<2x8x1xf32> to vector<2x8x1x1xf32>
    %cst_13 = arith.constant dense<0.000000e+00> : vector<8x1x1xf32>
    %27 = vector.multi_reduction <add>, %26, %cst_13 [0] : vector<2x8x1x1xf32> to vector<8x1x1xf32>
    %cst_14 = arith.constant 2.560000e+02 : f32
    %28 = vector.broadcast %cst_14 : f32 to vector<8x1x1xf32>
    %29 = arith.divf %27, %28 : vector<8x1x1xf32>
    %30 = arith.mulf %22, %22 : vector<2x8x16x8xf32>
    %cst_15 = arith.constant dense<0.000000e+00> : vector<2x8x16xf32>
    %31 = vector.multi_reduction <add>, %30, %cst_15 [3] : vector<2x8x16x8xf32> to vector<2x8x16xf32>
    %32 = vector.shape_cast %31 : vector<2x8x16xf32> to vector<2x8x16x1xf32>
    %cst_16 = arith.constant dense<0.000000e+00> : vector<2x8x1xf32>
    %33 = vector.multi_reduction <add>, %32, %cst_16 [2] : vector<2x8x16x1xf32> to vector<2x8x1xf32>
    %34 = vector.shape_cast %33 : vector<2x8x1xf32> to vector<2x8x1x1xf32>
    %cst_17 = arith.constant dense<0.000000e+00> : vector<8x1x1xf32>
    %35 = vector.multi_reduction <add>, %34, %cst_17 [0] : vector<2x8x1x1xf32> to vector<8x1x1xf32>
    %cst_18 = arith.constant 2.560000e+02 : f32
    %36 = vector.broadcast %cst_18 : f32 to vector<8x1x1xf32>
    %37 = arith.divf %35, %36 : vector<8x1x1xf32>
    %38 = arith.mulf %29, %29 : vector<8x1x1xf32>
    %39 = arith.subf %37, %38 : vector<8x1x1xf32>
    %cst_19 = arith.constant 0.000000e+00 : f32
    %40 = vector.broadcast %cst_19 : f32 to vector<8x1x1xf32>
    %41 = arith.maximumf %39, %40 : vector<8x1x1xf32>
    %cst_20 = arith.constant 9.99999974E-6 : f32
    %42 = vector.broadcast %cst_20 : f32 to vector<8x1x1xf32>
    %43 = arith.addf %41, %42 : vector<8x1x1xf32>
    %44 = math.rsqrt %43 : vector<8x1x1xf32>
    %45 = arith.mulf %44, %3 : vector<8x1x1xf32>
    %46 = vector.shape_cast %29 : vector<8x1x1xf32> to vector<1x8x1x1xf32>
    %47 = vector.broadcast %46 : vector<1x8x1x1xf32> to vector<2x8x16x8xf32>
    %48 = arith.subf %22, %47 : vector<2x8x16x8xf32>
    %49 = vector.shape_cast %45 : vector<8x1x1xf32> to vector<1x8x1x1xf32>
    %50 = vector.broadcast %49 : vector<1x8x1x1xf32> to vector<2x8x16x8xf32>
    %51 = arith.mulf %48, %50 : vector<2x8x16x8xf32>
    %52 = vector.shape_cast %6 : vector<8x1x1xf32> to vector<1x8x1x1xf32>
    %53 = vector.broadcast %52 : vector<1x8x1x1xf32> to vector<2x8x16x8xf32>
    %54 = arith.addf %51, %53 : vector<2x8x16x8xf32>
    %cst_21 = arith.constant 0.000000e+00 : f32
    %55 = vector.broadcast %cst_21 : f32 to vector<8x16x8xf32>
    %cst_22 = arith.constant 0.000000e+00 : f32
    %56 = vector.broadcast %cst_22 : f32 to vector<8x1x1xf32>
    %cst_23 = arith.constant 0.000000e+00 : f32
    %57 = vector.broadcast %cst_23 : f32 to vector<8x1x1xf32>
    %58 = vector.extract_strided_slice %54 {offsets = [0, 0, 0, 0], sizes = [1, 8, 16, 8], strides = [1, 1, 1, 1]} : vector<2x8x16x8xf32> to vector<1x8x16x8xf32>
    %59 = vector.shape_cast %58 : vector<1x8x16x8xf32> to vector<8x16x8xf32>
    %60 = arith.subf %59, %55 : vector<8x16x8xf32>
    %cst_24 = arith.constant 5.000000e-01 : f32
    %61 = vector.broadcast %cst_24 : f32 to vector<8x16x8xf32>
    %62 = arith.mulf %60, %61 : vector<8x16x8xf32>
    %63 = arith.addf %55, %62 : vector<8x16x8xf32>
    %cst_25 = arith.constant 1.000000e+00 : f32
    %64 = vector.broadcast %cst_25 : f32 to vector<8x16x8xf32>
    %65 = arith.cmpf oge, %63, %64 : vector<8x16x8xf32>
    %66 = arith.extui %65 : vector<8x16x8xi1> to vector<8x16x8xi32>
    %67 = arith.sitofp %66 : vector<8x16x8xi32> to vector<8x16x8xf32>
    %cst_26 = arith.constant 1.000000e+00 : f32
    %68 = vector.broadcast %cst_26 : f32 to vector<8x16x8xf32>
    %69 = arith.subf %68, %67 : vector<8x16x8xf32>
    %70 = arith.mulf %63, %69 : vector<8x16x8xf32>
    %71 = vector.shape_cast %67 : vector<8x16x8xf32> to vector<128x8xf32>
    %72 = arith.truncf %71 : vector<128x8xf32> to vector<128x8xbf16>
    %c0_27 = arith.constant 0 : index
    %c0_28 = arith.constant 0 : index
    %73 = vector.load %arg6[%c0_27, %c0_28] : memref<8x8xbf16, #tpu.memory_space<vmem>>, vector<8x8xbf16>
    %cst_29 = arith.constant dense<0.000000e+00> : vector<128x8xf32>
    %74 = tpu.matmul %72, %73, %cst_29 {dimension_numbers = #tpu.dot_dimension_numbers<[1], [0], [0], [1], [0, 0, 1, 1], [], []>} : vector<128x8xbf16>, vector<8x8xbf16>, vector<128x8xf32> -> vector<128x8xf32>
    %75 = vector.shape_cast %74 : vector<128x8xf32> to vector<8x16x8xf32>
    %c0_30 = arith.constant 0 : index
    %c0_31 = arith.constant 0 : index
    %76 = vector.load %arg7[%c0_30, %c0_31] : memref<1x8xf32, #tpu.memory_space<vmem>>, vector<1x8xf32>
    %77 = vector.shape_cast %76 : vector<1x8xf32> to vector<1x1x8xf32>
    %78 = vector.broadcast %77 : vector<1x1x8xf32> to vector<8x16x8xf32>
    %79 = arith.addf %75, %78 : vector<8x16x8xf32>
    %cst_32 = arith.constant dense<0.000000e+00> : vector<8x16xf32>
    %80 = vector.multi_reduction <add>, %79, %cst_32 [2] : vector<8x16x8xf32> to vector<8x16xf32>
    %81 = vector.shape_cast %80 : vector<8x16xf32> to vector<8x16x1xf32>
    %cst_33 = arith.constant dense<0.000000e+00> : vector<8x1xf32>
    %82 = vector.multi_reduction <add>, %81, %cst_33 [1] : vector<8x16x1xf32> to vector<8x1xf32>
    %83 = vector.shape_cast %82 : vector<8x1xf32> to vector<8x1x1xf32>
    %84 = arith.addf %56, %83 : vector<8x1x1xf32>
    %85 = arith.mulf %79, %79 : vector<8x16x8xf32>
    %cst_34 = arith.constant dense<0.000000e+00> : vector<8x16xf32>
    %86 = vector.multi_reduction <add>, %85, %cst_34 [2] : vector<8x16x8xf32> to vector<8x16xf32>
    %87 = vector.shape_cast %86 : vector<8x16xf32> to vector<8x16x1xf32>
    %cst_35 = arith.constant dense<0.000000e+00> : vector<8x1xf32>
    %88 = vector.multi_reduction <add>, %87, %cst_35 [1] : vector<8x16x1xf32> to vector<8x1xf32>
    %89 = vector.shape_cast %88 : vector<8x1xf32> to vector<8x1x1xf32>
    %90 = arith.addf %57, %89 : vector<8x1x1xf32>
    %91 = vector.extract_strided_slice %54 {offsets = [1, 0, 0, 0], sizes = [1, 8, 16, 8], strides = [1, 1, 1, 1]} : vector<2x8x16x8xf32> to vector<1x8x16x8xf32>
    %92 = vector.shape_cast %91 : vector<1x8x16x8xf32> to vector<8x16x8xf32>
    %93 = arith.subf %92, %70 : vector<8x16x8xf32>
    %cst_36 = arith.constant 5.000000e-01 : f32
    %94 = vector.broadcast %cst_36 : f32 to vector<8x16x8xf32>
    %95 = arith.mulf %93, %94 : vector<8x16x8xf32>
    %96 = arith.addf %70, %95 : vector<8x16x8xf32>
    %cst_37 = arith.constant 1.000000e+00 : f32
    %97 = vector.broadcast %cst_37 : f32 to vector<8x16x8xf32>
    %98 = arith.cmpf oge, %96, %97 : vector<8x16x8xf32>
    %99 = arith.extui %98 : vector<8x16x8xi1> to vector<8x16x8xi32>
    %100 = arith.sitofp %99 : vector<8x16x8xi32> to vector<8x16x8xf32>
    %101 = vector.shape_cast %100 : vector<8x16x8xf32> to vector<128x8xf32>
    %102 = arith.truncf %101 : vector<128x8xf32> to vector<128x8xbf16>
    %c0_38 = arith.constant 0 : index
    %c0_39 = arith.constant 0 : index
    %103 = vector.load %arg6[%c0_38, %c0_39] : memref<8x8xbf16, #tpu.memory_space<vmem>>, vector<8x8xbf16>
    %cst_40 = arith.constant dense<0.000000e+00> : vector<128x8xf32>
    %104 = tpu.matmul %102, %103, %cst_40 {dimension_numbers = #tpu.dot_dimension_numbers<[1], [0], [0], [1], [0, 0, 1, 1], [], []>} : vector<128x8xbf16>, vector<8x8xbf16>, vector<128x8xf32> -> vector<128x8xf32>
    %105 = vector.shape_cast %104 : vector<128x8xf32> to vector<8x16x8xf32>
    %c0_41 = arith.constant 0 : index
    %c0_42 = arith.constant 0 : index
    %106 = vector.load %arg7[%c0_41, %c0_42] : memref<1x8xf32, #tpu.memory_space<vmem>>, vector<1x8xf32>
    %107 = vector.shape_cast %106 : vector<1x8xf32> to vector<1x1x8xf32>
    %108 = vector.broadcast %107 : vector<1x1x8xf32> to vector<8x16x8xf32>
    %109 = arith.addf %105, %108 : vector<8x16x8xf32>
    %cst_43 = arith.constant dense<0.000000e+00> : vector<8x16xf32>
    %110 = vector.multi_reduction <add>, %109, %cst_43 [2] : vector<8x16x8xf32> to vector<8x16xf32>
    %111 = vector.shape_cast %110 : vector<8x16xf32> to vector<8x16x1xf32>
    %cst_44 = arith.constant dense<0.000000e+00> : vector<8x1xf32>
    %112 = vector.multi_reduction <add>, %111, %cst_44 [1] : vector<8x16x1xf32> to vector<8x1xf32>
    %113 = vector.shape_cast %112 : vector<8x1xf32> to vector<8x1x1xf32>
    %114 = arith.addf %84, %113 : vector<8x1x1xf32>
    %115 = arith.mulf %109, %109 : vector<8x16x8xf32>
    %cst_45 = arith.constant dense<0.000000e+00> : vector<8x16xf32>
    %116 = vector.multi_reduction <add>, %115, %cst_45 [2] : vector<8x16x8xf32> to vector<8x16xf32>
    %117 = vector.shape_cast %116 : vector<8x16xf32> to vector<8x16x1xf32>
    %cst_46 = arith.constant dense<0.000000e+00> : vector<8x1xf32>
    %118 = vector.multi_reduction <add>, %117, %cst_46 [1] : vector<8x16x1xf32> to vector<8x1xf32>
    %119 = vector.shape_cast %118 : vector<8x1xf32> to vector<8x1x1xf32>
    %120 = arith.addf %90, %119 : vector<8x1x1xf32>
    %cst_47 = arith.constant 2.560000e+02 : f32
    %121 = vector.broadcast %cst_47 : f32 to vector<8x1x1xf32>
    %122 = arith.divf %114, %121 : vector<8x1x1xf32>
    %cst_48 = arith.constant 2.560000e+02 : f32
    %123 = vector.broadcast %cst_48 : f32 to vector<8x1x1xf32>
    %124 = arith.divf %120, %123 : vector<8x1x1xf32>
    %125 = arith.mulf %122, %122 : vector<8x1x1xf32>
    %126 = arith.subf %124, %125 : vector<8x1x1xf32>
    %cst_49 = arith.constant 0.000000e+00 : f32
    %127 = vector.broadcast %cst_49 : f32 to vector<8x1x1xf32>
    %128 = arith.maximumf %126, %127 : vector<8x1x1xf32>
    %cst_50 = arith.constant 9.99999974E-6 : f32
    %129 = vector.broadcast %cst_50 : f32 to vector<8x1x1xf32>
    %130 = arith.addf %128, %129 : vector<8x1x1xf32>
    %131 = math.rsqrt %130 : vector<8x1x1xf32>
    %132 = arith.mulf %131, %9 : vector<8x1x1xf32>
    %cst_51 = arith.constant 0.000000e+00 : f32
    %133 = vector.broadcast %cst_51 : f32 to vector<8x16x8xf32>
    %134 = vector.broadcast %122 : vector<8x1x1xf32> to vector<8x16x8xf32>
    %135 = arith.subf %79, %134 : vector<8x16x8xf32>
    %136 = vector.broadcast %132 : vector<8x1x1xf32> to vector<8x16x8xf32>
    %137 = arith.mulf %135, %136 : vector<8x16x8xf32>
    %138 = vector.broadcast %12 : vector<8x1x1xf32> to vector<8x16x8xf32>
    %139 = arith.addf %137, %138 : vector<8x16x8xf32>
    %140 = vector.extract_strided_slice %54 {offsets = [0, 0, 0, 0], sizes = [1, 8, 16, 8], strides = [1, 1, 1, 1]} : vector<2x8x16x8xf32> to vector<1x8x16x8xf32>
    %141 = vector.shape_cast %140 : vector<1x8x16x8xf32> to vector<8x16x8xf32>
    %142 = arith.addf %139, %141 : vector<8x16x8xf32>
    %143 = arith.subf %142, %133 : vector<8x16x8xf32>
    %cst_52 = arith.constant 5.000000e-01 : f32
    %144 = vector.broadcast %cst_52 : f32 to vector<8x16x8xf32>
    %145 = arith.mulf %143, %144 : vector<8x16x8xf32>
    %146 = arith.addf %133, %145 : vector<8x16x8xf32>
    %cst_53 = arith.constant 1.000000e+00 : f32
    %147 = vector.broadcast %cst_53 : f32 to vector<8x16x8xf32>
    %148 = arith.cmpf oge, %146, %147 : vector<8x16x8xf32>
    %149 = arith.extui %148 : vector<8x16x8xi1> to vector<8x16x8xi32>
    %150 = arith.sitofp %149 : vector<8x16x8xi32> to vector<8x16x8xf32>
    %cst_54 = arith.constant 1.000000e+00 : f32
    %151 = vector.broadcast %cst_54 : f32 to vector<8x16x8xf32>
    %152 = arith.subf %151, %150 : vector<8x16x8xf32>
    %153 = arith.mulf %146, %152 : vector<8x16x8xf32>
    %c0_55 = arith.constant 0 : index
    %c0_56 = arith.constant 0 : index
    %c0_57 = arith.constant 0 : index
    %c0_58 = arith.constant 0 : index
    %154 = vector.load %arg10[%c0_55, %c0_56, %c0_57, %c0_58] : memref<2x8x16x8xf32, #tpu.memory_space<vmem>>, vector<1x8x16x8xf32>
    %155 = vector.shape_cast %154 : vector<1x8x16x8xf32> to vector<8x16x8xf32>
    %156 = vector.shape_cast %150 : vector<8x16x8xf32> to vector<1x8x16x8xf32>
    tpu.vector_store %arg10[%c0_55, %c0_56, %c0_57, %c0_58], %156 {strides = array<i32>} : memref<2x8x16x8xf32, #tpu.memory_space<vmem>>, vector<1x8x16x8xf32>,
    %157 = vector.broadcast %122 : vector<8x1x1xf32> to vector<8x16x8xf32>
    %158 = arith.subf %109, %157 : vector<8x16x8xf32>
    %159 = vector.broadcast %132 : vector<8x1x1xf32> to vector<8x16x8xf32>
    %160 = arith.mulf %158, %159 : vector<8x16x8xf32>
    %161 = vector.broadcast %12 : vector<8x1x1xf32> to vector<8x16x8xf32>
    %162 = arith.addf %160, %161 : vector<8x16x8xf32>
    %163 = vector.extract_strided_slice %54 {offsets = [1, 0, 0, 0], sizes = [1, 8, 16, 8], strides = [1, 1, 1, 1]} : vector<2x8x16x8xf32> to vector<1x8x16x8xf32>
    %164 = vector.shape_cast %163 : vector<1x8x16x8xf32> to vector<8x16x8xf32>
    %165 = arith.addf %162, %164 : vector<8x16x8xf32>
    %166 = arith.subf %165, %153 : vector<8x16x8xf32>
    %cst_59 = arith.constant 5.000000e-01 : f32
    %167 = vector.broadcast %cst_59 : f32 to vector<8x16x8xf32>
    %168 = arith.mulf %166, %167 : vector<8x16x8xf32>
    %169 = arith.addf %153, %168 : vector<8x16x8xf32>
    %cst_60 = arith.constant 1.000000e+00 : f32
    %170 = vector.broadcast %cst_60 : f32 to vector<8x16x8xf32>
    %171 = arith.cmpf oge, %169, %170 : vector<8x16x8xf32>
    %172 = arith.extui %171 : vector<8x16x8xi1> to vector<8x16x8xi32>
    %173 = arith.sitofp %172 : vector<8x16x8xi32> to vector<8x16x8xf32>
    %c1 = arith.constant 1 : index
    %c0_61 = arith.constant 0 : index
    %c0_62 = arith.constant 0 : index
    %c0_63 = arith.constant 0 : index
    %174 = vector.load %arg10[%c1, %c0_61, %c0_62, %c0_63] : memref<2x8x16x8xf32, #tpu.memory_space<vmem>>, vector<1x8x16x8xf32>
    %175 = vector.shape_cast %174 : vector<1x8x16x8xf32> to vector<8x16x8xf32>
    %176 = vector.shape_cast %173 : vector<8x16x8xf32> to vector<1x8x16x8xf32>
    tpu.vector_store %arg10[%c1, %c0_61, %c0_62, %c0_63], %176 {strides = array<i32>} : memref<2x8x16x8xf32, #tpu.memory_space<vmem>>, vector<1x8x16x8xf32>,
    return
  }
  func.func @transform_0(%arg0: i32) -> (i32, i32, i32, i32) {
    %c0_i32 = arith.constant 0 : i32
    %c0_i32_0 = arith.constant 0 : i32
    %c0_i32_1 = arith.constant 0 : i32
    %c0_i32_2 = arith.constant 0 : i32
    return %c0_i32, %arg0, %c0_i32_0, %c0_i32_1 : i32, i32, i32, i32
  }
  func.func @transform_1(%arg0: i32) -> (i32, i32) {
    %c0_i32 = arith.constant 0 : i32
    %c0_i32_0 = arith.constant 0 : i32
    %c0_i32_1 = arith.constant 0 : i32
    return %c0_i32, %c0_i32_0 : i32, i32
  }
  func.func @transform_2(%arg0: i32) -> (i32, i32) {
    %c0_i32 = arith.constant 0 : i32
    %c0_i32_0 = arith.constant 0 : i32
    %c0_i32_1 = arith.constant 0 : i32
    return %c0_i32, %c0_i32_0 : i32, i32
  }
  func.func @transform_3(%arg0: i32) -> (i32, i32) {
    %c0_i32 = arith.constant 0 : i32
    %c0_i32_0 = arith.constant 0 : i32
    %c0_i32_1 = arith.constant 0 : i32
    return %c0_i32, %c0_i32_0 : i32, i32
  }
  func.func @transform_4(%arg0: i32) -> (i32, i32) {
    %c0_i32 = arith.constant 0 : i32
    %c0_i32_0 = arith.constant 0 : i32
    %c0_i32_1 = arith.constant 0 : i32
    return %c0_i32, %c0_i32_0 : i32, i32
  }
  func.func @transform_5(%arg0: i32) -> (i32, i32) {
    %c0_i32 = arith.constant 0 : i32
    %c0_i32_0 = arith.constant 0 : i32
    %c0_i32_1 = arith.constant 0 : i32
    return %c0_i32, %c0_i32_0 : i32, i32
  }
  func.func @transform_6(%arg0: i32) -> (i32, i32) {
    %c0_i32 = arith.constant 0 : i32
    %c0_i32_0 = arith.constant 0 : i32
    %c0_i32_1 = arith.constant 0 : i32
    return %c0_i32, %c0_i32_0 : i32, i32
  }
  func.func @transform_7(%arg0: i32) -> (i32, i32) {
    %c0_i32 = arith.constant 0 : i32
    %c0_i32_0 = arith.constant 0 : i32
    %c0_i32_1 = arith.constant 0 : i32
    return %c0_i32, %c0_i32_0 : i32, i32
  }
  func.func @transform_8(%arg0: i32) -> (i32, i32) {
    %c0_i32 = arith.constant 0 : i32
    %c0_i32_0 = arith.constant 0 : i32
    %c0_i32_1 = arith.constant 0 : i32
    return %c0_i32, %c0_i32_0 : i32, i32
  }
  func.func @transform_9(%arg0: i32) -> (i32, i32, i32, i32) {
    %c0_i32 = arith.constant 0 : i32
    %c0_i32_0 = arith.constant 0 : i32
    %c0_i32_1 = arith.constant 0 : i32
    %c0_i32_2 = arith.constant 0 : i32
    return %c0_i32, %arg0, %c0_i32_0, %c0_i32_1 : i32, i32, i32, i32
  }
}

module attributes {stable_mosaic.version = 11 : i64} {
  func.func @_outmix_kernel(%arg0: i32, %arg1: memref<2x128x8xf32, #tpu.memory_space<vmem>>, %arg2: memref<2x128x8xf32, #tpu.memory_space<vmem>>, %arg3: memref<2x128x8xf32, #tpu.memory_space<vmem>>, %arg4: memref<8x8xbf16, #tpu.memory_space<vmem>>, %arg5: memref<8x8xbf16, #tpu.memory_space<vmem>>, %arg6: memref<8x8xbf16, #tpu.memory_space<vmem>>, %arg7: memref<1x8xf32, #tpu.memory_space<vmem>>, %arg8: memref<8x8xbf16, #tpu.memory_space<vmem>>, %arg9: memref<1x8xf32, #tpu.memory_space<vmem>>, %arg10: memref<8x8xbf16, #tpu.memory_space<vmem>>, %arg11: memref<1x8xf32, #tpu.memory_space<vmem>>, %arg12: memref<2x128x8xf32, #tpu.memory_space<vmem>>, %arg13: memref<1x1x8xf32, #tpu.memory_space<vmem>>) attributes {dimension_semantics = [#tpu.dimension_semantics<parallel>], iteration_bounds = array<i64: 1>, scalar_prefetch = 0 : i64, scratch_operands = 0 : i64, tpu.core_type = #tpu.core_type<tc>, window_params = [{transform_indices = @transform_0, window_bounds = array<i64: 2, 128, 8>}, {transform_indices = @transform_1, window_bounds = array<i64: 2, 128, 8>}, {transform_indices = @transform_2, window_bounds = array<i64: 2, 128, 8>}, {pipeline_mode = #tpu.pipeline_mode<synchronous>, transform_indices = @transform_3, window_bounds = array<i64: 8, 8>}, {pipeline_mode = #tpu.pipeline_mode<synchronous>, transform_indices = @transform_4, window_bounds = array<i64: 8, 8>}, {pipeline_mode = #tpu.pipeline_mode<synchronous>, transform_indices = @transform_5, window_bounds = array<i64: 8, 8>}, {pipeline_mode = #tpu.pipeline_mode<synchronous>, transform_indices = @transform_6, window_bounds = array<i64: 1, 8>}, {pipeline_mode = #tpu.pipeline_mode<synchronous>, transform_indices = @transform_7, window_bounds = array<i64: 8, 8>}, {pipeline_mode = #tpu.pipeline_mode<synchronous>, transform_indices = @transform_8, window_bounds = array<i64: 1, 8>}, {pipeline_mode = #tpu.pipeline_mode<synchronous>, transform_indices = @transform_9, window_bounds = array<i64: 8, 8>}, {pipeline_mode = #tpu.pipeline_mode<synchronous>, transform_indices = @transform_10, window_bounds = array<i64: 1, 8>}, {transform_indices = @transform_11, window_bounds = array<i64: 2, 128, 8>}, {transform_indices = @transform_12, window_bounds = array<i64: 1, 1, 8>}]} {
    %cst = arith.constant 0.000000e+00 : f32
    %0 = vector.broadcast %cst : f32 to vector<128x8xf32>
    %cst_0 = arith.constant 0.000000e+00 : f32
    %1 = vector.broadcast %cst_0 : f32 to vector<128x8xf32>
    %cst_1 = arith.constant 0.000000e+00 : f32
    %2 = vector.broadcast %cst_1 : f32 to vector<1x8xf32>
    %c0 = arith.constant 0 : index
    %c0_2 = arith.constant 0 : index
    %c0_3 = arith.constant 0 : index
    %3 = vector.load %arg1[%c0, %c0_2, %c0_3] : memref<2x128x8xf32, #tpu.memory_space<vmem>>, vector<1x128x8xf32>
    %4 = vector.shape_cast %3 : vector<1x128x8xf32> to vector<128x8xf32>
    %5 = arith.truncf %4 : vector<128x8xf32> to vector<128x8xbf16>
    %c0_4 = arith.constant 0 : index
    %c0_5 = arith.constant 0 : index
    %6 = vector.load %arg4[%c0_4, %c0_5] : memref<8x8xbf16, #tpu.memory_space<vmem>>, vector<8x8xbf16>
    %cst_6 = arith.constant dense<0.000000e+00> : vector<128x8xf32>
    %7 = tpu.matmul %5, %6, %cst_6 {dimension_numbers = #tpu.dot_dimension_numbers<[1], [0], [0], [1], [0, 0, 1, 1], [], []>} : vector<128x8xbf16>, vector<8x8xbf16>, vector<128x8xf32> -> vector<128x8xf32>
    %c0_7 = arith.constant 0 : index
    %c0_8 = arith.constant 0 : index
    %c0_9 = arith.constant 0 : index
    %8 = vector.load %arg2[%c0_7, %c0_8, %c0_9] : memref<2x128x8xf32, #tpu.memory_space<vmem>>, vector<1x128x8xf32>
    %9 = vector.shape_cast %8 : vector<1x128x8xf32> to vector<128x8xf32>
    %10 = arith.truncf %9 : vector<128x8xf32> to vector<128x8xbf16>
    %c0_10 = arith.constant 0 : index
    %c0_11 = arith.constant 0 : index
    %11 = vector.load %arg5[%c0_10, %c0_11] : memref<8x8xbf16, #tpu.memory_space<vmem>>, vector<8x8xbf16>
    %cst_12 = arith.constant dense<0.000000e+00> : vector<128x8xf32>
    %12 = tpu.matmul %10, %11, %cst_12 {dimension_numbers = #tpu.dot_dimension_numbers<[1], [0], [0], [1], [0, 0, 1, 1], [], []>} : vector<128x8xbf16>, vector<8x8xbf16>, vector<128x8xf32> -> vector<128x8xf32>
    %13 = arith.addf %7, %12 : vector<128x8xf32>
    %c0_13 = arith.constant 0 : index
    %c0_14 = arith.constant 0 : index
    %c0_15 = arith.constant 0 : index
    %14 = vector.load %arg3[%c0_13, %c0_14, %c0_15] : memref<2x128x8xf32, #tpu.memory_space<vmem>>, vector<1x128x8xf32>
    %15 = vector.shape_cast %14 : vector<1x128x8xf32> to vector<128x8xf32>
    %16 = arith.truncf %15 : vector<128x8xf32> to vector<128x8xbf16>
    %c0_16 = arith.constant 0 : index
    %c0_17 = arith.constant 0 : index
    %17 = vector.load %arg6[%c0_16, %c0_17] : memref<8x8xbf16, #tpu.memory_space<vmem>>, vector<8x8xbf16>
    %cst_18 = arith.constant dense<0.000000e+00> : vector<128x8xf32>
    %18 = tpu.matmul %16, %17, %cst_18 {dimension_numbers = #tpu.dot_dimension_numbers<[1], [0], [0], [1], [0, 0, 1, 1], [], []>} : vector<128x8xbf16>, vector<8x8xbf16>, vector<128x8xf32> -> vector<128x8xf32>
    %19 = arith.addf %13, %18 : vector<128x8xf32>
    %c0_19 = arith.constant 0 : index
    %c0_20 = arith.constant 0 : index
    %20 = vector.load %arg7[%c0_19, %c0_20] : memref<1x8xf32, #tpu.memory_space<vmem>>, vector<1x8xf32>
    %21 = vector.broadcast %20 : vector<1x8xf32> to vector<128x8xf32>
    %22 = arith.addf %19, %21 : vector<128x8xf32>
    %23 = arith.truncf %22 : vector<128x8xf32> to vector<128x8xbf16>
    %c0_21 = arith.constant 0 : index
    %c0_22 = arith.constant 0 : index
    %24 = vector.load %arg8[%c0_21, %c0_22] : memref<8x8xbf16, #tpu.memory_space<vmem>>, vector<8x8xbf16>
    %cst_23 = arith.constant dense<0.000000e+00> : vector<128x8xf32>
    %25 = tpu.matmul %23, %24, %cst_23 {dimension_numbers = #tpu.dot_dimension_numbers<[1], [0], [0], [1], [0, 0, 1, 1], [], []>} : vector<128x8xbf16>, vector<8x8xbf16>, vector<128x8xf32> -> vector<128x8xf32>
    %c0_24 = arith.constant 0 : index
    %c0_25 = arith.constant 0 : index
    %26 = vector.load %arg9[%c0_24, %c0_25] : memref<1x8xf32, #tpu.memory_space<vmem>>, vector<1x8xf32>
    %27 = vector.broadcast %26 : vector<1x8xf32> to vector<128x8xf32>
    %28 = arith.addf %25, %27 : vector<128x8xf32>
    %29 = arith.subf %28, %0 : vector<128x8xf32>
    %cst_26 = arith.constant 5.000000e-01 : f32
    %30 = vector.broadcast %cst_26 : f32 to vector<128x8xf32>
    %31 = arith.mulf %29, %30 : vector<128x8xf32>
    %32 = arith.addf %0, %31 : vector<128x8xf32>
    %cst_27 = arith.constant 1.000000e+00 : f32
    %33 = vector.broadcast %cst_27 : f32 to vector<128x8xf32>
    %34 = arith.cmpf oge, %32, %33 : vector<128x8xf32>
    %35 = arith.extui %34 : vector<128x8xi1> to vector<128x8xi32>
    %36 = arith.sitofp %35 : vector<128x8xi32> to vector<128x8xf32>
    %cst_28 = arith.constant 1.000000e+00 : f32
    %37 = vector.broadcast %cst_28 : f32 to vector<128x8xf32>
    %38 = arith.subf %37, %36 : vector<128x8xf32>
    %39 = arith.mulf %32, %38 : vector<128x8xf32>
    %40 = arith.truncf %36 : vector<128x8xf32> to vector<128x8xbf16>
    %c0_29 = arith.constant 0 : index
    %c0_30 = arith.constant 0 : index
    %41 = vector.load %arg10[%c0_29, %c0_30] : memref<8x8xbf16, #tpu.memory_space<vmem>>, vector<8x8xbf16>
    %cst_31 = arith.constant dense<0.000000e+00> : vector<128x8xf32>
    %42 = tpu.matmul %40, %41, %cst_31 {dimension_numbers = #tpu.dot_dimension_numbers<[1], [0], [0], [1], [0, 0, 1, 1], [], []>} : vector<128x8xbf16>, vector<8x8xbf16>, vector<128x8xf32> -> vector<128x8xf32>
    %c0_32 = arith.constant 0 : index
    %c0_33 = arith.constant 0 : index
    %43 = vector.load %arg11[%c0_32, %c0_33] : memref<1x8xf32, #tpu.memory_space<vmem>>, vector<1x8xf32>
    %44 = vector.broadcast %43 : vector<1x8xf32> to vector<128x8xf32>
    %45 = arith.addf %42, %44 : vector<128x8xf32>
    %46 = arith.addf %45, %28 : vector<128x8xf32>
    %47 = arith.subf %46, %1 : vector<128x8xf32>
    %cst_34 = arith.constant 5.000000e-01 : f32
    %48 = vector.broadcast %cst_34 : f32 to vector<128x8xf32>
    %49 = arith.mulf %47, %48 : vector<128x8xf32>
    %50 = arith.addf %1, %49 : vector<128x8xf32>
    %cst_35 = arith.constant 1.000000e+00 : f32
    %51 = vector.broadcast %cst_35 : f32 to vector<128x8xf32>
    %52 = arith.cmpf oge, %50, %51 : vector<128x8xf32>
    %53 = arith.extui %52 : vector<128x8xi1> to vector<128x8xi32>
    %54 = arith.sitofp %53 : vector<128x8xi32> to vector<128x8xf32>
    %cst_36 = arith.constant 1.000000e+00 : f32
    %55 = vector.broadcast %cst_36 : f32 to vector<128x8xf32>
    %56 = arith.subf %55, %54 : vector<128x8xf32>
    %57 = arith.mulf %50, %56 : vector<128x8xf32>
    %c0_37 = arith.constant 0 : index
    %c0_38 = arith.constant 0 : index
    %c0_39 = arith.constant 0 : index
    %58 = vector.load %arg12[%c0_37, %c0_38, %c0_39] : memref<2x128x8xf32, #tpu.memory_space<vmem>>, vector<1x128x8xf32>
    %59 = vector.shape_cast %58 : vector<1x128x8xf32> to vector<128x8xf32>
    %60 = vector.shape_cast %54 : vector<128x8xf32> to vector<1x128x8xf32>
    tpu.vector_store %arg12[%c0_37, %c0_38, %c0_39], %60 {strides = array<i32>} : memref<2x128x8xf32, #tpu.memory_space<vmem>>, vector<1x128x8xf32>,
    %cst_40 = arith.constant dense<0.000000e+00> : vector<8xf32>
    %61 = vector.multi_reduction <add>, %54, %cst_40 [0] : vector<128x8xf32> to vector<8xf32>
    %62 = vector.shape_cast %61 : vector<8xf32> to vector<1x8xf32>
    %63 = arith.addf %2, %62 : vector<1x8xf32>
    %c1 = arith.constant 1 : index
    %c0_41 = arith.constant 0 : index
    %c0_42 = arith.constant 0 : index
    %64 = vector.load %arg1[%c1, %c0_41, %c0_42] : memref<2x128x8xf32, #tpu.memory_space<vmem>>, vector<1x128x8xf32>
    %65 = vector.shape_cast %64 : vector<1x128x8xf32> to vector<128x8xf32>
    %66 = arith.truncf %65 : vector<128x8xf32> to vector<128x8xbf16>
    %c0_43 = arith.constant 0 : index
    %c0_44 = arith.constant 0 : index
    %67 = vector.load %arg4[%c0_43, %c0_44] : memref<8x8xbf16, #tpu.memory_space<vmem>>, vector<8x8xbf16>
    %cst_45 = arith.constant dense<0.000000e+00> : vector<128x8xf32>
    %68 = tpu.matmul %66, %67, %cst_45 {dimension_numbers = #tpu.dot_dimension_numbers<[1], [0], [0], [1], [0, 0, 1, 1], [], []>} : vector<128x8xbf16>, vector<8x8xbf16>, vector<128x8xf32> -> vector<128x8xf32>
    %c1_46 = arith.constant 1 : index
    %c0_47 = arith.constant 0 : index
    %c0_48 = arith.constant 0 : index
    %69 = vector.load %arg2[%c1_46, %c0_47, %c0_48] : memref<2x128x8xf32, #tpu.memory_space<vmem>>, vector<1x128x8xf32>
    %70 = vector.shape_cast %69 : vector<1x128x8xf32> to vector<128x8xf32>
    %71 = arith.truncf %70 : vector<128x8xf32> to vector<128x8xbf16>
    %c0_49 = arith.constant 0 : index
    %c0_50 = arith.constant 0 : index
    %72 = vector.load %arg5[%c0_49, %c0_50] : memref<8x8xbf16, #tpu.memory_space<vmem>>, vector<8x8xbf16>
    %cst_51 = arith.constant dense<0.000000e+00> : vector<128x8xf32>
    %73 = tpu.matmul %71, %72, %cst_51 {dimension_numbers = #tpu.dot_dimension_numbers<[1], [0], [0], [1], [0, 0, 1, 1], [], []>} : vector<128x8xbf16>, vector<8x8xbf16>, vector<128x8xf32> -> vector<128x8xf32>
    %74 = arith.addf %68, %73 : vector<128x8xf32>
    %c1_52 = arith.constant 1 : index
    %c0_53 = arith.constant 0 : index
    %c0_54 = arith.constant 0 : index
    %75 = vector.load %arg3[%c1_52, %c0_53, %c0_54] : memref<2x128x8xf32, #tpu.memory_space<vmem>>, vector<1x128x8xf32>
    %76 = vector.shape_cast %75 : vector<1x128x8xf32> to vector<128x8xf32>
    %77 = arith.truncf %76 : vector<128x8xf32> to vector<128x8xbf16>
    %c0_55 = arith.constant 0 : index
    %c0_56 = arith.constant 0 : index
    %78 = vector.load %arg6[%c0_55, %c0_56] : memref<8x8xbf16, #tpu.memory_space<vmem>>, vector<8x8xbf16>
    %cst_57 = arith.constant dense<0.000000e+00> : vector<128x8xf32>
    %79 = tpu.matmul %77, %78, %cst_57 {dimension_numbers = #tpu.dot_dimension_numbers<[1], [0], [0], [1], [0, 0, 1, 1], [], []>} : vector<128x8xbf16>, vector<8x8xbf16>, vector<128x8xf32> -> vector<128x8xf32>
    %80 = arith.addf %74, %79 : vector<128x8xf32>
    %c0_58 = arith.constant 0 : index
    %c0_59 = arith.constant 0 : index
    %81 = vector.load %arg7[%c0_58, %c0_59] : memref<1x8xf32, #tpu.memory_space<vmem>>, vector<1x8xf32>
    %82 = vector.broadcast %81 : vector<1x8xf32> to vector<128x8xf32>
    %83 = arith.addf %80, %82 : vector<128x8xf32>
    %84 = arith.truncf %83 : vector<128x8xf32> to vector<128x8xbf16>
    %c0_60 = arith.constant 0 : index
    %c0_61 = arith.constant 0 : index
    %85 = vector.load %arg8[%c0_60, %c0_61] : memref<8x8xbf16, #tpu.memory_space<vmem>>, vector<8x8xbf16>
    %cst_62 = arith.constant dense<0.000000e+00> : vector<128x8xf32>
    %86 = tpu.matmul %84, %85, %cst_62 {dimension_numbers = #tpu.dot_dimension_numbers<[1], [0], [0], [1], [0, 0, 1, 1], [], []>} : vector<128x8xbf16>, vector<8x8xbf16>, vector<128x8xf32> -> vector<128x8xf32>
    %c0_63 = arith.constant 0 : index
    %c0_64 = arith.constant 0 : index
    %87 = vector.load %arg9[%c0_63, %c0_64] : memref<1x8xf32, #tpu.memory_space<vmem>>, vector<1x8xf32>
    %88 = vector.broadcast %87 : vector<1x8xf32> to vector<128x8xf32>
    %89 = arith.addf %86, %88 : vector<128x8xf32>
    %90 = arith.subf %89, %39 : vector<128x8xf32>
    %cst_65 = arith.constant 5.000000e-01 : f32
    %91 = vector.broadcast %cst_65 : f32 to vector<128x8xf32>
    %92 = arith.mulf %90, %91 : vector<128x8xf32>
    %93 = arith.addf %39, %92 : vector<128x8xf32>
    %cst_66 = arith.constant 1.000000e+00 : f32
    %94 = vector.broadcast %cst_66 : f32 to vector<128x8xf32>
    %95 = arith.cmpf oge, %93, %94 : vector<128x8xf32>
    %96 = arith.extui %95 : vector<128x8xi1> to vector<128x8xi32>
    %97 = arith.sitofp %96 : vector<128x8xi32> to vector<128x8xf32>
    %98 = arith.truncf %97 : vector<128x8xf32> to vector<128x8xbf16>
    %c0_67 = arith.constant 0 : index
    %c0_68 = arith.constant 0 : index
    %99 = vector.load %arg10[%c0_67, %c0_68] : memref<8x8xbf16, #tpu.memory_space<vmem>>, vector<8x8xbf16>
    %cst_69 = arith.constant dense<0.000000e+00> : vector<128x8xf32>
    %100 = tpu.matmul %98, %99, %cst_69 {dimension_numbers = #tpu.dot_dimension_numbers<[1], [0], [0], [1], [0, 0, 1, 1], [], []>} : vector<128x8xbf16>, vector<8x8xbf16>, vector<128x8xf32> -> vector<128x8xf32>
    %c0_70 = arith.constant 0 : index
    %c0_71 = arith.constant 0 : index
    %101 = vector.load %arg11[%c0_70, %c0_71] : memref<1x8xf32, #tpu.memory_space<vmem>>, vector<1x8xf32>
    %102 = vector.broadcast %101 : vector<1x8xf32> to vector<128x8xf32>
    %103 = arith.addf %100, %102 : vector<128x8xf32>
    %104 = arith.addf %103, %89 : vector<128x8xf32>
    %105 = arith.subf %104, %57 : vector<128x8xf32>
    %cst_72 = arith.constant 5.000000e-01 : f32
    %106 = vector.broadcast %cst_72 : f32 to vector<128x8xf32>
    %107 = arith.mulf %105, %106 : vector<128x8xf32>
    %108 = arith.addf %57, %107 : vector<128x8xf32>
    %cst_73 = arith.constant 1.000000e+00 : f32
    %109 = vector.broadcast %cst_73 : f32 to vector<128x8xf32>
    %110 = arith.cmpf oge, %108, %109 : vector<128x8xf32>
    %111 = arith.extui %110 : vector<128x8xi1> to vector<128x8xi32>
    %112 = arith.sitofp %111 : vector<128x8xi32> to vector<128x8xf32>
    %c1_74 = arith.constant 1 : index
    %c0_75 = arith.constant 0 : index
    %c0_76 = arith.constant 0 : index
    %113 = vector.load %arg12[%c1_74, %c0_75, %c0_76] : memref<2x128x8xf32, #tpu.memory_space<vmem>>, vector<1x128x8xf32>
    %114 = vector.shape_cast %113 : vector<1x128x8xf32> to vector<128x8xf32>
    %115 = vector.shape_cast %112 : vector<128x8xf32> to vector<1x128x8xf32>
    tpu.vector_store %arg12[%c1_74, %c0_75, %c0_76], %115 {strides = array<i32>} : memref<2x128x8xf32, #tpu.memory_space<vmem>>, vector<1x128x8xf32>,
    %cst_77 = arith.constant dense<0.000000e+00> : vector<8xf32>
    %116 = vector.multi_reduction <add>, %112, %cst_77 [0] : vector<128x8xf32> to vector<8xf32>
    %117 = vector.shape_cast %116 : vector<8xf32> to vector<1x8xf32>
    %118 = arith.addf %63, %117 : vector<1x8xf32>
    %119 = vector.shape_cast %118 : vector<1x8xf32> to vector<1x1x8xf32>
    %c0_78 = arith.constant 0 : index
    %c0_79 = arith.constant 0 : index
    %c0_80 = arith.constant 0 : index
    %120 = vector.load %arg13[%c0_78, %c0_79, %c0_80] : memref<1x1x8xf32, #tpu.memory_space<vmem>>, vector<1x1x8xf32>
    tpu.vector_store %arg13[%c0_78, %c0_79, %c0_80], %119 {strides = array<i32>} : memref<1x1x8xf32, #tpu.memory_space<vmem>>, vector<1x1x8xf32>,
    return
  }
  func.func @transform_0(%arg0: i32) -> (i32, i32, i32) {
    %c0_i32 = arith.constant 0 : i32
    %c0_i32_0 = arith.constant 0 : i32
    %c0_i32_1 = arith.constant 0 : i32
    return %c0_i32, %arg0, %c0_i32_0 : i32, i32, i32
  }
  func.func @transform_1(%arg0: i32) -> (i32, i32, i32) {
    %c0_i32 = arith.constant 0 : i32
    %c0_i32_0 = arith.constant 0 : i32
    %c0_i32_1 = arith.constant 0 : i32
    return %c0_i32, %arg0, %c0_i32_0 : i32, i32, i32
  }
  func.func @transform_2(%arg0: i32) -> (i32, i32, i32) {
    %c0_i32 = arith.constant 0 : i32
    %c0_i32_0 = arith.constant 0 : i32
    %c0_i32_1 = arith.constant 0 : i32
    return %c0_i32, %arg0, %c0_i32_0 : i32, i32, i32
  }
  func.func @transform_3(%arg0: i32) -> (i32, i32) {
    %c0_i32 = arith.constant 0 : i32
    %c0_i32_0 = arith.constant 0 : i32
    %c0_i32_1 = arith.constant 0 : i32
    return %c0_i32, %c0_i32_0 : i32, i32
  }
  func.func @transform_4(%arg0: i32) -> (i32, i32) {
    %c0_i32 = arith.constant 0 : i32
    %c0_i32_0 = arith.constant 0 : i32
    %c0_i32_1 = arith.constant 0 : i32
    return %c0_i32, %c0_i32_0 : i32, i32
  }
  func.func @transform_5(%arg0: i32) -> (i32, i32) {
    %c0_i32 = arith.constant 0 : i32
    %c0_i32_0 = arith.constant 0 : i32
    %c0_i32_1 = arith.constant 0 : i32
    return %c0_i32, %c0_i32_0 : i32, i32
  }
  func.func @transform_6(%arg0: i32) -> (i32, i32) {
    %c0_i32 = arith.constant 0 : i32
    %c0_i32_0 = arith.constant 0 : i32
    %c0_i32_1 = arith.constant 0 : i32
    return %c0_i32, %c0_i32_0 : i32, i32
  }
  func.func @transform_7(%arg0: i32) -> (i32, i32) {
    %c0_i32 = arith.constant 0 : i32
    %c0_i32_0 = arith.constant 0 : i32
    %c0_i32_1 = arith.constant 0 : i32
    return %c0_i32, %c0_i32_0 : i32, i32
  }
  func.func @transform_8(%arg0: i32) -> (i32, i32) {
    %c0_i32 = arith.constant 0 : i32
    %c0_i32_0 = arith.constant 0 : i32
    %c0_i32_1 = arith.constant 0 : i32
    return %c0_i32, %c0_i32_0 : i32, i32
  }
  func.func @transform_9(%arg0: i32) -> (i32, i32) {
    %c0_i32 = arith.constant 0 : i32
    %c0_i32_0 = arith.constant 0 : i32
    %c0_i32_1 = arith.constant 0 : i32
    return %c0_i32, %c0_i32_0 : i32, i32
  }
  func.func @transform_10(%arg0: i32) -> (i32, i32) {
    %c0_i32 = arith.constant 0 : i32
    %c0_i32_0 = arith.constant 0 : i32
    %c0_i32_1 = arith.constant 0 : i32
    return %c0_i32, %c0_i32_0 : i32, i32
  }
  func.func @transform_11(%arg0: i32) -> (i32, i32, i32) {
    %c0_i32 = arith.constant 0 : i32
    %c0_i32_0 = arith.constant 0 : i32
    %c0_i32_1 = arith.constant 0 : i32
    return %c0_i32, %arg0, %c0_i32_0 : i32, i32, i32
  }
  func.func @transform_12(%arg0: i32) -> (i32, i32, i32) {
    %c0_i32 = arith.constant 0 : i32
    %c0_i32_0 = arith.constant 0 : i32
    %c0_i32_1 = arith.constant 0 : i32
    return %arg0, %c0_i32, %c0_i32_0 : i32, i32, i32
  }
}

</mosaic_0001>

<llo_original>
// kernel: snn_stage_block.8
$region0: #{snn_stage_block.8}
  #allocation0 [shape = 'u32[]', space=smem, size = 0x4, offset = 0x4, fixed_abs, tag = 'smem constant byte address 0x4 - core index']
  #allocation1 [shape = 'u32[144,128]{1,0:T(1,128)}', space=vmem, size = 0x12000, scoped, tag = 'internal scratch']
  %s0 = inlined_call_operand.vmem [shape: f32[2,128,8], index: 0, kind: input, shape index: {}]
  %s1 = inlined_call_operand.vmem [shape: f32[2,128,8], index: 1, kind: input, shape index: {}]
  %s2 = inlined_call_operand.vmem [shape: f32[1,8], index: 2, kind: input, shape index: {}]
  %s3 = inlined_call_operand.vmem [shape: f32[1,8], index: 3, kind: input, shape index: {}]
  %s4 = inlined_call_operand.vmem [shape: f32[1,8], index: 4, kind: input, shape index: {}]
  %s5 = inlined_call_operand.vmem [shape: f32[1,8], index: 5, kind: input, shape index: {}]
  %s6 = inlined_call_operand.vmem [shape: f32[2,128,8], index: 6, kind: output, shape index: {}]
  %s7 = sld [smem:[#allocation0]]
  $region34: #{snn_stage_block.8} parent=0
    _
  %s9 = ssub.s32 1, %s7
  %s10 = scalar_select 0, %s9, %s7
  // Predicated region
  $region2: #{snn_stage_block.8} parent=0 // pred_check
    _
  $region3: #{snn_stage_block.8} parent=0 // pred_check_branch
    %12 = sbr.rel (0) target = $region5
  $region4: #{snn_stage_block.8} parent=0 // pred_region
    _
  $region5: #{snn_stage_block.8} parent=0 // pred_fallthru
    _
  // Predicated region
  $region6: #{snn_stage_block.8} parent=0 // pred_check
    _
  $region7: #{snn_stage_block.8} parent=0 // pred_check_branch
    %14 = sbr.rel (0) target = $region9
  $region8: #{snn_stage_block.8} parent=0 // pred_region
    _
  $region9: #{snn_stage_block.8} parent=0 // pred_fallthru
    _
  // Predicated region
  $region10: #{snn_stage_block.8} parent=0 // pred_check
    _
  $region11: #{snn_stage_block.8} parent=0 // pred_check_branch
    %16 = sbr.rel (0) target = $region13
  $region12: #{snn_stage_block.8} parent=0 // pred_region
    _
  $region13: #{snn_stage_block.8} parent=0 // pred_fallthru
    _
  // Predicated region
  $region14: #{snn_stage_block.8} parent=0 // pred_check
    _
  $region15: #{snn_stage_block.8} parent=0 // pred_check_branch
    %18 = sbr.rel (0) target = $region17
  $region16: #{snn_stage_block.8} parent=0 // pred_region
    _
  $region17: #{snn_stage_block.8} parent=0 // pred_fallthru
    _
  // Predicated region
  $region18: #{snn_stage_block.8} parent=0 // pred_check
    _
  $region19: #{snn_stage_block.8} parent=0 // pred_check_branch
    %20 = sbr.rel (0) target = $region21
  $region20: #{snn_stage_block.8} parent=0 // pred_region
    _
  $region21: #{snn_stage_block.8} parent=0 // pred_fallthru
    _
  // Predicated region
  $region22: #{snn_stage_block.8} parent=0 // pred_check
    _
  $region23: #{snn_stage_block.8} parent=0 // pred_check_branch
    %22 = sbr.rel (0) target = $region25
  $region24: #{snn_stage_block.8} parent=0 // pred_region
    _
  $region25: #{snn_stage_block.8} parent=0 // pred_fallthru
    _
  %v23 = vld [vmem:[%s0] sm:$0xff]
  %v24 = vld [vmem:[%s0 + $0x8] sm:$0xff]
  %v25 = vld [vmem:[%s0 + $0x10] sm:$0xff]
  %v26 = vld [vmem:[%s0 + $0x18] sm:$0xff]
  %v27 = vld [vmem:[%s0 + $0x20] sm:$0xff]
  %v28 = vld [vmem:[%s0 + $0x28] sm:$0xff]
  %v29 = vld [vmem:[%s0 + $0x30] sm:$0xff]
  %v30 = vld [vmem:[%s0 + $0x38] sm:$0xff]
  %v31 = vld [vmem:[%s0 + $0x40] sm:$0xff]
  %v32 = vld [vmem:[%s0 + $0x48] sm:$0xff]
  %v33 = vld [vmem:[%s0 + $0x50] sm:$0xff]
  %v34 = vld [vmem:[%s0 + $0x58] sm:$0xff]
  %v35 = vld [vmem:[%s0 + $0x60] sm:$0xff]
  %v36 = vld [vmem:[%s0 + $0x68] sm:$0xff]
  %v37 = vld [vmem:[%s0 + $0x70] sm:$0xff]
  %v38 = vld [vmem:[%s0 + $0x78] sm:$0xff]
  %v39 = vld [vmem:[%s2] sm:$0x1]
  %v41 = vlaneseq
  %v42 = vshrl.u32 %v41, 7
  %v43 = vsub.s32 0, %v42
  %v44 = vrot.slane %v39, %v43
  %v46 = vmul.f32 %v23, %v44
  %v47 = vmul.f32 %v24, %v44
  %v48 = vmul.f32 %v25, %v44
  %v49 = vmul.f32 %v26, %v44
  %v50 = vmul.f32 %v27, %v44
  %v51 = vmul.f32 %v28, %v44
  %v52 = vmul.f32 %v29, %v44
  %v53 = vmul.f32 %v30, %v44
  %v54 = vmul.f32 %v31, %v44
  %v55 = vmul.f32 %v32, %v44
  %v56 = vmul.f32 %v33, %v44
  %v57 = vmul.f32 %v34, %v44
  %v58 = vmul.f32 %v35, %v44
  %v59 = vmul.f32 %v36, %v44
  %v60 = vmul.f32 %v37, %v44
  %v61 = vmul.f32 %v38, %v44
  %v62 = vld [vmem:[%s3] sm:$0x1]
  %v64 = vlaneseq
  %v65 = vshrl.u32 %v64, 7
  %v66 = vsub.s32 0, %v65
  %v67 = vrot.slane %v62, %v66
  %v69 = vadd.f32 %v46, %v67
  %v70 = vadd.f32 %v47, %v67
  %v71 = vadd.f32 %v48, %v67
  %v72 = vadd.f32 %v49, %v67
  %v73 = vadd.f32 %v50, %v67
  %v74 = vadd.f32 %v51, %v67
  %v75 = vadd.f32 %v52, %v67
  %v76 = vadd.f32 %v53, %v67
  %v77 = vadd.f32 %v54, %v67
  %v78 = vadd.f32 %v55, %v67
  %v79 = vadd.f32 %v56, %v67
  %v80 = vadd.f32 %v57, %v67
  %v81 = vadd.f32 %v58, %v67
  %v82 = vadd.f32 %v59, %v67
  %v83 = vadd.f32 %v60, %v67
  %v84 = vadd.f32 %v61, %v67
  %v85 = vld [vmem:[%s1] sm:$0xff]
  %v86 = vld [vmem:[%s1 + $0x8] sm:$0xff]
  %v87 = vld [vmem:[%s1 + $0x10] sm:$0xff]
  %v88 = vld [vmem:[%s1 + $0x18] sm:$0xff]
  %v89 = vld [vmem:[%s1 + $0x20] sm:$0xff]
  %v90 = vld [vmem:[%s1 + $0x28] sm:$0xff]
  %v91 = vld [vmem:[%s1 + $0x30] sm:$0xff]
  %v92 = vld [vmem:[%s1 + $0x38] sm:$0xff]
  %v93 = vld [vmem:[%s1 + $0x40] sm:$0xff]
  %v94 = vld [vmem:[%s1 + $0x48] sm:$0xff]
  %v95 = vld [vmem:[%s1 + $0x50] sm:$0xff]
  %v96 = vld [vmem:[%s1 + $0x58] sm:$0xff]
  %v97 = vld [vmem:[%s1 + $0x60] sm:$0xff]
  %v98 = vld [vmem:[%s1 + $0x68] sm:$0xff]
  %v99 = vld [vmem:[%s1 + $0x70] sm:$0xff]
  %v100 = vld [vmem:[%s1 + $0x78] sm:$0xff]
  %v101 = vld [vmem:[%s4] sm:$0x1]
  %v103 = vlaneseq
  %v104 = vshrl.u32 %v103, 7
  %v105 = vsub.s32 0, %v104
  %v106 = vrot.slane %v101, %v105
  %v108 = vmul.f32 %v85, %v106
  %v109 = vmul.f32 %v86, %v106
  %v110 = vmul.f32 %v87, %v106
  %v111 = vmul.f32 %v88, %v106
  %v112 = vmul.f32 %v89, %v106
  %v113 = vmul.f32 %v90, %v106
  %v114 = vmul.f32 %v91, %v106
  %v115 = vmul.f32 %v92, %v106
  %v116 = vmul.f32 %v93, %v106
  %v117 = vmul.f32 %v94, %v106
  %v118 = vmul.f32 %v95, %v106
  %v119 = vmul.f32 %v96, %v106
  %v120 = vmul.f32 %v97, %v106
  %v121 = vmul.f32 %v98, %v106
  %v122 = vmul.f32 %v99, %v106
  %v123 = vmul.f32 %v100, %v106
  %v124 = vld [vmem:[%s5] sm:$0x1]
  %v126 = vlaneseq
  %v127 = vshrl.u32 %v126, 7
  %v128 = vsub.s32 0, %v127
  %v129 = vrot.slane %v124, %v128
  %v131 = vadd.f32 %v108, %v129
  %v132 = vadd.f32 %v109, %v129
  %v133 = vadd.f32 %v110, %v129
  %v134 = vadd.f32 %v111, %v129
  %v135 = vadd.f32 %v112, %v129
  %v136 = vadd.f32 %v113, %v129
  %v137 = vadd.f32 %v114, %v129
  %v138 = vadd.f32 %v115, %v129
  %v139 = vadd.f32 %v116, %v129
  %v140 = vadd.f32 %v117, %v129
  %v141 = vadd.f32 %v118, %v129
  %v142 = vadd.f32 %v119, %v129
  %v143 = vadd.f32 %v120, %v129
  %v144 = vadd.f32 %v121, %v129
  %v145 = vadd.f32 %v122, %v129
  %v146 = vadd.f32 %v123, %v129
  %v147 = vadd.f32 %v131, %v69
  %v148 = vadd.f32 %v132, %v70
  %v149 = vadd.f32 %v133, %v71
  %v150 = vadd.f32 %v134, %v72
  %v151 = vadd.f32 %v135, %v73
  %v152 = vadd.f32 %v136, %v74
  %v153 = vadd.f32 %v137, %v75
  %v154 = vadd.f32 %v138, %v76
  %v155 = vadd.f32 %v139, %v77
  %v156 = vadd.f32 %v140, %v78
  %v157 = vadd.f32 %v141, %v79
  %v158 = vadd.f32 %v142, %v80
  %v159 = vadd.f32 %v143, %v81
  %v160 = vadd.f32 %v144, %v82
  %v161 = vadd.f32 %v145, %v83
  %v162 = vadd.f32 %v146, %v84
  %v163 = vmul.f32 %v147, 0.5
  %v164 = vmul.f32 %v148, 0.5
  %v165 = vmul.f32 %v149, 0.5
  %v166 = vmul.f32 %v150, 0.5
  %v167 = vmul.f32 %v151, 0.5
  %v168 = vmul.f32 %v152, 0.5
  %v169 = vmul.f32 %v153, 0.5
  %v170 = vmul.f32 %v154, 0.5
  %v171 = vmul.f32 %v155, 0.5
  %v172 = vmul.f32 %v156, 0.5
  %v173 = vmul.f32 %v157, 0.5
  %v174 = vmul.f32 %v158, 0.5
  %v175 = vmul.f32 %v159, 0.5
  %v176 = vmul.f32 %v160, 0.5
  %v177 = vmul.f32 %v161, 0.5
  %v178 = vmul.f32 %v162, 0.5
  %v179 = vadd.f32 %v163, 0.0
  %v180 = vadd.f32 %v164, 0.0
  %v181 = vadd.f32 %v165, 0.0
  %v182 = vadd.f32 %v166, 0.0
  %v183 = vadd.f32 %v167, 0.0
  %v184 = vadd.f32 %v168, 0.0
  %v185 = vadd.f32 %v169, 0.0
  %v186 = vadd.f32 %v170, 0.0
  %v187 = vadd.f32 %v171, 0.0
  %v188 = vadd.f32 %v172, 0.0
  %v189 = vadd.f32 %v173, 0.0
  %v190 = vadd.f32 %v174, 0.0
  %v191 = vadd.f32 %v175, 0.0
  %v192 = vadd.f32 %v176, 0.0
  %v193 = vadd.f32 %v177, 0.0
  %v194 = vadd.f32 %v178, 0.0
  %vm195 = vcmp.ge.f32.partialorder %v179, 1.0
  %vm196 = vcmp.ge.f32.partialorder %v180, 1.0
  %vm197 = vcmp.ge.f32.partialorder %v181, 1.0
  %vm198 = vcmp.ge.f32.partialorder %v182, 1.0
  %vm199 = vcmp.ge.f32.partialorder %v183, 1.0
  %vm200 = vcmp.ge.f32.partialorder %v184, 1.0
  %vm201 = vcmp.ge.f32.partialorder %v185, 1.0
  %vm202 = vcmp.ge.f32.partialorder %v186, 1.0
  %vm203 = vcmp.ge.f32.partialorder %v187, 1.0
  %vm204 = vcmp.ge.f32.partialorder %v188, 1.0
  %vm205 = vcmp.ge.f32.partialorder %v189, 1.0
  %vm206 = vcmp.ge.f32.partialorder %v190, 1.0
  %vm207 = vcmp.ge.f32.partialorder %v191, 1.0
  %vm208 = vcmp.ge.f32.partialorder %v192, 1.0
  %vm209 = vcmp.ge.f32.partialorder %v193, 1.0
  %vm210 = vcmp.ge.f32.partialorder %v194, 1.0
  %v211 = vsel %vm195, 1, 0
  %v212 = vsel %vm196, 1, 0
  %v213 = vsel %vm197, 1, 0
  %v214 = vsel %vm198, 1, 0
  %v215 = vsel %vm199, 1, 0
  %v216 = vsel %vm200, 1, 0
  %v217 = vsel %vm201, 1, 0
  %v218 = vsel %vm202, 1, 0
  %v219 = vsel %vm203, 1, 0
  %v220 = vsel %vm204, 1, 0
  %v221 = vsel %vm205, 1, 0
  %v222 = vsel %vm206, 1, 0
  %v223 = vsel %vm207, 1, 0
  %v224 = vsel %vm208, 1, 0
  %v225 = vsel %vm209, 1, 0
  %v226 = vsel %vm210, 1, 0
  %v227 = vcvt.s32.f32 %v211
  %v228 = vcvt.s32.f32 %v212
  %v229 = vcvt.s32.f32 %v213
  %v230 = vcvt.s32.f32 %v214
  %v231 = vcvt.s32.f32 %v215
  %v232 = vcvt.s32.f32 %v216
  %v233 = vcvt.s32.f32 %v217
  %v234 = vcvt.s32.f32 %v218
  %v235 = vcvt.s32.f32 %v219
  %v236 = vcvt.s32.f32 %v220
  %v237 = vcvt.s32.f32 %v221
  %v238 = vcvt.s32.f32 %v222
  %v239 = vcvt.s32.f32 %v223
  %v240 = vcvt.s32.f32 %v224
  %v241 = vcvt.s32.f32 %v225
  %v242 = vcvt.s32.f32 %v226
  %vm243 = vcmask 64512
  %244 = vst.msk [vmem:[%s6] sm:$0xff] %vm243, %v227
  %245 = vst.msk [vmem:[%s6 + $0x8] sm:$0xff] %vm243, %v228
  %246 = vst.msk [vmem:[%s6 + $0x10] sm:$0xff] %vm243, %v229
  %247 = vst.msk [vmem:[%s6 + $0x18] sm:$0xff] %vm243, %v230
  %248 = vst.msk [vmem:[%s6 + $0x20] sm:$0xff] %vm243, %v231
  %249 = vst.msk [vmem:[%s6 + $0x28] sm:$0xff] %vm243, %v232
  %250 = vst.msk [vmem:[%s6 + $0x30] sm:$0xff] %vm243, %v233
  %251 = vst.msk [vmem:[%s6 + $0x38] sm:$0xff] %vm243, %v234
  %252 = vst.msk [vmem:[%s6 + $0x40] sm:$0xff] %vm243, %v235
  %253 = vst.msk [vmem:[%s6 + $0x48] sm:$0xff] %vm243, %v236
  %254 = vst.msk [vmem:[%s6 + $0x50] sm:$0xff] %vm243, %v237
  %255 = vst.msk [vmem:[%s6 + $0x58] sm:$0xff] %vm243, %v238
  %256 = vst.msk [vmem:[%s6 + $0x60] sm:$0xff] %vm243, %v239
  %257 = vst.msk [vmem:[%s6 + $0x68] sm:$0xff] %vm243, %v240
  %258 = vst.msk [vmem:[%s6 + $0x70] sm:$0xff] %vm243, %v241
  %259 = vst.msk [vmem:[%s6 + $0x78] sm:$0xff] %vm243, %v242
  %v260 = vsub.f32 1.0, %v227
  %v261 = vsub.f32 1.0, %v228
  %v262 = vsub.f32 1.0, %v229
  %v263 = vsub.f32 1.0, %v230
  %v264 = vsub.f32 1.0, %v231
  %v265 = vsub.f32 1.0, %v232
  %v266 = vsub.f32 1.0, %v233
  %v267 = vsub.f32 1.0, %v234
  %v268 = vsub.f32 1.0, %v235
  %v269 = vsub.f32 1.0, %v236
  %v270 = vsub.f32 1.0, %v237
  %v271 = vsub.f32 1.0, %v238
  %v272 = vsub.f32 1.0, %v239
  %v273 = vsub.f32 1.0, %v240
  %v274 = vsub.f32 1.0, %v241
  %v275 = vsub.f32 1.0, %v242
  %v276 = vmul.f32 %v179, %v260
  %v277 = vmul.f32 %v180, %v261
  %v278 = vmul.f32 %v181, %v262
  %v279 = vmul.f32 %v182, %v263
  %v280 = vmul.f32 %v183, %v264
  %v281 = vmul.f32 %v184, %v265
  %v282 = vmul.f32 %v185, %v266
  %v283 = vmul.f32 %v186, %v267
  %v284 = vmul.f32 %v187, %v268
  %v285 = vmul.f32 %v188, %v269
  %v286 = vmul.f32 %v189, %v270
  %v287 = vmul.f32 %v190, %v271
  %v288 = vmul.f32 %v191, %v272
  %v289 = vmul.f32 %v192, %v273
  %v290 = vmul.f32 %v193, %v274
  %v291 = vmul.f32 %v194, %v275
  %s292 = scalar_lea.vmem %s0, 128
  %v293 = vld [vmem:[%s292] sm:$0xff]
  %v294 = vld [vmem:[%s292 + $0x8] sm:$0xff]
  %v295 = vld [vmem:[%s292 + $0x10] sm:$0xff]
  %v296 = vld [vmem:[%s292 + $0x18] sm:$0xff]
  %v297 = vld [vmem:[%s292 + $0x20] sm:$0xff]
  %v298 = vld [vmem:[%s292 + $0x28] sm:$0xff]
  %v299 = vld [vmem:[%s292 + $0x30] sm:$0xff]
  %v300 = vld [vmem:[%s292 + $0x38] sm:$0xff]
  %v301 = vld [vmem:[%s292 + $0x40] sm:$0xff]
  %v302 = vld [vmem:[%s292 + $0x48] sm:$0xff]
  %v303 = vld [vmem:[%s292 + $0x50] sm:$0xff]
  %v304 = vld [vmem:[%s292 + $0x58] sm:$0xff]
  %v305 = vld [vmem:[%s292 + $0x60] sm:$0xff]
  %v306 = vld [vmem:[%s292 + $0x68] sm:$0xff]
  %v307 = vld [vmem:[%s292 + $0x70] sm:$0xff]
  %v308 = vld [vmem:[%s292 + $0x78] sm:$0xff]
  %v309 = vld [vmem:[%s2] sm:$0x1]
  %v311 = vlaneseq
  %v312 = vshrl.u32 %v311, 7
  %v313 = vsub.s32 0, %v312
  %v314 = vrot.slane %v309, %v313
  %v316 = vmul.f32 %v293, %v314
  %v317 = vmul.f32 %v294, %v314
  %v318 = vmul.f32 %v295, %v314
  %v319 = vmul.f32 %v296, %v314
  %v320 = vmul.f32 %v297, %v314
  %v321 = vmul.f32 %v298, %v314
  %v322 = vmul.f32 %v299, %v314
  %v323 = vmul.f32 %v300, %v314
  %v324 = vmul.f32 %v301, %v314
  %v325 = vmul.f32 %v302, %v314
  %v326 = vmul.f32 %v303, %v314
  %v327 = vmul.f32 %v304, %v314
  %v328 = vmul.f32 %v305, %v314
  %v329 = vmul.f32 %v306, %v314
  %v330 = vmul.f32 %v307, %v314
  %v331 = vmul.f32 %v308, %v314
  %v332 = vld [vmem:[%s3] sm:$0x1]
  %v334 = vlaneseq
  %v335 = vshrl.u32 %v334, 7
  %v336 = vsub.s32 0, %v335
  %v337 = vrot.slane %v332, %v336
  %v339 = vadd.f32 %v316, %v337
  %v340 = vadd.f32 %v317, %v337
  %v341 = vadd.f32 %v318, %v337
  %v342 = vadd.f32 %v319, %v337
  %v343 = vadd.f32 %v320, %v337
  %v344 = vadd.f32 %v321, %v337
  %v345 = vadd.f32 %v322, %v337
  %v346 = vadd.f32 %v323, %v337
  %v347 = vadd.f32 %v324, %v337
  %v348 = vadd.f32 %v325, %v337
  %v349 = vadd.f32 %v326, %v337
  %v350 = vadd.f32 %v327, %v337
  %v351 = vadd.f32 %v328, %v337
  %v352 = vadd.f32 %v329, %v337
  %v353 = vadd.f32 %v330, %v337
  %v354 = vadd.f32 %v331, %v337
  %s355 = scalar_lea.vmem %s1, 128
  %v356 = vld [vmem:[%s355] sm:$0xff]
  %v357 = vld [vmem:[%s355 + $0x8] sm:$0xff]
  %v358 = vld [vmem:[%s355 + $0x10] sm:$0xff]
  %v359 = vld [vmem:[%s355 + $0x18] sm:$0xff]
  %v360 = vld [vmem:[%s355 + $0x20] sm:$0xff]
  %v361 = vld [vmem:[%s355 + $0x28] sm:$0xff]
  %v362 = vld [vmem:[%s355 + $0x30] sm:$0xff]
  %v363 = vld [vmem:[%s355 + $0x38] sm:$0xff]
  %v364 = vld [vmem:[%s355 + $0x40] sm:$0xff]
  %v365 = vld [vmem:[%s355 + $0x48] sm:$0xff]
  %v366 = vld [vmem:[%s355 + $0x50] sm:$0xff]
  %v367 = vld [vmem:[%s355 + $0x58] sm:$0xff]
  %v368 = vld [vmem:[%s355 + $0x60] sm:$0xff]
  %v369 = vld [vmem:[%s355 + $0x68] sm:$0xff]
  %v370 = vld [vmem:[%s355 + $0x70] sm:$0xff]
  %v371 = vld [vmem:[%s355 + $0x78] sm:$0xff]
  %v372 = vld [vmem:[%s4] sm:$0x1]
  %v374 = vlaneseq
  %v375 = vshrl.u32 %v374, 7
  %v376 = vsub.s32 0, %v375
  %v377 = vrot.slane %v372, %v376
  %v379 = vmul.f32 %v356, %v377
  %v380 = vmul.f32 %v357, %v377
  %v381 = vmul.f32 %v358, %v377
  %v382 = vmul.f32 %v359, %v377
  %v383 = vmul.f32 %v360, %v377
  %v384 = vmul.f32 %v361, %v377
  %v385 = vmul.f32 %v362, %v377
  %v386 = vmul.f32 %v363, %v377
  %v387 = vmul.f32 %v364, %v377
  %v388 = vmul.f32 %v365, %v377
  %v389 = vmul.f32 %v366, %v377
  %v390 = vmul.f32 %v367, %v377
  %v391 = vmul.f32 %v368, %v377
  %v392 = vmul.f32 %v369, %v377
  %v393 = vmul.f32 %v370, %v377
  %v394 = vmul.f32 %v371, %v377
  %v395 = vld [vmem:[%s5] sm:$0x1]
  %v397 = vlaneseq
  %v398 = vshrl.u32 %v397, 7
  %v399 = vsub.s32 0, %v398
  %v400 = vrot.slane %v395, %v399
  %v402 = vadd.f32 %v379, %v400
  %v403 = vadd.f32 %v380, %v400
  %v404 = vadd.f32 %v381, %v400
  %v405 = vadd.f32 %v382, %v400
  %v406 = vadd.f32 %v383, %v400
  %v407 = vadd.f32 %v384, %v400
  %v408 = vadd.f32 %v385, %v400
  %v409 = vadd.f32 %v386, %v400
  %v410 = vadd.f32 %v387, %v400
  %v411 = vadd.f32 %v388, %v400
  %v412 = vadd.f32 %v389, %v400
  %v413 = vadd.f32 %v390, %v400
  %v414 = vadd.f32 %v391, %v400
  %v415 = vadd.f32 %v392, %v400
  %v416 = vadd.f32 %v393, %v400
  %v417 = vadd.f32 %v394, %v400
  %v418 = vadd.f32 %v402, %v339
  %v419 = vadd.f32 %v403, %v340
  %v420 = vadd.f32 %v404, %v341
  %v421 = vadd.f32 %v405, %v342
  %v422 = vadd.f32 %v406, %v343
  %v423 = vadd.f32 %v407, %v344
  %v424 = vadd.f32 %v408, %v345
  %v425 = vadd.f32 %v409, %v346
  %v426 = vadd.f32 %v410, %v347
  %v427 = vadd.f32 %v411, %v348
  %v428 = vadd.f32 %v412, %v349
  %v429 = vadd.f32 %v413, %v350
  %v430 = vadd.f32 %v414, %v351
  %v431 = vadd.f32 %v415, %v352
  %v432 = vadd.f32 %v416, %v353
  %v433 = vadd.f32 %v417, %v354
  %v434 = vsub.f32 %v418, %v276
  %v435 = vsub.f32 %v419, %v277
  %v436 = vsub.f32 %v420, %v278
  %v437 = vsub.f32 %v421, %v279
  %v438 = vsub.f32 %v422, %v280
  %v439 = vsub.f32 %v423, %v281
  %v440 = vsub.f32 %v424, %v282
  %v441 = vsub.f32 %v425, %v283
  %v442 = vsub.f32 %v426, %v284
  %v443 = vsub.f32 %v427, %v285
  %v444 = vsub.f32 %v428, %v286
  %v445 = vsub.f32 %v429, %v287
  %v446 = vsub.f32 %v430, %v288
  %v447 = vsub.f32 %v431, %v289
  %v448 = vsub.f32 %v432, %v290
  %v449 = vsub.f32 %v433, %v291
  %v450 = vmul.f32 %v434, 0.5
  %v451 = vmul.f32 %v435, 0.5
  %v452 = vmul.f32 %v436, 0.5
  %v453 = vmul.f32 %v437, 0.5
  %v454 = vmul.f32 %v438, 0.5
  %v455 = vmul.f32 %v439, 0.5
  %v456 = vmul.f32 %v440, 0.5
  %v457 = vmul.f32 %v441, 0.5
  %v458 = vmul.f32 %v442, 0.5
  %v459 = vmul.f32 %v443, 0.5
  %v460 = vmul.f32 %v444, 0.5
  %v461 = vmul.f32 %v445, 0.5
  %v462 = vmul.f32 %v446, 0.5
  %v463 = vmul.f32 %v447, 0.5
  %v464 = vmul.f32 %v448, 0.5
  %v465 = vmul.f32 %v449, 0.5
  %v466 = vadd.f32 %v276, %v450
  %v467 = vadd.f32 %v277, %v451
  %v468 = vadd.f32 %v278, %v452
  %v469 = vadd.f32 %v279, %v453
  %v470 = vadd.f32 %v280, %v454
  %v471 = vadd.f32 %v281, %v455
  %v472 = vadd.f32 %v282, %v456
  %v473 = vadd.f32 %v283, %v457
  %v474 = vadd.f32 %v284, %v458
  %v475 = vadd.f32 %v285, %v459
  %v476 = vadd.f32 %v286, %v460
  %v477 = vadd.f32 %v287, %v461
  %v478 = vadd.f32 %v288, %v462
  %v479 = vadd.f32 %v289, %v463
  %v480 = vadd.f32 %v290, %v464
  %v481 = vadd.f32 %v291, %v465
  %vm482 = vcmp.ge.f32.partialorder %v466, 1.0
  %vm483 = vcmp.ge.f32.partialorder %v467, 1.0
  %vm484 = vcmp.ge.f32.partialorder %v468, 1.0
  %vm485 = vcmp.ge.f32.partialorder %v469, 1.0
  %vm486 = vcmp.ge.f32.partialorder %v470, 1.0
  %vm487 = vcmp.ge.f32.partialorder %v471, 1.0
  %vm488 = vcmp.ge.f32.partialorder %v472, 1.0
  %vm489 = vcmp.ge.f32.partialorder %v473, 1.0
  %vm490 = vcmp.ge.f32.partialorder %v474, 1.0
  %vm491 = vcmp.ge.f32.partialorder %v475, 1.0
  %vm492 = vcmp.ge.f32.partialorder %v476, 1.0
  %vm493 = vcmp.ge.f32.partialorder %v477, 1.0
  %vm494 = vcmp.ge.f32.partialorder %v478, 1.0
  %vm495 = vcmp.ge.f32.partialorder %v479, 1.0
  %vm496 = vcmp.ge.f32.partialorder %v480, 1.0
  %vm497 = vcmp.ge.f32.partialorder %v481, 1.0
  %v498 = vsel %vm482, 1, 0
  %v499 = vsel %vm483, 1, 0
  %v500 = vsel %vm484, 1, 0
  %v501 = vsel %vm485, 1, 0
  %v502 = vsel %vm486, 1, 0
  %v503 = vsel %vm487, 1, 0
  %v504 = vsel %vm488, 1, 0
  %v505 = vsel %vm489, 1, 0
  %v506 = vsel %vm490, 1, 0
  %v507 = vsel %vm491, 1, 0
  %v508 = vsel %vm492, 1, 0
  %v509 = vsel %vm493, 1, 0
  %v510 = vsel %vm494, 1, 0
  %v511 = vsel %vm495, 1, 0
  %v512 = vsel %vm496, 1, 0
  %v513 = vsel %vm497, 1, 0
  %v514 = vcvt.s32.f32 %v498
  %v515 = vcvt.s32.f32 %v499
  %v516 = vcvt.s32.f32 %v500
  %v517 = vcvt.s32.f32 %v501
  %v518 = vcvt.s32.f32 %v502
  %v519 = vcvt.s32.f32 %v503
  %v520 = vcvt.s32.f32 %v504
  %v521 = vcvt.s32.f32 %v505
  %v522 = vcvt.s32.f32 %v506
  %v523 = vcvt.s32.f32 %v507
  %v524 = vcvt.s32.f32 %v508
  %v525 = vcvt.s32.f32 %v509
  %v526 = vcvt.s32.f32 %v510
  %v527 = vcvt.s32.f32 %v511
  %v528 = vcvt.s32.f32 %v512
  %v529 = vcvt.s32.f32 %v513
  %s530 = scalar_lea.vmem %s6, 128
  %531 = vst.msk [vmem:[%s530] sm:$0xff] %vm243, %v514
  %532 = vst.msk [vmem:[%s530 + $0x8] sm:$0xff] %vm243, %v515
  %533 = vst.msk [vmem:[%s530 + $0x10] sm:$0xff] %vm243, %v516
  %534 = vst.msk [vmem:[%s530 + $0x18] sm:$0xff] %vm243, %v517
  %535 = vst.msk [vmem:[%s530 + $0x20] sm:$0xff] %vm243, %v518
  %536 = vst.msk [vmem:[%s530 + $0x28] sm:$0xff] %vm243, %v519
  %537 = vst.msk [vmem:[%s530 + $0x30] sm:$0xff] %vm243, %v520
  %538 = vst.msk [vmem:[%s530 + $0x38] sm:$0xff] %vm243, %v521
  %539 = vst.msk [vmem:[%s530 + $0x40] sm:$0xff] %vm243, %v522
  %540 = vst.msk [vmem:[%s530 + $0x48] sm:$0xff] %vm243, %v523
  %541 = vst.msk [vmem:[%s530 + $0x50] sm:$0xff] %vm243, %v524
  %542 = vst.msk [vmem:[%s530 + $0x58] sm:$0xff] %vm243, %v525
  %543 = vst.msk [vmem:[%s530 + $0x60] sm:$0xff] %vm243, %v526
  %544 = vst.msk [vmem:[%s530 + $0x68] sm:$0xff] %vm243, %v527
  %545 = vst.msk [vmem:[%s530 + $0x70] sm:$0xff] %vm243, %v528
  %546 = vst.msk [vmem:[%s530 + $0x78] sm:$0xff] %vm243, %v529
  // Predicated region
  $region26: #{snn_stage_block.8} parent=0 // pred_check
    _
  $region27: #{snn_stage_block.8} parent=0 // pred_check_branch
    %548 = sbr.rel (0) target = $region29
  $region28: #{snn_stage_block.8} parent=0 // pred_region
    _
  $region29: #{snn_stage_block.8} parent=0 // pred_fallthru
    _
  // Predicated region
  $region30: #{snn_stage_block.8} parent=0 // pred_check
    _
  $region31: #{snn_stage_block.8} parent=0 // pred_check_branch
    %550 = sbr.rel (0) target = $region33
  $region32: #{snn_stage_block.8} parent=0 // pred_region
    _
  $region33: #{snn_stage_block.8} parent=0 // pred_fallthru
    _

// kernel: snn_stage_block.6
$region0: #{snn_stage_block.6}
  #allocation0 [shape = 'u32[]', space=smem, size = 0x4, offset = 0x4, fixed_abs, tag = 'smem constant byte address 0x4 - core index']
  #allocation1 [shape = 'u32[144,128]{1,0:T(1,128)}', space=vmem, size = 0x12000, scoped, tag = 'internal scratch']
  %s0 = inlined_call_operand.vmem [shape: f32[2,128,16], index: 0, kind: input, shape index: {}]
  %s1 = inlined_call_operand.vmem [shape: bf16[16,8], index: 1, kind: input, shape index: {}]
  %s2 = inlined_call_operand.vmem [shape: f32[1,8], index: 2, kind: input, shape index: {}]
  %s3 = inlined_call_operand.vmem [shape: f32[2,128,8], index: 3, kind: output, shape index: {0}]
  %s4 = inlined_call_operand.vmem [shape: f32[1,1,8], index: 4, kind: output, shape index: {1}]
  %5 = xla_tuple %s3, %s4
  %s6 = sld [smem:[#allocation0]]
  $region30: #{snn_stage_block.6} parent=0
    _
  %s8 = ssub.s32 1, %s6
  %s9 = scalar_select 0, %s8, %s6
  // Predicated region
  $region2: #{snn_stage_block.6} parent=0 // pred_check
    _
  $region3: #{snn_stage_block.6} parent=0 // pred_check_branch
    %11 = sbr.rel (0) target = $region5
  $region4: #{snn_stage_block.6} parent=0 // pred_region
    _
  $region5: #{snn_stage_block.6} parent=0 // pred_fallthru
    _
  // Predicated region
  $region6: #{snn_stage_block.6} parent=0 // pred_check
    _
  $region7: #{snn_stage_block.6} parent=0 // pred_check_branch
    %13 = sbr.rel (0) target = $region9
  $region8: #{snn_stage_block.6} parent=0 // pred_region
    _
  $region9: #{snn_stage_block.6} parent=0 // pred_fallthru
    _
  // Predicated region
  $region10: #{snn_stage_block.6} parent=0 // pred_check
    _
  $region11: #{snn_stage_block.6} parent=0 // pred_check_branch
    %15 = sbr.rel (0) target = $region13
  $region12: #{snn_stage_block.6} parent=0 // pred_region
    _
  $region13: #{snn_stage_block.6} parent=0 // pred_fallthru
    _
  %v17 = vld [vmem:[%s0] sm:$0xff]
  %v18 = vld [vmem:[%s0 + $0x8] sm:$0xff]
  %v19 = vld [vmem:[%s0 + $0x10] sm:$0xff]
  %v20 = vld [vmem:[%s0 + $0x18] sm:$0xff]
  %v21 = vld [vmem:[%s0 + $0x20] sm:$0xff]
  %v22 = vld [vmem:[%s0 + $0x28] sm:$0xff]
  %v23 = vld [vmem:[%s0 + $0x30] sm:$0xff]
  %v24 = vld [vmem:[%s0 + $0x38] sm:$0xff]
  %v25 = vld [vmem:[%s0 + $0x40] sm:$0xff]
  %v26 = vld [vmem:[%s0 + $0x48] sm:$0xff]
  %v27 = vld [vmem:[%s0 + $0x50] sm:$0xff]
  %v28 = vld [vmem:[%s0 + $0x58] sm:$0xff]
  %v29 = vld [vmem:[%s0 + $0x60] sm:$0xff]
  %v30 = vld [vmem:[%s0 + $0x68] sm:$0xff]
  %v31 = vld [vmem:[%s0 + $0x70] sm:$0xff]
  %v32 = vld [vmem:[%s0 + $0x78] sm:$0xff]
  %v33 = vpack.c.bf16 %v18, %v17
  %v34 = vpack.c.bf16 %v20, %v19
  %v35 = vpack.c.bf16 %v22, %v21
  %v36 = vpack.c.bf16 %v24, %v23
  %v37 = vpack.c.bf16 %v26, %v25
  %v38 = vpack.c.bf16 %v28, %v27
  %v39 = vpack.c.bf16 %v30, %v29
  %v40 = vpack.c.bf16 %v32, %v31
  %v41 = vld [vmem:[%s1] sm:$0xf]
  %v42 = vld [vmem:[%s1 + $0x4] sm:$0xf]
  %v43 = vld [vmem:[%s2] sm:$0x1]
  %v45 = vlaneseq
  %v46 = vshrl.u32 %v45, 7
  %v47 = vsub.s32 0, %v46
  %v48 = vrot.slane %v43, %v47
  %v52 = vunpack.c.l.b16 %v41
  %v53 = vunpack.c.l.b16 %v42
  %v54 = vpack.c.b16 %v53, %v52
  %vm56 = vcmask 130048
  %v58 = vsel %vm56, %v33, 0
  %v61 = vsel %vm56, %v34, 0
  %v64 = vsel %vm56, %v35, 0
  %v67 = vsel %vm56, %v36, 0
  %v70 = vsel %vm56, %v37, 0
  %v73 = vsel %vm56, %v38, 0
  %v76 = vsel %vm56, %v39, 0
  %v79 = vsel %vm56, %v40, 0
  %81 = vmatprep.subr.bf16.mxu0 0
  %82 = vmatpush1.bf16.msra.mxu0 0
  %83 = vmatprep.subr.bf16.mxu0 0
  %84 = vmatpush1.bf16.msra.mxu0 0
  %85 = vmatprep.subr.bf16.mxu0 0
  %86 = vmatpush1.bf16.msra.mxu0 0
  %87 = vmatprep.subr.bf16.mxu0 0
  %88 = vmatpush1.bf16.msra.mxu0 0
  %89 = vmatprep.subr.bf16.mxu0 0
  %90 = vmatpush1.bf16.msra.mxu0 0
  %91 = vmatprep.subr.bf16.mxu0 0
  %92 = vmatpush1.bf16.msra.mxu0 0
  %93 = vmatprep.subr.bf16.mxu0 0
  %94 = vmatpush1.bf16.msra.mxu0 0
  %95 = vmatprep.subr.bf16.mxu0 0
  %96 = vmatpush1.bf16.msra.mxu0 %v54
  %97 = vmatprep.subr.bf16.mxu0 0
  %98 = vmatpush2.bf16.msra.mxu0 0
  %99 = vmatprep.subr.bf16.mxu0 0
  %100 = vmatpush2.bf16.msra.mxu0 0
  %101 = vmatprep.subr.bf16.mxu0 0
  %102 = vmatpush2.bf16.msra.mxu0 0
  %103 = vmatprep.subr.bf16.mxu0 0
  %104 = vmatpush2.bf16.msra.mxu0 0
  %105 = vmatprep.subr.bf16.mxu0 0
  %106 = vmatpush2.bf16.msra.mxu0 0
  %107 = vmatprep.subr.bf16.mxu0 0
  %108 = vmatpush2.bf16.msra.mxu0 0
  %109 = vmatprep.subr.bf16.mxu0 0
  %110 = vmatpush2.bf16.msra.mxu0 0
  %111 = vmatprep.subr.bf16.mxu0 0
  %112 = vmatpush2.bf16.msra.mxu0 0
  %113 = vmatprep.mubr.bf16.mxu0 0
  %114 = vmatmul.mubr.bf16.gmra.mxu0 %v58
  %v115 = vpop.f32.mrf.mxu0
  %v116 = vadd.f32 %v48, %v115
  %v117 = vpop.f32.mrf.mxu0
  %v118 = vpop.f32.mrf.mxu0
  %v119 = vadd.f32 %v48, %v118
  %v120 = vpop.f32.mrf.mxu0
  %121 = vmatprep.mubr.bf16.mxu0 0
  %122 = vmatmul.mubr.bf16.gmra.mxu0 %v61
  %v123 = vpop.f32.mrf.mxu0
  %v124 = vadd.f32 %v48, %v123
  %v125 = vpop.f32.mrf.mxu0
  %v126 = vpop.f32.mrf.mxu0
  %v127 = vadd.f32 %v48, %v126
  %v128 = vpop.f32.mrf.mxu0
  %129 = vmatprep.mubr.bf16.mxu0 0
  %130 = vmatmul.mubr.bf16.gmra.mxu0 %v64
  %v131 = vpop.f32.mrf.mxu0
  %v132 = vadd.f32 %v48, %v131
  %v133 = vpop.f32.mrf.mxu0
  %v134 = vpop.f32.mrf.mxu0
  %v135 = vadd.f32 %v48, %v134
  %v136 = vpop.f32.mrf.mxu0
  %137 = vmatprep.mubr.bf16.mxu0 0
  %138 = vmatmul.mubr.bf16.gmra.mxu0 %v67
  %v139 = vpop.f32.mrf.mxu0
  %v140 = vadd.f32 %v48, %v139
  %v141 = vpop.f32.mrf.mxu0
  %v142 = vpop.f32.mrf.mxu0
  %v143 = vadd.f32 %v48, %v142
  %v144 = vpop.f32.mrf.mxu0
  %145 = vmatprep.mubr.bf16.mxu0 0
  %146 = vmatmul.mubr.bf16.gmra.mxu0 %v70
  %v147 = vpop.f32.mrf.mxu0
  %v148 = vadd.f32 %v48, %v147
  %v149 = vpop.f32.mrf.mxu0
  %v150 = vpop.f32.mrf.mxu0
  %v151 = vadd.f32 %v48, %v150
  %v152 = vpop.f32.mrf.mxu0
  %153 = vmatprep.mubr.bf16.mxu0 0
  %154 = vmatmul.mubr.bf16.gmra.mxu0 %v73
  %v155 = vpop.f32.mrf.mxu0
  %v156 = vadd.f32 %v48, %v155
  %v157 = vpop.f32.mrf.mxu0
  %v158 = vpop.f32.mrf.mxu0
  %v159 = vadd.f32 %v48, %v158
  %v160 = vpop.f32.mrf.mxu0
  %161 = vmatprep.mubr.bf16.mxu0 0
  %162 = vmatmul.mubr.bf16.gmra.mxu0 %v76
  %v163 = vpop.f32.mrf.mxu0
  %v164 = vadd.f32 %v48, %v163
  %v165 = vpop.f32.mrf.mxu0
  %v166 = vpop.f32.mrf.mxu0
  %v167 = vadd.f32 %v48, %v166
  %v168 = vpop.f32.mrf.mxu0
  %169 = vmatprep.mubr.bf16.mxu0 0
  %170 = vmatmul.mubr.bf16.gmra.mxu0 %v79
  %v171 = vpop.f32.mrf.mxu0
  %v172 = vadd.f32 %v48, %v171
  %v173 = vpop.f32.mrf.mxu0
  %v174 = vpop.f32.mrf.mxu0
  %v175 = vadd.f32 %v48, %v174
  %v176 = vpop.f32.mrf.mxu0
  %177 = vdwg.mxu0
  %v178 = vmul.f32 %v116, 0.5
  %v179 = vmul.f32 %v119, 0.5
  %v180 = vmul.f32 %v124, 0.5
  %v181 = vmul.f32 %v127, 0.5
  %v182 = vmul.f32 %v132, 0.5
  %v183 = vmul.f32 %v135, 0.5
  %v184 = vmul.f32 %v140, 0.5
  %v185 = vmul.f32 %v143, 0.5
  %v186 = vmul.f32 %v148, 0.5
  %v187 = vmul.f32 %v151, 0.5
  %v188 = vmul.f32 %v156, 0.5
  %v189 = vmul.f32 %v159, 0.5
  %v190 = vmul.f32 %v164, 0.5
  %v191 = vmul.f32 %v167, 0.5
  %v192 = vmul.f32 %v172, 0.5
  %v193 = vmul.f32 %v175, 0.5
  %v194 = vadd.f32 %v178, 0.0
  %v195 = vadd.f32 %v179, 0.0
  %v196 = vadd.f32 %v180, 0.0
  %v197 = vadd.f32 %v181, 0.0
  %v198 = vadd.f32 %v182, 0.0
  %v199 = vadd.f32 %v183, 0.0
  %v200 = vadd.f32 %v184, 0.0
  %v201 = vadd.f32 %v185, 0.0
  %v202 = vadd.f32 %v186, 0.0
  %v203 = vadd.f32 %v187, 0.0
  %v204 = vadd.f32 %v188, 0.0
  %v205 = vadd.f32 %v189, 0.0
  %v206 = vadd.f32 %v190, 0.0
  %v207 = vadd.f32 %v191, 0.0
  %v208 = vadd.f32 %v192, 0.0
  %v209 = vadd.f32 %v193, 0.0
  %vm210 = vcmp.ge.f32.partialorder %v194, 1.0
  %vm211 = vcmp.ge.f32.partialorder %v195, 1.0
  %vm212 = vcmp.ge.f32.partialorder %v196, 1.0
  %vm213 = vcmp.ge.f32.partialorder %v197, 1.0
  %vm214 = vcmp.ge.f32.partialorder %v198, 1.0
  %vm215 = vcmp.ge.f32.partialorder %v199, 1.0
  %vm216 = vcmp.ge.f32.partialorder %v200, 1.0
  %vm217 = vcmp.ge.f32.partialorder %v201, 1.0
  %vm218 = vcmp.ge.f32.partialorder %v202, 1.0
  %vm219 = vcmp.ge.f32.partialorder %v203, 1.0
  %vm220 = vcmp.ge.f32.partialorder %v204, 1.0
  %vm221 = vcmp.ge.f32.partialorder %v205, 1.0
  %vm222 = vcmp.ge.f32.partialorder %v206, 1.0
  %vm223 = vcmp.ge.f32.partialorder %v207, 1.0
  %vm224 = vcmp.ge.f32.partialorder %v208, 1.0
  %vm225 = vcmp.ge.f32.partialorder %v209, 1.0
  %v226 = vsel %vm210, 1, 0
  %v227 = vsel %vm211, 1, 0
  %v228 = vsel %vm212, 1, 0
  %v229 = vsel %vm213, 1, 0
  %v230 = vsel %vm214, 1, 0
  %v231 = vsel %vm215, 1, 0
  %v232 = vsel %vm216, 1, 0
  %v233 = vsel %vm217, 1, 0
  %v234 = vsel %vm218, 1, 0
  %v235 = vsel %vm219, 1, 0
  %v236 = vsel %vm220, 1, 0
  %v237 = vsel %vm221, 1, 0
  %v238 = vsel %vm222, 1, 0
  %v239 = vsel %vm223, 1, 0
  %v240 = vsel %vm224, 1, 0
  %v241 = vsel %vm225, 1, 0
  %v242 = vcvt.s32.f32 %v226
  %v243 = vcvt.s32.f32 %v227
  %v244 = vcvt.s32.f32 %v228
  %v245 = vcvt.s32.f32 %v229
  %v246 = vcvt.s32.f32 %v230
  %v247 = vcvt.s32.f32 %v231
  %v248 = vcvt.s32.f32 %v232
  %v249 = vcvt.s32.f32 %v233
  %v250 = vcvt.s32.f32 %v234
  %v251 = vcvt.s32.f32 %v235
  %v252 = vcvt.s32.f32 %v236
  %v253 = vcvt.s32.f32 %v237
  %v254 = vcvt.s32.f32 %v238
  %v255 = vcvt.s32.f32 %v239
  %v256 = vcvt.s32.f32 %v240
  %v257 = vcvt.s32.f32 %v241
  %vm258 = vcmask 64512
  %259 = vst.msk [vmem:[%s3] sm:$0xff] %vm258, %v242
  %260 = vst.msk [vmem:[%s3 + $0x8] sm:$0xff] %vm258, %v243
  %261 = vst.msk [vmem:[%s3 + $0x10] sm:$0xff] %vm258, %v244
  %262 = vst.msk [vmem:[%s3 + $0x18] sm:$0xff] %vm258, %v245
  %263 = vst.msk [vmem:[%s3 + $0x20] sm:$0xff] %vm258, %v246
  %264 = vst.msk [vmem:[%s3 + $0x28] sm:$0xff] %vm258, %v247
  %265 = vst.msk [vmem:[%s3 + $0x30] sm:$0xff] %vm258, %v248
  %266 = vst.msk [vmem:[%s3 + $0x38] sm:$0xff] %vm258, %v249
  %267 = vst.msk [vmem:[%s3 + $0x40] sm:$0xff] %vm258, %v250
  %268 = vst.msk [vmem:[%s3 + $0x48] sm:$0xff] %vm258, %v251
  %269 = vst.msk [vmem:[%s3 + $0x50] sm:$0xff] %vm258, %v252
  %270 = vst.msk [vmem:[%s3 + $0x58] sm:$0xff] %vm258, %v253
  %271 = vst.msk [vmem:[%s3 + $0x60] sm:$0xff] %vm258, %v254
  %272 = vst.msk [vmem:[%s3 + $0x68] sm:$0xff] %vm258, %v255
  %273 = vst.msk [vmem:[%s3 + $0x70] sm:$0xff] %vm258, %v256
  %274 = vst.msk [vmem:[%s3 + $0x78] sm:$0xff] %vm258, %v257
  %v275 = vsub.f32 1.0, %v242
  %v276 = vsub.f32 1.0, %v243
  %v277 = vsub.f32 1.0, %v244
  %v278 = vsub.f32 1.0, %v245
  %v279 = vsub.f32 1.0, %v246
  %v280 = vsub.f32 1.0, %v247
  %v281 = vsub.f32 1.0, %v248
  %v282 = vsub.f32 1.0, %v249
  %v283 = vsub.f32 1.0, %v250
  %v284 = vsub.f32 1.0, %v251
  %v285 = vsub.f32 1.0, %v252
  %v286 = vsub.f32 1.0, %v253
  %v287 = vsub.f32 1.0, %v254
  %v288 = vsub.f32 1.0, %v255
  %v289 = vsub.f32 1.0, %v256
  %v290 = vsub.f32 1.0, %v257
  %v291 = vmul.f32 %v194, %v275
  %v292 = vmul.f32 %v195, %v276
  %v293 = vmul.f32 %v196, %v277
  %v294 = vmul.f32 %v197, %v278
  %v295 = vmul.f32 %v198, %v279
  %v296 = vmul.f32 %v199, %v280
  %v297 = vmul.f32 %v200, %v281
  %v298 = vmul.f32 %v201, %v282
  %v299 = vmul.f32 %v202, %v283
  %v300 = vmul.f32 %v203, %v284
  %v301 = vmul.f32 %v204, %v285
  %v302 = vmul.f32 %v205, %v286
  %v303 = vmul.f32 %v206, %v287
  %v304 = vmul.f32 %v207, %v288
  %v305 = vmul.f32 %v208, %v289
  %v306 = vmul.f32 %v209, %v290
  %v307 = vsel %vm258, %v242, 0.0
  %v308 = vsel %vm258, %v243, 0.0
  %v309 = vadd.f32 %v307, %v308
  %v310 = vsel %vm258, %v244, 0.0
  %v311 = vadd.f32 %v309, %v310
  %v312 = vsel %vm258, %v245, 0.0
  %v313 = vadd.f32 %v311, %v312
  %v314 = vsel %vm258, %v246, 0.0
  %v315 = vadd.f32 %v313, %v314
  %v316 = vsel %vm258, %v247, 0.0
  %v317 = vadd.f32 %v315, %v316
  %v318 = vsel %vm258, %v248, 0.0
  %v319 = vadd.f32 %v317, %v318
  %v320 = vsel %vm258, %v249, 0.0
  %v321 = vadd.f32 %v319, %v320
  %v322 = vsel %vm258, %v250, 0.0
  %v323 = vadd.f32 %v321, %v322
  %v324 = vsel %vm258, %v251, 0.0
  %v325 = vadd.f32 %v323, %v324
  %v326 = vsel %vm258, %v252, 0.0
  %v327 = vadd.f32 %v325, %v326
  %v328 = vsel %vm258, %v253, 0.0
  %v329 = vadd.f32 %v327, %v328
  %v330 = vsel %vm258, %v254, 0.0
  %v331 = vadd.f32 %v329, %v330
  %v332 = vsel %vm258, %v255, 0.0
  %v333 = vadd.f32 %v331, %v332
  %v334 = vsel %vm258, %v256, 0.0
  %v335 = vadd.f32 %v333, %v334
  %v336 = vsel %vm258, %v257, 0.0
  %v337 = vadd.f32 %v335, %v336
  %v338 = vrot.slane %v337, 4
  %v339 = vadd.f32 %v337, %v338
  %v340 = vrot.slane %v339, 2
  %v341 = vadd.f32 %v339, %v340
  %v342 = vrot.slane %v341, 1
  %v343 = vadd.f32 %v341, %v342
  %v344 = vadd.f32 %v343, 0.0
  %s345 = scalar_lea.vmem %s0, 128
  %v346 = vld [vmem:[%s345] sm:$0xff]
  %v347 = vld [vmem:[%s345 + $0x8] sm:$0xff]
  %v348 = vld [vmem:[%s345 + $0x10] sm:$0xff]
  %v349 = vld [vmem:[%s345 + $0x18] sm:$0xff]
  %v350 = vld [vmem:[%s345 + $0x20] sm:$0xff]
  %v351 = vld [vmem:[%s345 + $0x28] sm:$0xff]
  %v352 = vld [vmem:[%s345 + $0x30] sm:$0xff]
  %v353 = vld [vmem:[%s345 + $0x38] sm:$0xff]
  %v354 = vld [vmem:[%s345 + $0x40] sm:$0xff]
  %v355 = vld [vmem:[%s345 + $0x48] sm:$0xff]
  %v356 = vld [vmem:[%s345 + $0x50] sm:$0xff]
  %v357 = vld [vmem:[%s345 + $0x58] sm:$0xff]
  %v358 = vld [vmem:[%s345 + $0x60] sm:$0xff]
  %v359 = vld [vmem:[%s345 + $0x68] sm:$0xff]
  %v360 = vld [vmem:[%s345 + $0x70] sm:$0xff]
  %v361 = vld [vmem:[%s345 + $0x78] sm:$0xff]
  %v362 = vpack.c.bf16 %v347, %v346
  %v363 = vpack.c.bf16 %v349, %v348
  %v364 = vpack.c.bf16 %v351, %v350
  %v365 = vpack.c.bf16 %v353, %v352
  %v366 = vpack.c.bf16 %v355, %v354
  %v367 = vpack.c.bf16 %v357, %v356
  %v368 = vpack.c.bf16 %v359, %v358
  %v369 = vpack.c.bf16 %v361, %v360
  %v370 = vld [vmem:[%s1] sm:$0xf]
  %v371 = vld [vmem:[%s1 + $0x4] sm:$0xf]
  %v372 = vld [vmem:[%s2] sm:$0x1]
  %v374 = vlaneseq
  %v375 = vshrl.u32 %v374, 7
  %v376 = vsub.s32 0, %v375
  %v377 = vrot.slane %v372, %v376
  %v381 = vunpack.c.l.b16 %v370
  %v382 = vunpack.c.l.b16 %v371
  %v383 = vpack.c.b16 %v382, %v381
  %v386 = vsel %vm56, %v362, 0
  %v389 = vsel %vm56, %v363, 0
  %v392 = vsel %vm56, %v364, 0
  %v395 = vsel %vm56, %v365, 0
  %v398 = vsel %vm56, %v366, 0
  %v401 = vsel %vm56, %v367, 0
  %v404 = vsel %vm56, %v368, 0
  %v407 = vsel %vm56, %v369, 0
  %409 = vmatprep.subr.bf16.mxu0 0
  %410 = vmatpush1.bf16.msra.mxu0 0
  %411 = vmatprep.subr.bf16.mxu0 0
  %412 = vmatpush1.bf16.msra.mxu0 0
  %413 = vmatprep.subr.bf16.mxu0 0
  %414 = vmatpush1.bf16.msra.mxu0 0
  %415 = vmatprep.subr.bf16.mxu0 0
  %416 = vmatpush1.bf16.msra.mxu0 0
  %417 = vmatprep.subr.bf16.mxu0 0
  %418 = vmatpush1.bf16.msra.mxu0 0
  %419 = vmatprep.subr.bf16.mxu0 0
  %420 = vmatpush1.bf16.msra.mxu0 0
  %421 = vmatprep.subr.bf16.mxu0 0
  %422 = vmatpush1.bf16.msra.mxu0 0
  %423 = vmatprep.subr.bf16.mxu0 0
  %424 = vmatpush1.bf16.msra.mxu0 %v383
  %425 = vmatprep.subr.bf16.mxu0 0
  %426 = vmatpush2.bf16.msra.mxu0 0
  %427 = vmatprep.subr.bf16.mxu0 0
  %428 = vmatpush2.bf16.msra.mxu0 0
  %429 = vmatprep.subr.bf16.mxu0 0
  %430 = vmatpush2.bf16.msra.mxu0 0
  %431 = vmatprep.subr.bf16.mxu0 0
  %432 = vmatpush2.bf16.msra.mxu0 0
  %433 = vmatprep.subr.bf16.mxu0 0
  %434 = vmatpush2.bf16.msra.mxu0 0
  %435 = vmatprep.subr.bf16.mxu0 0
  %436 = vmatpush2.bf16.msra.mxu0 0
  %437 = vmatprep.subr.bf16.mxu0 0
  %438 = vmatpush2.bf16.msra.mxu0 0
  %439 = vmatprep.subr.bf16.mxu0 0
  %440 = vmatpush2.bf16.msra.mxu0 0
  %441 = vmatprep.mubr.bf16.mxu0 0
  %442 = vmatmul.mubr.bf16.gmra.mxu0 %v386
  %v443 = vpop.f32.mrf.mxu0
  %v444 = vadd.f32 %v377, %v443
  %v445 = vpop.f32.mrf.mxu0
  %v446 = vpop.f32.mrf.mxu0
  %v447 = vadd.f32 %v377, %v446
  %v448 = vpop.f32.mrf.mxu0
  %449 = vmatprep.mubr.bf16.mxu0 0
  %450 = vmatmul.mubr.bf16.gmra.mxu0 %v389
  %v451 = vpop.f32.mrf.mxu0
  %v452 = vadd.f32 %v377, %v451
  %v453 = vpop.f32.mrf.mxu0
  %v454 = vpop.f32.mrf.mxu0
  %v455 = vadd.f32 %v377, %v454
  %v456 = vpop.f32.mrf.mxu0
  %457 = vmatprep.mubr.bf16.mxu0 0
  %458 = vmatmul.mubr.bf16.gmra.mxu0 %v392
  %v459 = vpop.f32.mrf.mxu0
  %v460 = vadd.f32 %v377, %v459
  %v461 = vpop.f32.mrf.mxu0
  %v462 = vpop.f32.mrf.mxu0
  %v463 = vadd.f32 %v377, %v462
  %v464 = vpop.f32.mrf.mxu0
  %465 = vmatprep.mubr.bf16.mxu0 0
  %466 = vmatmul.mubr.bf16.gmra.mxu0 %v395
  %v467 = vpop.f32.mrf.mxu0
  %v468 = vadd.f32 %v377, %v467
  %v469 = vpop.f32.mrf.mxu0
  %v470 = vpop.f32.mrf.mxu0
  %v471 = vadd.f32 %v377, %v470
  %v472 = vpop.f32.mrf.mxu0
  %473 = vmatprep.mubr.bf16.mxu0 0
  %474 = vmatmul.mubr.bf16.gmra.mxu0 %v398
  %v475 = vpop.f32.mrf.mxu0
  %v476 = vadd.f32 %v377, %v475
  %v477 = vpop.f32.mrf.mxu0
  %v478 = vpop.f32.mrf.mxu0
  %v479 = vadd.f32 %v377, %v478
  %v480 = vpop.f32.mrf.mxu0
  %481 = vmatprep.mubr.bf16.mxu0 0
  %482 = vmatmul.mubr.bf16.gmra.mxu0 %v401
  %v483 = vpop.f32.mrf.mxu0
  %v484 = vadd.f32 %v377, %v483
  %v485 = vpop.f32.mrf.mxu0
  %v486 = vpop.f32.mrf.mxu0
  %v487 = vadd.f32 %v377, %v486
  %v488 = vpop.f32.mrf.mxu0
  %489 = vmatprep.mubr.bf16.mxu0 0
  %490 = vmatmul.mubr.bf16.gmra.mxu0 %v404
  %v491 = vpop.f32.mrf.mxu0
  %v492 = vadd.f32 %v377, %v491
  %v493 = vpop.f32.mrf.mxu0
  %v494 = vpop.f32.mrf.mxu0
  %v495 = vadd.f32 %v377, %v494
  %v496 = vpop.f32.mrf.mxu0
  %497 = vmatprep.mubr.bf16.mxu0 0
  %498 = vmatmul.mubr.bf16.gmra.mxu0 %v407
  %v499 = vpop.f32.mrf.mxu0
  %v500 = vadd.f32 %v377, %v499
  %v501 = vpop.f32.mrf.mxu0
  %v502 = vpop.f32.mrf.mxu0
  %v503 = vadd.f32 %v377, %v502
  %v504 = vpop.f32.mrf.mxu0
  %505 = vdwg.mxu0
  %v506 = vsub.f32 %v444, %v291
  %v507 = vsub.f32 %v447, %v292
  %v508 = vsub.f32 %v452, %v293
  %v509 = vsub.f32 %v455, %v294
  %v510 = vsub.f32 %v460, %v295
  %v511 = vsub.f32 %v463, %v296
  %v512 = vsub.f32 %v468, %v297
  %v513 = vsub.f32 %v471, %v298
  %v514 = vsub.f32 %v476, %v299
  %v515 = vsub.f32 %v479, %v300
  %v516 = vsub.f32 %v484, %v301
  %v517 = vsub.f32 %v487, %v302
  %v518 = vsub.f32 %v492, %v303
  %v519 = vsub.f32 %v495, %v304
  %v520 = vsub.f32 %v500, %v305
  %v521 = vsub.f32 %v503, %v306
  %v522 = vmul.f32 %v506, 0.5
  %v523 = vmul.f32 %v507, 0.5
  %v524 = vmul.f32 %v508, 0.5
  %v525 = vmul.f32 %v509, 0.5
  %v526 = vmul.f32 %v510, 0.5
  %v527 = vmul.f32 %v511, 0.5
  %v528 = vmul.f32 %v512, 0.5
  %v529 = vmul.f32 %v513, 0.5
  %v530 = vmul.f32 %v514, 0.5
  %v531 = vmul.f32 %v515, 0.5
  %v532 = vmul.f32 %v516, 0.5
  %v533 = vmul.f32 %v517, 0.5
  %v534 = vmul.f32 %v518, 0.5
  %v535 = vmul.f32 %v519, 0.5
  %v536 = vmul.f32 %v520, 0.5
  %v537 = vmul.f32 %v521, 0.5
  %v538 = vadd.f32 %v291, %v522
  %v539 = vadd.f32 %v292, %v523
  %v540 = vadd.f32 %v293, %v524
  %v541 = vadd.f32 %v294, %v525
  %v542 = vadd.f32 %v295, %v526
  %v543 = vadd.f32 %v296, %v527
  %v544 = vadd.f32 %v297, %v528
  %v545 = vadd.f32 %v298, %v529
  %v546 = vadd.f32 %v299, %v530
  %v547 = vadd.f32 %v300, %v531
  %v548 = vadd.f32 %v301, %v532
  %v549 = vadd.f32 %v302, %v533
  %v550 = vadd.f32 %v303, %v534
  %v551 = vadd.f32 %v304, %v535
  %v552 = vadd.f32 %v305, %v536
  %v553 = vadd.f32 %v306, %v537
  %vm554 = vcmp.ge.f32.partialorder %v538, 1.0
  %vm555 = vcmp.ge.f32.partialorder %v539, 1.0
  %vm556 = vcmp.ge.f32.partialorder %v540, 1.0
  %vm557 = vcmp.ge.f32.partialorder %v541, 1.0
  %vm558 = vcmp.ge.f32.partialorder %v542, 1.0
  %vm559 = vcmp.ge.f32.partialorder %v543, 1.0
  %vm560 = vcmp.ge.f32.partialorder %v544, 1.0
  %vm561 = vcmp.ge.f32.partialorder %v545, 1.0
  %vm562 = vcmp.ge.f32.partialorder %v546, 1.0
  %vm563 = vcmp.ge.f32.partialorder %v547, 1.0
  %vm564 = vcmp.ge.f32.partialorder %v548, 1.0
  %vm565 = vcmp.ge.f32.partialorder %v549, 1.0
  %vm566 = vcmp.ge.f32.partialorder %v550, 1.0
  %vm567 = vcmp.ge.f32.partialorder %v551, 1.0
  %vm568 = vcmp.ge.f32.partialorder %v552, 1.0
  %vm569 = vcmp.ge.f32.partialorder %v553, 1.0
  %v570 = vsel %vm554, 1, 0
  %v571 = vsel %vm555, 1, 0
  %v572 = vsel %vm556, 1, 0
  %v573 = vsel %vm557, 1, 0
  %v574 = vsel %vm558, 1, 0
  %v575 = vsel %vm559, 1, 0
  %v576 = vsel %vm560, 1, 0
  %v577 = vsel %vm561, 1, 0
  %v578 = vsel %vm562, 1, 0
  %v579 = vsel %vm563, 1, 0
  %v580 = vsel %vm564, 1, 0
  %v581 = vsel %vm565, 1, 0
  %v582 = vsel %vm566, 1, 0
  %v583 = vsel %vm567, 1, 0
  %v584 = vsel %vm568, 1, 0
  %v585 = vsel %vm569, 1, 0
  %v586 = vcvt.s32.f32 %v570
  %v587 = vcvt.s32.f32 %v571
  %v588 = vcvt.s32.f32 %v572
  %v589 = vcvt.s32.f32 %v573
  %v590 = vcvt.s32.f32 %v574
  %v591 = vcvt.s32.f32 %v575
  %v592 = vcvt.s32.f32 %v576
  %v593 = vcvt.s32.f32 %v577
  %v594 = vcvt.s32.f32 %v578
  %v595 = vcvt.s32.f32 %v579
  %v596 = vcvt.s32.f32 %v580
  %v597 = vcvt.s32.f32 %v581
  %v598 = vcvt.s32.f32 %v582
  %v599 = vcvt.s32.f32 %v583
  %v600 = vcvt.s32.f32 %v584
  %v601 = vcvt.s32.f32 %v585
  %s602 = scalar_lea.vmem %s3, 128
  %603 = vst.msk [vmem:[%s602] sm:$0xff] %vm258, %v586
  %604 = vst.msk [vmem:[%s602 + $0x8] sm:$0xff] %vm258, %v587
  %605 = vst.msk [vmem:[%s602 + $0x10] sm:$0xff] %vm258, %v588
  %606 = vst.msk [vmem:[%s602 + $0x18] sm:$0xff] %vm258, %v589
  %607 = vst.msk [vmem:[%s602 + $0x20] sm:$0xff] %vm258, %v590
  %608 = vst.msk [vmem:[%s602 + $0x28] sm:$0xff] %vm258, %v591
  %609 = vst.msk [vmem:[%s602 + $0x30] sm:$0xff] %vm258, %v592
  %610 = vst.msk [vmem:[%s602 + $0x38] sm:$0xff] %vm258, %v593
  %611 = vst.msk [vmem:[%s602 + $0x40] sm:$0xff] %vm258, %v594
  %612 = vst.msk [vmem:[%s602 + $0x48] sm:$0xff] %vm258, %v595
  %613 = vst.msk [vmem:[%s602 + $0x50] sm:$0xff] %vm258, %v596
  %614 = vst.msk [vmem:[%s602 + $0x58] sm:$0xff] %vm258, %v597
  %615 = vst.msk [vmem:[%s602 + $0x60] sm:$0xff] %vm258, %v598
  %616 = vst.msk [vmem:[%s602 + $0x68] sm:$0xff] %vm258, %v599
  %617 = vst.msk [vmem:[%s602 + $0x70] sm:$0xff] %vm258, %v600
  %618 = vst.msk [vmem:[%s602 + $0x78] sm:$0xff] %vm258, %v601
  %v619 = vsel %vm258, %v586, 0.0
  %v620 = vsel %vm258, %v587, 0.0
  %v621 = vadd.f32 %v619, %v620
  %v622 = vsel %vm258, %v588, 0.0
  %v623 = vadd.f32 %v621, %v622
  %v624 = vsel %vm258, %v589, 0.0
  %v625 = vadd.f32 %v623, %v624
  %v626 = vsel %vm258, %v590, 0.0
  %v627 = vadd.f32 %v625, %v626
  %v628 = vsel %vm258, %v591, 0.0
  %v629 = vadd.f32 %v627, %v628
  %v630 = vsel %vm258, %v592, 0.0
  %v631 = vadd.f32 %v629, %v630
  %v632 = vsel %vm258, %v593, 0.0
  %v633 = vadd.f32 %v631, %v632
  %v634 = vsel %vm258, %v594, 0.0
  %v635 = vadd.f32 %v633, %v634
  %v636 = vsel %vm258, %v595, 0.0
  %v637 = vadd.f32 %v635, %v636
  %v638 = vsel %vm258, %v596, 0.0
  %v639 = vadd.f32 %v637, %v638
  %v640 = vsel %vm258, %v597, 0.0
  %v641 = vadd.f32 %v639, %v640
  %v642 = vsel %vm258, %v598, 0.0
  %v643 = vadd.f32 %v641, %v642
  %v644 = vsel %vm258, %v599, 0.0
  %v645 = vadd.f32 %v643, %v644
  %v646 = vsel %vm258, %v600, 0.0
  %v647 = vadd.f32 %v645, %v646
  %v648 = vsel %vm258, %v601, 0.0
  %v649 = vadd.f32 %v647, %v648
  %v650 = vrot.slane %v649, 4
  %v651 = vadd.f32 %v649, %v650
  %v652 = vrot.slane %v651, 2
  %v653 = vadd.f32 %v651, %v652
  %v654 = vrot.slane %v653, 1
  %v655 = vadd.f32 %v653, %v654
  %v656 = vadd.f32 %v344, %v655
  %vm657 = vcmask 57344
  %658 = vst.msk [vmem:[%s4] sm:$0x1] %vm657, %v656
  // Predicated region
  $region14: #{snn_stage_block.6} parent=0 // pred_check
    _
  $region15: #{snn_stage_block.6} parent=0 // pred_check_branch
    %660 = sbr.rel (0) target = $region17
  $region16: #{snn_stage_block.6} parent=0 // pred_region
    _
  $region17: #{snn_stage_block.6} parent=0 // pred_fallthru
    _
  // Predicated region
  $region18: #{snn_stage_block.6} parent=0 // pred_check
    _
  $region19: #{snn_stage_block.6} parent=0 // pred_check_branch
    %662 = sbr.rel (0) target = $region21
  $region20: #{snn_stage_block.6} parent=0 // pred_region
    _
  $region21: #{snn_stage_block.6} parent=0 // pred_fallthru
    _
  // Predicated region
  $region22: #{snn_stage_block.6} parent=0 // pred_check
    _
  $region23: #{snn_stage_block.6} parent=0 // pred_check_branch
    %664 = sbr.rel (0) target = $region25
  $region24: #{snn_stage_block.6} parent=0 // pred_region
    _
  $region25: #{snn_stage_block.6} parent=0 // pred_fallthru
    _
  // Predicated region
  $region26: #{snn_stage_block.6} parent=0 // pred_check
    _
  $region27: #{snn_stage_block.6} parent=0 // pred_check_branch
    %666 = sbr.rel (0) target = $region29
  $region28: #{snn_stage_block.6} parent=0 // pred_region
    _
  $region29: #{snn_stage_block.6} parent=0 // pred_fallthru
    _

// kernel: snn_stage_block.10
$region0: #{snn_stage_block.10}
  #allocation0 [shape = 'u32[]', space=smem, size = 0x4, offset = 0x4, fixed_abs, tag = 'smem constant byte address 0x4 - core index']
  #allocation1 [shape = 'u32[144,128]{1,0:T(1,128)}', space=vmem, size = 0x12000, scoped, tag = 'internal scratch']
  %s0 = inlined_call_operand.vmem [shape: f32[2,8,16,8], index: 0, kind: input, shape index: {}]
  %s1 = inlined_call_operand.vmem [shape: bf16[8,8], index: 1, kind: input, shape index: {}]
  %s2 = inlined_call_operand.vmem [shape: f32[1,8], index: 2, kind: input, shape index: {}]
  %s3 = inlined_call_operand.vmem [shape: f32[8,1], index: 3, kind: input, shape index: {}]
  %s4 = inlined_call_operand.vmem [shape: f32[8,1], index: 4, kind: input, shape index: {}]
  %s5 = inlined_call_operand.vmem [shape: bf16[8,8], index: 5, kind: input, shape index: {}]
  %s6 = inlined_call_operand.vmem [shape: f32[1,8], index: 6, kind: input, shape index: {}]
  %s7 = inlined_call_operand.vmem [shape: f32[8,1], index: 7, kind: input, shape index: {}]
  %s8 = inlined_call_operand.vmem [shape: f32[8,1], index: 8, kind: input, shape index: {}]
  %s9 = inlined_call_operand.vmem [shape: f32[2,8,16,8], index: 9, kind: output, shape index: {}]
  %s10 = sld [smem:[#allocation0]]
  $region46: #{snn_stage_block.10} parent=0
    _
  %s12 = ssub.s32 1, %s10
  %s13 = scalar_select 0, %s12, %s10
  // Predicated region
  $region2: #{snn_stage_block.10} parent=0 // pred_check
    _
  $region3: #{snn_stage_block.10} parent=0 // pred_check_branch
    %15 = sbr.rel (0) target = $region5
  $region4: #{snn_stage_block.10} parent=0 // pred_region
    _
  $region5: #{snn_stage_block.10} parent=0 // pred_fallthru
    _
  // Predicated region
  $region6: #{snn_stage_block.10} parent=0 // pred_check
    _
  $region7: #{snn_stage_block.10} parent=0 // pred_check_branch
    %17 = sbr.rel (0) target = $region9
  $region8: #{snn_stage_block.10} parent=0 // pred_region
    _
  $region9: #{snn_stage_block.10} parent=0 // pred_fallthru
    _
  // Predicated region
  $region10: #{snn_stage_block.10} parent=0 // pred_check
    _
  $region11: #{snn_stage_block.10} parent=0 // pred_check_branch
    %19 = sbr.rel (0) target = $region13
  $region12: #{snn_stage_block.10} parent=0 // pred_region
    _
  $region13: #{snn_stage_block.10} parent=0 // pred_fallthru
    _
  // Predicated region
  $region14: #{snn_stage_block.10} parent=0 // pred_check
    _
  $region15: #{snn_stage_block.10} parent=0 // pred_check_branch
    %21 = sbr.rel (0) target = $region17
  $region16: #{snn_stage_block.10} parent=0 // pred_region
    _
  $region17: #{snn_stage_block.10} parent=0 // pred_fallthru
    _
  // Predicated region
  $region18: #{snn_stage_block.10} parent=0 // pred_check
    _
  $region19: #{snn_stage_block.10} parent=0 // pred_check_branch
    %23 = sbr.rel (0) target = $region21
  $region20: #{snn_stage_block.10} parent=0 // pred_region
    _
  $region21: #{snn_stage_block.10} parent=0 // pred_fallthru
    _
  // Predicated region
  $region22: #{snn_stage_block.10} parent=0 // pred_check
    _
  $region23: #{snn_stage_block.10} parent=0 // pred_check_branch
    %25 = sbr.rel (0) target = $region25
  $region24: #{snn_stage_block.10} parent=0 // pred_region
    _
  $region25: #{snn_stage_block.10} parent=0 // pred_fallthru
    _
  // Predicated region
  $region26: #{snn_stage_block.10} parent=0 // pred_check
    _
  $region27: #{snn_stage_block.10} parent=0 // pred_check_branch
    %27 = sbr.rel (0) target = $region29
  $region28: #{snn_stage_block.10} parent=0 // pred_region
    _
  $region29: #{snn_stage_block.10} parent=0 // pred_fallthru
    _
  // Predicated region
  $region30: #{snn_stage_block.10} parent=0 // pred_check
    _
  $region31: #{snn_stage_block.10} parent=0 // pred_check_branch
    %29 = sbr.rel (0) target = $region33
  $region32: #{snn_stage_block.10} parent=0 // pred_region
    _
  $region33: #{snn_stage_block.10} parent=0 // pred_fallthru
    _
  // Predicated region
  $region34: #{snn_stage_block.10} parent=0 // pred_check
    _
  $region35: #{snn_stage_block.10} parent=0 // pred_check_branch
    %31 = sbr.rel (0) target = $region37
  $region36: #{snn_stage_block.10} parent=0 // pred_region
    _
  $region37: #{snn_stage_block.10} parent=0 // pred_fallthru
    _
  %s33 = smul.u32 0, 8
  %s34 = scalar_lea.vmem %s3, %s33
  %v35 = vld [vmem:[%s34] sm:$0xff]
  %v37 = vcombine.high %v35, %v35
  %v39 = vunpack.c.l.s4 1966171168
  %v40 = vunpack.c.0.s8 %v39
  %v41 = vlaneseq
  %v42 = vshrl.u32 %v41, 7
  %v43 = vsub.s32 %v40, %v42
  %v44 = vrot.slane %v35, %v43
  %v46 = vunpack.c.l.s4 1966171168
  %v47 = vunpack.c.0.s8 %v46
  %v48 = vlaneseq
  %v49 = vshrl.u32 %v48, 7
  %v50 = vsub.s32 %v47, %v49
  %v51 = vrot.slane %v37, %v50
  %v52 = vcombine.high %v44, %v44
  %v53 = vcombine.high %v51, %v51
  %v55 = vunpack.c.l.s4 1966171168
  %v56 = vunpack.c.0.s8 %v55
  %v57 = vlaneseq
  %v58 = vshrl.u32 %v57, 7
  %v59 = vsub.s32 %v56, %v58
  %v60 = vrot.slane %v44, %v59
  %v62 = vunpack.c.l.s4 1966171168
  %v63 = vunpack.c.0.s8 %v62
  %v64 = vlaneseq
  %v65 = vshrl.u32 %v64, 7
  %v66 = vsub.s32 %v63, %v65
  %v67 = vrot.slane %v51, %v66
  %v69 = vunpack.c.l.s4 1966171168
  %v70 = vunpack.c.0.s8 %v69
  %v71 = vlaneseq
  %v72 = vshrl.u32 %v71, 7
  %v73 = vsub.s32 %v70, %v72
  %v74 = vrot.slane %v52, %v73
  %v76 = vunpack.c.l.s4 1966171168
  %v77 = vunpack.c.0.s8 %v76
  %v78 = vlaneseq
  %v79 = vshrl.u32 %v78, 7
  %v80 = vsub.s32 %v77, %v79
  %v81 = vrot.slane %v53, %v80
  %v82 = vcombine.high %v60, %v60
  %v83 = vcombine.high %v67, %v67
  %v84 = vcombine.high %v74, %v74
  %v85 = vcombine.high %v81, %v81
  %s94 = scalar_lea.vmem %s4, %s33
  %v95 = vld [vmem:[%s94] sm:$0xff]
  %s96 = scalar_lea.vmem %s7, %s33
  %v97 = vld [vmem:[%s96] sm:$0xff]
  %v99 = vcombine.high %v97, %v97
  %v101 = vunpack.c.l.s4 1966171168
  %v102 = vunpack.c.0.s8 %v101
  %v103 = vlaneseq
  %v104 = vshrl.u32 %v103, 7
  %v105 = vsub.s32 %v102, %v104
  %v106 = vrot.slane %v97, %v105
  %v108 = vunpack.c.l.s4 1966171168
  %v109 = vunpack.c.0.s8 %v108
  %v110 = vlaneseq
  %v111 = vshrl.u32 %v110, 7
  %v112 = vsub.s32 %v109, %v111
  %v113 = vrot.slane %v99, %v112
  %v114 = vcombine.high %v106, %v106
  %v115 = vcombine.high %v113, %v113
  %v117 = vunpack.c.l.s4 1966171168
  %v118 = vunpack.c.0.s8 %v117
  %v119 = vlaneseq
  %v120 = vshrl.u32 %v119, 7
  %v121 = vsub.s32 %v118, %v120
  %v122 = vrot.slane %v106, %v121
  %v124 = vunpack.c.l.s4 1966171168
  %v125 = vunpack.c.0.s8 %v124
  %v126 = vlaneseq
  %v127 = vshrl.u32 %v126, 7
  %v128 = vsub.s32 %v125, %v127
  %v129 = vrot.slane %v113, %v128
  %v131 = vunpack.c.l.s4 1966171168
  %v132 = vunpack.c.0.s8 %v131
  %v133 = vlaneseq
  %v134 = vshrl.u32 %v133, 7
  %v135 = vsub.s32 %v132, %v134
  %v136 = vrot.slane %v114, %v135
  %v138 = vunpack.c.l.s4 1966171168
  %v139 = vunpack.c.0.s8 %v138
  %v140 = vlaneseq
  %v141 = vshrl.u32 %v140, 7
  %v142 = vsub.s32 %v139, %v141
  %v143 = vrot.slane %v115, %v142
  %v144 = vcombine.high %v122, %v122
  %v145 = vcombine.high %v129, %v129
  %v146 = vcombine.high %v136, %v136
  %v147 = vcombine.high %v143, %v143
  %s156 = scalar_lea.vmem %s8, %s33
  %v157 = vld [vmem:[%s156] sm:$0xff]
  %v159 = vcombine.high %v157, %v157
  %v161 = vunpack.c.l.s4 1966171168
  %v162 = vunpack.c.0.s8 %v161
  %v163 = vlaneseq
  %v164 = vshrl.u32 %v163, 7
  %v165 = vsub.s32 %v162, %v164
  %v166 = vrot.slane %v157, %v165
  %v168 = vunpack.c.l.s4 1966171168
  %v169 = vunpack.c.0.s8 %v168
  %v170 = vlaneseq
  %v171 = vshrl.u32 %v170, 7
  %v172 = vsub.s32 %v169, %v171
  %v173 = vrot.slane %v159, %v172
  %v174 = vcombine.high %v166, %v166
  %v175 = vcombine.high %v173, %v173
  %v177 = vunpack.c.l.s4 1966171168
  %v178 = vunpack.c.0.s8 %v177
  %v179 = vlaneseq
  %v180 = vshrl.u32 %v179, 7
  %v181 = vsub.s32 %v178, %v180
  %v182 = vrot.slane %v166, %v181
  %v184 = vunpack.c.l.s4 1966171168
  %v185 = vunpack.c.0.s8 %v184
  %v186 = vlaneseq
  %v187 = vshrl.u32 %v186, 7
  %v188 = vsub.s32 %v185, %v187
  %v189 = vrot.slane %v173, %v188
  %v191 = vunpack.c.l.s4 1966171168
  %v192 = vunpack.c.0.s8 %v191
  %v193 = vlaneseq
  %v194 = vshrl.u32 %v193, 7
  %v195 = vsub.s32 %v192, %v194
  %v196 = vrot.slane %v174, %v195
  %v198 = vunpack.c.l.s4 1966171168
  %v199 = vunpack.c.0.s8 %v198
  %v200 = vlaneseq
  %v201 = vshrl.u32 %v200, 7
  %v202 = vsub.s32 %v199, %v201
  %v203 = vrot.slane %v175, %v202
  %v204 = vcombine.high %v182, %v182
  %v205 = vcombine.high %v189, %v189
  %v206 = vcombine.high %v196, %v196
  %v207 = vcombine.high %v203, %v203
  %v208 = vld [vmem:[%s0] sm:$0xff]
  %v209 = vld [vmem:[%s0 + $0x8] sm:$0xff]
  %v210 = vld [vmem:[%s0 + $0x10] sm:$0xff]
  %v211 = vld [vmem:[%s0 + $0x18] sm:$0xff]
  %v212 = vld [vmem:[%s0 + $0x20] sm:$0xff]
  %v213 = vld [vmem:[%s0 + $0x28] sm:$0xff]
  %v214 = vld [vmem:[%s0 + $0x30] sm:$0xff]
  %v215 = vld [vmem:[%s0 + $0x38] sm:$0xff]
  %v216 = vld [vmem:[%s0 + $0x40] sm:$0xff]
  %v217 = vld [vmem:[%s0 + $0x48] sm:$0xff]
  %v218 = vld [vmem:[%s0 + $0x50] sm:$0xff]
  %v219 = vld [vmem:[%s0 + $0x58] sm:$0xff]
  %v220 = vld [vmem:[%s0 + $0x60] sm:$0xff]
  %v221 = vld [vmem:[%s0 + $0x68] sm:$0xff]
  %v222 = vld [vmem:[%s0 + $0x70] sm:$0xff]
  %v223 = vld [vmem:[%s0 + $0x78] sm:$0xff]
  %v224 = vld [vmem:[%s0 + $0x80] sm:$0xff]
  %v225 = vld [vmem:[%s0 + $0x88] sm:$0xff]
  %v226 = vld [vmem:[%s0 + $0x90] sm:$0xff]
  %v227 = vld [vmem:[%s0 + $0x98] sm:$0xff]
  %v228 = vld [vmem:[%s0 + $0xa0] sm:$0xff]
  %v229 = vld [vmem:[%s0 + $0xa8] sm:$0xff]
  %v230 = vld [vmem:[%s0 + $0xb0] sm:$0xff]
  %v231 = vld [vmem:[%s0 + $0xb8] sm:$0xff]
  %v232 = vld [vmem:[%s0 + $0xc0] sm:$0xff]
  %v233 = vld [vmem:[%s0 + $0xc8] sm:$0xff]
  %v234 = vld [vmem:[%s0 + $0xd0] sm:$0xff]
  %v235 = vld [vmem:[%s0 + $0xd8] sm:$0xff]
  %v236 = vld [vmem:[%s0 + $0xe0] sm:$0xff]
  %v237 = vld [vmem:[%s0 + $0xe8] sm:$0xff]
  %v238 = vld [vmem:[%s0 + $0xf0] sm:$0xff]
  %v239 = vld [vmem:[%s0 + $0xf8] sm:$0xff]
  %v240 = vpack.c.bf16 %v209, %v208
  %v241 = vpack.c.bf16 %v211, %v210
  %v242 = vpack.c.bf16 %v213, %v212
  %v243 = vpack.c.bf16 %v215, %v214
  %v244 = vpack.c.bf16 %v217, %v216
  %v245 = vpack.c.bf16 %v219, %v218
  %v246 = vpack.c.bf16 %v221, %v220
  %v247 = vpack.c.bf16 %v223, %v222
  %v248 = vpack.c.bf16 %v225, %v224
  %v249 = vpack.c.bf16 %v227, %v226
  %v250 = vpack.c.bf16 %v229, %v228
  %v251 = vpack.c.bf16 %v231, %v230
  %v252 = vpack.c.bf16 %v233, %v232
  %v253 = vpack.c.bf16 %v235, %v234
  %v254 = vpack.c.bf16 %v237, %v236
  %v255 = vpack.c.bf16 %v239, %v238
  %v256 = vld [vmem:[%s1] sm:$0xf]
  %vm257 = vcmask 64512
  %v259 = vsel %vm257, %v240, 0
  %v262 = vsel %vm257, %v241, 0
  %v265 = vsel %vm257, %v242, 0
  %v268 = vsel %vm257, %v243, 0
  %v271 = vsel %vm257, %v244, 0
  %v274 = vsel %vm257, %v245, 0
  %v277 = vsel %vm257, %v246, 0
  %v280 = vsel %vm257, %v247, 0
  %v283 = vsel %vm257, %v248, 0
  %v286 = vsel %vm257, %v249, 0
  %v289 = vsel %vm257, %v250, 0
  %v292 = vsel %vm257, %v251, 0
  %v295 = vsel %vm257, %v252, 0
  %v298 = vsel %vm257, %v253, 0
  %v301 = vsel %vm257, %v254, 0
  %v304 = vsel %vm257, %v255, 0
  %vm306 = vcmask 1043456
  %v308 = vsel %vm306, %v256, 0
  %310 = vmatprep.subr.bf16.mxu0 0
  %311 = vmatpush1.bf16.msra.mxu0 0
  %312 = vmatprep.subr.bf16.mxu0 0
  %313 = vmatpush1.bf16.msra.mxu0 0
  %314 = vmatprep.subr.bf16.mxu0 0
  %315 = vmatpush1.bf16.msra.mxu0 0
  %316 = vmatprep.subr.bf16.mxu0 0
  %317 = vmatpush1.bf16.msra.mxu0 0
  %318 = vmatprep.subr.bf16.mxu0 0
  %319 = vmatpush1.bf16.msra.mxu0 0
  %320 = vmatprep.subr.bf16.mxu0 0
  %321 = vmatpush1.bf16.msra.mxu0 0
  %322 = vmatprep.subr.bf16.mxu0 0
  %323 = vmatpush1.bf16.msra.mxu0 0
  %324 = vmatprep.subr.bf16.mxu0 0
  %325 = vmatpush1.bf16.msra.mxu0 %v308
  %326 = vmatprep.subr.bf16.mxu0 0
  %327 = vmatpush2.bf16.msra.mxu0 0
  %328 = vmatprep.subr.bf16.mxu0 0
  %329 = vmatpush2.bf16.msra.mxu0 0
  %330 = vmatprep.subr.bf16.mxu0 0
  %331 = vmatpush2.bf16.msra.mxu0 0
  %332 = vmatprep.subr.bf16.mxu0 0
  %333 = vmatpush2.bf16.msra.mxu0 0
  %334 = vmatprep.subr.bf16.mxu0 0
  %335 = vmatpush2.bf16.msra.mxu0 0
  %336 = vmatprep.subr.bf16.mxu0 0
  %337 = vmatpush2.bf16.msra.mxu0 0
  %338 = vmatprep.subr.bf16.mxu0 0
  %339 = vmatpush2.bf16.msra.mxu0 0
  %340 = vmatprep.subr.bf16.mxu0 0
  %341 = vmatpush2.bf16.msra.mxu0 0
  %342 = vmatprep.mubr.bf16.mxu0 0
  %343 = vmatmul.mubr.bf16.gmra.mxu0 %v259
  %v344 = vpop.f32.mrf.mxu0
  %v345 = vadd.f32 0.0, %v344
  %v346 = vpop.f32.mrf.mxu0
  %v347 = vpop.f32.mrf.mxu0
  %v348 = vadd.f32 0.0, %v347
  %v349 = vpop.f32.mrf.mxu0
  %350 = vmatprep.mubr.bf16.mxu0 0
  %351 = vmatmul.mubr.bf16.gmra.mxu0 %v262
  %v352 = vpop.f32.mrf.mxu0
  %v353 = vadd.f32 0.0, %v352
  %v354 = vpop.f32.mrf.mxu0
  %v355 = vpop.f32.mrf.mxu0
  %v356 = vadd.f32 0.0, %v355
  %v357 = vpop.f32.mrf.mxu0
  %358 = vmatprep.mubr.bf16.mxu0 0
  %359 = vmatmul.mubr.bf16.gmra.mxu0 %v265
  %v360 = vpop.f32.mrf.mxu0
  %v361 = vadd.f32 0.0, %v360
  %v362 = vpop.f32.mrf.mxu0
  %v363 = vpop.f32.mrf.mxu0
  %v364 = vadd.f32 0.0, %v363
  %v365 = vpop.f32.mrf.mxu0
  %366 = vmatprep.mubr.bf16.mxu0 0
  %367 = vmatmul.mubr.bf16.gmra.mxu0 %v268
  %v368 = vpop.f32.mrf.mxu0
  %v369 = vadd.f32 0.0, %v368
  %v370 = vpop.f32.mrf.mxu0
  %v371 = vpop.f32.mrf.mxu0
  %v372 = vadd.f32 0.0, %v371
  %v373 = vpop.f32.mrf.mxu0
  %374 = vmatprep.mubr.bf16.mxu0 0
  %375 = vmatmul.mubr.bf16.gmra.mxu0 %v271
  %v376 = vpop.f32.mrf.mxu0
  %v377 = vadd.f32 0.0, %v376
  %v378 = vpop.f32.mrf.mxu0
  %v379 = vpop.f32.mrf.mxu0
  %v380 = vadd.f32 0.0, %v379
  %v381 = vpop.f32.mrf.mxu0
  %382 = vmatprep.mubr.bf16.mxu0 0
  %383 = vmatmul.mubr.bf16.gmra.mxu0 %v274
  %v384 = vpop.f32.mrf.mxu0
  %v385 = vadd.f32 0.0, %v384
  %v386 = vpop.f32.mrf.mxu0
  %v387 = vpop.f32.mrf.mxu0
  %v388 = vadd.f32 0.0, %v387
  %v389 = vpop.f32.mrf.mxu0
  %390 = vmatprep.mubr.bf16.mxu0 0
  %391 = vmatmul.mubr.bf16.gmra.mxu0 %v277
  %v392 = vpop.f32.mrf.mxu0
  %v393 = vadd.f32 0.0, %v392
  %v394 = vpop.f32.mrf.mxu0
  %v395 = vpop.f32.mrf.mxu0
  %v396 = vadd.f32 0.0, %v395
  %v397 = vpop.f32.mrf.mxu0
  %398 = vmatprep.mubr.bf16.mxu0 0
  %399 = vmatmul.mubr.bf16.gmra.mxu0 %v280
  %v400 = vpop.f32.mrf.mxu0
  %v401 = vadd.f32 0.0, %v400
  %v402 = vpop.f32.mrf.mxu0
  %v403 = vpop.f32.mrf.mxu0
  %v404 = vadd.f32 0.0, %v403
  %v405 = vpop.f32.mrf.mxu0
  %406 = vmatprep.mubr.bf16.mxu0 0
  %407 = vmatmul.mubr.bf16.gmra.mxu0 %v283
  %v408 = vpop.f32.mrf.mxu0
  %v409 = vadd.f32 0.0, %v408
  %v410 = vpop.f32.mrf.mxu0
  %v411 = vpop.f32.mrf.mxu0
  %v412 = vadd.f32 0.0, %v411
  %v413 = vpop.f32.mrf.mxu0
  %414 = vmatprep.mubr.bf16.mxu0 0
  %415 = vmatmul.mubr.bf16.gmra.mxu0 %v286
  %v416 = vpop.f32.mrf.mxu0
  %v417 = vadd.f32 0.0, %v416
  %v418 = vpop.f32.mrf.mxu0
  %v419 = vpop.f32.mrf.mxu0
  %v420 = vadd.f32 0.0, %v419
  %v421 = vpop.f32.mrf.mxu0
  %422 = vmatprep.mubr.bf16.mxu0 0
  %423 = vmatmul.mubr.bf16.gmra.mxu0 %v289
  %v424 = vpop.f32.mrf.mxu0
  %v425 = vadd.f32 0.0, %v424
  %v426 = vpop.f32.mrf.mxu0
  %v427 = vpop.f32.mrf.mxu0
  %v428 = vadd.f32 0.0, %v427
  %v429 = vpop.f32.mrf.mxu0
  %430 = vmatprep.mubr.bf16.mxu0 0
  %431 = vmatmul.mubr.bf16.gmra.mxu0 %v292
  %v432 = vpop.f32.mrf.mxu0
  %v433 = vadd.f32 0.0, %v432
  %v434 = vpop.f32.mrf.mxu0
  %v435 = vpop.f32.mrf.mxu0
  %v436 = vadd.f32 0.0, %v435
  %v437 = vpop.f32.mrf.mxu0
  %438 = vmatprep.mubr.bf16.mxu0 0
  %439 = vmatmul.mubr.bf16.gmra.mxu0 %v295
  %v440 = vpop.f32.mrf.mxu0
  %v441 = vadd.f32 0.0, %v440
  %v442 = vpop.f32.mrf.mxu0
  %v443 = vpop.f32.mrf.mxu0
  %v444 = vadd.f32 0.0, %v443
  %v445 = vpop.f32.mrf.mxu0
  %446 = vmatprep.mubr.bf16.mxu0 0
  %447 = vmatmul.mubr.bf16.gmra.mxu0 %v298
  %v448 = vpop.f32.mrf.mxu0
  %v449 = vadd.f32 0.0, %v448
  %v450 = vpop.f32.mrf.mxu0
  %v451 = vpop.f32.mrf.mxu0
  %v452 = vadd.f32 0.0, %v451
  %v453 = vpop.f32.mrf.mxu0
  %454 = vmatprep.mubr.bf16.mxu0 0
  %455 = vmatmul.mubr.bf16.gmra.mxu0 %v301
  %v456 = vpop.f32.mrf.mxu0
  %v457 = vadd.f32 0.0, %v456
  %v458 = vpop.f32.mrf.mxu0
  %v459 = vpop.f32.mrf.mxu0
  %v460 = vadd.f32 0.0, %v459
  %v461 = vpop.f32.mrf.mxu0
  %462 = vmatprep.mubr.bf16.mxu0 0
  %463 = vmatmul.mubr.bf16.gmra.mxu0 %v304
  %v464 = vpop.f32.mrf.mxu0
  %v465 = vadd.f32 0.0, %v464
  %v466 = vpop.f32.mrf.mxu0
  %v467 = vpop.f32.mrf.mxu0
  %v468 = vadd.f32 0.0, %v467
  %v469 = vpop.f32.mrf.mxu0
  %470 = vdwg.mxu0
  %v471 = vld [vmem:[%s2] sm:$0x1]
  %v473 = vlaneseq
  %v474 = vshrl.u32 %v473, 7
  %v475 = vsub.s32 0, %v474
  %v476 = vrot.slane %v471, %v475
  %v478 = vadd.f32 %v345, %v476
  %v479 = vadd.f32 %v348, %v476
  %v480 = vadd.f32 %v353, %v476
  %v481 = vadd.f32 %v356, %v476
  %v482 = vadd.f32 %v361, %v476
  %v483 = vadd.f32 %v364, %v476
  %v484 = vadd.f32 %v369, %v476
  %v485 = vadd.f32 %v372, %v476
  %v486 = vadd.f32 %v377, %v476
  %v487 = vadd.f32 %v380, %v476
  %v488 = vadd.f32 %v385, %v476
  %v489 = vadd.f32 %v388, %v476
  %v490 = vadd.f32 %v393, %v476
  %v491 = vadd.f32 %v396, %v476
  %v492 = vadd.f32 %v401, %v476
  %v493 = vadd.f32 %v404, %v476
  %v494 = vadd.f32 %v409, %v476
  %v495 = vadd.f32 %v412, %v476
  %v496 = vadd.f32 %v417, %v476
  %v497 = vadd.f32 %v420, %v476
  %v498 = vadd.f32 %v425, %v476
  %v499 = vadd.f32 %v428, %v476
  %v500 = vadd.f32 %v433, %v476
  %v501 = vadd.f32 %v436, %v476
  %v502 = vadd.f32 %v441, %v476
  %v503 = vadd.f32 %v444, %v476
  %v504 = vadd.f32 %v449, %v476
  %v505 = vadd.f32 %v452, %v476
  %v506 = vadd.f32 %v457, %v476
  %v507 = vadd.f32 %v460, %v476
  %v508 = vadd.f32 %v465, %v476
  %v509 = vadd.f32 %v468, %v476
  %v510 = vsel %vm257, %v478, 0.0
  %511 = vadd.xlane.f32.xlu0 %v510
  %v512 = vpop.xlane.xlu0 %511
  %v513 = vsel %vm257, %v479, 0.0
  %514 = vadd.xlane.f32.xlu0 %v513
  %v515 = vpop.xlane.xlu0 %514
  %v516 = vsel %vm257, %v480, 0.0
  %517 = vadd.xlane.f32.xlu0 %v516
  %v518 = vpop.xlane.xlu0 %517
  %v519 = vsel %vm257, %v481, 0.0
  %520 = vadd.xlane.f32.xlu0 %v519
  %v521 = vpop.xlane.xlu0 %520
  %v522 = vsel %vm257, %v482, 0.0
  %523 = vadd.xlane.f32.xlu0 %v522
  %v524 = vpop.xlane.xlu0 %523
  %v525 = vsel %vm257, %v483, 0.0
  %526 = vadd.xlane.f32.xlu0 %v525
  %v527 = vpop.xlane.xlu0 %526
  %v528 = vsel %vm257, %v484, 0.0
  %529 = vadd.xlane.f32.xlu0 %v528
  %v530 = vpop.xlane.xlu0 %529
  %v531 = vsel %vm257, %v485, 0.0
  %532 = vadd.xlane.f32.xlu0 %v531
  %v533 = vpop.xlane.xlu0 %532
  %v534 = vsel %vm257, %v486, 0.0
  %535 = vadd.xlane.f32.xlu0 %v534
  %v536 = vpop.xlane.xlu0 %535
  %v537 = vsel %vm257, %v487, 0.0
  %538 = vadd.xlane.f32.xlu0 %v537
  %v539 = vpop.xlane.xlu0 %538
  %v540 = vsel %vm257, %v488, 0.0
  %541 = vadd.xlane.f32.xlu0 %v540
  %v542 = vpop.xlane.xlu0 %541
  %v543 = vsel %vm257, %v489, 0.0
  %544 = vadd.xlane.f32.xlu0 %v543
  %v545 = vpop.xlane.xlu0 %544
  %v546 = vsel %vm257, %v490, 0.0
  %547 = vadd.xlane.f32.xlu0 %v546
  %v548 = vpop.xlane.xlu0 %547
  %v549 = vsel %vm257, %v491, 0.0
  %550 = vadd.xlane.f32.xlu0 %v549
  %v551 = vpop.xlane.xlu0 %550
  %v552 = vsel %vm257, %v492, 0.0
  %553 = vadd.xlane.f32.xlu0 %v552
  %v554 = vpop.xlane.xlu0 %553
  %v555 = vsel %vm257, %v493, 0.0
  %556 = vadd.xlane.f32.xlu0 %v555
  %v557 = vpop.xlane.xlu0 %556
  %v558 = vsel %vm257, %v494, 0.0
  %559 = vadd.xlane.f32.xlu0 %v558
  %v560 = vpop.xlane.xlu0 %559
  %v561 = vsel %vm257, %v495, 0.0
  %562 = vadd.xlane.f32.xlu0 %v561
  %v563 = vpop.xlane.xlu0 %562
  %v564 = vsel %vm257, %v496, 0.0
  %565 = vadd.xlane.f32.xlu0 %v564
  %v566 = vpop.xlane.xlu0 %565
  %v567 = vsel %vm257, %v497, 0.0
  %568 = vadd.xlane.f32.xlu0 %v567
  %v569 = vpop.xlane.xlu0 %568
  %v570 = vsel %vm257, %v498, 0.0
  %571 = vadd.xlane.f32.xlu0 %v570
  %v572 = vpop.xlane.xlu0 %571
  %v573 = vsel %vm257, %v499, 0.0
  %574 = vadd.xlane.f32.xlu0 %v573
  %v575 = vpop.xlane.xlu0 %574
  %v576 = vsel %vm257, %v500, 0.0
  %577 = vadd.xlane.f32.xlu0 %v576
  %v578 = vpop.xlane.xlu0 %577
  %v579 = vsel %vm257, %v501, 0.0
  %580 = vadd.xlane.f32.xlu0 %v579
  %v581 = vpop.xlane.xlu0 %580
  %v582 = vsel %vm257, %v502, 0.0
  %583 = vadd.xlane.f32.xlu0 %v582
  %v584 = vpop.xlane.xlu0 %583
  %v585 = vsel %vm257, %v503, 0.0
  %586 = vadd.xlane.f32.xlu0 %v585
  %v587 = vpop.xlane.xlu0 %586
  %v588 = vsel %vm257, %v504, 0.0
  %589 = vadd.xlane.f32.xlu0 %v588
  %v590 = vpop.xlane.xlu0 %589
  %v591 = vsel %vm257, %v505, 0.0
  %592 = vadd.xlane.f32.xlu0 %v591
  %v593 = vpop.xlane.xlu0 %592
  %v594 = vsel %vm257, %v506, 0.0
  %595 = vadd.xlane.f32.xlu0 %v594
  %v596 = vpop.xlane.xlu0 %595
  %v597 = vsel %vm257, %v507, 0.0
  %598 = vadd.xlane.f32.xlu0 %v597
  %v599 = vpop.xlane.xlu0 %598
  %v600 = vsel %vm257, %v508, 0.0
  %601 = vadd.xlane.f32.xlu0 %v600
  %v602 = vpop.xlane.xlu0 %601
  %v603 = vsel %vm257, %v509, 0.0
  %604 = vadd.xlane.f32.xlu0 %v603
  %v605 = vpop.xlane.xlu0 %604
  %v606 = vadd.f32 %v512, %v515
  %v607 = vrot.slane %v606, 4
  %v608 = vadd.f32 %v606, %v607
  %v609 = vrot.slane %v608, 2
  %v610 = vadd.f32 %v608, %v609
  %v611 = vrot.slane %v610, 1
  %v612 = vadd.f32 %v610, %v611
  %v613 = vadd.f32 %v518, %v521
  %v614 = vrot.slane %v613, 4
  %v615 = vadd.f32 %v613, %v614
  %v616 = vrot.slane %v615, 2
  %v617 = vadd.f32 %v615, %v616
  %v618 = vrot.slane %v617, 1
  %v619 = vadd.f32 %v617, %v618
  %v620 = vadd.f32 %v524, %v527
  %v621 = vrot.slane %v620, 4
  %v622 = vadd.f32 %v620, %v621
  %v623 = vrot.slane %v622, 2
  %v624 = vadd.f32 %v622, %v623
  %v625 = vrot.slane %v624, 1
  %v626 = vadd.f32 %v624, %v625
  %v627 = vadd.f32 %v530, %v533
  %v628 = vrot.slane %v627, 4
  %v629 = vadd.f32 %v627, %v628
  %v630 = vrot.slane %v629, 2
  %v631 = vadd.f32 %v629, %v630
  %v632 = vrot.slane %v631, 1
  %v633 = vadd.f32 %v631, %v632
  %v634 = vadd.f32 %v536, %v539
  %v635 = vrot.slane %v634, 4
  %v636 = vadd.f32 %v634, %v635
  %v637 = vrot.slane %v636, 2
  %v638 = vadd.f32 %v636, %v637
  %v639 = vrot.slane %v638, 1
  %v640 = vadd.f32 %v638, %v639
  %v641 = vadd.f32 %v542, %v545
  %v642 = vrot.slane %v641, 4
  %v643 = vadd.f32 %v641, %v642
  %v644 = vrot.slane %v643, 2
  %v645 = vadd.f32 %v643, %v644
  %v646 = vrot.slane %v645, 1
  %v647 = vadd.f32 %v645, %v646
  %v648 = vadd.f32 %v548, %v551
  %v649 = vrot.slane %v648, 4
  %v650 = vadd.f32 %v648, %v649
  %v651 = vrot.slane %v650, 2
  %v652 = vadd.f32 %v650, %v651
  %v653 = vrot.slane %v652, 1
  %v654 = vadd.f32 %v652, %v653
  %v655 = vadd.f32 %v554, %v557
  %v656 = vrot.slane %v655, 4
  %v657 = vadd.f32 %v655, %v656
  %v658 = vrot.slane %v657, 2
  %v659 = vadd.f32 %v657, %v658
  %v660 = vrot.slane %v659, 1
  %v661 = vadd.f32 %v659, %v660
  %v662 = vadd.f32 %v560, %v563
  %v663 = vrot.slane %v662, 4
  %v664 = vadd.f32 %v662, %v663
  %v665 = vrot.slane %v664, 2
  %v666 = vadd.f32 %v664, %v665
  %v667 = vrot.slane %v666, 1
  %v668 = vadd.f32 %v666, %v667
  %v669 = vadd.f32 %v566, %v569
  %v670 = vrot.slane %v669, 4
  %v671 = vadd.f32 %v669, %v670
  %v672 = vrot.slane %v671, 2
  %v673 = vadd.f32 %v671, %v672
  %v674 = vrot.slane %v673, 1
  %v675 = vadd.f32 %v673, %v674
  %v676 = vadd.f32 %v572, %v575
  %v677 = vrot.slane %v676, 4
  %v678 = vadd.f32 %v676, %v677
  %v679 = vrot.slane %v678, 2
  %v680 = vadd.f32 %v678, %v679
  %v681 = vrot.slane %v680, 1
  %v682 = vadd.f32 %v680, %v681
  %v683 = vadd.f32 %v578, %v581
  %v684 = vrot.slane %v683, 4
  %v685 = vadd.f32 %v683, %v684
  %v686 = vrot.slane %v685, 2
  %v687 = vadd.f32 %v685, %v686
  %v688 = vrot.slane %v687, 1
  %v689 = vadd.f32 %v687, %v688
  %v690 = vadd.f32 %v584, %v587
  %v691 = vrot.slane %v690, 4
  %v692 = vadd.f32 %v690, %v691
  %v693 = vrot.slane %v692, 2
  %v694 = vadd.f32 %v692, %v693
  %v695 = vrot.slane %v694, 1
  %v696 = vadd.f32 %v694, %v695
  %v697 = vadd.f32 %v590, %v593
  %v698 = vrot.slane %v697, 4
  %v699 = vadd.f32 %v697, %v698
  %v700 = vrot.slane %v699, 2
  %v701 = vadd.f32 %v699, %v700
  %v702 = vrot.slane %v701, 1
  %v703 = vadd.f32 %v701, %v702
  %v704 = vadd.f32 %v596, %v599
  %v705 = vrot.slane %v704, 4
  %v706 = vadd.f32 %v704, %v705
  %v707 = vrot.slane %v706, 2
  %v708 = vadd.f32 %v706, %v707
  %v709 = vrot.slane %v708, 1
  %v710 = vadd.f32 %v708, %v709
  %v711 = vadd.f32 %v602, %v605
  %v712 = vrot.slane %v711, 4
  %v713 = vadd.f32 %v711, %v712
  %v714 = vrot.slane %v713, 2
  %v715 = vadd.f32 %v713, %v714
  %v716 = vrot.slane %v715, 1
  %v717 = vadd.f32 %v715, %v716
  %v718 = vadd.f32 %v612, %v668
  %v719 = vadd.f32 %v619, %v675
  %v720 = vadd.f32 %v626, %v682
  %v721 = vadd.f32 %v633, %v689
  %v722 = vadd.f32 %v640, %v696
  %v723 = vadd.f32 %v647, %v703
  %v724 = vadd.f32 %v654, %v710
  %v725 = vadd.f32 %v661, %v717
  %v726 = vrcp.pop 256.0
  %v727 = vmul.f32 %v718, %v726
  %v728 = vmul.f32 %v719, %v726
  %v729 = vmul.f32 %v720, %v726
  %v730 = vmul.f32 %v721, %v726
  %v731 = vmul.f32 %v722, %v726
  %v732 = vmul.f32 %v723, %v726
  %v733 = vmul.f32 %v724, %v726
  %v734 = vmul.f32 %v725, %v726
  %v735 = vmul.f32 %v478, %v478
  %v736 = vmul.f32 %v479, %v479
  %v737 = vmul.f32 %v480, %v480
  %v738 = vmul.f32 %v481, %v481
  %v739 = vmul.f32 %v482, %v482
  %v740 = vmul.f32 %v483, %v483
  %v741 = vmul.f32 %v484, %v484
  %v742 = vmul.f32 %v485, %v485
  %v743 = vmul.f32 %v486, %v486
  %v744 = vmul.f32 %v487, %v487
  %v745 = vmul.f32 %v488, %v488
  %v746 = vmul.f32 %v489, %v489
  %v747 = vmul.f32 %v490, %v490
  %v748 = vmul.f32 %v491, %v491
  %v749 = vmul.f32 %v492, %v492
  %v750 = vmul.f32 %v493, %v493
  %v751 = vmul.f32 %v494, %v494
  %v752 = vmul.f32 %v495, %v495
  %v753 = vmul.f32 %v496, %v496
  %v754 = vmul.f32 %v497, %v497
  %v755 = vmul.f32 %v498, %v498
  %v756 = vmul.f32 %v499, %v499
  %v757 = vmul.f32 %v500, %v500
  %v758 = vmul.f32 %v501, %v501
  %v759 = vmul.f32 %v502, %v502
  %v760 = vmul.f32 %v503, %v503
  %v761 = vmul.f32 %v504, %v504
  %v762 = vmul.f32 %v505, %v505
  %v763 = vmul.f32 %v506, %v506
  %v764 = vmul.f32 %v507, %v507
  %v765 = vmul.f32 %v508, %v508
  %v766 = vmul.f32 %v509, %v509
  %v767 = vsel %vm257, %v735, 0.0
  %768 = vadd.xlane.f32.xlu0 %v767
  %v769 = vpop.xlane.xlu0 %768
  %v770 = vsel %vm257, %v736, 0.0
  %771 = vadd.xlane.f32.xlu0 %v770
  %v772 = vpop.xlane.xlu0 %771
  %v773 = vsel %vm257, %v737, 0.0
  %774 = vadd.xlane.f32.xlu0 %v773
  %v775 = vpop.xlane.xlu0 %774
  %v776 = vsel %vm257, %v738, 0.0
  %777 = vadd.xlane.f32.xlu0 %v776
  %v778 = vpop.xlane.xlu0 %777
  %v779 = vsel %vm257, %v739, 0.0
  %780 = vadd.xlane.f32.xlu0 %v779
  %v781 = vpop.xlane.xlu0 %780
  %v782 = vsel %vm257, %v740, 0.0
  %783 = vadd.xlane.f32.xlu0 %v782
  %v784 = vpop.xlane.xlu0 %783
  %v785 = vsel %vm257, %v741, 0.0
  %786 = vadd.xlane.f32.xlu0 %v785
  %v787 = vpop.xlane.xlu0 %786
  %v788 = vsel %vm257, %v742, 0.0
  %789 = vadd.xlane.f32.xlu0 %v788
  %v790 = vpop.xlane.xlu0 %789
  %v791 = vsel %vm257, %v743, 0.0
  %792 = vadd.xlane.f32.xlu0 %v791
  %v793 = vpop.xlane.xlu0 %792
  %v794 = vsel %vm257, %v744, 0.0
  %795 = vadd.xlane.f32.xlu0 %v794
  %v796 = vpop.xlane.xlu0 %795
  %v797 = vsel %vm257, %v745, 0.0
  %798 = vadd.xlane.f32.xlu0 %v797
  %v799 = vpop.xlane.xlu0 %798
  %v800 = vsel %vm257, %v746, 0.0
  %801 = vadd.xlane.f32.xlu0 %v800
  %v802 = vpop.xlane.xlu0 %801
  %v803 = vsel %vm257, %v747, 0.0
  %804 = vadd.xlane.f32.xlu0 %v803
  %v805 = vpop.xlane.xlu0 %804
  %v806 = vsel %vm257, %v748, 0.0
  %807 = vadd.xlane.f32.xlu0 %v806
  %v808 = vpop.xlane.xlu0 %807
  %v809 = vsel %vm257, %v749, 0.0
  %810 = vadd.xlane.f32.xlu0 %v809
  %v811 = vpop.xlane.xlu0 %810
  %v812 = vsel %vm257, %v750, 0.0
  %813 = vadd.xlane.f32.xlu0 %v812
  %v814 = vpop.xlane.xlu0 %813
  %v815 = vsel %vm257, %v751, 0.0
  %816 = vadd.xlane.f32.xlu0 %v815
  %v817 = vpop.xlane.xlu0 %816
  %v818 = vsel %vm257, %v752, 0.0
  %819 = vadd.xlane.f32.xlu0 %v818
  %v820 = vpop.xlane.xlu0 %819
  %v821 = vsel %vm257, %v753, 0.0
  %822 = vadd.xlane.f32.xlu0 %v821
  %v823 = vpop.xlane.xlu0 %822
  %v824 = vsel %vm257, %v754, 0.0
  %825 = vadd.xlane.f32.xlu0 %v824
  %v826 = vpop.xlane.xlu0 %825
  %v827 = vsel %vm257, %v755, 0.0
  %828 = vadd.xlane.f32.xlu0 %v827
  %v829 = vpop.xlane.xlu0 %828
  %v830 = vsel %vm257, %v756, 0.0
  %831 = vadd.xlane.f32.xlu0 %v830
  %v832 = vpop.xlane.xlu0 %831
  %v833 = vsel %vm257, %v757, 0.0
  %834 = vadd.xlane.f32.xlu0 %v833
  %v835 = vpop.xlane.xlu0 %834
  %v836 = vsel %vm257, %v758, 0.0
  %837 = vadd.xlane.f32.xlu0 %v836
  %v838 = vpop.xlane.xlu0 %837
  %v839 = vsel %vm257, %v759, 0.0
  %840 = vadd.xlane.f32.xlu0 %v839
  %v841 = vpop.xlane.xlu0 %840
  %v842 = vsel %vm257, %v760, 0.0
  %843 = vadd.xlane.f32.xlu0 %v842
  %v844 = vpop.xlane.xlu0 %843
  %v845 = vsel %vm257, %v761, 0.0
  %846 = vadd.xlane.f32.xlu0 %v845
  %v847 = vpop.xlane.xlu0 %846
  %v848 = vsel %vm257, %v762, 0.0
  %849 = vadd.xlane.f32.xlu0 %v848
  %v850 = vpop.xlane.xlu0 %849
  %v851 = vsel %vm257, %v763, 0.0
  %852 = vadd.xlane.f32.xlu0 %v851
  %v853 = vpop.xlane.xlu0 %852
  %v854 = vsel %vm257, %v764, 0.0
  %855 = vadd.xlane.f32.xlu0 %v854
  %v856 = vpop.xlane.xlu0 %855
  %v857 = vsel %vm257, %v765, 0.0
  %858 = vadd.xlane.f32.xlu0 %v857
  %v859 = vpop.xlane.xlu0 %858
  %v860 = vsel %vm257, %v766, 0.0
  %861 = vadd.xlane.f32.xlu0 %v860
  %v862 = vpop.xlane.xlu0 %861
  %v863 = vadd.f32 %v769, %v772
  %v864 = vrot.slane %v863, 4
  %v865 = vadd.f32 %v863, %v864
  %v866 = vrot.slane %v865, 2
  %v867 = vadd.f32 %v865, %v866
  %v868 = vrot.slane %v867, 1
  %v869 = vadd.f32 %v867, %v868
  %v870 = vadd.f32 %v775, %v778
  %v871 = vrot.slane %v870, 4
  %v872 = vadd.f32 %v870, %v871
  %v873 = vrot.slane %v872, 2
  %v874 = vadd.f32 %v872, %v873
  %v875 = vrot.slane %v874, 1
  %v876 = vadd.f32 %v874, %v875
  %v877 = vadd.f32 %v781, %v784
  %v878 = vrot.slane %v877, 4
  %v879 = vadd.f32 %v877, %v878
  %v880 = vrot.slane %v879, 2
  %v881 = vadd.f32 %v879, %v880
  %v882 = vrot.slane %v881, 1
  %v883 = vadd.f32 %v881, %v882
  %v884 = vadd.f32 %v787, %v790
  %v885 = vrot.slane %v884, 4
  %v886 = vadd.f32 %v884, %v885
  %v887 = vrot.slane %v886, 2
  %v888 = vadd.f32 %v886, %v887
  %v889 = vrot.slane %v888, 1
  %v890 = vadd.f32 %v888, %v889
  %v891 = vadd.f32 %v793, %v796
  %v892 = vrot.slane %v891, 4
  %v893 = vadd.f32 %v891, %v892
  %v894 = vrot.slane %v893, 2
  %v895 = vadd.f32 %v893, %v894
  %v896 = vrot.slane %v895, 1
  %v897 = vadd.f32 %v895, %v896
  %v898 = vadd.f32 %v799, %v802
  %v899 = vrot.slane %v898, 4
  %v900 = vadd.f32 %v898, %v899
  %v901 = vrot.slane %v900, 2
  %v902 = vadd.f32 %v900, %v901
  %v903 = vrot.slane %v902, 1
  %v904 = vadd.f32 %v902, %v903
  %v905 = vadd.f32 %v805, %v808
  %v906 = vrot.slane %v905, 4
  %v907 = vadd.f32 %v905, %v906
  %v908 = vrot.slane %v907, 2
  %v909 = vadd.f32 %v907, %v908
  %v910 = vrot.slane %v909, 1
  %v911 = vadd.f32 %v909, %v910
  %v912 = vadd.f32 %v811, %v814
  %v913 = vrot.slane %v912, 4
  %v914 = vadd.f32 %v912, %v913
  %v915 = vrot.slane %v914, 2
  %v916 = vadd.f32 %v914, %v915
  %v917 = vrot.slane %v916, 1
  %v918 = vadd.f32 %v916, %v917
  %v919 = vadd.f32 %v817, %v820
  %v920 = vrot.slane %v919, 4
  %v921 = vadd.f32 %v919, %v920
  %v922 = vrot.slane %v921, 2
  %v923 = vadd.f32 %v921, %v922
  %v924 = vrot.slane %v923, 1
  %v925 = vadd.f32 %v923, %v924
  %v926 = vadd.f32 %v823, %v826
  %v927 = vrot.slane %v926, 4
  %v928 = vadd.f32 %v926, %v927
  %v929 = vrot.slane %v928, 2
  %v930 = vadd.f32 %v928, %v929
  %v931 = vrot.slane %v930, 1
  %v932 = vadd.f32 %v930, %v931
  %v933 = vadd.f32 %v829, %v832
  %v934 = vrot.slane %v933, 4
  %v935 = vadd.f32 %v933, %v934
  %v936 = vrot.slane %v935, 2
  %v937 = vadd.f32 %v935, %v936
  %v938 = vrot.slane %v937, 1
  %v939 = vadd.f32 %v937, %v938
  %v940 = vadd.f32 %v835, %v838
  %v941 = vrot.slane %v940, 4
  %v942 = vadd.f32 %v940, %v941
  %v943 = vrot.slane %v942, 2
  %v944 = vadd.f32 %v942, %v943
  %v945 = vrot.slane %v944, 1
  %v946 = vadd.f32 %v944, %v945
  %v947 = vadd.f32 %v841, %v844
  %v948 = vrot.slane %v947, 4
  %v949 = vadd.f32 %v947, %v948
  %v950 = vrot.slane %v949, 2
  %v951 = vadd.f32 %v949, %v950
  %v952 = vrot.slane %v951, 1
  %v953 = vadd.f32 %v951, %v952
  %v954 = vadd.f32 %v847, %v850
  %v955 = vrot.slane %v954, 4
  %v956 = vadd.f32 %v954, %v955
  %v957 = vrot.slane %v956, 2
  %v958 = vadd.f32 %v956, %v957
  %v959 = vrot.slane %v958, 1
  %v960 = vadd.f32 %v958, %v959
  %v961 = vadd.f32 %v853, %v856
  %v962 = vrot.slane %v961, 4
  %v963 = vadd.f32 %v961, %v962
  %v964 = vrot.slane %v963, 2
  %v965 = vadd.f32 %v963, %v964
  %v966 = vrot.slane %v965, 1
  %v967 = vadd.f32 %v965, %v966
  %v968 = vadd.f32 %v859, %v862
  %v969 = vrot.slane %v968, 4
  %v970 = vadd.f32 %v968, %v969
  %v971 = vrot.slane %v970, 2
  %v972 = vadd.f32 %v970, %v971
  %v973 = vrot.slane %v972, 1
  %v974 = vadd.f32 %v972, %v973
  %v975 = vadd.f32 %v869, %v925
  %v976 = vadd.f32 %v876, %v932
  %v977 = vadd.f32 %v883, %v939
  %v978 = vadd.f32 %v890, %v946
  %v979 = vadd.f32 %v897, %v953
  %v980 = vadd.f32 %v904, %v960
  %v981 = vadd.f32 %v911, %v967
  %v982 = vadd.f32 %v918, %v974
  %v983 = vmul.f32 %v975, %v726
  %v984 = vmul.f32 %v976, %v726
  %v985 = vmul.f32 %v977, %v726
  %v986 = vmul.f32 %v978, %v726
  %v987 = vmul.f32 %v979, %v726
  %v988 = vmul.f32 %v980, %v726
  %v989 = vmul.f32 %v981, %v726
  %v990 = vmul.f32 %v982, %v726
  %v991 = vmul.f32 %v727, %v727
  %v992 = vmul.f32 %v728, %v728
  %v993 = vmul.f32 %v729, %v729
  %v994 = vmul.f32 %v730, %v730
  %v995 = vmul.f32 %v731, %v731
  %v996 = vmul.f32 %v732, %v732
  %v997 = vmul.f32 %v733, %v733
  %v998 = vmul.f32 %v734, %v734
  %v999 = vsub.f32 %v983, %v991
  %v1000 = vsub.f32 %v984, %v992
  %v1001 = vsub.f32 %v985, %v993
  %v1002 = vsub.f32 %v986, %v994
  %v1003 = vsub.f32 %v987, %v995
  %v1004 = vsub.f32 %v988, %v996
  %v1005 = vsub.f32 %v989, %v997
  %v1006 = vsub.f32 %v990, %v998
  %v1007 = vmax.f32 %v999, 0.0
  %v1008 = vmax.f32 %v1000, 0.0
  %v1009 = vmax.f32 %v1001, 0.0
  %v1010 = vmax.f32 %v1002, 0.0
  %v1011 = vmax.f32 %v1003, 0.0
  %v1012 = vmax.f32 %v1004, 0.0
  %v1013 = vmax.f32 %v1005, 0.0
  %v1014 = vmax.f32 %v1006, 0.0
  %v1015 = vadd.f32 %v1007, 1e-05
  %v1016 = vadd.f32 %v1008, 1e-05
  %v1017 = vadd.f32 %v1009, 1e-05
  %v1018 = vadd.f32 %v1010, 1e-05
  %v1019 = vadd.f32 %v1011, 1e-05
  %v1020 = vadd.f32 %v1012, 1e-05
  %v1021 = vadd.f32 %v1013, 1e-05
  %v1022 = vadd.f32 %v1014, 1e-05
  %v1023 = vrsqrt.pop %v1015
  %v1024 = vrsqrt.pop %v1016
  %v1025 = vrsqrt.pop %v1017
  %v1026 = vrsqrt.pop %v1018
  %v1027 = vrsqrt.pop %v1019
  %v1028 = vrsqrt.pop %v1020
  %v1029 = vrsqrt.pop %v1021
  %v1030 = vrsqrt.pop %v1022
  %v1031 = vmul.f32 %v1023, %v60
  %v1032 = vmul.f32 %v1024, %v74
  %v1033 = vmul.f32 %v1025, %v82
  %v1034 = vmul.f32 %v1026, %v84
  %v1035 = vmul.f32 %v1027, %v67
  %v1036 = vmul.f32 %v1028, %v81
  %v1037 = vmul.f32 %v1029, %v83
  %v1038 = vmul.f32 %v1030, %v85
  %v1039 = vsub.f32 %v478, %v727
  %v1040 = vsub.f32 %v479, %v727
  %v1041 = vsub.f32 %v480, %v728
  %v1042 = vsub.f32 %v481, %v728
  %v1043 = vsub.f32 %v482, %v729
  %v1044 = vsub.f32 %v483, %v729
  %v1045 = vsub.f32 %v484, %v730
  %v1046 = vsub.f32 %v485, %v730
  %v1047 = vsub.f32 %v486, %v731
  %v1048 = vsub.f32 %v487, %v731
  %v1049 = vsub.f32 %v488, %v732
  %v1050 = vsub.f32 %v489, %v732
  %v1051 = vsub.f32 %v490, %v733
  %v1052 = vsub.f32 %v491, %v733
  %v1053 = vsub.f32 %v492, %v734
  %v1054 = vsub.f32 %v493, %v734
  %v1055 = vsub.f32 %v494, %v727
  %v1056 = vsub.f32 %v495, %v727
  %v1057 = vsub.f32 %v496, %v728
  %v1058 = vsub.f32 %v497, %v728
  %v1059 = vsub.f32 %v498, %v729
  %v1060 = vsub.f32 %v499, %v729
  %v1061 = vsub.f32 %v500, %v730
  %v1062 = vsub.f32 %v501, %v730
  %v1063 = vsub.f32 %v502, %v731
  %v1064 = vsub.f32 %v503, %v731
  %v1065 = vsub.f32 %v504, %v732
  %v1066 = vsub.f32 %v505, %v732
  %v1067 = vsub.f32 %v506, %v733
  %v1068 = vsub.f32 %v507, %v733
  %v1069 = vsub.f32 %v508, %v734
  %v1070 = vsub.f32 %v509, %v734
  %v1079 = vlaneseq
  %v1080 = vshrl.u32 %v1079, 7
  %v1081 = vsub.s32 0, %v1080
  %v1082 = vrot.slane %v1031, %v1081
  %v1083 = vlaneseq
  %v1084 = vshrl.u32 %v1083, 7
  %v1085 = vsub.s32 0, %v1084
  %v1086 = vrot.slane %v1032, %v1085
  %v1087 = vlaneseq
  %v1088 = vshrl.u32 %v1087, 7
  %v1089 = vsub.s32 0, %v1088
  %v1090 = vrot.slane %v1033, %v1089
  %v1091 = vlaneseq
  %v1092 = vshrl.u32 %v1091, 7
  %v1093 = vsub.s32 0, %v1092
  %v1094 = vrot.slane %v1034, %v1093
  %v1095 = vlaneseq
  %v1096 = vshrl.u32 %v1095, 7
  %v1097 = vsub.s32 0, %v1096
  %v1098 = vrot.slane %v1035, %v1097
  %v1099 = vlaneseq
  %v1100 = vshrl.u32 %v1099, 7
  %v1101 = vsub.s32 0, %v1100
  %v1102 = vrot.slane %v1036, %v1101
  %v1103 = vlaneseq
  %v1104 = vshrl.u32 %v1103, 7
  %v1105 = vsub.s32 0, %v1104
  %v1106 = vrot.slane %v1037, %v1105
  %v1107 = vlaneseq
  %v1108 = vshrl.u32 %v1107, 7
  %v1109 = vsub.s32 0, %v1108
  %v1110 = vrot.slane %v1038, %v1109
  %1111 = vset.pattern.permute.xlu0 0
  %1112 = vperm.xlu0 %1111, %v1082
  %v1113 = vpop.permute.xlu0 %1112
  %1115 = vset.pattern.permute.xlu0 0
  %1116 = vperm.xlu0 %1115, %v1086
  %v1117 = vpop.permute.xlu0 %1116
  %1119 = vset.pattern.permute.xlu0 0
  %1120 = vperm.xlu0 %1119, %v1090
  %v1121 = vpop.permute.xlu0 %1120
  %1123 = vset.pattern.permute.xlu0 0
  %1124 = vperm.xlu0 %1123, %v1094
  %v1125 = vpop.permute.xlu0 %1124
  %1127 = vset.pattern.permute.xlu0 0
  %1128 = vperm.xlu0 %1127, %v1098
  %v1129 = vpop.permute.xlu0 %1128
  %1131 = vset.pattern.permute.xlu0 0
  %1132 = vperm.xlu0 %1131, %v1102
  %v1133 = vpop.permute.xlu0 %1132
  %1135 = vset.pattern.permute.xlu0 0
  %1136 = vperm.xlu0 %1135, %v1106
  %v1137 = vpop.permute.xlu0 %1136
  %1139 = vset.pattern.permute.xlu0 0
  %1140 = vperm.xlu0 %1139, %v1110
  %v1141 = vpop.permute.xlu0 %1140
  %v1143 = vmul.f32 %v1039, %v1113
  %v1144 = vmul.f32 %v1040, %v1113
  %v1145 = vmul.f32 %v1041, %v1117
  %v1146 = vmul.f32 %v1042, %v1117
  %v1147 = vmul.f32 %v1043, %v1121
  %v1148 = vmul.f32 %v1044, %v1121
  %v1149 = vmul.f32 %v1045, %v1125
  %v1150 = vmul.f32 %v1046, %v1125
  %v1151 = vmul.f32 %v1047, %v1129
  %v1152 = vmul.f32 %v1048, %v1129
  %v1153 = vmul.f32 %v1049, %v1133
  %v1154 = vmul.f32 %v1050, %v1133
  %v1155 = vmul.f32 %v1051, %v1137
  %v1156 = vmul.f32 %v1052, %v1137
  %v1157 = vmul.f32 %v1053, %v1141
  %v1158 = vmul.f32 %v1054, %v1141
  %v1159 = vmul.f32 %v1055, %v1113
  %v1160 = vmul.f32 %v1056, %v1113
  %v1161 = vmul.f32 %v1057, %v1117
  %v1162 = vmul.f32 %v1058, %v1117
  %v1163 = vmul.f32 %v1059, %v1121
  %v1164 = vmul.f32 %v1060, %v1121
  %v1165 = vmul.f32 %v1061, %v1125
  %v1166 = vmul.f32 %v1062, %v1125
  %v1167 = vmul.f32 %v1063, %v1129
  %v1168 = vmul.f32 %v1064, %v1129
  %v1169 = vmul.f32 %v1065, %v1133
  %v1170 = vmul.f32 %v1066, %v1133
  %v1171 = vmul.f32 %v1067, %v1137
  %v1172 = vmul.f32 %v1068, %v1137
  %v1173 = vmul.f32 %v1069, %v1141
  %v1174 = vmul.f32 %v1070, %v1141
  %v1176 = vcombine.high %v95, %v95
  %v1178 = vunpack.c.l.s4 1966171168
  %v1179 = vunpack.c.0.s8 %v1178
  %v1180 = vlaneseq
  %v1181 = vshrl.u32 %v1180, 7
  %v1182 = vsub.s32 %v1179, %v1181
  %v1183 = vrot.slane %v95, %v1182
  %v1185 = vunpack.c.l.s4 1966171168
  %v1186 = vunpack.c.0.s8 %v1185
  %v1187 = vlaneseq
  %v1188 = vshrl.u32 %v1187, 7
  %v1189 = vsub.s32 %v1186, %v1188
  %v1190 = vrot.slane %v1176, %v1189
  %v1191 = vcombine.high %v1183, %v1183
  %v1192 = vcombine.high %v1190, %v1190
  %v1194 = vunpack.c.l.s4 1966171168
  %v1195 = vunpack.c.0.s8 %v1194
  %v1196 = vlaneseq
  %v1197 = vshrl.u32 %v1196, 7
  %v1198 = vsub.s32 %v1195, %v1197
  %v1199 = vrot.slane %v1183, %v1198
  %v1201 = vunpack.c.l.s4 1966171168
  %v1202 = vunpack.c.0.s8 %v1201
  %v1203 = vlaneseq
  %v1204 = vshrl.u32 %v1203, 7
  %v1205 = vsub.s32 %v1202, %v1204
  %v1206 = vrot.slane %v1190, %v1205
  %v1208 = vunpack.c.l.s4 1966171168
  %v1209 = vunpack.c.0.s8 %v1208
  %v1210 = vlaneseq
  %v1211 = vshrl.u32 %v1210, 7
  %v1212 = vsub.s32 %v1209, %v1211
  %v1213 = vrot.slane %v1191, %v1212
  %v1215 = vunpack.c.l.s4 1966171168
  %v1216 = vunpack.c.0.s8 %v1215
  %v1217 = vlaneseq
  %v1218 = vshrl.u32 %v1217, 7
  %v1219 = vsub.s32 %v1216, %v1218
  %v1220 = vrot.slane %v1192, %v1219
  %v1221 = vcombine.high %v1199, %v1199
  %v1222 = vcombine.high %v1206, %v1206
  %v1223 = vcombine.high %v1213, %v1213
  %v1224 = vcombine.high %v1220, %v1220
  %v1225 = vlaneseq
  %v1226 = vshrl.u32 %v1225, 7
  %v1227 = vsub.s32 0, %v1226
  %v1228 = vrot.slane %v1199, %v1227
  %v1229 = vlaneseq
  %v1230 = vshrl.u32 %v1229, 7
  %v1231 = vsub.s32 0, %v1230
  %v1232 = vrot.slane %v1213, %v1231
  %v1233 = vlaneseq
  %v1234 = vshrl.u32 %v1233, 7
  %v1235 = vsub.s32 0, %v1234
  %v1236 = vrot.slane %v1221, %v1235
  %v1237 = vlaneseq
  %v1238 = vshrl.u32 %v1237, 7
  %v1239 = vsub.s32 0, %v1238
  %v1240 = vrot.slane %v1223, %v1239
  %v1241 = vlaneseq
  %v1242 = vshrl.u32 %v1241, 7
  %v1243 = vsub.s32 0, %v1242
  %v1244 = vrot.slane %v1206, %v1243
  %v1245 = vlaneseq
  %v1246 = vshrl.u32 %v1245, 7
  %v1247 = vsub.s32 0, %v1246
  %v1248 = vrot.slane %v1220, %v1247
  %v1249 = vlaneseq
  %v1250 = vshrl.u32 %v1249, 7
  %v1251 = vsub.s32 0, %v1250
  %v1252 = vrot.slane %v1222, %v1251
  %v1253 = vlaneseq
  %v1254 = vshrl.u32 %v1253, 7
  %v1255 = vsub.s32 0, %v1254
  %v1256 = vrot.slane %v1224, %v1255
  %1257 = vset.pattern.permute.xlu0 0
  %1258 = vperm.xlu0 %1257, %v1228
  %v1259 = vpop.permute.xlu0 %1258
  %1261 = vset.pattern.permute.xlu0 0
  %1262 = vperm.xlu0 %1261, %v1232
  %v1263 = vpop.permute.xlu0 %1262
  %1265 = vset.pattern.permute.xlu0 0
  %1266 = vperm.xlu0 %1265, %v1236
  %v1267 = vpop.permute.xlu0 %1266
  %1269 = vset.pattern.permute.xlu0 0
  %1270 = vperm.xlu0 %1269, %v1240
  %v1271 = vpop.permute.xlu0 %1270
  %1273 = vset.pattern.permute.xlu0 0
  %1274 = vperm.xlu0 %1273, %v1244
  %v1275 = vpop.permute.xlu0 %1274
  %1277 = vset.pattern.permute.xlu0 0
  %1278 = vperm.xlu0 %1277, %v1248
  %v1279 = vpop.permute.xlu0 %1278
  %1281 = vset.pattern.permute.xlu0 0
  %1282 = vperm.xlu0 %1281, %v1252
  %v1283 = vpop.permute.xlu0 %1282
  %1285 = vset.pattern.permute.xlu0 0
  %1286 = vperm.xlu0 %1285, %v1256
  %v1287 = vpop.permute.xlu0 %1286
  %v1289 = vadd.f32 %v1143, %v1259
  %v1290 = vadd.f32 %v1144, %v1259
  %v1291 = vadd.f32 %v1145, %v1263
  %v1292 = vadd.f32 %v1146, %v1263
  %v1293 = vadd.f32 %v1147, %v1267
  %v1294 = vadd.f32 %v1148, %v1267
  %v1295 = vadd.f32 %v1149, %v1271
  %v1296 = vadd.f32 %v1150, %v1271
  %v1297 = vadd.f32 %v1151, %v1275
  %v1298 = vadd.f32 %v1152, %v1275
  %v1299 = vadd.f32 %v1153, %v1279
  %v1300 = vadd.f32 %v1154, %v1279
  %v1301 = vadd.f32 %v1155, %v1283
  %v1302 = vadd.f32 %v1156, %v1283
  %v1303 = vadd.f32 %v1157, %v1287
  %v1304 = vadd.f32 %v1158, %v1287
  %v1305 = vadd.f32 %v1159, %v1259
  %v1306 = vadd.f32 %v1160, %v1259
  %v1307 = vadd.f32 %v1161, %v1263
  %v1308 = vadd.f32 %v1162, %v1263
  %v1309 = vadd.f32 %v1163, %v1267
  %v1310 = vadd.f32 %v1164, %v1267
  %v1311 = vadd.f32 %v1165, %v1271
  %v1312 = vadd.f32 %v1166, %v1271
  %v1313 = vadd.f32 %v1167, %v1275
  %v1314 = vadd.f32 %v1168, %v1275
  %v1315 = vadd.f32 %v1169, %v1279
  %v1316 = vadd.f32 %v1170, %v1279
  %v1317 = vadd.f32 %v1171, %v1283
  %v1318 = vadd.f32 %v1172, %v1283
  %v1319 = vadd.f32 %v1173, %v1287
  %v1320 = vadd.f32 %v1174, %v1287
  %v1321 = vmul.f32 %v1289, 0.5
  %v1322 = vmul.f32 %v1290, 0.5
  %v1323 = vmul.f32 %v1291, 0.5
  %v1324 = vmul.f32 %v1292, 0.5
  %v1325 = vmul.f32 %v1293, 0.5
  %v1326 = vmul.f32 %v1294, 0.5
  %v1327 = vmul.f32 %v1295, 0.5
  %v1328 = vmul.f32 %v1296, 0.5
  %v1329 = vmul.f32 %v1297, 0.5
  %v1330 = vmul.f32 %v1298, 0.5
  %v1331 = vmul.f32 %v1299, 0.5
  %v1332 = vmul.f32 %v1300, 0.5
  %v1333 = vmul.f32 %v1301, 0.5
  %v1334 = vmul.f32 %v1302, 0.5
  %v1335 = vmul.f32 %v1303, 0.5
  %v1336 = vmul.f32 %v1304, 0.5
  %v1337 = vadd.f32 %v1321, 0.0
  %v1338 = vadd.f32 %v1322, 0.0
  %v1339 = vadd.f32 %v1323, 0.0
  %v1340 = vadd.f32 %v1324, 0.0
  %v1341 = vadd.f32 %v1325, 0.0
  %v1342 = vadd.f32 %v1326, 0.0
  %v1343 = vadd.f32 %v1327, 0.0
  %v1344 = vadd.f32 %v1328, 0.0
  %v1345 = vadd.f32 %v1329, 0.0
  %v1346 = vadd.f32 %v1330, 0.0
  %v1347 = vadd.f32 %v1331, 0.0
  %v1348 = vadd.f32 %v1332, 0.0
  %v1349 = vadd.f32 %v1333, 0.0
  %v1350 = vadd.f32 %v1334, 0.0
  %v1351 = vadd.f32 %v1335, 0.0
  %v1352 = vadd.f32 %v1336, 0.0
  %vm1353 = vcmp.ge.f32.partialorder %v1337, 1.0
  %vm1354 = vcmp.ge.f32.partialorder %v1338, 1.0
  %vm1355 = vcmp.ge.f32.partialorder %v1339, 1.0
  %vm1356 = vcmp.ge.f32.partialorder %v1340, 1.0
  %vm1357 = vcmp.ge.f32.partialorder %v1341, 1.0
  %vm1358 = vcmp.ge.f32.partialorder %v1342, 1.0
  %vm1359 = vcmp.ge.f32.partialorder %v1343, 1.0
  %vm1360 = vcmp.ge.f32.partialorder %v1344, 1.0
  %vm1361 = vcmp.ge.f32.partialorder %v1345, 1.0
  %vm1362 = vcmp.ge.f32.partialorder %v1346, 1.0
  %vm1363 = vcmp.ge.f32.partialorder %v1347, 1.0
  %vm1364 = vcmp.ge.f32.partialorder %v1348, 1.0
  %vm1365 = vcmp.ge.f32.partialorder %v1349, 1.0
  %vm1366 = vcmp.ge.f32.partialorder %v1350, 1.0
  %vm1367 = vcmp.ge.f32.partialorder %v1351, 1.0
  %vm1368 = vcmp.ge.f32.partialorder %v1352, 1.0
  %v1369 = vsel %vm1353, 1, 0
  %v1370 = vsel %vm1354, 1, 0
  %v1371 = vsel %vm1355, 1, 0
  %v1372 = vsel %vm1356, 1, 0
  %v1373 = vsel %vm1357, 1, 0
  %v1374 = vsel %vm1358, 1, 0
  %v1375 = vsel %vm1359, 1, 0
  %v1376 = vsel %vm1360, 1, 0
  %v1377 = vsel %vm1361, 1, 0
  %v1378 = vsel %vm1362, 1, 0
  %v1379 = vsel %vm1363, 1, 0
  %v1380 = vsel %vm1364, 1, 0
  %v1381 = vsel %vm1365, 1, 0
  %v1382 = vsel %vm1366, 1, 0
  %v1383 = vsel %vm1367, 1, 0
  %v1384 = vsel %vm1368, 1, 0
  %v1385 = vcvt.s32.f32 %v1369
  %v1386 = vcvt.s32.f32 %v1370
  %v1387 = vcvt.s32.f32 %v1371
  %v1388 = vcvt.s32.f32 %v1372
  %v1389 = vcvt.s32.f32 %v1373
  %v1390 = vcvt.s32.f32 %v1374
  %v1391 = vcvt.s32.f32 %v1375
  %v1392 = vcvt.s32.f32 %v1376
  %v1393 = vcvt.s32.f32 %v1377
  %v1394 = vcvt.s32.f32 %v1378
  %v1395 = vcvt.s32.f32 %v1379
  %v1396 = vcvt.s32.f32 %v1380
  %v1397 = vcvt.s32.f32 %v1381
  %v1398 = vcvt.s32.f32 %v1382
  %v1399 = vcvt.s32.f32 %v1383
  %v1400 = vcvt.s32.f32 %v1384
  %v1401 = vsub.f32 1.0, %v1385
  %v1402 = vsub.f32 1.0, %v1386
  %v1403 = vsub.f32 1.0, %v1387
  %v1404 = vsub.f32 1.0, %v1388
  %v1405 = vsub.f32 1.0, %v1389
  %v1406 = vsub.f32 1.0, %v1390
  %v1407 = vsub.f32 1.0, %v1391
  %v1408 = vsub.f32 1.0, %v1392
  %v1409 = vsub.f32 1.0, %v1393
  %v1410 = vsub.f32 1.0, %v1394
  %v1411 = vsub.f32 1.0, %v1395
  %v1412 = vsub.f32 1.0, %v1396
  %v1413 = vsub.f32 1.0, %v1397
  %v1414 = vsub.f32 1.0, %v1398
  %v1415 = vsub.f32 1.0, %v1399
  %v1416 = vsub.f32 1.0, %v1400
  %v1417 = vmul.f32 %v1337, %v1401
  %v1418 = vmul.f32 %v1338, %v1402
  %v1419 = vmul.f32 %v1339, %v1403
  %v1420 = vmul.f32 %v1340, %v1404
  %v1421 = vmul.f32 %v1341, %v1405
  %v1422 = vmul.f32 %v1342, %v1406
  %v1423 = vmul.f32 %v1343, %v1407
  %v1424 = vmul.f32 %v1344, %v1408
  %v1425 = vmul.f32 %v1345, %v1409
  %v1426 = vmul.f32 %v1346, %v1410
  %v1427 = vmul.f32 %v1347, %v1411
  %v1428 = vmul.f32 %v1348, %v1412
  %v1429 = vmul.f32 %v1349, %v1413
  %v1430 = vmul.f32 %v1350, %v1414
  %v1431 = vmul.f32 %v1351, %v1415
  %v1432 = vmul.f32 %v1352, %v1416
  %v1433 = vpack.c.bf16 %v1386, %v1385
  %v1434 = vpack.c.bf16 %v1388, %v1387
  %v1435 = vpack.c.bf16 %v1390, %v1389
  %v1436 = vpack.c.bf16 %v1392, %v1391
  %v1437 = vpack.c.bf16 %v1394, %v1393
  %v1438 = vpack.c.bf16 %v1396, %v1395
  %v1439 = vpack.c.bf16 %v1398, %v1397
  %v1440 = vpack.c.bf16 %v1400, %v1399
  %v1441 = vld [vmem:[%s5] sm:$0xf]
  %v1443 = vsel %vm257, %v1433, 0
  %v1446 = vsel %vm257, %v1434, 0
  %v1449 = vsel %vm257, %v1435, 0
  %v1452 = vsel %vm257, %v1436, 0
  %v1455 = vsel %vm257, %v1437, 0
  %v1458 = vsel %vm257, %v1438, 0
  %v1461 = vsel %vm257, %v1439, 0
  %v1464 = vsel %vm257, %v1440, 0
  %v1467 = vsel %vm306, %v1441, 0
  %1469 = vmatprep.subr.bf16.mxu0 0
  %1470 = vmatpush1.bf16.msra.mxu0 0
  %1471 = vmatprep.subr.bf16.mxu0 0
  %1472 = vmatpush1.bf16.msra.mxu0 0
  %1473 = vmatprep.subr.bf16.mxu0 0
  %1474 = vmatpush1.bf16.msra.mxu0 0
  %1475 = vmatprep.subr.bf16.mxu0 0
  %1476 = vmatpush1.bf16.msra.mxu0 0
  %1477 = vmatprep.subr.bf16.mxu0 0
  %1478 = vmatpush1.bf16.msra.mxu0 0
  %1479 = vmatprep.subr.bf16.mxu0 0
  %1480 = vmatpush1.bf16.msra.mxu0 0
  %1481 = vmatprep.subr.bf16.mxu0 0
  %1482 = vmatpush1.bf16.msra.mxu0 0
  %1483 = vmatprep.subr.bf16.mxu0 0
  %1484 = vmatpush1.bf16.msra.mxu0 %v1467
  %1485 = vmatprep.subr.bf16.mxu0 0
  %1486 = vmatpush2.bf16.msra.mxu0 0
  %1487 = vmatprep.subr.bf16.mxu0 0
  %1488 = vmatpush2.bf16.msra.mxu0 0
  %1489 = vmatprep.subr.bf16.mxu0 0
  %1490 = vmatpush2.bf16.msra.mxu0 0
  %1491 = vmatprep.subr.bf16.mxu0 0
  %1492 = vmatpush2.bf16.msra.mxu0 0
  %1493 = vmatprep.subr.bf16.mxu0 0
  %1494 = vmatpush2.bf16.msra.mxu0 0
  %1495 = vmatprep.subr.bf16.mxu0 0
  %1496 = vmatpush2.bf16.msra.mxu0 0
  %1497 = vmatprep.subr.bf16.mxu0 0
  %1498 = vmatpush2.bf16.msra.mxu0 0
  %1499 = vmatprep.subr.bf16.mxu0 0
  %1500 = vmatpush2.bf16.msra.mxu0 0
  %1501 = vmatprep.mubr.bf16.mxu0 0
  %1502 = vmatmul.mubr.bf16.gmra.mxu0 %v1443
  %v1503 = vpop.f32.mrf.mxu0
  %v1504 = vadd.f32 0.0, %v1503
  %v1505 = vpop.f32.mrf.mxu0
  %v1506 = vpop.f32.mrf.mxu0
  %v1507 = vadd.f32 0.0, %v1506
  %v1508 = vpop.f32.mrf.mxu0
  %1509 = vmatprep.mubr.bf16.mxu0 0
  %1510 = vmatmul.mubr.bf16.gmra.mxu0 %v1446
  %v1511 = vpop.f32.mrf.mxu0
  %v1512 = vadd.f32 0.0, %v1511
  %v1513 = vpop.f32.mrf.mxu0
  %v1514 = vpop.f32.mrf.mxu0
  %v1515 = vadd.f32 0.0, %v1514
  %v1516 = vpop.f32.mrf.mxu0
  %1517 = vmatprep.mubr.bf16.mxu0 0
  %1518 = vmatmul.mubr.bf16.gmra.mxu0 %v1449
  %v1519 = vpop.f32.mrf.mxu0
  %v1520 = vadd.f32 0.0, %v1519
  %v1521 = vpop.f32.mrf.mxu0
  %v1522 = vpop.f32.mrf.mxu0
  %v1523 = vadd.f32 0.0, %v1522
  %v1524 = vpop.f32.mrf.mxu0
  %1525 = vmatprep.mubr.bf16.mxu0 0
  %1526 = vmatmul.mubr.bf16.gmra.mxu0 %v1452
  %v1527 = vpop.f32.mrf.mxu0
  %v1528 = vadd.f32 0.0, %v1527
  %v1529 = vpop.f32.mrf.mxu0
  %v1530 = vpop.f32.mrf.mxu0
  %v1531 = vadd.f32 0.0, %v1530
  %v1532 = vpop.f32.mrf.mxu0
  %1533 = vmatprep.mubr.bf16.mxu0 0
  %1534 = vmatmul.mubr.bf16.gmra.mxu0 %v1455
  %v1535 = vpop.f32.mrf.mxu0
  %v1536 = vadd.f32 0.0, %v1535
  %v1537 = vpop.f32.mrf.mxu0
  %v1538 = vpop.f32.mrf.mxu0
  %v1539 = vadd.f32 0.0, %v1538
  %v1540 = vpop.f32.mrf.mxu0
  %1541 = vmatprep.mubr.bf16.mxu0 0
  %1542 = vmatmul.mubr.bf16.gmra.mxu0 %v1458
  %v1543 = vpop.f32.mrf.mxu0
  %v1544 = vadd.f32 0.0, %v1543
  %v1545 = vpop.f32.mrf.mxu0
  %v1546 = vpop.f32.mrf.mxu0
  %v1547 = vadd.f32 0.0, %v1546
  %v1548 = vpop.f32.mrf.mxu0
  %1549 = vmatprep.mubr.bf16.mxu0 0
  %1550 = vmatmul.mubr.bf16.gmra.mxu0 %v1461
  %v1551 = vpop.f32.mrf.mxu0
  %v1552 = vadd.f32 0.0, %v1551
  %v1553 = vpop.f32.mrf.mxu0
  %v1554 = vpop.f32.mrf.mxu0
  %v1555 = vadd.f32 0.0, %v1554
  %v1556 = vpop.f32.mrf.mxu0
  %1557 = vmatprep.mubr.bf16.mxu0 0
  %1558 = vmatmul.mubr.bf16.gmra.mxu0 %v1464
  %v1559 = vpop.f32.mrf.mxu0
  %v1560 = vadd.f32 0.0, %v1559
  %v1561 = vpop.f32.mrf.mxu0
  %v1562 = vpop.f32.mrf.mxu0
  %v1563 = vadd.f32 0.0, %v1562
  %v1564 = vpop.f32.mrf.mxu0
  %1565 = vdwg.mxu0
  %v1566 = vld [vmem:[%s6] sm:$0x1]
  %v1568 = vlaneseq
  %v1569 = vshrl.u32 %v1568, 7
  %v1570 = vsub.s32 0, %v1569
  %v1571 = vrot.slane %v1566, %v1570
  %v1573 = vadd.f32 %v1504, %v1571
  %v1574 = vadd.f32 %v1507, %v1571
  %v1575 = vadd.f32 %v1512, %v1571
  %v1576 = vadd.f32 %v1515, %v1571
  %v1577 = vadd.f32 %v1520, %v1571
  %v1578 = vadd.f32 %v1523, %v1571
  %v1579 = vadd.f32 %v1528, %v1571
  %v1580 = vadd.f32 %v1531, %v1571
  %v1581 = vadd.f32 %v1536, %v1571
  %v1582 = vadd.f32 %v1539, %v1571
  %v1583 = vadd.f32 %v1544, %v1571
  %v1584 = vadd.f32 %v1547, %v1571
  %v1585 = vadd.f32 %v1552, %v1571
  %v1586 = vadd.f32 %v1555, %v1571
  %v1587 = vadd.f32 %v1560, %v1571
  %v1588 = vadd.f32 %v1563, %v1571
  %v1589 = vsel %vm257, %v1573, 0.0
  %1590 = vadd.xlane.f32.xlu0 %v1589
  %v1591 = vpop.xlane.xlu0 %1590
  %v1592 = vsel %vm257, %v1574, 0.0
  %1593 = vadd.xlane.f32.xlu0 %v1592
  %v1594 = vpop.xlane.xlu0 %1593
  %v1595 = vsel %vm257, %v1575, 0.0
  %1596 = vadd.xlane.f32.xlu0 %v1595
  %v1597 = vpop.xlane.xlu0 %1596
  %v1598 = vsel %vm257, %v1576, 0.0
  %1599 = vadd.xlane.f32.xlu0 %v1598
  %v1600 = vpop.xlane.xlu0 %1599
  %v1601 = vsel %vm257, %v1577, 0.0
  %1602 = vadd.xlane.f32.xlu0 %v1601
  %v1603 = vpop.xlane.xlu0 %1602
  %v1604 = vsel %vm257, %v1578, 0.0
  %1605 = vadd.xlane.f32.xlu0 %v1604
  %v1606 = vpop.xlane.xlu0 %1605
  %v1607 = vsel %vm257, %v1579, 0.0
  %1608 = vadd.xlane.f32.xlu0 %v1607
  %v1609 = vpop.xlane.xlu0 %1608
  %v1610 = vsel %vm257, %v1580, 0.0
  %1611 = vadd.xlane.f32.xlu0 %v1610
  %v1612 = vpop.xlane.xlu0 %1611
  %v1613 = vsel %vm257, %v1581, 0.0
  %1614 = vadd.xlane.f32.xlu0 %v1613
  %v1615 = vpop.xlane.xlu0 %1614
  %v1616 = vsel %vm257, %v1582, 0.0
  %1617 = vadd.xlane.f32.xlu0 %v1616
  %v1618 = vpop.xlane.xlu0 %1617
  %v1619 = vsel %vm257, %v1583, 0.0
  %1620 = vadd.xlane.f32.xlu0 %v1619
  %v1621 = vpop.xlane.xlu0 %1620
  %v1622 = vsel %vm257, %v1584, 0.0
  %1623 = vadd.xlane.f32.xlu0 %v1622
  %v1624 = vpop.xlane.xlu0 %1623
  %v1625 = vsel %vm257, %v1585, 0.0
  %1626 = vadd.xlane.f32.xlu0 %v1625
  %v1627 = vpop.xlane.xlu0 %1626
  %v1628 = vsel %vm257, %v1586, 0.0
  %1629 = vadd.xlane.f32.xlu0 %v1628
  %v1630 = vpop.xlane.xlu0 %1629
  %v1631 = vsel %vm257, %v1587, 0.0
  %1632 = vadd.xlane.f32.xlu0 %v1631
  %v1633 = vpop.xlane.xlu0 %1632
  %v1634 = vsel %vm257, %v1588, 0.0
  %1635 = vadd.xlane.f32.xlu0 %v1634
  %v1636 = vpop.xlane.xlu0 %1635
  %v1637 = vadd.f32 %v1591, %v1594
  %v1638 = vrot.slane %v1637, 4
  %v1639 = vadd.f32 %v1637, %v1638
  %v1640 = vrot.slane %v1639, 2
  %v1641 = vadd.f32 %v1639, %v1640
  %v1642 = vrot.slane %v1641, 1
  %v1643 = vadd.f32 %v1641, %v1642
  %v1644 = vadd.f32 %v1597, %v1600
  %v1645 = vrot.slane %v1644, 4
  %v1646 = vadd.f32 %v1644, %v1645
  %v1647 = vrot.slane %v1646, 2
  %v1648 = vadd.f32 %v1646, %v1647
  %v1649 = vrot.slane %v1648, 1
  %v1650 = vadd.f32 %v1648, %v1649
  %v1651 = vadd.f32 %v1603, %v1606
  %v1652 = vrot.slane %v1651, 4
  %v1653 = vadd.f32 %v1651, %v1652
  %v1654 = vrot.slane %v1653, 2
  %v1655 = vadd.f32 %v1653, %v1654
  %v1656 = vrot.slane %v1655, 1
  %v1657 = vadd.f32 %v1655, %v1656
  %v1658 = vadd.f32 %v1609, %v1612
  %v1659 = vrot.slane %v1658, 4
  %v1660 = vadd.f32 %v1658, %v1659
  %v1661 = vrot.slane %v1660, 2
  %v1662 = vadd.f32 %v1660, %v1661
  %v1663 = vrot.slane %v1662, 1
  %v1664 = vadd.f32 %v1662, %v1663
  %v1665 = vadd.f32 %v1615, %v1618
  %v1666 = vrot.slane %v1665, 4
  %v1667 = vadd.f32 %v1665, %v1666
  %v1668 = vrot.slane %v1667, 2
  %v1669 = vadd.f32 %v1667, %v1668
  %v1670 = vrot.slane %v1669, 1
  %v1671 = vadd.f32 %v1669, %v1670
  %v1672 = vadd.f32 %v1621, %v1624
  %v1673 = vrot.slane %v1672, 4
  %v1674 = vadd.f32 %v1672, %v1673
  %v1675 = vrot.slane %v1674, 2
  %v1676 = vadd.f32 %v1674, %v1675
  %v1677 = vrot.slane %v1676, 1
  %v1678 = vadd.f32 %v1676, %v1677
  %v1679 = vadd.f32 %v1627, %v1630
  %v1680 = vrot.slane %v1679, 4
  %v1681 = vadd.f32 %v1679, %v1680
  %v1682 = vrot.slane %v1681, 2
  %v1683 = vadd.f32 %v1681, %v1682
  %v1684 = vrot.slane %v1683, 1
  %v1685 = vadd.f32 %v1683, %v1684
  %v1686 = vadd.f32 %v1633, %v1636
  %v1687 = vrot.slane %v1686, 4
  %v1688 = vadd.f32 %v1686, %v1687
  %v1689 = vrot.slane %v1688, 2
  %v1690 = vadd.f32 %v1688, %v1689
  %v1691 = vrot.slane %v1690, 1
  %v1692 = vadd.f32 %v1690, %v1691
  %v1693 = vadd.f32 %v1643, 0.0
  %v1694 = vadd.f32 %v1650, 0.0
  %v1695 = vadd.f32 %v1657, 0.0
  %v1696 = vadd.f32 %v1664, 0.0
  %v1697 = vadd.f32 %v1671, 0.0
  %v1698 = vadd.f32 %v1678, 0.0
  %v1699 = vadd.f32 %v1685, 0.0
  %v1700 = vadd.f32 %v1692, 0.0
  %v1701 = vmul.f32 %v1573, %v1573
  %v1702 = vmul.f32 %v1574, %v1574
  %v1703 = vmul.f32 %v1575, %v1575
  %v1704 = vmul.f32 %v1576, %v1576
  %v1705 = vmul.f32 %v1577, %v1577
  %v1706 = vmul.f32 %v1578, %v1578
  %v1707 = vmul.f32 %v1579, %v1579
  %v1708 = vmul.f32 %v1580, %v1580
  %v1709 = vmul.f32 %v1581, %v1581
  %v1710 = vmul.f32 %v1582, %v1582
  %v1711 = vmul.f32 %v1583, %v1583
  %v1712 = vmul.f32 %v1584, %v1584
  %v1713 = vmul.f32 %v1585, %v1585
  %v1714 = vmul.f32 %v1586, %v1586
  %v1715 = vmul.f32 %v1587, %v1587
  %v1716 = vmul.f32 %v1588, %v1588
  %v1717 = vsel %vm257, %v1701, 0.0
  %1718 = vadd.xlane.f32.xlu0 %v1717
  %v1719 = vpop.xlane.xlu0 %1718
  %v1720 = vsel %vm257, %v1702, 0.0
  %1721 = vadd.xlane.f32.xlu0 %v1720
  %v1722 = vpop.xlane.xlu0 %1721
  %v1723 = vsel %vm257, %v1703, 0.0
  %1724 = vadd.xlane.f32.xlu0 %v1723
  %v1725 = vpop.xlane.xlu0 %1724
  %v1726 = vsel %vm257, %v1704, 0.0
  %1727 = vadd.xlane.f32.xlu0 %v1726
  %v1728 = vpop.xlane.xlu0 %1727
  %v1729 = vsel %vm257, %v1705, 0.0
  %1730 = vadd.xlane.f32.xlu0 %v1729
  %v1731 = vpop.xlane.xlu0 %1730
  %v1732 = vsel %vm257, %v1706, 0.0
  %1733 = vadd.xlane.f32.xlu0 %v1732
  %v1734 = vpop.xlane.xlu0 %1733
  %v1735 = vsel %vm257, %v1707, 0.0
  %1736 = vadd.xlane.f32.xlu0 %v1735
  %v1737 = vpop.xlane.xlu0 %1736
  %v1738 = vsel %vm257, %v1708, 0.0
  %1739 = vadd.xlane.f32.xlu0 %v1738
  %v1740 = vpop.xlane.xlu0 %1739
  %v1741 = vsel %vm257, %v1709, 0.0
  %1742 = vadd.xlane.f32.xlu0 %v1741
  %v1743 = vpop.xlane.xlu0 %1742
  %v1744 = vsel %vm257, %v1710, 0.0
  %1745 = vadd.xlane.f32.xlu0 %v1744
  %v1746 = vpop.xlane.xlu0 %1745
  %v1747 = vsel %vm257, %v1711, 0.0
  %1748 = vadd.xlane.f32.xlu0 %v1747
  %v1749 = vpop.xlane.xlu0 %1748
  %v1750 = vsel %vm257, %v1712, 0.0
  %1751 = vadd.xlane.f32.xlu0 %v1750
  %v1752 = vpop.xlane.xlu0 %1751
  %v1753 = vsel %vm257, %v1713, 0.0
  %1754 = vadd.xlane.f32.xlu0 %v1753
  %v1755 = vpop.xlane.xlu0 %1754
  %v1756 = vsel %vm257, %v1714, 0.0
  %1757 = vadd.xlane.f32.xlu0 %v1756
  %v1758 = vpop.xlane.xlu0 %1757
  %v1759 = vsel %vm257, %v1715, 0.0
  %1760 = vadd.xlane.f32.xlu0 %v1759
  %v1761 = vpop.xlane.xlu0 %1760
  %v1762 = vsel %vm257, %v1716, 0.0
  %1763 = vadd.xlane.f32.xlu0 %v1762
  %v1764 = vpop.xlane.xlu0 %1763
  %v1765 = vadd.f32 %v1719, %v1722
  %v1766 = vrot.slane %v1765, 4
  %v1767 = vadd.f32 %v1765, %v1766
  %v1768 = vrot.slane %v1767, 2
  %v1769 = vadd.f32 %v1767, %v1768
  %v1770 = vrot.slane %v1769, 1
  %v1771 = vadd.f32 %v1769, %v1770
  %v1772 = vadd.f32 %v1725, %v1728
  %v1773 = vrot.slane %v1772, 4
  %v1774 = vadd.f32 %v1772, %v1773
  %v1775 = vrot.slane %v1774, 2
  %v1776 = vadd.f32 %v1774, %v1775
  %v1777 = vrot.slane %v1776, 1
  %v1778 = vadd.f32 %v1776, %v1777
  %v1779 = vadd.f32 %v1731, %v1734
  %v1780 = vrot.slane %v1779, 4
  %v1781 = vadd.f32 %v1779, %v1780
  %v1782 = vrot.slane %v1781, 2
  %v1783 = vadd.f32 %v1781, %v1782
  %v1784 = vrot.slane %v1783, 1
  %v1785 = vadd.f32 %v1783, %v1784
  %v1786 = vadd.f32 %v1737, %v1740
  %v1787 = vrot.slane %v1786, 4
  %v1788 = vadd.f32 %v1786, %v1787
  %v1789 = vrot.slane %v1788, 2
  %v1790 = vadd.f32 %v1788, %v1789
  %v1791 = vrot.slane %v1790, 1
  %v1792 = vadd.f32 %v1790, %v1791
  %v1793 = vadd.f32 %v1743, %v1746
  %v1794 = vrot.slane %v1793, 4
  %v1795 = vadd.f32 %v1793, %v1794
  %v1796 = vrot.slane %v1795, 2
  %v1797 = vadd.f32 %v1795, %v1796
  %v1798 = vrot.slane %v1797, 1
  %v1799 = vadd.f32 %v1797, %v1798
  %v1800 = vadd.f32 %v1749, %v1752
  %v1801 = vrot.slane %v1800, 4
  %v1802 = vadd.f32 %v1800, %v1801
  %v1803 = vrot.slane %v1802, 2
  %v1804 = vadd.f32 %v1802, %v1803
  %v1805 = vrot.slane %v1804, 1
  %v1806 = vadd.f32 %v1804, %v1805
  %v1807 = vadd.f32 %v1755, %v1758
  %v1808 = vrot.slane %v1807, 4
  %v1809 = vadd.f32 %v1807, %v1808
  %v1810 = vrot.slane %v1809, 2
  %v1811 = vadd.f32 %v1809, %v1810
  %v1812 = vrot.slane %v1811, 1
  %v1813 = vadd.f32 %v1811, %v1812
  %v1814 = vadd.f32 %v1761, %v1764
  %v1815 = vrot.slane %v1814, 4
  %v1816 = vadd.f32 %v1814, %v1815
  %v1817 = vrot.slane %v1816, 2
  %v1818 = vadd.f32 %v1816, %v1817
  %v1819 = vrot.slane %v1818, 1
  %v1820 = vadd.f32 %v1818, %v1819
  %v1821 = vadd.f32 %v1771, 0.0
  %v1822 = vadd.f32 %v1778, 0.0
  %v1823 = vadd.f32 %v1785, 0.0
  %v1824 = vadd.f32 %v1792, 0.0
  %v1825 = vadd.f32 %v1799, 0.0
  %v1826 = vadd.f32 %v1806, 0.0
  %v1827 = vadd.f32 %v1813, 0.0
  %v1828 = vadd.f32 %v1820, 0.0
  %v1829 = vsub.f32 %v1305, %v1417
  %v1830 = vsub.f32 %v1306, %v1418
  %v1831 = vsub.f32 %v1307, %v1419
  %v1832 = vsub.f32 %v1308, %v1420
  %v1833 = vsub.f32 %v1309, %v1421
  %v1834 = vsub.f32 %v1310, %v1422
  %v1835 = vsub.f32 %v1311, %v1423
  %v1836 = vsub.f32 %v1312, %v1424
  %v1837 = vsub.f32 %v1313, %v1425
  %v1838 = vsub.f32 %v1314, %v1426
  %v1839 = vsub.f32 %v1315, %v1427
  %v1840 = vsub.f32 %v1316, %v1428
  %v1841 = vsub.f32 %v1317, %v1429
  %v1842 = vsub.f32 %v1318, %v1430
  %v1843 = vsub.f32 %v1319, %v1431
  %v1844 = vsub.f32 %v1320, %v1432
  %v1845 = vmul.f32 %v1829, 0.5
  %v1846 = vmul.f32 %v1830, 0.5
  %v1847 = vmul.f32 %v1831, 0.5
  %v1848 = vmul.f32 %v1832, 0.5
  %v1849 = vmul.f32 %v1833, 0.5
  %v1850 = vmul.f32 %v1834, 0.5
  %v1851 = vmul.f32 %v1835, 0.5
  %v1852 = vmul.f32 %v1836, 0.5
  %v1853 = vmul.f32 %v1837, 0.5
  %v1854 = vmul.f32 %v1838, 0.5
  %v1855 = vmul.f32 %v1839, 0.5
  %v1856 = vmul.f32 %v1840, 0.5
  %v1857 = vmul.f32 %v1841, 0.5
  %v1858 = vmul.f32 %v1842, 0.5
  %v1859 = vmul.f32 %v1843, 0.5
  %v1860 = vmul.f32 %v1844, 0.5
  %v1861 = vadd.f32 %v1417, %v1845
  %v1862 = vadd.f32 %v1418, %v1846
  %v1863 = vadd.f32 %v1419, %v1847
  %v1864 = vadd.f32 %v1420, %v1848
  %v1865 = vadd.f32 %v1421, %v1849
  %v1866 = vadd.f32 %v1422, %v1850
  %v1867 = vadd.f32 %v1423, %v1851
  %v1868 = vadd.f32 %v1424, %v1852
  %v1869 = vadd.f32 %v1425, %v1853
  %v1870 = vadd.f32 %v1426, %v1854
  %v1871 = vadd.f32 %v1427, %v1855
  %v1872 = vadd.f32 %v1428, %v1856
  %v1873 = vadd.f32 %v1429, %v1857
  %v1874 = vadd.f32 %v1430, %v1858
  %v1875 = vadd.f32 %v1431, %v1859
  %v1876 = vadd.f32 %v1432, %v1860
  %vm1877 = vcmp.ge.f32.partialorder %v1861, 1.0
  %vm1878 = vcmp.ge.f32.partialorder %v1862, 1.0
  %vm1879 = vcmp.ge.f32.partialorder %v1863, 1.0
  %vm1880 = vcmp.ge.f32.partialorder %v1864, 1.0
  %vm1881 = vcmp.ge.f32.partialorder %v1865, 1.0
  %vm1882 = vcmp.ge.f32.partialorder %v1866, 1.0
  %vm1883 = vcmp.ge.f32.partialorder %v1867, 1.0
  %vm1884 = vcmp.ge.f32.partialorder %v1868, 1.0
  %vm1885 = vcmp.ge.f32.partialorder %v1869, 1.0
  %vm1886 = vcmp.ge.f32.partialorder %v1870, 1.0
  %vm1887 = vcmp.ge.f32.partialorder %v1871, 1.0
  %vm1888 = vcmp.ge.f32.partialorder %v1872, 1.0
  %vm1889 = vcmp.ge.f32.partialorder %v1873, 1.0
  %vm1890 = vcmp.ge.f32.partialorder %v1874, 1.0
  %vm1891 = vcmp.ge.f32.partialorder %v1875, 1.0
  %vm1892 = vcmp.ge.f32.partialorder %v1876, 1.0
  %v1893 = vsel %vm1877, 1, 0
  %v1894 = vsel %vm1878, 1, 0
  %v1895 = vsel %vm1879, 1, 0
  %v1896 = vsel %vm1880, 1, 0
  %v1897 = vsel %vm1881, 1, 0
  %v1898 = vsel %vm1882, 1, 0
  %v1899 = vsel %vm1883, 1, 0
  %v1900 = vsel %vm1884, 1, 0
  %v1901 = vsel %vm1885, 1, 0
  %v1902 = vsel %vm1886, 1, 0
  %v1903 = vsel %vm1887, 1, 0
  %v1904 = vsel %vm1888, 1, 0
  %v1905 = vsel %vm1889, 1, 0
  %v1906 = vsel %vm1890, 1, 0
  %v1907 = vsel %vm1891, 1, 0
  %v1908 = vsel %vm1892, 1, 0
  %v1909 = vcvt.s32.f32 %v1893
  %v1910 = vcvt.s32.f32 %v1894
  %v1911 = vcvt.s32.f32 %v1895
  %v1912 = vcvt.s32.f32 %v1896
  %v1913 = vcvt.s32.f32 %v1897
  %v1914 = vcvt.s32.f32 %v1898
  %v1915 = vcvt.s32.f32 %v1899
  %v1916 = vcvt.s32.f32 %v1900
  %v1917 = vcvt.s32.f32 %v1901
  %v1918 = vcvt.s32.f32 %v1902
  %v1919 = vcvt.s32.f32 %v1903
  %v1920 = vcvt.s32.f32 %v1904
  %v1921 = vcvt.s32.f32 %v1905
  %v1922 = vcvt.s32.f32 %v1906
  %v1923 = vcvt.s32.f32 %v1907
  %v1924 = vcvt.s32.f32 %v1908
  %v1925 = vpack.c.bf16 %v1910, %v1909
  %v1926 = vpack.c.bf16 %v1912, %v1911
  %v1927 = vpack.c.bf16 %v1914, %v1913
  %v1928 = vpack.c.bf16 %v1916, %v1915
  %v1929 = vpack.c.bf16 %v1918, %v1917
  %v1930 = vpack.c.bf16 %v1920, %v1919
  %v1931 = vpack.c.bf16 %v1922, %v1921
  %v1932 = vpack.c.bf16 %v1924, %v1923
  %v1934 = vsel %vm257, %v1925, 0
  %v1937 = vsel %vm257, %v1926, 0
  %v1940 = vsel %vm257, %v1927, 0
  %v1943 = vsel %vm257, %v1928, 0
  %v1946 = vsel %vm257, %v1929, 0
  %v1949 = vsel %vm257, %v1930, 0
  %v1952 = vsel %vm257, %v1931, 0
  %v1955 = vsel %vm257, %v1932, 0
  %1957 = vmatprep.subr.bf16.mxu0 0
  %1958 = vmatpush1.bf16.msra.mxu0 0
  %1959 = vmatprep.subr.bf16.mxu0 0
  %1960 = vmatpush1.bf16.msra.mxu0 0
  %1961 = vmatprep.subr.bf16.mxu0 0
  %1962 = vmatpush1.bf16.msra.mxu0 0
  %1963 = vmatprep.subr.bf16.mxu0 0
  %1964 = vmatpush1.bf16.msra.mxu0 0
  %1965 = vmatprep.subr.bf16.mxu0 0
  %1966 = vmatpush1.bf16.msra.mxu0 0
  %1967 = vmatprep.subr.bf16.mxu0 0
  %1968 = vmatpush1.bf16.msra.mxu0 0
  %1969 = vmatprep.subr.bf16.mxu0 0
  %1970 = vmatpush1.bf16.msra.mxu0 0
  %1971 = vmatprep.subr.bf16.mxu0 0
  %1972 = vmatpush1.bf16.msra.mxu0 %v1467
  %1973 = vmatprep.subr.bf16.mxu0 0
  %1974 = vmatpush2.bf16.msra.mxu0 0
  %1975 = vmatprep.subr.bf16.mxu0 0
  %1976 = vmatpush2.bf16.msra.mxu0 0
  %1977 = vmatprep.subr.bf16.mxu0 0
  %1978 = vmatpush2.bf16.msra.mxu0 0
  %1979 = vmatprep.subr.bf16.mxu0 0
  %1980 = vmatpush2.bf16.msra.mxu0 0
  %1981 = vmatprep.subr.bf16.mxu0 0
  %1982 = vmatpush2.bf16.msra.mxu0 0
  %1983 = vmatprep.subr.bf16.mxu0 0
  %1984 = vmatpush2.bf16.msra.mxu0 0
  %1985 = vmatprep.subr.bf16.mxu0 0
  %1986 = vmatpush2.bf16.msra.mxu0 0
  %1987 = vmatprep.subr.bf16.mxu0 0
  %1988 = vmatpush2.bf16.msra.mxu0 0
  %1989 = vmatprep.mubr.bf16.mxu0 0
  %1990 = vmatmul.mubr.bf16.gmra.mxu0 %v1934
  %v1991 = vpop.f32.mrf.mxu0
  %v1992 = vadd.f32 0.0, %v1991
  %v1993 = vpop.f32.mrf.mxu0
  %v1994 = vpop.f32.mrf.mxu0
  %v1995 = vadd.f32 0.0, %v1994
  %v1996 = vpop.f32.mrf.mxu0
  %1997 = vmatprep.mubr.bf16.mxu0 0
  %1998 = vmatmul.mubr.bf16.gmra.mxu0 %v1937
  %v1999 = vpop.f32.mrf.mxu0
  %v2000 = vadd.f32 0.0, %v1999
  %v2001 = vpop.f32.mrf.mxu0
  %v2002 = vpop.f32.mrf.mxu0
  %v2003 = vadd.f32 0.0, %v2002
  %v2004 = vpop.f32.mrf.mxu0
  %2005 = vmatprep.mubr.bf16.mxu0 0
  %2006 = vmatmul.mubr.bf16.gmra.mxu0 %v1940
  %v2007 = vpop.f32.mrf.mxu0
  %v2008 = vadd.f32 0.0, %v2007
  %v2009 = vpop.f32.mrf.mxu0
  %v2010 = vpop.f32.mrf.mxu0
  %v2011 = vadd.f32 0.0, %v2010
  %v2012 = vpop.f32.mrf.mxu0
  %2013 = vmatprep.mubr.bf16.mxu0 0
  %2014 = vmatmul.mubr.bf16.gmra.mxu0 %v1943
  %v2015 = vpop.f32.mrf.mxu0
  %v2016 = vadd.f32 0.0, %v2015
  %v2017 = vpop.f32.mrf.mxu0
  %v2018 = vpop.f32.mrf.mxu0
  %v2019 = vadd.f32 0.0, %v2018
  %v2020 = vpop.f32.mrf.mxu0
  %2021 = vmatprep.mubr.bf16.mxu0 0
  %2022 = vmatmul.mubr.bf16.gmra.mxu0 %v1946
  %v2023 = vpop.f32.mrf.mxu0
  %v2024 = vadd.f32 0.0, %v2023
  %v2025 = vpop.f32.mrf.mxu0
  %v2026 = vpop.f32.mrf.mxu0
  %v2027 = vadd.f32 0.0, %v2026
  %v2028 = vpop.f32.mrf.mxu0
  %2029 = vmatprep.mubr.bf16.mxu0 0
  %2030 = vmatmul.mubr.bf16.gmra.mxu0 %v1949
  %v2031 = vpop.f32.mrf.mxu0
  %v2032 = vadd.f32 0.0, %v2031
  %v2033 = vpop.f32.mrf.mxu0
  %v2034 = vpop.f32.mrf.mxu0
  %v2035 = vadd.f32 0.0, %v2034
  %v2036 = vpop.f32.mrf.mxu0
  %2037 = vmatprep.mubr.bf16.mxu0 0
  %2038 = vmatmul.mubr.bf16.gmra.mxu0 %v1952
  %v2039 = vpop.f32.mrf.mxu0
  %v2040 = vadd.f32 0.0, %v2039
  %v2041 = vpop.f32.mrf.mxu0
  %v2042 = vpop.f32.mrf.mxu0
  %v2043 = vadd.f32 0.0, %v2042
  %v2044 = vpop.f32.mrf.mxu0
  %2045 = vmatprep.mubr.bf16.mxu0 0
  %2046 = vmatmul.mubr.bf16.gmra.mxu0 %v1955
  %v2047 = vpop.f32.mrf.mxu0
  %v2048 = vadd.f32 0.0, %v2047
  %v2049 = vpop.f32.mrf.mxu0
  %v2050 = vpop.f32.mrf.mxu0
  %v2051 = vadd.f32 0.0, %v2050
  %v2052 = vpop.f32.mrf.mxu0
  %2053 = vdwg.mxu0
  %v2054 = vadd.f32 %v1992, %v1571
  %v2055 = vadd.f32 %v1995, %v1571
  %v2056 = vadd.f32 %v2000, %v1571
  %v2057 = vadd.f32 %v2003, %v1571
  %v2058 = vadd.f32 %v2008, %v1571
  %v2059 = vadd.f32 %v2011, %v1571
  %v2060 = vadd.f32 %v2016, %v1571
  %v2061 = vadd.f32 %v2019, %v1571
  %v2062 = vadd.f32 %v2024, %v1571
  %v2063 = vadd.f32 %v2027, %v1571
  %v2064 = vadd.f32 %v2032, %v1571
  %v2065 = vadd.f32 %v2035, %v1571
  %v2066 = vadd.f32 %v2040, %v1571
  %v2067 = vadd.f32 %v2043, %v1571
  %v2068 = vadd.f32 %v2048, %v1571
  %v2069 = vadd.f32 %v2051, %v1571
  %v2070 = vsel %vm257, %v2054, 0.0
  %2071 = vadd.xlane.f32.xlu0 %v2070
  %v2072 = vpop.xlane.xlu0 %2071
  %v2073 = vsel %vm257, %v2055, 0.0
  %2074 = vadd.xlane.f32.xlu0 %v2073
  %v2075 = vpop.xlane.xlu0 %2074
  %v2076 = vsel %vm257, %v2056, 0.0
  %2077 = vadd.xlane.f32.xlu0 %v2076
  %v2078 = vpop.xlane.xlu0 %2077
  %v2079 = vsel %vm257, %v2057, 0.0
  %2080 = vadd.xlane.f32.xlu0 %v2079
  %v2081 = vpop.xlane.xlu0 %2080
  %v2082 = vsel %vm257, %v2058, 0.0
  %2083 = vadd.xlane.f32.xlu0 %v2082
  %v2084 = vpop.xlane.xlu0 %2083
  %v2085 = vsel %vm257, %v2059, 0.0
  %2086 = vadd.xlane.f32.xlu0 %v2085
  %v2087 = vpop.xlane.xlu0 %2086
  %v2088 = vsel %vm257, %v2060, 0.0
  %2089 = vadd.xlane.f32.xlu0 %v2088
  %v2090 = vpop.xlane.xlu0 %2089
  %v2091 = vsel %vm257, %v2061, 0.0
  %2092 = vadd.xlane.f32.xlu0 %v2091
  %v2093 = vpop.xlane.xlu0 %2092
  %v2094 = vsel %vm257, %v2062, 0.0
  %2095 = vadd.xlane.f32.xlu0 %v2094
  %v2096 = vpop.xlane.xlu0 %2095
  %v2097 = vsel %vm257, %v2063, 0.0
  %2098 = vadd.xlane.f32.xlu0 %v2097
  %v2099 = vpop.xlane.xlu0 %2098
  %v2100 = vsel %vm257, %v2064, 0.0
  %2101 = vadd.xlane.f32.xlu0 %v2100
  %v2102 = vpop.xlane.xlu0 %2101
  %v2103 = vsel %vm257, %v2065, 0.0
  %2104 = vadd.xlane.f32.xlu0 %v2103
  %v2105 = vpop.xlane.xlu0 %2104
  %v2106 = vsel %vm257, %v2066, 0.0
  %2107 = vadd.xlane.f32.xlu0 %v2106
  %v2108 = vpop.xlane.xlu0 %2107
  %v2109 = vsel %vm257, %v2067, 0.0
  %2110 = vadd.xlane.f32.xlu0 %v2109
  %v2111 = vpop.xlane.xlu0 %2110
  %v2112 = vsel %vm257, %v2068, 0.0
  %2113 = vadd.xlane.f32.xlu0 %v2112
  %v2114 = vpop.xlane.xlu0 %2113
  %v2115 = vsel %vm257, %v2069, 0.0
  %2116 = vadd.xlane.f32.xlu0 %v2115
  %v2117 = vpop.xlane.xlu0 %2116
  %v2118 = vadd.f32 %v2072, %v2075
  %v2119 = vrot.slane %v2118, 4
  %v2120 = vadd.f32 %v2118, %v2119
  %v2121 = vrot.slane %v2120, 2
  %v2122 = vadd.f32 %v2120, %v2121
  %v2123 = vrot.slane %v2122, 1
  %v2124 = vadd.f32 %v2122, %v2123
  %v2125 = vadd.f32 %v2078, %v2081
  %v2126 = vrot.slane %v2125, 4
  %v2127 = vadd.f32 %v2125, %v2126
  %v2128 = vrot.slane %v2127, 2
  %v2129 = vadd.f32 %v2127, %v2128
  %v2130 = vrot.slane %v2129, 1
  %v2131 = vadd.f32 %v2129, %v2130
  %v2132 = vadd.f32 %v2084, %v2087
  %v2133 = vrot.slane %v2132, 4
  %v2134 = vadd.f32 %v2132, %v2133
  %v2135 = vrot.slane %v2134, 2
  %v2136 = vadd.f32 %v2134, %v2135
  %v2137 = vrot.slane %v2136, 1
  %v2138 = vadd.f32 %v2136, %v2137
  %v2139 = vadd.f32 %v2090, %v2093
  %v2140 = vrot.slane %v2139, 4
  %v2141 = vadd.f32 %v2139, %v2140
  %v2142 = vrot.slane %v2141, 2
  %v2143 = vadd.f32 %v2141, %v2142
  %v2144 = vrot.slane %v2143, 1
  %v2145 = vadd.f32 %v2143, %v2144
  %v2146 = vadd.f32 %v2096, %v2099
  %v2147 = vrot.slane %v2146, 4
  %v2148 = vadd.f32 %v2146, %v2147
  %v2149 = vrot.slane %v2148, 2
  %v2150 = vadd.f32 %v2148, %v2149
  %v2151 = vrot.slane %v2150, 1
  %v2152 = vadd.f32 %v2150, %v2151
  %v2153 = vadd.f32 %v2102, %v2105
  %v2154 = vrot.slane %v2153, 4
  %v2155 = vadd.f32 %v2153, %v2154
  %v2156 = vrot.slane %v2155, 2
  %v2157 = vadd.f32 %v2155, %v2156
  %v2158 = vrot.slane %v2157, 1
  %v2159 = vadd.f32 %v2157, %v2158
  %v2160 = vadd.f32 %v2108, %v2111
  %v2161 = vrot.slane %v2160, 4
  %v2162 = vadd.f32 %v2160, %v2161
  %v2163 = vrot.slane %v2162, 2
  %v2164 = vadd.f32 %v2162, %v2163
  %v2165 = vrot.slane %v2164, 1
  %v2166 = vadd.f32 %v2164, %v2165
  %v2167 = vadd.f32 %v2114, %v2117
  %v2168 = vrot.slane %v2167, 4
  %v2169 = vadd.f32 %v2167, %v2168
  %v2170 = vrot.slane %v2169, 2
  %v2171 = vadd.f32 %v2169, %v2170
  %v2172 = vrot.slane %v2171, 1
  %v2173 = vadd.f32 %v2171, %v2172
  %v2174 = vadd.f32 %v1693, %v2124
  %v2175 = vadd.f32 %v1694, %v2131
  %v2176 = vadd.f32 %v1695, %v2138
  %v2177 = vadd.f32 %v1696, %v2145
  %v2178 = vadd.f32 %v1697, %v2152
  %v2179 = vadd.f32 %v1698, %v2159
  %v2180 = vadd.f32 %v1699, %v2166
  %v2181 = vadd.f32 %v1700, %v2173
  %v2182 = vmul.f32 %v2054, %v2054
  %v2183 = vmul.f32 %v2055, %v2055
  %v2184 = vmul.f32 %v2056, %v2056
  %v2185 = vmul.f32 %v2057, %v2057
  %v2186 = vmul.f32 %v2058, %v2058
  %v2187 = vmul.f32 %v2059, %v2059
  %v2188 = vmul.f32 %v2060, %v2060
  %v2189 = vmul.f32 %v2061, %v2061
  %v2190 = vmul.f32 %v2062, %v2062
  %v2191 = vmul.f32 %v2063, %v2063
  %v2192 = vmul.f32 %v2064, %v2064
  %v2193 = vmul.f32 %v2065, %v2065
  %v2194 = vmul.f32 %v2066, %v2066
  %v2195 = vmul.f32 %v2067, %v2067
  %v2196 = vmul.f32 %v2068, %v2068
  %v2197 = vmul.f32 %v2069, %v2069
  %v2198 = vsel %vm257, %v2182, 0.0
  %2199 = vadd.xlane.f32.xlu0 %v2198
  %v2200 = vpop.xlane.xlu0 %2199
  %v2201 = vsel %vm257, %v2183, 0.0
  %2202 = vadd.xlane.f32.xlu0 %v2201
  %v2203 = vpop.xlane.xlu0 %2202
  %v2204 = vsel %vm257, %v2184, 0.0
  %2205 = vadd.xlane.f32.xlu0 %v2204
  %v2206 = vpop.xlane.xlu0 %2205
  %v2207 = vsel %vm257, %v2185, 0.0
  %2208 = vadd.xlane.f32.xlu0 %v2207
  %v2209 = vpop.xlane.xlu0 %2208
  %v2210 = vsel %vm257, %v2186, 0.0
  %2211 = vadd.xlane.f32.xlu0 %v2210
  %v2212 = vpop.xlane.xlu0 %2211
  %v2213 = vsel %vm257, %v2187, 0.0
  %2214 = vadd.xlane.f32.xlu0 %v2213
  %v2215 = vpop.xlane.xlu0 %2214
  %v2216 = vsel %vm257, %v2188, 0.0
  %2217 = vadd.xlane.f32.xlu0 %v2216
  %v2218 = vpop.xlane.xlu0 %2217
  %v2219 = vsel %vm257, %v2189, 0.0
  %2220 = vadd.xlane.f32.xlu0 %v2219
  %v2221 = vpop.xlane.xlu0 %2220
  %v2222 = vsel %vm257, %v2190, 0.0
  %2223 = vadd.xlane.f32.xlu0 %v2222
  %v2224 = vpop.xlane.xlu0 %2223
  %v2225 = vsel %vm257, %v2191, 0.0
  %2226 = vadd.xlane.f32.xlu0 %v2225
  %v2227 = vpop.xlane.xlu0 %2226
  %v2228 = vsel %vm257, %v2192, 0.0
  %2229 = vadd.xlane.f32.xlu0 %v2228
  %v2230 = vpop.xlane.xlu0 %2229
  %v2231 = vsel %vm257, %v2193, 0.0
  %2232 = vadd.xlane.f32.xlu0 %v2231
  %v2233 = vpop.xlane.xlu0 %2232
  %v2234 = vsel %vm257, %v2194, 0.0
  %2235 = vadd.xlane.f32.xlu0 %v2234
  %v2236 = vpop.xlane.xlu0 %2235
  %v2237 = vsel %vm257, %v2195, 0.0
  %2238 = vadd.xlane.f32.xlu0 %v2237
  %v2239 = vpop.xlane.xlu0 %2238
  %v2240 = vsel %vm257, %v2196, 0.0
  %2241 = vadd.xlane.f32.xlu0 %v2240
  %v2242 = vpop.xlane.xlu0 %2241
  %v2243 = vsel %vm257, %v2197, 0.0
  %2244 = vadd.xlane.f32.xlu0 %v2243
  %v2245 = vpop.xlane.xlu0 %2244
  %v2246 = vadd.f32 %v2200, %v2203
  %v2247 = vrot.slane %v2246, 4
  %v2248 = vadd.f32 %v2246, %v2247
  %v2249 = vrot.slane %v2248, 2
  %v2250 = vadd.f32 %v2248, %v2249
  %v2251 = vrot.slane %v2250, 1
  %v2252 = vadd.f32 %v2250, %v2251
  %v2253 = vadd.f32 %v2206, %v2209
  %v2254 = vrot.slane %v2253, 4
  %v2255 = vadd.f32 %v2253, %v2254
  %v2256 = vrot.slane %v2255, 2
  %v2257 = vadd.f32 %v2255, %v2256
  %v2258 = vrot.slane %v2257, 1
  %v2259 = vadd.f32 %v2257, %v2258
  %v2260 = vadd.f32 %v2212, %v2215
  %v2261 = vrot.slane %v2260, 4
  %v2262 = vadd.f32 %v2260, %v2261
  %v2263 = vrot.slane %v2262, 2
  %v2264 = vadd.f32 %v2262, %v2263
  %v2265 = vrot.slane %v2264, 1
  %v2266 = vadd.f32 %v2264, %v2265
  %v2267 = vadd.f32 %v2218, %v2221
  %v2268 = vrot.slane %v2267, 4
  %v2269 = vadd.f32 %v2267, %v2268
  %v2270 = vrot.slane %v2269, 2
  %v2271 = vadd.f32 %v2269, %v2270
  %v2272 = vrot.slane %v2271, 1
  %v2273 = vadd.f32 %v2271, %v2272
  %v2274 = vadd.f32 %v2224, %v2227
  %v2275 = vrot.slane %v2274, 4
  %v2276 = vadd.f32 %v2274, %v2275
  %v2277 = vrot.slane %v2276, 2
  %v2278 = vadd.f32 %v2276, %v2277
  %v2279 = vrot.slane %v2278, 1
  %v2280 = vadd.f32 %v2278, %v2279
  %v2281 = vadd.f32 %v2230, %v2233
  %v2282 = vrot.slane %v2281, 4
  %v2283 = vadd.f32 %v2281, %v2282
  %v2284 = vrot.slane %v2283, 2
  %v2285 = vadd.f32 %v2283, %v2284
  %v2286 = vrot.slane %v2285, 1
  %v2287 = vadd.f32 %v2285, %v2286
  %v2288 = vadd.f32 %v2236, %v2239
  %v2289 = vrot.slane %v2288, 4
  %v2290 = vadd.f32 %v2288, %v2289
  %v2291 = vrot.slane %v2290, 2
  %v2292 = vadd.f32 %v2290, %v2291
  %v2293 = vrot.slane %v2292, 1
  %v2294 = vadd.f32 %v2292, %v2293
  %v2295 = vadd.f32 %v2242, %v2245
  %v2296 = vrot.slane %v2295, 4
  %v2297 = vadd.f32 %v2295, %v2296
  %v2298 = vrot.slane %v2297, 2
  %v2299 = vadd.f32 %v2297, %v2298
  %v2300 = vrot.slane %v2299, 1
  %v2301 = vadd.f32 %v2299, %v2300
  %v2302 = vadd.f32 %v1821, %v2252
  %v2303 = vadd.f32 %v1822, %v2259
  %v2304 = vadd.f32 %v1823, %v2266
  %v2305 = vadd.f32 %v1824, %v2273
  %v2306 = vadd.f32 %v1825, %v2280
  %v2307 = vadd.f32 %v1826, %v2287
  %v2308 = vadd.f32 %v1827, %v2294
  %v2309 = vadd.f32 %v1828, %v2301
  %v2310 = vmul.f32 %v2174, %v726
  %v2311 = vmul.f32 %v2175, %v726
  %v2312 = vmul.f32 %v2176, %v726
  %v2313 = vmul.f32 %v2177, %v726
  %v2314 = vmul.f32 %v2178, %v726
  %v2315 = vmul.f32 %v2179, %v726
  %v2316 = vmul.f32 %v2180, %v726
  %v2317 = vmul.f32 %v2181, %v726
  %v2318 = vmul.f32 %v2302, %v726
  %v2319 = vmul.f32 %v2303, %v726
  %v2320 = vmul.f32 %v2304, %v726
  %v2321 = vmul.f32 %v2305, %v726
  %v2322 = vmul.f32 %v2306, %v726
  %v2323 = vmul.f32 %v2307, %v726
  %v2324 = vmul.f32 %v2308, %v726
  %v2325 = vmul.f32 %v2309, %v726
  %v2326 = vmul.f32 %v2310, %v2310
  %v2327 = vmul.f32 %v2311, %v2311
  %v2328 = vmul.f32 %v2312, %v2312
  %v2329 = vmul.f32 %v2313, %v2313
  %v2330 = vmul.f32 %v2314, %v2314
  %v2331 = vmul.f32 %v2315, %v2315
  %v2332 = vmul.f32 %v2316, %v2316
  %v2333 = vmul.f32 %v2317, %v2317
  %v2334 = vsub.f32 %v2318, %v2326
  %v2335 = vsub.f32 %v2319, %v2327
  %v2336 = vsub.f32 %v2320, %v2328
  %v2337 = vsub.f32 %v2321, %v2329
  %v2338 = vsub.f32 %v2322, %v2330
  %v2339 = vsub.f32 %v2323, %v2331
  %v2340 = vsub.f32 %v2324, %v2332
  %v2341 = vsub.f32 %v2325, %v2333
  %v2342 = vmax.f32 %v2334, 0.0
  %v2343 = vmax.f32 %v2335, 0.0
  %v2344 = vmax.f32 %v2336, 0.0
  %v2345 = vmax.f32 %v2337, 0.0
  %v2346 = vmax.f32 %v2338, 0.0
  %v2347 = vmax.f32 %v2339, 0.0
  %v2348 = vmax.f32 %v2340, 0.0
  %v2349 = vmax.f32 %v2341, 0.0
  %v2350 = vadd.f32 %v2342, 1e-05
  %v2351 = vadd.f32 %v2343, 1e-05
  %v2352 = vadd.f32 %v2344, 1e-05
  %v2353 = vadd.f32 %v2345, 1e-05
  %v2354 = vadd.f32 %v2346, 1e-05
  %v2355 = vadd.f32 %v2347, 1e-05
  %v2356 = vadd.f32 %v2348, 1e-05
  %v2357 = vadd.f32 %v2349, 1e-05
  %v2358 = vrsqrt.pop %v2350
  %v2359 = vrsqrt.pop %v2351
  %v2360 = vrsqrt.pop %v2352
  %v2361 = vrsqrt.pop %v2353
  %v2362 = vrsqrt.pop %v2354
  %v2363 = vrsqrt.pop %v2355
  %v2364 = vrsqrt.pop %v2356
  %v2365 = vrsqrt.pop %v2357
  %v2366 = vmul.f32 %v2358, %v122
  %v2367 = vmul.f32 %v2359, %v136
  %v2368 = vmul.f32 %v2360, %v144
  %v2369 = vmul.f32 %v2361, %v146
  %v2370 = vmul.f32 %v2362, %v129
  %v2371 = vmul.f32 %v2363, %v143
  %v2372 = vmul.f32 %v2364, %v145
  %v2373 = vmul.f32 %v2365, %v147
  %v2374 = vsub.f32 %v1573, %v2310
  %v2375 = vsub.f32 %v1574, %v2310
  %v2376 = vsub.f32 %v1575, %v2311
  %v2377 = vsub.f32 %v1576, %v2311
  %v2378 = vsub.f32 %v1577, %v2312
  %v2379 = vsub.f32 %v1578, %v2312
  %v2380 = vsub.f32 %v1579, %v2313
  %v2381 = vsub.f32 %v1580, %v2313
  %v2382 = vsub.f32 %v1581, %v2314
  %v2383 = vsub.f32 %v1582, %v2314
  %v2384 = vsub.f32 %v1583, %v2315
  %v2385 = vsub.f32 %v1584, %v2315
  %v2386 = vsub.f32 %v1585, %v2316
  %v2387 = vsub.f32 %v1586, %v2316
  %v2388 = vsub.f32 %v1587, %v2317
  %v2389 = vsub.f32 %v1588, %v2317
  %v2398 = vlaneseq
  %v2399 = vshrl.u32 %v2398, 7
  %v2400 = vsub.s32 0, %v2399
  %v2401 = vrot.slane %v2366, %v2400
  %v2402 = vlaneseq
  %v2403 = vshrl.u32 %v2402, 7
  %v2404 = vsub.s32 0, %v2403
  %v2405 = vrot.slane %v2367, %v2404
  %v2406 = vlaneseq
  %v2407 = vshrl.u32 %v2406, 7
  %v2408 = vsub.s32 0, %v2407
  %v2409 = vrot.slane %v2368, %v2408
  %v2410 = vlaneseq
  %v2411 = vshrl.u32 %v2410, 7
  %v2412 = vsub.s32 0, %v2411
  %v2413 = vrot.slane %v2369, %v2412
  %v2414 = vlaneseq
  %v2415 = vshrl.u32 %v2414, 7
  %v2416 = vsub.s32 0, %v2415
  %v2417 = vrot.slane %v2370, %v2416
  %v2418 = vlaneseq
  %v2419 = vshrl.u32 %v2418, 7
  %v2420 = vsub.s32 0, %v2419
  %v2421 = vrot.slane %v2371, %v2420
  %v2422 = vlaneseq
  %v2423 = vshrl.u32 %v2422, 7
  %v2424 = vsub.s32 0, %v2423
  %v2425 = vrot.slane %v2372, %v2424
  %v2426 = vlaneseq
  %v2427 = vshrl.u32 %v2426, 7
  %v2428 = vsub.s32 0, %v2427
  %v2429 = vrot.slane %v2373, %v2428
  %2430 = vset.pattern.permute.xlu0 0
  %2431 = vperm.xlu0 %2430, %v2401
  %v2432 = vpop.permute.xlu0 %2431
  %2434 = vset.pattern.permute.xlu0 0
  %2435 = vperm.xlu0 %2434, %v2405
  %v2436 = vpop.permute.xlu0 %2435
  %2438 = vset.pattern.permute.xlu0 0
  %2439 = vperm.xlu0 %2438, %v2409
  %v2440 = vpop.permute.xlu0 %2439
  %2442 = vset.pattern.permute.xlu0 0
  %2443 = vperm.xlu0 %2442, %v2413
  %v2444 = vpop.permute.xlu0 %2443
  %2446 = vset.pattern.permute.xlu0 0
  %2447 = vperm.xlu0 %2446, %v2417
  %v2448 = vpop.permute.xlu0 %2447
  %2450 = vset.pattern.permute.xlu0 0
  %2451 = vperm.xlu0 %2450, %v2421
  %v2452 = vpop.permute.xlu0 %2451
  %2454 = vset.pattern.permute.xlu0 0
  %2455 = vperm.xlu0 %2454, %v2425
  %v2456 = vpop.permute.xlu0 %2455
  %2458 = vset.pattern.permute.xlu0 0
  %2459 = vperm.xlu0 %2458, %v2429
  %v2460 = vpop.permute.xlu0 %2459
  %v2462 = vmul.f32 %v2374, %v2432
  %v2463 = vmul.f32 %v2375, %v2432
  %v2464 = vmul.f32 %v2376, %v2436
  %v2465 = vmul.f32 %v2377, %v2436
  %v2466 = vmul.f32 %v2378, %v2440
  %v2467 = vmul.f32 %v2379, %v2440
  %v2468 = vmul.f32 %v2380, %v2444
  %v2469 = vmul.f32 %v2381, %v2444
  %v2470 = vmul.f32 %v2382, %v2448
  %v2471 = vmul.f32 %v2383, %v2448
  %v2472 = vmul.f32 %v2384, %v2452
  %v2473 = vmul.f32 %v2385, %v2452
  %v2474 = vmul.f32 %v2386, %v2456
  %v2475 = vmul.f32 %v2387, %v2456
  %v2476 = vmul.f32 %v2388, %v2460
  %v2477 = vmul.f32 %v2389, %v2460
  %v2478 = vlaneseq
  %v2479 = vshrl.u32 %v2478, 7
  %v2480 = vsub.s32 0, %v2479
  %v2481 = vrot.slane %v182, %v2480
  %v2482 = vlaneseq
  %v2483 = vshrl.u32 %v2482, 7
  %v2484 = vsub.s32 0, %v2483
  %v2485 = vrot.slane %v196, %v2484
  %v2486 = vlaneseq
  %v2487 = vshrl.u32 %v2486, 7
  %v2488 = vsub.s32 0, %v2487
  %v2489 = vrot.slane %v204, %v2488
  %v2490 = vlaneseq
  %v2491 = vshrl.u32 %v2490, 7
  %v2492 = vsub.s32 0, %v2491
  %v2493 = vrot.slane %v206, %v2492
  %v2494 = vlaneseq
  %v2495 = vshrl.u32 %v2494, 7
  %v2496 = vsub.s32 0, %v2495
  %v2497 = vrot.slane %v189, %v2496
  %v2498 = vlaneseq
  %v2499 = vshrl.u32 %v2498, 7
  %v2500 = vsub.s32 0, %v2499
  %v2501 = vrot.slane %v203, %v2500
  %v2502 = vlaneseq
  %v2503 = vshrl.u32 %v2502, 7
  %v2504 = vsub.s32 0, %v2503
  %v2505 = vrot.slane %v205, %v2504
  %v2506 = vlaneseq
  %v2507 = vshrl.u32 %v2506, 7
  %v2508 = vsub.s32 0, %v2507
  %v2509 = vrot.slane %v207, %v2508
  %2510 = vset.pattern.permute.xlu0 0
  %2511 = vperm.xlu0 %2510, %v2481
  %v2512 = vpop.permute.xlu0 %2511
  %2514 = vset.pattern.permute.xlu0 0
  %2515 = vperm.xlu0 %2514, %v2485
  %v2516 = vpop.permute.xlu0 %2515
  %2518 = vset.pattern.permute.xlu0 0
  %2519 = vperm.xlu0 %2518, %v2489
  %v2520 = vpop.permute.xlu0 %2519
  %2522 = vset.pattern.permute.xlu0 0
  %2523 = vperm.xlu0 %2522, %v2493
  %v2524 = vpop.permute.xlu0 %2523
  %2526 = vset.pattern.permute.xlu0 0
  %2527 = vperm.xlu0 %2526, %v2497
  %v2528 = vpop.permute.xlu0 %2527
  %2530 = vset.pattern.permute.xlu0 0
  %2531 = vperm.xlu0 %2530, %v2501
  %v2532 = vpop.permute.xlu0 %2531
  %2534 = vset.pattern.permute.xlu0 0
  %2535 = vperm.xlu0 %2534, %v2505
  %v2536 = vpop.permute.xlu0 %2535
  %2538 = vset.pattern.permute.xlu0 0
  %2539 = vperm.xlu0 %2538, %v2509
  %v2540 = vpop.permute.xlu0 %2539
  %v2542 = vadd.f32 %v2462, %v2512
  %v2543 = vadd.f32 %v2463, %v2512
  %v2544 = vadd.f32 %v2464, %v2516
  %v2545 = vadd.f32 %v2465, %v2516
  %v2546 = vadd.f32 %v2466, %v2520
  %v2547 = vadd.f32 %v2467, %v2520
  %v2548 = vadd.f32 %v2468, %v2524
  %v2549 = vadd.f32 %v2469, %v2524
  %v2550 = vadd.f32 %v2470, %v2528
  %v2551 = vadd.f32 %v2471, %v2528
  %v2552 = vadd.f32 %v2472, %v2532
  %v2553 = vadd.f32 %v2473, %v2532
  %v2554 = vadd.f32 %v2474, %v2536
  %v2555 = vadd.f32 %v2475, %v2536
  %v2556 = vadd.f32 %v2476, %v2540
  %v2557 = vadd.f32 %v2477, %v2540
  %v2558 = vadd.f32 %v2542, %v1289
  %v2559 = vadd.f32 %v2543, %v1290
  %v2560 = vadd.f32 %v2544, %v1291
  %v2561 = vadd.f32 %v2545, %v1292
  %v2562 = vadd.f32 %v2546, %v1293
  %v2563 = vadd.f32 %v2547, %v1294
  %v2564 = vadd.f32 %v2548, %v1295
  %v2565 = vadd.f32 %v2549, %v1296
  %v2566 = vadd.f32 %v2550, %v1297
  %v2567 = vadd.f32 %v2551, %v1298
  %v2568 = vadd.f32 %v2552, %v1299
  %v2569 = vadd.f32 %v2553, %v1300
  %v2570 = vadd.f32 %v2554, %v1301
  %v2571 = vadd.f32 %v2555, %v1302
  %v2572 = vadd.f32 %v2556, %v1303
  %v2573 = vadd.f32 %v2557, %v1304
  %v2574 = vmul.f32 %v2558, 0.5
  %v2575 = vmul.f32 %v2559, 0.5
  %v2576 = vmul.f32 %v2560, 0.5
  %v2577 = vmul.f32 %v2561, 0.5
  %v2578 = vmul.f32 %v2562, 0.5
  %v2579 = vmul.f32 %v2563, 0.5
  %v2580 = vmul.f32 %v2564, 0.5
  %v2581 = vmul.f32 %v2565, 0.5
  %v2582 = vmul.f32 %v2566, 0.5
  %v2583 = vmul.f32 %v2567, 0.5
  %v2584 = vmul.f32 %v2568, 0.5
  %v2585 = vmul.f32 %v2569, 0.5
  %v2586 = vmul.f32 %v2570, 0.5
  %v2587 = vmul.f32 %v2571, 0.5
  %v2588 = vmul.f32 %v2572, 0.5
  %v2589 = vmul.f32 %v2573, 0.5
  %v2590 = vadd.f32 %v2574, 0.0
  %v2591 = vadd.f32 %v2575, 0.0
  %v2592 = vadd.f32 %v2576, 0.0
  %v2593 = vadd.f32 %v2577, 0.0
  %v2594 = vadd.f32 %v2578, 0.0
  %v2595 = vadd.f32 %v2579, 0.0
  %v2596 = vadd.f32 %v2580, 0.0
  %v2597 = vadd.f32 %v2581, 0.0
  %v2598 = vadd.f32 %v2582, 0.0
  %v2599 = vadd.f32 %v2583, 0.0
  %v2600 = vadd.f32 %v2584, 0.0
  %v2601 = vadd.f32 %v2585, 0.0
  %v2602 = vadd.f32 %v2586, 0.0
  %v2603 = vadd.f32 %v2587, 0.0
  %v2604 = vadd.f32 %v2588, 0.0
  %v2605 = vadd.f32 %v2589, 0.0
  %vm2606 = vcmp.ge.f32.partialorder %v2590, 1.0
  %vm2607 = vcmp.ge.f32.partialorder %v2591, 1.0
  %vm2608 = vcmp.ge.f32.partialorder %v2592, 1.0
  %vm2609 = vcmp.ge.f32.partialorder %v2593, 1.0
  %vm2610 = vcmp.ge.f32.partialorder %v2594, 1.0
  %vm2611 = vcmp.ge.f32.partialorder %v2595, 1.0
  %vm2612 = vcmp.ge.f32.partialorder %v2596, 1.0
  %vm2613 = vcmp.ge.f32.partialorder %v2597, 1.0
  %vm2614 = vcmp.ge.f32.partialorder %v2598, 1.0
  %vm2615 = vcmp.ge.f32.partialorder %v2599, 1.0
  %vm2616 = vcmp.ge.f32.partialorder %v2600, 1.0
  %vm2617 = vcmp.ge.f32.partialorder %v2601, 1.0
  %vm2618 = vcmp.ge.f32.partialorder %v2602, 1.0
  %vm2619 = vcmp.ge.f32.partialorder %v2603, 1.0
  %vm2620 = vcmp.ge.f32.partialorder %v2604, 1.0
  %vm2621 = vcmp.ge.f32.partialorder %v2605, 1.0
  %v2622 = vsel %vm2606, 1, 0
  %v2623 = vsel %vm2607, 1, 0
  %v2624 = vsel %vm2608, 1, 0
  %v2625 = vsel %vm2609, 1, 0
  %v2626 = vsel %vm2610, 1, 0
  %v2627 = vsel %vm2611, 1, 0
  %v2628 = vsel %vm2612, 1, 0
  %v2629 = vsel %vm2613, 1, 0
  %v2630 = vsel %vm2614, 1, 0
  %v2631 = vsel %vm2615, 1, 0
  %v2632 = vsel %vm2616, 1, 0
  %v2633 = vsel %vm2617, 1, 0
  %v2634 = vsel %vm2618, 1, 0
  %v2635 = vsel %vm2619, 1, 0
  %v2636 = vsel %vm2620, 1, 0
  %v2637 = vsel %vm2621, 1, 0
  %v2638 = vcvt.s32.f32 %v2622
  %v2639 = vcvt.s32.f32 %v2623
  %v2640 = vcvt.s32.f32 %v2624
  %v2641 = vcvt.s32.f32 %v2625
  %v2642 = vcvt.s32.f32 %v2626
  %v2643 = vcvt.s32.f32 %v2627
  %v2644 = vcvt.s32.f32 %v2628
  %v2645 = vcvt.s32.f32 %v2629
  %v2646 = vcvt.s32.f32 %v2630
  %v2647 = vcvt.s32.f32 %v2631
  %v2648 = vcvt.s32.f32 %v2632
  %v2649 = vcvt.s32.f32 %v2633
  %v2650 = vcvt.s32.f32 %v2634
  %v2651 = vcvt.s32.f32 %v2635
  %v2652 = vcvt.s32.f32 %v2636
  %v2653 = vcvt.s32.f32 %v2637
  %v2654 = vsub.f32 1.0, %v2638
  %v2655 = vsub.f32 1.0, %v2639
  %v2656 = vsub.f32 1.0, %v2640
  %v2657 = vsub.f32 1.0, %v2641
  %v2658 = vsub.f32 1.0, %v2642
  %v2659 = vsub.f32 1.0, %v2643
  %v2660 = vsub.f32 1.0, %v2644
  %v2661 = vsub.f32 1.0, %v2645
  %v2662 = vsub.f32 1.0, %v2646
  %v2663 = vsub.f32 1.0, %v2647
  %v2664 = vsub.f32 1.0, %v2648
  %v2665 = vsub.f32 1.0, %v2649
  %v2666 = vsub.f32 1.0, %v2650
  %v2667 = vsub.f32 1.0, %v2651
  %v2668 = vsub.f32 1.0, %v2652
  %v2669 = vsub.f32 1.0, %v2653
  %v2670 = vmul.f32 %v2590, %v2654
  %v2671 = vmul.f32 %v2591, %v2655
  %v2672 = vmul.f32 %v2592, %v2656
  %v2673 = vmul.f32 %v2593, %v2657
  %v2674 = vmul.f32 %v2594, %v2658
  %v2675 = vmul.f32 %v2595, %v2659
  %v2676 = vmul.f32 %v2596, %v2660
  %v2677 = vmul.f32 %v2597, %v2661
  %v2678 = vmul.f32 %v2598, %v2662
  %v2679 = vmul.f32 %v2599, %v2663
  %v2680 = vmul.f32 %v2600, %v2664
  %v2681 = vmul.f32 %v2601, %v2665
  %v2682 = vmul.f32 %v2602, %v2666
  %v2683 = vmul.f32 %v2603, %v2667
  %v2684 = vmul.f32 %v2604, %v2668
  %v2685 = vmul.f32 %v2605, %v2669
  %2686 = vst.msk [vmem:[%s9] sm:$0xff] %vm257, %v2638
  %2687 = vst.msk [vmem:[%s9 + $0x8] sm:$0xff] %vm257, %v2639
  %2688 = vst.msk [vmem:[%s9 + $0x10] sm:$0xff] %vm257, %v2640
  %2689 = vst.msk [vmem:[%s9 + $0x18] sm:$0xff] %vm257, %v2641
  %2690 = vst.msk [vmem:[%s9 + $0x20] sm:$0xff] %vm257, %v2642
  %2691 = vst.msk [vmem:[%s9 + $0x28] sm:$0xff] %vm257, %v2643
  %2692 = vst.msk [vmem:[%s9 + $0x30] sm:$0xff] %vm257, %v2644
  %2693 = vst.msk [vmem:[%s9 + $0x38] sm:$0xff] %vm257, %v2645
  %2694 = vst.msk [vmem:[%s9 + $0x40] sm:$0xff] %vm257, %v2646
  %2695 = vst.msk [vmem:[%s9 + $0x48] sm:$0xff] %vm257, %v2647
  %2696 = vst.msk [vmem:[%s9 + $0x50] sm:$0xff] %vm257, %v2648
  %2697 = vst.msk [vmem:[%s9 + $0x58] sm:$0xff] %vm257, %v2649
  %2698 = vst.msk [vmem:[%s9 + $0x60] sm:$0xff] %vm257, %v2650
  %2699 = vst.msk [vmem:[%s9 + $0x68] sm:$0xff] %vm257, %v2651
  %2700 = vst.msk [vmem:[%s9 + $0x70] sm:$0xff] %vm257, %v2652
  %2701 = vst.msk [vmem:[%s9 + $0x78] sm:$0xff] %vm257, %v2653
  %v2702 = vsub.f32 %v2054, %v2310
  %v2703 = vsub.f32 %v2055, %v2310
  %v2704 = vsub.f32 %v2056, %v2311
  %v2705 = vsub.f32 %v2057, %v2311
  %v2706 = vsub.f32 %v2058, %v2312
  %v2707 = vsub.f32 %v2059, %v2312
  %v2708 = vsub.f32 %v2060, %v2313
  %v2709 = vsub.f32 %v2061, %v2313
  %v2710 = vsub.f32 %v2062, %v2314
  %v2711 = vsub.f32 %v2063, %v2314
  %v2712 = vsub.f32 %v2064, %v2315
  %v2713 = vsub.f32 %v2065, %v2315
  %v2714 = vsub.f32 %v2066, %v2316
  %v2715 = vsub.f32 %v2067, %v2316
  %v2716 = vsub.f32 %v2068, %v2317
  %v2717 = vsub.f32 %v2069, %v2317
  %v2718 = vmul.f32 %v2702, %v2432
  %v2719 = vmul.f32 %v2703, %v2432
  %v2720 = vmul.f32 %v2704, %v2436
  %v2721 = vmul.f32 %v2705, %v2436
  %v2722 = vmul.f32 %v2706, %v2440
  %v2723 = vmul.f32 %v2707, %v2440
  %v2724 = vmul.f32 %v2708, %v2444
  %v2725 = vmul.f32 %v2709, %v2444
  %v2726 = vmul.f32 %v2710, %v2448
  %v2727 = vmul.f32 %v2711, %v2448
  %v2728 = vmul.f32 %v2712, %v2452
  %v2729 = vmul.f32 %v2713, %v2452
  %v2730 = vmul.f32 %v2714, %v2456
  %v2731 = vmul.f32 %v2715, %v2456
  %v2732 = vmul.f32 %v2716, %v2460
  %v2733 = vmul.f32 %v2717, %v2460
  %v2734 = vadd.f32 %v2718, %v2512
  %v2735 = vadd.f32 %v2719, %v2512
  %v2736 = vadd.f32 %v2720, %v2516
  %v2737 = vadd.f32 %v2721, %v2516
  %v2738 = vadd.f32 %v2722, %v2520
  %v2739 = vadd.f32 %v2723, %v2520
  %v2740 = vadd.f32 %v2724, %v2524
  %v2741 = vadd.f32 %v2725, %v2524
  %v2742 = vadd.f32 %v2726, %v2528
  %v2743 = vadd.f32 %v2727, %v2528
  %v2744 = vadd.f32 %v2728, %v2532
  %v2745 = vadd.f32 %v2729, %v2532
  %v2746 = vadd.f32 %v2730, %v2536
  %v2747 = vadd.f32 %v2731, %v2536
  %v2748 = vadd.f32 %v2732, %v2540
  %v2749 = vadd.f32 %v2733, %v2540
  %v2750 = vadd.f32 %v2734, %v1305
  %v2751 = vadd.f32 %v2735, %v1306
  %v2752 = vadd.f32 %v2736, %v1307
  %v2753 = vadd.f32 %v2737, %v1308
  %v2754 = vadd.f32 %v2738, %v1309
  %v2755 = vadd.f32 %v2739, %v1310
  %v2756 = vadd.f32 %v2740, %v1311
  %v2757 = vadd.f32 %v2741, %v1312
  %v2758 = vadd.f32 %v2742, %v1313
  %v2759 = vadd.f32 %v2743, %v1314
  %v2760 = vadd.f32 %v2744, %v1315
  %v2761 = vadd.f32 %v2745, %v1316
  %v2762 = vadd.f32 %v2746, %v1317
  %v2763 = vadd.f32 %v2747, %v1318
  %v2764 = vadd.f32 %v2748, %v1319
  %v2765 = vadd.f32 %v2749, %v1320
  %v2766 = vsub.f32 %v2750, %v2670
  %v2767 = vsub.f32 %v2751, %v2671
  %v2768 = vsub.f32 %v2752, %v2672
  %v2769 = vsub.f32 %v2753, %v2673
  %v2770 = vsub.f32 %v2754, %v2674
  %v2771 = vsub.f32 %v2755, %v2675
  %v2772 = vsub.f32 %v2756, %v2676
  %v2773 = vsub.f32 %v2757, %v2677
  %v2774 = vsub.f32 %v2758, %v2678
  %v2775 = vsub.f32 %v2759, %v2679
  %v2776 = vsub.f32 %v2760, %v2680
  %v2777 = vsub.f32 %v2761, %v2681
  %v2778 = vsub.f32 %v2762, %v2682
  %v2779 = vsub.f32 %v2763, %v2683
  %v2780 = vsub.f32 %v2764, %v2684
  %v2781 = vsub.f32 %v2765, %v2685
  %v2782 = vmul.f32 %v2766, 0.5
  %v2783 = vmul.f32 %v2767, 0.5
  %v2784 = vmul.f32 %v2768, 0.5
  %v2785 = vmul.f32 %v2769, 0.5
  %v2786 = vmul.f32 %v2770, 0.5
  %v2787 = vmul.f32 %v2771, 0.5
  %v2788 = vmul.f32 %v2772, 0.5
  %v2789 = vmul.f32 %v2773, 0.5
  %v2790 = vmul.f32 %v2774, 0.5
  %v2791 = vmul.f32 %v2775, 0.5
  %v2792 = vmul.f32 %v2776, 0.5
  %v2793 = vmul.f32 %v2777, 0.5
  %v2794 = vmul.f32 %v2778, 0.5
  %v2795 = vmul.f32 %v2779, 0.5
  %v2796 = vmul.f32 %v2780, 0.5
  %v2797 = vmul.f32 %v2781, 0.5
  %v2798 = vadd.f32 %v2670, %v2782
  %v2799 = vadd.f32 %v2671, %v2783
  %v2800 = vadd.f32 %v2672, %v2784
  %v2801 = vadd.f32 %v2673, %v2785
  %v2802 = vadd.f32 %v2674, %v2786
  %v2803 = vadd.f32 %v2675, %v2787
  %v2804 = vadd.f32 %v2676, %v2788
  %v2805 = vadd.f32 %v2677, %v2789
  %v2806 = vadd.f32 %v2678, %v2790
  %v2807 = vadd.f32 %v2679, %v2791
  %v2808 = vadd.f32 %v2680, %v2792
  %v2809 = vadd.f32 %v2681, %v2793
  %v2810 = vadd.f32 %v2682, %v2794
  %v2811 = vadd.f32 %v2683, %v2795
  %v2812 = vadd.f32 %v2684, %v2796
  %v2813 = vadd.f32 %v2685, %v2797
  %vm2814 = vcmp.ge.f32.partialorder %v2798, 1.0
  %vm2815 = vcmp.ge.f32.partialorder %v2799, 1.0
  %vm2816 = vcmp.ge.f32.partialorder %v2800, 1.0
  %vm2817 = vcmp.ge.f32.partialorder %v2801, 1.0
  %vm2818 = vcmp.ge.f32.partialorder %v2802, 1.0
  %vm2819 = vcmp.ge.f32.partialorder %v2803, 1.0
  %vm2820 = vcmp.ge.f32.partialorder %v2804, 1.0
  %vm2821 = vcmp.ge.f32.partialorder %v2805, 1.0
  %vm2822 = vcmp.ge.f32.partialorder %v2806, 1.0
  %vm2823 = vcmp.ge.f32.partialorder %v2807, 1.0
  %vm2824 = vcmp.ge.f32.partialorder %v2808, 1.0
  %vm2825 = vcmp.ge.f32.partialorder %v2809, 1.0
  %vm2826 = vcmp.ge.f32.partialorder %v2810, 1.0
  %vm2827 = vcmp.ge.f32.partialorder %v2811, 1.0
  %vm2828 = vcmp.ge.f32.partialorder %v2812, 1.0
  %vm2829 = vcmp.ge.f32.partialorder %v2813, 1.0
  %v2830 = vsel %vm2814, 1, 0
  %v2831 = vsel %vm2815, 1, 0
  %v2832 = vsel %vm2816, 1, 0
  %v2833 = vsel %vm2817, 1, 0
  %v2834 = vsel %vm2818, 1, 0
  %v2835 = vsel %vm2819, 1, 0
  %v2836 = vsel %vm2820, 1, 0
  %v2837 = vsel %vm2821, 1, 0
  %v2838 = vsel %vm2822, 1, 0
  %v2839 = vsel %vm2823, 1, 0
  %v2840 = vsel %vm2824, 1, 0
  %v2841 = vsel %vm2825, 1, 0
  %v2842 = vsel %vm2826, 1, 0
  %v2843 = vsel %vm2827, 1, 0
  %v2844 = vsel %vm2828, 1, 0
  %v2845 = vsel %vm2829, 1, 0
  %v2846 = vcvt.s32.f32 %v2830
  %v2847 = vcvt.s32.f32 %v2831
  %v2848 = vcvt.s32.f32 %v2832
  %v2849 = vcvt.s32.f32 %v2833
  %v2850 = vcvt.s32.f32 %v2834
  %v2851 = vcvt.s32.f32 %v2835
  %v2852 = vcvt.s32.f32 %v2836
  %v2853 = vcvt.s32.f32 %v2837
  %v2854 = vcvt.s32.f32 %v2838
  %v2855 = vcvt.s32.f32 %v2839
  %v2856 = vcvt.s32.f32 %v2840
  %v2857 = vcvt.s32.f32 %v2841
  %v2858 = vcvt.s32.f32 %v2842
  %v2859 = vcvt.s32.f32 %v2843
  %v2860 = vcvt.s32.f32 %v2844
  %v2861 = vcvt.s32.f32 %v2845
  %s2862 = scalar_lea.vmem %s9, 128
  %2863 = vst.msk [vmem:[%s2862] sm:$0xff] %vm257, %v2846
  %2864 = vst.msk [vmem:[%s2862 + $0x8] sm:$0xff] %vm257, %v2847
  %2865 = vst.msk [vmem:[%s2862 + $0x10] sm:$0xff] %vm257, %v2848
  %2866 = vst.msk [vmem:[%s2862 + $0x18] sm:$0xff] %vm257, %v2849
  %2867 = vst.msk [vmem:[%s2862 + $0x20] sm:$0xff] %vm257, %v2850
  %2868 = vst.msk [vmem:[%s2862 + $0x28] sm:$0xff] %vm257, %v2851
  %2869 = vst.msk [vmem:[%s2862 + $0x30] sm:$0xff] %vm257, %v2852
  %2870 = vst.msk [vmem:[%s2862 + $0x38] sm:$0xff] %vm257, %v2853
  %2871 = vst.msk [vmem:[%s2862 + $0x40] sm:$0xff] %vm257, %v2854
  %2872 = vst.msk [vmem:[%s2862 + $0x48] sm:$0xff] %vm257, %v2855
  %2873 = vst.msk [vmem:[%s2862 + $0x50] sm:$0xff] %vm257, %v2856
  %2874 = vst.msk [vmem:[%s2862 + $0x58] sm:$0xff] %vm257, %v2857
  %2875 = vst.msk [vmem:[%s2862 + $0x60] sm:$0xff] %vm257, %v2858
  %2876 = vst.msk [vmem:[%s2862 + $0x68] sm:$0xff] %vm257, %v2859
  %2877 = vst.msk [vmem:[%s2862 + $0x70] sm:$0xff] %vm257, %v2860
  %2878 = vst.msk [vmem:[%s2862 + $0x78] sm:$0xff] %vm257, %v2861
  // Predicated region
  $region38: #{snn_stage_block.10} parent=0 // pred_check
    _
  $region39: #{snn_stage_block.10} parent=0 // pred_check_branch
    %2880 = sbr.rel (0) target = $region41
  $region40: #{snn_stage_block.10} parent=0 // pred_region
    _
  $region41: #{snn_stage_block.10} parent=0 // pred_fallthru
    _
  // Predicated region
  $region42: #{snn_stage_block.10} parent=0 // pred_check
    _
  $region43: #{snn_stage_block.10} parent=0 // pred_check_branch
    %2882 = sbr.rel (0) target = $region45
  $region44: #{snn_stage_block.10} parent=0 // pred_region
    _
  $region45: #{snn_stage_block.10} parent=0 // pred_fallthru
    _

// kernel: snn_stage_block.7
$region0: #{snn_stage_block.7}
  #allocation0 [shape = 'u32[]', space=smem, size = 0x4, offset = 0x4, fixed_abs, tag = 'smem constant byte address 0x4 - core index']
  #allocation1 [shape = 'u32[144,128]{1,0:T(1,128)}', space=vmem, size = 0x12000, scoped, tag = 'internal scratch']
  %s0 = inlined_call_operand.vmem [shape: f32[4,10,10,8], index: 0, kind: input, shape index: {}]
  %s1 = inlined_call_operand.vmem [shape: f32[1,10,10,1], index: 1, kind: input, shape index: {}]
  %s2 = inlined_call_operand.vmem [shape: f32[1,8], index: 2, kind: input, shape index: {}]
  %s3 = inlined_call_operand.vmem [shape: f32[1,8], index: 3, kind: input, shape index: {}]
  %s4 = inlined_call_operand.vmem [shape: f32[9,8], index: 4, kind: input, shape index: {}]
  %s5 = inlined_call_operand.vmem [shape: f32[1,8], index: 5, kind: input, shape index: {}]
  %s6 = inlined_call_operand.vmem [shape: f32[4,8,8,8], index: 6, kind: output, shape index: {0}]
  %s7 = inlined_call_operand.vmem [shape: f32[1,1,8], index: 7, kind: output, shape index: {1}]
  %s8 = inlined_call_operand.vmem [shape: f32[1,1,8], index: 8, kind: output, shape index: {2}]
  %9 = xla_tuple %s6, %s7, %s8
  %s10 = sld [smem:[#allocation0]]
  $region50: #{snn_stage_block.7} parent=0
    _
  %s12 = ssub.s32 1, %s10
  %s13 = scalar_select 0, %s12, %s10
  // Predicated region
  $region2: #{snn_stage_block.7} parent=0 // pred_check
    _
  $region3: #{snn_stage_block.7} parent=0 // pred_check_branch
    %15 = sbr.rel (0) target = $region5
  $region4: #{snn_stage_block.7} parent=0 // pred_region
    _
  $region5: #{snn_stage_block.7} parent=0 // pred_fallthru
    _
  // Predicated region
  $region6: #{snn_stage_block.7} parent=0 // pred_check
    _
  $region7: #{snn_stage_block.7} parent=0 // pred_check_branch
    %17 = sbr.rel (0) target = $region9
  $region8: #{snn_stage_block.7} parent=0 // pred_region
    _
  $region9: #{snn_stage_block.7} parent=0 // pred_fallthru
    _
  // Predicated region
  $region10: #{snn_stage_block.7} parent=0 // pred_check
    _
  $region11: #{snn_stage_block.7} parent=0 // pred_check_branch
    %19 = sbr.rel (0) target = $region13
  $region12: #{snn_stage_block.7} parent=0 // pred_region
    _
  $region13: #{snn_stage_block.7} parent=0 // pred_fallthru
    _
  // Predicated region
  $region14: #{snn_stage_block.7} parent=0 // pred_check
    _
  $region15: #{snn_stage_block.7} parent=0 // pred_check_branch
    %21 = sbr.rel (0) target = $region17
  $region16: #{snn_stage_block.7} parent=0 // pred_region
    _
  $region17: #{snn_stage_block.7} parent=0 // pred_fallthru
    _
  // Predicated region
  $region18: #{snn_stage_block.7} parent=0 // pred_check
    _
  $region19: #{snn_stage_block.7} parent=0 // pred_check_branch
    %23 = sbr.rel (0) target = $region21
  $region20: #{snn_stage_block.7} parent=0 // pred_region
    _
  $region21: #{snn_stage_block.7} parent=0 // pred_fallthru
    _
  // Predicated region
  $region22: #{snn_stage_block.7} parent=0 // pred_check
    _
  $region23: #{snn_stage_block.7} parent=0 // pred_check_branch
    %25 = sbr.rel (0) target = $region25
  $region24: #{snn_stage_block.7} parent=0 // pred_region
    _
  $region25: #{snn_stage_block.7} parent=0 // pred_fallthru
    _
  %v26 = vld [vmem:[%s2] sm:$0x1]
  %v27 = vld [vmem:[%s3] sm:$0x1]
  %v28 = vld [vmem:[%s0] sm:$0xff]
  %v29 = vld [vmem:[%s0 + $0x8] sm:$0x3]
  %v30 = vld [vmem:[%s0 + $0x10] sm:$0xff]
  %v31 = vld [vmem:[%s0 + $0x18] sm:$0x3]
  %v32 = vld [vmem:[%s0 + $0x20] sm:$0xff]
  %v33 = vld [vmem:[%s0 + $0x28] sm:$0x3]
  %v34 = vld [vmem:[%s0 + $0x30] sm:$0xff]
  %v35 = vld [vmem:[%s0 + $0x38] sm:$0x3]
  %v36 = vld [vmem:[%s0 + $0x40] sm:$0xff]
  %v37 = vld [vmem:[%s0 + $0x48] sm:$0x3]
  %v38 = vld [vmem:[%s0 + $0x50] sm:$0xff]
  %v39 = vld [vmem:[%s0 + $0x58] sm:$0x3]
  %v40 = vld [vmem:[%s0 + $0x60] sm:$0xff]
  %v41 = vld [vmem:[%s0 + $0x68] sm:$0x3]
  %v42 = vld [vmem:[%s0 + $0x70] sm:$0xff]
  %v43 = vld [vmem:[%s0 + $0x78] sm:$0x3]
  %v44 = vld [vmem:[%s0 + $0x80] sm:$0xff]
  %v45 = vld [vmem:[%s0 + $0x88] sm:$0x3]
  %v46 = vld [vmem:[%s0 + $0x90] sm:$0xff]
  %v47 = vld [vmem:[%s0 + $0x98] sm:$0x3]
  %v48 = vld [vmem:[%s0 + $0xa0] sm:$0xff]
  %v49 = vld [vmem:[%s0 + $0xa8] sm:$0x3]
  %v50 = vld [vmem:[%s0 + $0xb0] sm:$0xff]
  %v51 = vld [vmem:[%s0 + $0xb8] sm:$0x3]
  %v52 = vld [vmem:[%s0 + $0xc0] sm:$0xff]
  %v53 = vld [vmem:[%s0 + $0xc8] sm:$0x3]
  %v54 = vld [vmem:[%s0 + $0xd0] sm:$0xff]
  %v55 = vld [vmem:[%s0 + $0xd8] sm:$0x3]
  %v56 = vld [vmem:[%s0 + $0xe0] sm:$0xff]
  %v57 = vld [vmem:[%s0 + $0xe8] sm:$0x3]
  %v58 = vld [vmem:[%s0 + $0xf0] sm:$0xff]
  %v59 = vld [vmem:[%s0 + $0xf8] sm:$0x3]
  %v60 = vld [vmem:[%s0 + $0x100] sm:$0xff]
  %v61 = vld [vmem:[%s0 + $0x108] sm:$0x3]
  %v62 = vld [vmem:[%s0 + $0x110] sm:$0xff]
  %v63 = vld [vmem:[%s0 + $0x118] sm:$0x3]
  %v64 = vld [vmem:[%s0 + $0x120] sm:$0xff]
  %v65 = vld [vmem:[%s0 + $0x128] sm:$0x3]
  %v66 = vld [vmem:[%s0 + $0x130] sm:$0xff]
  %v67 = vld [vmem:[%s0 + $0x138] sm:$0x3]
  %v68 = vld [vmem:[%s0 + $0x140] sm:$0xff]
  %v69 = vld [vmem:[%s0 + $0x148] sm:$0x3]
  %v70 = vld [vmem:[%s0 + $0x150] sm:$0xff]
  %v71 = vld [vmem:[%s0 + $0x158] sm:$0x3]
  %v72 = vld [vmem:[%s0 + $0x160] sm:$0xff]
  %v73 = vld [vmem:[%s0 + $0x168] sm:$0x3]
  %v74 = vld [vmem:[%s0 + $0x170] sm:$0xff]
  %v75 = vld [vmem:[%s0 + $0x178] sm:$0x3]
  %v76 = vld [vmem:[%s0 + $0x180] sm:$0xff]
  %v77 = vld [vmem:[%s0 + $0x188] sm:$0x3]
  %v78 = vld [vmem:[%s0 + $0x190] sm:$0xff]
  %v79 = vld [vmem:[%s0 + $0x198] sm:$0x3]
  %v80 = vld [vmem:[%s0 + $0x1a0] sm:$0xff]
  %v81 = vld [vmem:[%s0 + $0x1a8] sm:$0x3]
  %v82 = vld [vmem:[%s0 + $0x1b0] sm:$0xff]
  %v83 = vld [vmem:[%s0 + $0x1b8] sm:$0x3]
  %v84 = vld [vmem:[%s0 + $0x1c0] sm:$0xff]
  %v85 = vld [vmem:[%s0 + $0x1c8] sm:$0x3]
  %v86 = vld [vmem:[%s0 + $0x1d0] sm:$0xff]
  %v87 = vld [vmem:[%s0 + $0x1d8] sm:$0x3]
  %v88 = vld [vmem:[%s0 + $0x1e0] sm:$0xff]
  %v89 = vld [vmem:[%s0 + $0x1e8] sm:$0x3]
  %v90 = vld [vmem:[%s0 + $0x1f0] sm:$0xff]
  %v91 = vld [vmem:[%s0 + $0x1f8] sm:$0x3]
  %v92 = vld [vmem:[%s0 + $0x200] sm:$0xff]
  %v93 = vld [vmem:[%s0 + $0x208] sm:$0x3]
  %v94 = vld [vmem:[%s0 + $0x210] sm:$0xff]
  %v95 = vld [vmem:[%s0 + $0x218] sm:$0x3]
  %v96 = vld [vmem:[%s0 + $0x220] sm:$0xff]
  %v97 = vld [vmem:[%s0 + $0x228] sm:$0x3]
  %v98 = vld [vmem:[%s0 + $0x230] sm:$0xff]
  %v99 = vld [vmem:[%s0 + $0x238] sm:$0x3]
  %v100 = vld [vmem:[%s0 + $0x240] sm:$0xff]
  %v101 = vld [vmem:[%s0 + $0x248] sm:$0x3]
  %v102 = vld [vmem:[%s0 + $0x250] sm:$0xff]
  %v103 = vld [vmem:[%s0 + $0x258] sm:$0x3]
  %v104 = vld [vmem:[%s0 + $0x260] sm:$0xff]
  %v105 = vld [vmem:[%s0 + $0x268] sm:$0x3]
  %v106 = vld [vmem:[%s0 + $0x270] sm:$0xff]
  %v107 = vld [vmem:[%s0 + $0x278] sm:$0x3]
  %v109 = vlaneseq
  %v110 = vshrl.u32 %v109, 7
  %v111 = vsub.s32 0, %v110
  %v112 = vrot.slane %v26, %v111
  %v114 = vmul.f32 %v28, %v112
  %v115 = vmul.f32 %v29, %v112
  %v116 = vmul.f32 %v30, %v112
  %v117 = vmul.f32 %v31, %v112
  %v118 = vmul.f32 %v32, %v112
  %v119 = vmul.f32 %v33, %v112
  %v120 = vmul.f32 %v34, %v112
  %v121 = vmul.f32 %v35, %v112
  %v122 = vmul.f32 %v36, %v112
  %v123 = vmul.f32 %v37, %v112
  %v124 = vmul.f32 %v38, %v112
  %v125 = vmul.f32 %v39, %v112
  %v126 = vmul.f32 %v40, %v112
  %v127 = vmul.f32 %v41, %v112
  %v128 = vmul.f32 %v42, %v112
  %v129 = vmul.f32 %v43, %v112
  %v130 = vmul.f32 %v44, %v112
  %v131 = vmul.f32 %v45, %v112
  %v132 = vmul.f32 %v46, %v112
  %v133 = vmul.f32 %v47, %v112
  %v134 = vmul.f32 %v48, %v112
  %v135 = vmul.f32 %v49, %v112
  %v136 = vmul.f32 %v50, %v112
  %v137 = vmul.f32 %v51, %v112
  %v138 = vmul.f32 %v52, %v112
  %v139 = vmul.f32 %v53, %v112
  %v140 = vmul.f32 %v54, %v112
  %v141 = vmul.f32 %v55, %v112
  %v142 = vmul.f32 %v56, %v112
  %v143 = vmul.f32 %v57, %v112
  %v144 = vmul.f32 %v58, %v112
  %v145 = vmul.f32 %v59, %v112
  %v146 = vmul.f32 %v60, %v112
  %v147 = vmul.f32 %v61, %v112
  %v148 = vmul.f32 %v62, %v112
  %v149 = vmul.f32 %v63, %v112
  %v150 = vmul.f32 %v64, %v112
  %v151 = vmul.f32 %v65, %v112
  %v152 = vmul.f32 %v66, %v112
  %v153 = vmul.f32 %v67, %v112
  %v154 = vmul.f32 %v68, %v112
  %v155 = vmul.f32 %v69, %v112
  %v156 = vmul.f32 %v70, %v112
  %v157 = vmul.f32 %v71, %v112
  %v158 = vmul.f32 %v72, %v112
  %v159 = vmul.f32 %v73, %v112
  %v160 = vmul.f32 %v74, %v112
  %v161 = vmul.f32 %v75, %v112
  %v162 = vmul.f32 %v76, %v112
  %v163 = vmul.f32 %v77, %v112
  %v164 = vmul.f32 %v78, %v112
  %v165 = vmul.f32 %v79, %v112
  %v166 = vmul.f32 %v80, %v112
  %v167 = vmul.f32 %v81, %v112
  %v168 = vmul.f32 %v82, %v112
  %v169 = vmul.f32 %v83, %v112
  %v170 = vmul.f32 %v84, %v112
  %v171 = vmul.f32 %v85, %v112
  %v172 = vmul.f32 %v86, %v112
  %v173 = vmul.f32 %v87, %v112
  %v174 = vmul.f32 %v88, %v112
  %v175 = vmul.f32 %v89, %v112
  %v176 = vmul.f32 %v90, %v112
  %v177 = vmul.f32 %v91, %v112
  %v178 = vmul.f32 %v92, %v112
  %v179 = vmul.f32 %v93, %v112
  %v180 = vmul.f32 %v94, %v112
  %v181 = vmul.f32 %v95, %v112
  %v182 = vmul.f32 %v96, %v112
  %v183 = vmul.f32 %v97, %v112
  %v184 = vmul.f32 %v98, %v112
  %v185 = vmul.f32 %v99, %v112
  %v186 = vmul.f32 %v100, %v112
  %v187 = vmul.f32 %v101, %v112
  %v188 = vmul.f32 %v102, %v112
  %v189 = vmul.f32 %v103, %v112
  %v190 = vmul.f32 %v104, %v112
  %v191 = vmul.f32 %v105, %v112
  %v192 = vmul.f32 %v106, %v112
  %v193 = vmul.f32 %v107, %v112
  %v194 = vld [vmem:[%s1] sm:$0xff]
  %v195 = vld [vmem:[%s1 + $0x8] sm:$0x3]
  %v196 = vld [vmem:[%s1 + $0x10] sm:$0xff]
  %v197 = vld [vmem:[%s1 + $0x18] sm:$0x3]
  %v198 = vld [vmem:[%s1 + $0x20] sm:$0xff]
  %v199 = vld [vmem:[%s1 + $0x28] sm:$0x3]
  %v200 = vld [vmem:[%s1 + $0x30] sm:$0xff]
  %v201 = vld [vmem:[%s1 + $0x38] sm:$0x3]
  %v202 = vld [vmem:[%s1 + $0x40] sm:$0xff]
  %v203 = vld [vmem:[%s1 + $0x48] sm:$0x3]
  %v204 = vld [vmem:[%s1 + $0x50] sm:$0xff]
  %v205 = vld [vmem:[%s1 + $0x58] sm:$0x3]
  %v206 = vld [vmem:[%s1 + $0x60] sm:$0xff]
  %v207 = vld [vmem:[%s1 + $0x68] sm:$0x3]
  %v208 = vld [vmem:[%s1 + $0x70] sm:$0xff]
  %v209 = vld [vmem:[%s1 + $0x78] sm:$0x3]
  %v210 = vld [vmem:[%s1 + $0x80] sm:$0xff]
  %v211 = vld [vmem:[%s1 + $0x88] sm:$0x3]
  %v212 = vld [vmem:[%s1 + $0x90] sm:$0xff]
  %v213 = vld [vmem:[%s1 + $0x98] sm:$0x3]
  %v215 = vlaneseq
  %v216 = vshrl.u32 %v215, 7
  %v217 = vsub.s32 0, %v216
  %v218 = vrot.slane %v27, %v217
  %221 = vset.pattern.permute.xlu0 0
  %222 = vperm.xlu0 %221, %v194
  %v223 = vpop.permute.xlu0 %222
  %226 = vset.pattern.permute.xlu0 0
  %227 = vperm.xlu0 %226, %v195
  %v228 = vpop.permute.xlu0 %227
  %231 = vset.pattern.permute.xlu0 0
  %232 = vperm.xlu0 %231, %v196
  %v233 = vpop.permute.xlu0 %232
  %236 = vset.pattern.permute.xlu0 0
  %237 = vperm.xlu0 %236, %v197
  %v238 = vpop.permute.xlu0 %237
  %241 = vset.pattern.permute.xlu0 0
  %242 = vperm.xlu0 %241, %v198
  %v243 = vpop.permute.xlu0 %242
  %246 = vset.pattern.permute.xlu0 0
  %247 = vperm.xlu0 %246, %v199
  %v248 = vpop.permute.xlu0 %247
  %251 = vset.pattern.permute.xlu0 0
  %252 = vperm.xlu0 %251, %v200
  %v253 = vpop.permute.xlu0 %252
  %256 = vset.pattern.permute.xlu0 0
  %257 = vperm.xlu0 %256, %v201
  %v258 = vpop.permute.xlu0 %257
  %261 = vset.pattern.permute.xlu0 0
  %262 = vperm.xlu0 %261, %v202
  %v263 = vpop.permute.xlu0 %262
  %266 = vset.pattern.permute.xlu0 0
  %267 = vperm.xlu0 %266, %v203
  %v268 = vpop.permute.xlu0 %267
  %271 = vset.pattern.permute.xlu0 0
  %272 = vperm.xlu0 %271, %v204
  %v273 = vpop.permute.xlu0 %272
  %276 = vset.pattern.permute.xlu0 0
  %277 = vperm.xlu0 %276, %v205
  %v278 = vpop.permute.xlu0 %277
  %281 = vset.pattern.permute.xlu0 0
  %282 = vperm.xlu0 %281, %v206
  %v283 = vpop.permute.xlu0 %282
  %286 = vset.pattern.permute.xlu0 0
  %287 = vperm.xlu0 %286, %v207
  %v288 = vpop.permute.xlu0 %287
  %291 = vset.pattern.permute.xlu0 0
  %292 = vperm.xlu0 %291, %v208
  %v293 = vpop.permute.xlu0 %292
  %296 = vset.pattern.permute.xlu0 0
  %297 = vperm.xlu0 %296, %v209
  %v298 = vpop.permute.xlu0 %297
  %301 = vset.pattern.permute.xlu0 0
  %302 = vperm.xlu0 %301, %v210
  %v303 = vpop.permute.xlu0 %302
  %306 = vset.pattern.permute.xlu0 0
  %307 = vperm.xlu0 %306, %v211
  %v308 = vpop.permute.xlu0 %307
  %311 = vset.pattern.permute.xlu0 0
  %312 = vperm.xlu0 %311, %v212
  %v313 = vpop.permute.xlu0 %312
  %316 = vset.pattern.permute.xlu0 0
  %317 = vperm.xlu0 %316, %v213
  %v318 = vpop.permute.xlu0 %317
  %v320 = vmul.f32 %v218, %v223
  %v321 = vmul.f32 %v218, %v228
  %v322 = vmul.f32 %v218, %v233
  %v323 = vmul.f32 %v218, %v238
  %v324 = vmul.f32 %v218, %v243
  %v325 = vmul.f32 %v218, %v248
  %v326 = vmul.f32 %v218, %v253
  %v327 = vmul.f32 %v218, %v258
  %v328 = vmul.f32 %v218, %v263
  %v329 = vmul.f32 %v218, %v268
  %v330 = vmul.f32 %v218, %v273
  %v331 = vmul.f32 %v218, %v278
  %v332 = vmul.f32 %v218, %v283
  %v333 = vmul.f32 %v218, %v288
  %v334 = vmul.f32 %v218, %v293
  %v335 = vmul.f32 %v218, %v298
  %v336 = vmul.f32 %v218, %v303
  %v337 = vmul.f32 %v218, %v308
  %v338 = vmul.f32 %v218, %v313
  %v339 = vmul.f32 %v218, %v318
  %v340 = vadd.f32 %v114, %v320
  %v341 = vadd.f32 %v115, %v321
  %v342 = vadd.f32 %v116, %v322
  %v343 = vadd.f32 %v117, %v323
  %v344 = vadd.f32 %v118, %v324
  %v345 = vadd.f32 %v119, %v325
  %v346 = vadd.f32 %v120, %v326
  %v347 = vadd.f32 %v121, %v327
  %v348 = vadd.f32 %v122, %v328
  %v349 = vadd.f32 %v123, %v329
  %v350 = vadd.f32 %v124, %v330
  %v351 = vadd.f32 %v125, %v331
  %v352 = vadd.f32 %v126, %v332
  %v353 = vadd.f32 %v127, %v333
  %v354 = vadd.f32 %v128, %v334
  %v355 = vadd.f32 %v129, %v335
  %v356 = vadd.f32 %v130, %v336
  %v357 = vadd.f32 %v131, %v337
  %v358 = vadd.f32 %v132, %v338
  %v359 = vadd.f32 %v133, %v339
  %v360 = vadd.f32 %v134, %v320
  %v361 = vadd.f32 %v135, %v321
  %v362 = vadd.f32 %v136, %v322
  %v363 = vadd.f32 %v137, %v323
  %v364 = vadd.f32 %v138, %v324
  %v365 = vadd.f32 %v139, %v325
  %v366 = vadd.f32 %v140, %v326
  %v367 = vadd.f32 %v141, %v327
  %v368 = vadd.f32 %v142, %v328
  %v369 = vadd.f32 %v143, %v329
  %v370 = vadd.f32 %v144, %v330
  %v371 = vadd.f32 %v145, %v331
  %v372 = vadd.f32 %v146, %v332
  %v373 = vadd.f32 %v147, %v333
  %v374 = vadd.f32 %v148, %v334
  %v375 = vadd.f32 %v149, %v335
  %v376 = vadd.f32 %v150, %v336
  %v377 = vadd.f32 %v151, %v337
  %v378 = vadd.f32 %v152, %v338
  %v379 = vadd.f32 %v153, %v339
  %v380 = vadd.f32 %v154, %v320
  %v381 = vadd.f32 %v155, %v321
  %v382 = vadd.f32 %v156, %v322
  %v383 = vadd.f32 %v157, %v323
  %v384 = vadd.f32 %v158, %v324
  %v385 = vadd.f32 %v159, %v325
  %v386 = vadd.f32 %v160, %v326
  %v387 = vadd.f32 %v161, %v327
  %v388 = vadd.f32 %v162, %v328
  %v389 = vadd.f32 %v163, %v329
  %v390 = vadd.f32 %v164, %v330
  %v391 = vadd.f32 %v165, %v331
  %v392 = vadd.f32 %v166, %v332
  %v393 = vadd.f32 %v167, %v333
  %v394 = vadd.f32 %v168, %v334
  %v395 = vadd.f32 %v169, %v335
  %v396 = vadd.f32 %v170, %v336
  %v397 = vadd.f32 %v171, %v337
  %v398 = vadd.f32 %v172, %v338
  %v399 = vadd.f32 %v173, %v339
  %v400 = vadd.f32 %v174, %v320
  %v401 = vadd.f32 %v175, %v321
  %v402 = vadd.f32 %v176, %v322
  %v403 = vadd.f32 %v177, %v323
  %v404 = vadd.f32 %v178, %v324
  %v405 = vadd.f32 %v179, %v325
  %v406 = vadd.f32 %v180, %v326
  %v407 = vadd.f32 %v181, %v327
  %v408 = vadd.f32 %v182, %v328
  %v409 = vadd.f32 %v183, %v329
  %v410 = vadd.f32 %v184, %v330
  %v411 = vadd.f32 %v185, %v331
  %v412 = vadd.f32 %v186, %v332
  %v413 = vadd.f32 %v187, %v333
  %v414 = vadd.f32 %v188, %v334
  %v415 = vadd.f32 %v189, %v335
  %v416 = vadd.f32 %v190, %v336
  %v417 = vadd.f32 %v191, %v337
  %v418 = vadd.f32 %v192, %v338
  %v419 = vadd.f32 %v193, %v339
  %v420 = vld [vmem:[%s4] sm:$0xff]
  %v421 = vld [vmem:[%s4 + $0x8] sm:$0x1]
  %v422 = vld [vmem:[%s5] sm:$0x1]
  %v424 = vlaneseq
  %v425 = vshrl.u32 %v424, 7
  %v426 = vsub.s32 0, %v425
  %v427 = vrot.slane %v422, %v426
  %v429 = vadd.f32 %v427, 0.0
  %v430 = vlaneseq
  %v431 = vshrl.u32 %v430, 7
  %v432 = vsub.s32 0, %v431
  %v433 = vrot.slane %v420, %v432
  %v434 = vmul.f32 %v340, %v433
  %v435 = vmul.f32 %v342, %v433
  %v436 = vmul.f32 %v344, %v433
  %v437 = vmul.f32 %v346, %v433
  %v438 = vmul.f32 %v348, %v433
  %v439 = vmul.f32 %v350, %v433
  %v440 = vmul.f32 %v352, %v433
  %v441 = vmul.f32 %v354, %v433
  %v442 = vmul.f32 %v360, %v433
  %v443 = vmul.f32 %v362, %v433
  %v444 = vmul.f32 %v364, %v433
  %v445 = vmul.f32 %v366, %v433
  %v446 = vmul.f32 %v368, %v433
  %v447 = vmul.f32 %v370, %v433
  %v448 = vmul.f32 %v372, %v433
  %v449 = vmul.f32 %v374, %v433
  %v450 = vmul.f32 %v380, %v433
  %v451 = vmul.f32 %v382, %v433
  %v452 = vmul.f32 %v384, %v433
  %v453 = vmul.f32 %v386, %v433
  %v454 = vmul.f32 %v388, %v433
  %v455 = vmul.f32 %v390, %v433
  %v456 = vmul.f32 %v392, %v433
  %v457 = vmul.f32 %v394, %v433
  %v458 = vmul.f32 %v400, %v433
  %v459 = vmul.f32 %v402, %v433
  %v460 = vmul.f32 %v404, %v433
  %v461 = vmul.f32 %v406, %v433
  %v462 = vmul.f32 %v408, %v433
  %v463 = vmul.f32 %v410, %v433
  %v464 = vmul.f32 %v412, %v433
  %v465 = vmul.f32 %v414, %v433
  %v466 = vadd.f32 %v429, %v434
  %v467 = vadd.f32 %v429, %v435
  %v468 = vadd.f32 %v429, %v436
  %v469 = vadd.f32 %v429, %v437
  %v470 = vadd.f32 %v429, %v438
  %v471 = vadd.f32 %v429, %v439
  %v472 = vadd.f32 %v429, %v440
  %v473 = vadd.f32 %v429, %v441
  %v474 = vadd.f32 %v429, %v442
  %v475 = vadd.f32 %v429, %v443
  %v476 = vadd.f32 %v429, %v444
  %v477 = vadd.f32 %v429, %v445
  %v478 = vadd.f32 %v429, %v446
  %v479 = vadd.f32 %v429, %v447
  %v480 = vadd.f32 %v429, %v448
  %v481 = vadd.f32 %v429, %v449
  %v482 = vadd.f32 %v429, %v450
  %v483 = vadd.f32 %v429, %v451
  %v484 = vadd.f32 %v429, %v452
  %v485 = vadd.f32 %v429, %v453
  %v486 = vadd.f32 %v429, %v454
  %v487 = vadd.f32 %v429, %v455
  %v488 = vadd.f32 %v429, %v456
  %v489 = vadd.f32 %v429, %v457
  %v490 = vadd.f32 %v429, %v458
  %v491 = vadd.f32 %v429, %v459
  %v492 = vadd.f32 %v429, %v460
  %v493 = vadd.f32 %v429, %v461
  %v494 = vadd.f32 %v429, %v462
  %v495 = vadd.f32 %v429, %v463
  %v496 = vadd.f32 %v429, %v464
  %v497 = vadd.f32 %v429, %v465
  %v498 = vlaneseq
  %v499 = vshrl.u32 %v498, 7
  %v500 = vsub.s32 1, %v499
  %v501 = vrot.slane %v420, %v500
  %v502 = vmul.f32 %v340, %v501
  %v503 = vmul.f32 %v341, %v501
  %v504 = vmul.f32 %v342, %v501
  %v505 = vmul.f32 %v343, %v501
  %v506 = vmul.f32 %v344, %v501
  %v507 = vmul.f32 %v345, %v501
  %v508 = vmul.f32 %v346, %v501
  %v509 = vmul.f32 %v347, %v501
  %v510 = vmul.f32 %v348, %v501
  %v511 = vmul.f32 %v349, %v501
  %v512 = vmul.f32 %v350, %v501
  %v513 = vmul.f32 %v351, %v501
  %v514 = vmul.f32 %v352, %v501
  %v515 = vmul.f32 %v353, %v501
  %v516 = vmul.f32 %v354, %v501
  %v517 = vmul.f32 %v355, %v501
  %v518 = vmul.f32 %v360, %v501
  %v519 = vmul.f32 %v361, %v501
  %v520 = vmul.f32 %v362, %v501
  %v521 = vmul.f32 %v363, %v501
  %v522 = vmul.f32 %v364, %v501
  %v523 = vmul.f32 %v365, %v501
  %v524 = vmul.f32 %v366, %v501
  %v525 = vmul.f32 %v367, %v501
  %v526 = vmul.f32 %v368, %v501
  %v527 = vmul.f32 %v369, %v501
  %v528 = vmul.f32 %v370, %v501
  %v529 = vmul.f32 %v371, %v501
  %v530 = vmul.f32 %v372, %v501
  %v531 = vmul.f32 %v373, %v501
  %v532 = vmul.f32 %v374, %v501
  %v533 = vmul.f32 %v375, %v501
  %v534 = vmul.f32 %v380, %v501
  %v535 = vmul.f32 %v381, %v501
  %v536 = vmul.f32 %v382, %v501
  %v537 = vmul.f32 %v383, %v501
  %v538 = vmul.f32 %v384, %v501
  %v539 = vmul.f32 %v385, %v501
  %v540 = vmul.f32 %v386, %v501
  %v541 = vmul.f32 %v387, %v501
  %v542 = vmul.f32 %v388, %v501
  %v543 = vmul.f32 %v389, %v501
  %v544 = vmul.f32 %v390, %v501
  %v545 = vmul.f32 %v391, %v501
  %v546 = vmul.f32 %v392, %v501
  %v547 = vmul.f32 %v393, %v501
  %v548 = vmul.f32 %v394, %v501
  %v549 = vmul.f32 %v395, %v501
  %v550 = vmul.f32 %v400, %v501
  %v551 = vmul.f32 %v401, %v501
  %v552 = vmul.f32 %v402, %v501
  %v553 = vmul.f32 %v403, %v501
  %v554 = vmul.f32 %v404, %v501
  %v555 = vmul.f32 %v405, %v501
  %v556 = vmul.f32 %v406, %v501
  %v557 = vmul.f32 %v407, %v501
  %v558 = vmul.f32 %v408, %v501
  %v559 = vmul.f32 %v409, %v501
  %v560 = vmul.f32 %v410, %v501
  %v561 = vmul.f32 %v411, %v501
  %v562 = vmul.f32 %v412, %v501
  %v563 = vmul.f32 %v413, %v501
  %v564 = vmul.f32 %v414, %v501
  %v565 = vmul.f32 %v415, %v501
  %vm630 = vcmask 1046528
  %v631 = vrot.slane %v502, 1
  %v632 = vrot.slane %v503, 1
  %v633 = vsel %vm630, %v631, %v632
  %v634 = vrot.slane %v504, 1
  %v635 = vrot.slane %v505, 1
  %v636 = vsel %vm630, %v634, %v635
  %v637 = vrot.slane %v506, 1
  %v638 = vrot.slane %v507, 1
  %v639 = vsel %vm630, %v637, %v638
  %v640 = vrot.slane %v508, 1
  %v641 = vrot.slane %v509, 1
  %v642 = vsel %vm630, %v640, %v641
  %v643 = vrot.slane %v510, 1
  %v644 = vrot.slane %v511, 1
  %v645 = vsel %vm630, %v643, %v644
  %v646 = vrot.slane %v512, 1
  %v647 = vrot.slane %v513, 1
  %v648 = vsel %vm630, %v646, %v647
  %v649 = vrot.slane %v514, 1
  %v650 = vrot.slane %v515, 1
  %v651 = vsel %vm630, %v649, %v650
  %v652 = vrot.slane %v516, 1
  %v653 = vrot.slane %v517, 1
  %v654 = vsel %vm630, %v652, %v653
  %v655 = vrot.slane %v518, 1
  %v656 = vrot.slane %v519, 1
  %v657 = vsel %vm630, %v655, %v656
  %v658 = vrot.slane %v520, 1
  %v659 = vrot.slane %v521, 1
  %v660 = vsel %vm630, %v658, %v659
  %v661 = vrot.slane %v522, 1
  %v662 = vrot.slane %v523, 1
  %v663 = vsel %vm630, %v661, %v662
  %v664 = vrot.slane %v524, 1
  %v665 = vrot.slane %v525, 1
  %v666 = vsel %vm630, %v664, %v665
  %v667 = vrot.slane %v526, 1
  %v668 = vrot.slane %v527, 1
  %v669 = vsel %vm630, %v667, %v668
  %v670 = vrot.slane %v528, 1
  %v671 = vrot.slane %v529, 1
  %v672 = vsel %vm630, %v670, %v671
  %v673 = vrot.slane %v530, 1
  %v674 = vrot.slane %v531, 1
  %v675 = vsel %vm630, %v673, %v674
  %v676 = vrot.slane %v532, 1
  %v677 = vrot.slane %v533, 1
  %v678 = vsel %vm630, %v676, %v677
  %v679 = vrot.slane %v534, 1
  %v680 = vrot.slane %v535, 1
  %v681 = vsel %vm630, %v679, %v680
  %v682 = vrot.slane %v536, 1
  %v683 = vrot.slane %v537, 1
  %v684 = vsel %vm630, %v682, %v683
  %v685 = vrot.slane %v538, 1
  %v686 = vrot.slane %v539, 1
  %v687 = vsel %vm630, %v685, %v686
  %v688 = vrot.slane %v540, 1
  %v689 = vrot.slane %v541, 1
  %v690 = vsel %vm630, %v688, %v689
  %v691 = vrot.slane %v542, 1
  %v692 = vrot.slane %v543, 1
  %v693 = vsel %vm630, %v691, %v692
  %v694 = vrot.slane %v544, 1
  %v695 = vrot.slane %v545, 1
  %v696 = vsel %vm630, %v694, %v695
  %v697 = vrot.slane %v546, 1
  %v698 = vrot.slane %v547, 1
  %v699 = vsel %vm630, %v697, %v698
  %v700 = vrot.slane %v548, 1
  %v701 = vrot.slane %v549, 1
  %v702 = vsel %vm630, %v700, %v701
  %v703 = vrot.slane %v550, 1
  %v704 = vrot.slane %v551, 1
  %v705 = vsel %vm630, %v703, %v704
  %v706 = vrot.slane %v552, 1
  %v707 = vrot.slane %v553, 1
  %v708 = vsel %vm630, %v706, %v707
  %v709 = vrot.slane %v554, 1
  %v710 = vrot.slane %v555, 1
  %v711 = vsel %vm630, %v709, %v710
  %v712 = vrot.slane %v556, 1
  %v713 = vrot.slane %v557, 1
  %v714 = vsel %vm630, %v712, %v713
  %v715 = vrot.slane %v558, 1
  %v716 = vrot.slane %v559, 1
  %v717 = vsel %vm630, %v715, %v716
  %v718 = vrot.slane %v560, 1
  %v719 = vrot.slane %v561, 1
  %v720 = vsel %vm630, %v718, %v719
  %v721 = vrot.slane %v562, 1
  %v722 = vrot.slane %v563, 1
  %v723 = vsel %vm630, %v721, %v722
  %v724 = vrot.slane %v564, 1
  %v725 = vrot.slane %v565, 1
  %v726 = vsel %vm630, %v724, %v725
  %v759 = vadd.f32 %v466, %v633
  %v760 = vadd.f32 %v467, %v636
  %v761 = vadd.f32 %v468, %v639
  %v762 = vadd.f32 %v469, %v642
  %v763 = vadd.f32 %v470, %v645
  %v764 = vadd.f32 %v471, %v648
  %v765 = vadd.f32 %v472, %v651
  %v766 = vadd.f32 %v473, %v654
  %v767 = vadd.f32 %v474, %v657
  %v768 = vadd.f32 %v475, %v660
  %v769 = vadd.f32 %v476, %v663
  %v770 = vadd.f32 %v477, %v666
  %v771 = vadd.f32 %v478, %v669
  %v772 = vadd.f32 %v479, %v672
  %v773 = vadd.f32 %v480, %v675
  %v774 = vadd.f32 %v481, %v678
  %v775 = vadd.f32 %v482, %v681
  %v776 = vadd.f32 %v483, %v684
  %v777 = vadd.f32 %v484, %v687
  %v778 = vadd.f32 %v485, %v690
  %v779 = vadd.f32 %v486, %v693
  %v780 = vadd.f32 %v487, %v696
  %v781 = vadd.f32 %v488, %v699
  %v782 = vadd.f32 %v489, %v702
  %v783 = vadd.f32 %v490, %v705
  %v784 = vadd.f32 %v491, %v708
  %v785 = vadd.f32 %v492, %v711
  %v786 = vadd.f32 %v493, %v714
  %v787 = vadd.f32 %v494, %v717
  %v788 = vadd.f32 %v495, %v720
  %v789 = vadd.f32 %v496, %v723
  %v790 = vadd.f32 %v497, %v726
  %v791 = vlaneseq
  %v792 = vshrl.u32 %v791, 7
  %v793 = vsub.s32 2, %v792
  %v794 = vrot.slane %v420, %v793
  %v795 = vmul.f32 %v340, %v794
  %v796 = vmul.f32 %v341, %v794
  %v797 = vmul.f32 %v342, %v794
  %v798 = vmul.f32 %v343, %v794
  %v799 = vmul.f32 %v344, %v794
  %v800 = vmul.f32 %v345, %v794
  %v801 = vmul.f32 %v346, %v794
  %v802 = vmul.f32 %v347, %v794
  %v803 = vmul.f32 %v348, %v794
  %v804 = vmul.f32 %v349, %v794
  %v805 = vmul.f32 %v350, %v794
  %v806 = vmul.f32 %v351, %v794
  %v807 = vmul.f32 %v352, %v794
  %v808 = vmul.f32 %v353, %v794
  %v809 = vmul.f32 %v354, %v794
  %v810 = vmul.f32 %v355, %v794
  %v811 = vmul.f32 %v360, %v794
  %v812 = vmul.f32 %v361, %v794
  %v813 = vmul.f32 %v362, %v794
  %v814 = vmul.f32 %v363, %v794
  %v815 = vmul.f32 %v364, %v794
  %v816 = vmul.f32 %v365, %v794
  %v817 = vmul.f32 %v366, %v794
  %v818 = vmul.f32 %v367, %v794
  %v819 = vmul.f32 %v368, %v794
  %v820 = vmul.f32 %v369, %v794
  %v821 = vmul.f32 %v370, %v794
  %v822 = vmul.f32 %v371, %v794
  %v823 = vmul.f32 %v372, %v794
  %v824 = vmul.f32 %v373, %v794
  %v825 = vmul.f32 %v374, %v794
  %v826 = vmul.f32 %v375, %v794
  %v827 = vmul.f32 %v380, %v794
  %v828 = vmul.f32 %v381, %v794
  %v829 = vmul.f32 %v382, %v794
  %v830 = vmul.f32 %v383, %v794
  %v831 = vmul.f32 %v384, %v794
  %v832 = vmul.f32 %v385, %v794
  %v833 = vmul.f32 %v386, %v794
  %v834 = vmul.f32 %v387, %v794
  %v835 = vmul.f32 %v388, %v794
  %v836 = vmul.f32 %v389, %v794
  %v837 = vmul.f32 %v390, %v794
  %v838 = vmul.f32 %v391, %v794
  %v839 = vmul.f32 %v392, %v794
  %v840 = vmul.f32 %v393, %v794
  %v841 = vmul.f32 %v394, %v794
  %v842 = vmul.f32 %v395, %v794
  %v843 = vmul.f32 %v400, %v794
  %v844 = vmul.f32 %v401, %v794
  %v845 = vmul.f32 %v402, %v794
  %v846 = vmul.f32 %v403, %v794
  %v847 = vmul.f32 %v404, %v794
  %v848 = vmul.f32 %v405, %v794
  %v849 = vmul.f32 %v406, %v794
  %v850 = vmul.f32 %v407, %v794
  %v851 = vmul.f32 %v408, %v794
  %v852 = vmul.f32 %v409, %v794
  %v853 = vmul.f32 %v410, %v794
  %v854 = vmul.f32 %v411, %v794
  %v855 = vmul.f32 %v412, %v794
  %v856 = vmul.f32 %v413, %v794
  %v857 = vmul.f32 %v414, %v794
  %v858 = vmul.f32 %v415, %v794
  %vm923 = vcmask 1045504
  %v924 = vrot.slane %v795, 2
  %v925 = vrot.slane %v796, 2
  %v926 = vsel %vm923, %v924, %v925
  %v927 = vrot.slane %v797, 2
  %v928 = vrot.slane %v798, 2
  %v929 = vsel %vm923, %v927, %v928
  %v930 = vrot.slane %v799, 2
  %v931 = vrot.slane %v800, 2
  %v932 = vsel %vm923, %v930, %v931
  %v933 = vrot.slane %v801, 2
  %v934 = vrot.slane %v802, 2
  %v935 = vsel %vm923, %v933, %v934
  %v936 = vrot.slane %v803, 2
  %v937 = vrot.slane %v804, 2
  %v938 = vsel %vm923, %v936, %v937
  %v939 = vrot.slane %v805, 2
  %v940 = vrot.slane %v806, 2
  %v941 = vsel %vm923, %v939, %v940
  %v942 = vrot.slane %v807, 2
  %v943 = vrot.slane %v808, 2
  %v944 = vsel %vm923, %v942, %v943
  %v945 = vrot.slane %v809, 2
  %v946 = vrot.slane %v810, 2
  %v947 = vsel %vm923, %v945, %v946
  %v948 = vrot.slane %v811, 2
  %v949 = vrot.slane %v812, 2
  %v950 = vsel %vm923, %v948, %v949
  %v951 = vrot.slane %v813, 2
  %v952 = vrot.slane %v814, 2
  %v953 = vsel %vm923, %v951, %v952
  %v954 = vrot.slane %v815, 2
  %v955 = vrot.slane %v816, 2
  %v956 = vsel %vm923, %v954, %v955
  %v957 = vrot.slane %v817, 2
  %v958 = vrot.slane %v818, 2
  %v959 = vsel %vm923, %v957, %v958
  %v960 = vrot.slane %v819, 2
  %v961 = vrot.slane %v820, 2
  %v962 = vsel %vm923, %v960, %v961
  %v963 = vrot.slane %v821, 2
  %v964 = vrot.slane %v822, 2
  %v965 = vsel %vm923, %v963, %v964
  %v966 = vrot.slane %v823, 2
  %v967 = vrot.slane %v824, 2
  %v968 = vsel %vm923, %v966, %v967
  %v969 = vrot.slane %v825, 2
  %v970 = vrot.slane %v826, 2
  %v971 = vsel %vm923, %v969, %v970
  %v972 = vrot.slane %v827, 2
  %v973 = vrot.slane %v828, 2
  %v974 = vsel %vm923, %v972, %v973
  %v975 = vrot.slane %v829, 2
  %v976 = vrot.slane %v830, 2
  %v977 = vsel %vm923, %v975, %v976
  %v978 = vrot.slane %v831, 2
  %v979 = vrot.slane %v832, 2
  %v980 = vsel %vm923, %v978, %v979
  %v981 = vrot.slane %v833, 2
  %v982 = vrot.slane %v834, 2
  %v983 = vsel %vm923, %v981, %v982
  %v984 = vrot.slane %v835, 2
  %v985 = vrot.slane %v836, 2
  %v986 = vsel %vm923, %v984, %v985
  %v987 = vrot.slane %v837, 2
  %v988 = vrot.slane %v838, 2
  %v989 = vsel %vm923, %v987, %v988
  %v990 = vrot.slane %v839, 2
  %v991 = vrot.slane %v840, 2
  %v992 = vsel %vm923, %v990, %v991
  %v993 = vrot.slane %v841, 2
  %v994 = vrot.slane %v842, 2
  %v995 = vsel %vm923, %v993, %v994
  %v996 = vrot.slane %v843, 2
  %v997 = vrot.slane %v844, 2
  %v998 = vsel %vm923, %v996, %v997
  %v999 = vrot.slane %v845, 2
  %v1000 = vrot.slane %v846, 2
  %v1001 = vsel %vm923, %v999, %v1000
  %v1002 = vrot.slane %v847, 2
  %v1003 = vrot.slane %v848, 2
  %v1004 = vsel %vm923, %v1002, %v1003
  %v1005 = vrot.slane %v849, 2
  %v1006 = vrot.slane %v850, 2
  %v1007 = vsel %vm923, %v1005, %v1006
  %v1008 = vrot.slane %v851, 2
  %v1009 = vrot.slane %v852, 2
  %v1010 = vsel %vm923, %v1008, %v1009
  %v1011 = vrot.slane %v853, 2
  %v1012 = vrot.slane %v854, 2
  %v1013 = vsel %vm923, %v1011, %v1012
  %v1014 = vrot.slane %v855, 2
  %v1015 = vrot.slane %v856, 2
  %v1016 = vsel %vm923, %v1014, %v1015
  %v1017 = vrot.slane %v857, 2
  %v1018 = vrot.slane %v858, 2
  %v1019 = vsel %vm923, %v1017, %v1018
  %v1052 = vadd.f32 %v759, %v926
  %v1053 = vadd.f32 %v760, %v929
  %v1054 = vadd.f32 %v761, %v932
  %v1055 = vadd.f32 %v762, %v935
  %v1056 = vadd.f32 %v763, %v938
  %v1057 = vadd.f32 %v764, %v941
  %v1058 = vadd.f32 %v765, %v944
  %v1059 = vadd.f32 %v766, %v947
  %v1060 = vadd.f32 %v767, %v950
  %v1061 = vadd.f32 %v768, %v953
  %v1062 = vadd.f32 %v769, %v956
  %v1063 = vadd.f32 %v770, %v959
  %v1064 = vadd.f32 %v771, %v962
  %v1065 = vadd.f32 %v772, %v965
  %v1066 = vadd.f32 %v773, %v968
  %v1067 = vadd.f32 %v774, %v971
  %v1068 = vadd.f32 %v775, %v974
  %v1069 = vadd.f32 %v776, %v977
  %v1070 = vadd.f32 %v777, %v980
  %v1071 = vadd.f32 %v778, %v983
  %v1072 = vadd.f32 %v779, %v986
  %v1073 = vadd.f32 %v780, %v989
  %v1074 = vadd.f32 %v781, %v992
  %v1075 = vadd.f32 %v782, %v995
  %v1076 = vadd.f32 %v783, %v998
  %v1077 = vadd.f32 %v784, %v1001
  %v1078 = vadd.f32 %v785, %v1004
  %v1079 = vadd.f32 %v786, %v1007
  %v1080 = vadd.f32 %v787, %v1010
  %v1081 = vadd.f32 %v788, %v1013
  %v1082 = vadd.f32 %v789, %v1016
  %v1083 = vadd.f32 %v790, %v1019
  %v1084 = vlaneseq
  %v1085 = vshrl.u32 %v1084, 7
  %v1086 = vsub.s32 3, %v1085
  %v1087 = vrot.slane %v420, %v1086
  %v1088 = vmul.f32 %v342, %v1087
  %v1089 = vmul.f32 %v344, %v1087
  %v1090 = vmul.f32 %v346, %v1087
  %v1091 = vmul.f32 %v348, %v1087
  %v1092 = vmul.f32 %v350, %v1087
  %v1093 = vmul.f32 %v352, %v1087
  %v1094 = vmul.f32 %v354, %v1087
  %v1095 = vmul.f32 %v356, %v1087
  %v1096 = vmul.f32 %v362, %v1087
  %v1097 = vmul.f32 %v364, %v1087
  %v1098 = vmul.f32 %v366, %v1087
  %v1099 = vmul.f32 %v368, %v1087
  %v1100 = vmul.f32 %v370, %v1087
  %v1101 = vmul.f32 %v372, %v1087
  %v1102 = vmul.f32 %v374, %v1087
  %v1103 = vmul.f32 %v376, %v1087
  %v1104 = vmul.f32 %v382, %v1087
  %v1105 = vmul.f32 %v384, %v1087
  %v1106 = vmul.f32 %v386, %v1087
  %v1107 = vmul.f32 %v388, %v1087
  %v1108 = vmul.f32 %v390, %v1087
  %v1109 = vmul.f32 %v392, %v1087
  %v1110 = vmul.f32 %v394, %v1087
  %v1111 = vmul.f32 %v396, %v1087
  %v1112 = vmul.f32 %v402, %v1087
  %v1113 = vmul.f32 %v404, %v1087
  %v1114 = vmul.f32 %v406, %v1087
  %v1115 = vmul.f32 %v408, %v1087
  %v1116 = vmul.f32 %v410, %v1087
  %v1117 = vmul.f32 %v412, %v1087
  %v1118 = vmul.f32 %v414, %v1087
  %v1119 = vmul.f32 %v416, %v1087
  %v1120 = vadd.f32 %v1052, %v1088
  %v1121 = vadd.f32 %v1053, %v1089
  %v1122 = vadd.f32 %v1054, %v1090
  %v1123 = vadd.f32 %v1055, %v1091
  %v1124 = vadd.f32 %v1056, %v1092
  %v1125 = vadd.f32 %v1057, %v1093
  %v1126 = vadd.f32 %v1058, %v1094
  %v1127 = vadd.f32 %v1059, %v1095
  %v1128 = vadd.f32 %v1060, %v1096
  %v1129 = vadd.f32 %v1061, %v1097
  %v1130 = vadd.f32 %v1062, %v1098
  %v1131 = vadd.f32 %v1063, %v1099
  %v1132 = vadd.f32 %v1064, %v1100
  %v1133 = vadd.f32 %v1065, %v1101
  %v1134 = vadd.f32 %v1066, %v1102
  %v1135 = vadd.f32 %v1067, %v1103
  %v1136 = vadd.f32 %v1068, %v1104
  %v1137 = vadd.f32 %v1069, %v1105
  %v1138 = vadd.f32 %v1070, %v1106
  %v1139 = vadd.f32 %v1071, %v1107
  %v1140 = vadd.f32 %v1072, %v1108
  %v1141 = vadd.f32 %v1073, %v1109
  %v1142 = vadd.f32 %v1074, %v1110
  %v1143 = vadd.f32 %v1075, %v1111
  %v1144 = vadd.f32 %v1076, %v1112
  %v1145 = vadd.f32 %v1077, %v1113
  %v1146 = vadd.f32 %v1078, %v1114
  %v1147 = vadd.f32 %v1079, %v1115
  %v1148 = vadd.f32 %v1080, %v1116
  %v1149 = vadd.f32 %v1081, %v1117
  %v1150 = vadd.f32 %v1082, %v1118
  %v1151 = vadd.f32 %v1083, %v1119
  %v1152 = vlaneseq
  %v1153 = vshrl.u32 %v1152, 7
  %v1154 = vsub.s32 4, %v1153
  %v1155 = vrot.slane %v420, %v1154
  %v1156 = vmul.f32 %v342, %v1155
  %v1157 = vmul.f32 %v343, %v1155
  %v1158 = vmul.f32 %v344, %v1155
  %v1159 = vmul.f32 %v345, %v1155
  %v1160 = vmul.f32 %v346, %v1155
  %v1161 = vmul.f32 %v347, %v1155
  %v1162 = vmul.f32 %v348, %v1155
  %v1163 = vmul.f32 %v349, %v1155
  %v1164 = vmul.f32 %v350, %v1155
  %v1165 = vmul.f32 %v351, %v1155
  %v1166 = vmul.f32 %v352, %v1155
  %v1167 = vmul.f32 %v353, %v1155
  %v1168 = vmul.f32 %v354, %v1155
  %v1169 = vmul.f32 %v355, %v1155
  %v1170 = vmul.f32 %v356, %v1155
  %v1171 = vmul.f32 %v357, %v1155
  %v1172 = vmul.f32 %v362, %v1155
  %v1173 = vmul.f32 %v363, %v1155
  %v1174 = vmul.f32 %v364, %v1155
  %v1175 = vmul.f32 %v365, %v1155
  %v1176 = vmul.f32 %v366, %v1155
  %v1177 = vmul.f32 %v367, %v1155
  %v1178 = vmul.f32 %v368, %v1155
  %v1179 = vmul.f32 %v369, %v1155
  %v1180 = vmul.f32 %v370, %v1155
  %v1181 = vmul.f32 %v371, %v1155
  %v1182 = vmul.f32 %v372, %v1155
  %v1183 = vmul.f32 %v373, %v1155
  %v1184 = vmul.f32 %v374, %v1155
  %v1185 = vmul.f32 %v375, %v1155
  %v1186 = vmul.f32 %v376, %v1155
  %v1187 = vmul.f32 %v377, %v1155
  %v1188 = vmul.f32 %v382, %v1155
  %v1189 = vmul.f32 %v383, %v1155
  %v1190 = vmul.f32 %v384, %v1155
  %v1191 = vmul.f32 %v385, %v1155
  %v1192 = vmul.f32 %v386, %v1155
  %v1193 = vmul.f32 %v387, %v1155
  %v1194 = vmul.f32 %v388, %v1155
  %v1195 = vmul.f32 %v389, %v1155
  %v1196 = vmul.f32 %v390, %v1155
  %v1197 = vmul.f32 %v391, %v1155
  %v1198 = vmul.f32 %v392, %v1155
  %v1199 = vmul.f32 %v393, %v1155
  %v1200 = vmul.f32 %v394, %v1155
  %v1201 = vmul.f32 %v395, %v1155
  %v1202 = vmul.f32 %v396, %v1155
  %v1203 = vmul.f32 %v397, %v1155
  %v1204 = vmul.f32 %v402, %v1155
  %v1205 = vmul.f32 %v403, %v1155
  %v1206 = vmul.f32 %v404, %v1155
  %v1207 = vmul.f32 %v405, %v1155
  %v1208 = vmul.f32 %v406, %v1155
  %v1209 = vmul.f32 %v407, %v1155
  %v1210 = vmul.f32 %v408, %v1155
  %v1211 = vmul.f32 %v409, %v1155
  %v1212 = vmul.f32 %v410, %v1155
  %v1213 = vmul.f32 %v411, %v1155
  %v1214 = vmul.f32 %v412, %v1155
  %v1215 = vmul.f32 %v413, %v1155
  %v1216 = vmul.f32 %v414, %v1155
  %v1217 = vmul.f32 %v415, %v1155
  %v1218 = vmul.f32 %v416, %v1155
  %v1219 = vmul.f32 %v417, %v1155
  %v1284 = vrot.slane %v1156, 1
  %v1285 = vrot.slane %v1157, 1
  %v1286 = vsel %vm630, %v1284, %v1285
  %v1287 = vrot.slane %v1158, 1
  %v1288 = vrot.slane %v1159, 1
  %v1289 = vsel %vm630, %v1287, %v1288
  %v1290 = vrot.slane %v1160, 1
  %v1291 = vrot.slane %v1161, 1
  %v1292 = vsel %vm630, %v1290, %v1291
  %v1293 = vrot.slane %v1162, 1
  %v1294 = vrot.slane %v1163, 1
  %v1295 = vsel %vm630, %v1293, %v1294
  %v1296 = vrot.slane %v1164, 1
  %v1297 = vrot.slane %v1165, 1
  %v1298 = vsel %vm630, %v1296, %v1297
  %v1299 = vrot.slane %v1166, 1
  %v1300 = vrot.slane %v1167, 1
  %v1301 = vsel %vm630, %v1299, %v1300
  %v1302 = vrot.slane %v1168, 1
  %v1303 = vrot.slane %v1169, 1
  %v1304 = vsel %vm630, %v1302, %v1303
  %v1305 = vrot.slane %v1170, 1
  %v1306 = vrot.slane %v1171, 1
  %v1307 = vsel %vm630, %v1305, %v1306
  %v1308 = vrot.slane %v1172, 1
  %v1309 = vrot.slane %v1173, 1
  %v1310 = vsel %vm630, %v1308, %v1309
  %v1311 = vrot.slane %v1174, 1
  %v1312 = vrot.slane %v1175, 1
  %v1313 = vsel %vm630, %v1311, %v1312
  %v1314 = vrot.slane %v1176, 1
  %v1315 = vrot.slane %v1177, 1
  %v1316 = vsel %vm630, %v1314, %v1315
  %v1317 = vrot.slane %v1178, 1
  %v1318 = vrot.slane %v1179, 1
  %v1319 = vsel %vm630, %v1317, %v1318
  %v1320 = vrot.slane %v1180, 1
  %v1321 = vrot.slane %v1181, 1
  %v1322 = vsel %vm630, %v1320, %v1321
  %v1323 = vrot.slane %v1182, 1
  %v1324 = vrot.slane %v1183, 1
  %v1325 = vsel %vm630, %v1323, %v1324
  %v1326 = vrot.slane %v1184, 1
  %v1327 = vrot.slane %v1185, 1
  %v1328 = vsel %vm630, %v1326, %v1327
  %v1329 = vrot.slane %v1186, 1
  %v1330 = vrot.slane %v1187, 1
  %v1331 = vsel %vm630, %v1329, %v1330
  %v1332 = vrot.slane %v1188, 1
  %v1333 = vrot.slane %v1189, 1
  %v1334 = vsel %vm630, %v1332, %v1333
  %v1335 = vrot.slane %v1190, 1
  %v1336 = vrot.slane %v1191, 1
  %v1337 = vsel %vm630, %v1335, %v1336
  %v1338 = vrot.slane %v1192, 1
  %v1339 = vrot.slane %v1193, 1
  %v1340 = vsel %vm630, %v1338, %v1339
  %v1341 = vrot.slane %v1194, 1
  %v1342 = vrot.slane %v1195, 1
  %v1343 = vsel %vm630, %v1341, %v1342
  %v1344 = vrot.slane %v1196, 1
  %v1345 = vrot.slane %v1197, 1
  %v1346 = vsel %vm630, %v1344, %v1345
  %v1347 = vrot.slane %v1198, 1
  %v1348 = vrot.slane %v1199, 1
  %v1349 = vsel %vm630, %v1347, %v1348
  %v1350 = vrot.slane %v1200, 1
  %v1351 = vrot.slane %v1201, 1
  %v1352 = vsel %vm630, %v1350, %v1351
  %v1353 = vrot.slane %v1202, 1
  %v1354 = vrot.slane %v1203, 1
  %v1355 = vsel %vm630, %v1353, %v1354
  %v1356 = vrot.slane %v1204, 1
  %v1357 = vrot.slane %v1205, 1
  %v1358 = vsel %vm630, %v1356, %v1357
  %v1359 = vrot.slane %v1206, 1
  %v1360 = vrot.slane %v1207, 1
  %v1361 = vsel %vm630, %v1359, %v1360
  %v1362 = vrot.slane %v1208, 1
  %v1363 = vrot.slane %v1209, 1
  %v1364 = vsel %vm630, %v1362, %v1363
  %v1365 = vrot.slane %v1210, 1
  %v1366 = vrot.slane %v1211, 1
  %v1367 = vsel %vm630, %v1365, %v1366
  %v1368 = vrot.slane %v1212, 1
  %v1369 = vrot.slane %v1213, 1
  %v1370 = vsel %vm630, %v1368, %v1369
  %v1371 = vrot.slane %v1214, 1
  %v1372 = vrot.slane %v1215, 1
  %v1373 = vsel %vm630, %v1371, %v1372
  %v1374 = vrot.slane %v1216, 1
  %v1375 = vrot.slane %v1217, 1
  %v1376 = vsel %vm630, %v1374, %v1375
  %v1377 = vrot.slane %v1218, 1
  %v1378 = vrot.slane %v1219, 1
  %v1379 = vsel %vm630, %v1377, %v1378
  %v1412 = vadd.f32 %v1120, %v1286
  %v1413 = vadd.f32 %v1121, %v1289
  %v1414 = vadd.f32 %v1122, %v1292
  %v1415 = vadd.f32 %v1123, %v1295
  %v1416 = vadd.f32 %v1124, %v1298
  %v1417 = vadd.f32 %v1125, %v1301
  %v1418 = vadd.f32 %v1126, %v1304
  %v1419 = vadd.f32 %v1127, %v1307
  %v1420 = vadd.f32 %v1128, %v1310
  %v1421 = vadd.f32 %v1129, %v1313
  %v1422 = vadd.f32 %v1130, %v1316
  %v1423 = vadd.f32 %v1131, %v1319
  %v1424 = vadd.f32 %v1132, %v1322
  %v1425 = vadd.f32 %v1133, %v1325
  %v1426 = vadd.f32 %v1134, %v1328
  %v1427 = vadd.f32 %v1135, %v1331
  %v1428 = vadd.f32 %v1136, %v1334
  %v1429 = vadd.f32 %v1137, %v1337
  %v1430 = vadd.f32 %v1138, %v1340
  %v1431 = vadd.f32 %v1139, %v1343
  %v1432 = vadd.f32 %v1140, %v1346
  %v1433 = vadd.f32 %v1141, %v1349
  %v1434 = vadd.f32 %v1142, %v1352
  %v1435 = vadd.f32 %v1143, %v1355
  %v1436 = vadd.f32 %v1144, %v1358
  %v1437 = vadd.f32 %v1145, %v1361
  %v1438 = vadd.f32 %v1146, %v1364
  %v1439 = vadd.f32 %v1147, %v1367
  %v1440 = vadd.f32 %v1148, %v1370
  %v1441 = vadd.f32 %v1149, %v1373
  %v1442 = vadd.f32 %v1150, %v1376
  %v1443 = vadd.f32 %v1151, %v1379
  %v1444 = vlaneseq
  %v1445 = vshrl.u32 %v1444, 7
  %v1446 = vsub.s32 5, %v1445
  %v1447 = vrot.slane %v420, %v1446
  %v1448 = vmul.f32 %v342, %v1447
  %v1449 = vmul.f32 %v343, %v1447
  %v1450 = vmul.f32 %v344, %v1447
  %v1451 = vmul.f32 %v345, %v1447
  %v1452 = vmul.f32 %v346, %v1447
  %v1453 = vmul.f32 %v347, %v1447
  %v1454 = vmul.f32 %v348, %v1447
  %v1455 = vmul.f32 %v349, %v1447
  %v1456 = vmul.f32 %v350, %v1447
  %v1457 = vmul.f32 %v351, %v1447
  %v1458 = vmul.f32 %v352, %v1447
  %v1459 = vmul.f32 %v353, %v1447
  %v1460 = vmul.f32 %v354, %v1447
  %v1461 = vmul.f32 %v355, %v1447
  %v1462 = vmul.f32 %v356, %v1447
  %v1463 = vmul.f32 %v357, %v1447
  %v1464 = vmul.f32 %v362, %v1447
  %v1465 = vmul.f32 %v363, %v1447
  %v1466 = vmul.f32 %v364, %v1447
  %v1467 = vmul.f32 %v365, %v1447
  %v1468 = vmul.f32 %v366, %v1447
  %v1469 = vmul.f32 %v367, %v1447
  %v1470 = vmul.f32 %v368, %v1447
  %v1471 = vmul.f32 %v369, %v1447
  %v1472 = vmul.f32 %v370, %v1447
  %v1473 = vmul.f32 %v371, %v1447
  %v1474 = vmul.f32 %v372, %v1447
  %v1475 = vmul.f32 %v373, %v1447
  %v1476 = vmul.f32 %v374, %v1447
  %v1477 = vmul.f32 %v375, %v1447
  %v1478 = vmul.f32 %v376, %v1447
  %v1479 = vmul.f32 %v377, %v1447
  %v1480 = vmul.f32 %v382, %v1447
  %v1481 = vmul.f32 %v383, %v1447
  %v1482 = vmul.f32 %v384, %v1447
  %v1483 = vmul.f32 %v385, %v1447
  %v1484 = vmul.f32 %v386, %v1447
  %v1485 = vmul.f32 %v387, %v1447
  %v1486 = vmul.f32 %v388, %v1447
  %v1487 = vmul.f32 %v389, %v1447
  %v1488 = vmul.f32 %v390, %v1447
  %v1489 = vmul.f32 %v391, %v1447
  %v1490 = vmul.f32 %v392, %v1447
  %v1491 = vmul.f32 %v393, %v1447
  %v1492 = vmul.f32 %v394, %v1447
  %v1493 = vmul.f32 %v395, %v1447
  %v1494 = vmul.f32 %v396, %v1447
  %v1495 = vmul.f32 %v397, %v1447
  %v1496 = vmul.f32 %v402, %v1447
  %v1497 = vmul.f32 %v403, %v1447
  %v1498 = vmul.f32 %v404, %v1447
  %v1499 = vmul.f32 %v405, %v1447
  %v1500 = vmul.f32 %v406, %v1447
  %v1501 = vmul.f32 %v407, %v1447
  %v1502 = vmul.f32 %v408, %v1447
  %v1503 = vmul.f32 %v409, %v1447
  %v1504 = vmul.f32 %v410, %v1447
  %v1505 = vmul.f32 %v411, %v1447
  %v1506 = vmul.f32 %v412, %v1447
  %v1507 = vmul.f32 %v413, %v1447
  %v1508 = vmul.f32 %v414, %v1447
  %v1509 = vmul.f32 %v415, %v1447
  %v1510 = vmul.f32 %v416, %v1447
  %v1511 = vmul.f32 %v417, %v1447
  %v1576 = vrot.slane %v1448, 2
  %v1577 = vrot.slane %v1449, 2
  %v1578 = vsel %vm923, %v1576, %v1577
  %v1579 = vrot.slane %v1450, 2
  %v1580 = vrot.slane %v1451, 2
  %v1581 = vsel %vm923, %v1579, %v1580
  %v1582 = vrot.slane %v1452, 2
  %v1583 = vrot.slane %v1453, 2
  %v1584 = vsel %vm923, %v1582, %v1583
  %v1585 = vrot.slane %v1454, 2
  %v1586 = vrot.slane %v1455, 2
  %v1587 = vsel %vm923, %v1585, %v1586
  %v1588 = vrot.slane %v1456, 2
  %v1589 = vrot.slane %v1457, 2
  %v1590 = vsel %vm923, %v1588, %v1589
  %v1591 = vrot.slane %v1458, 2
  %v1592 = vrot.slane %v1459, 2
  %v1593 = vsel %vm923, %v1591, %v1592
  %v1594 = vrot.slane %v1460, 2
  %v1595 = vrot.slane %v1461, 2
  %v1596 = vsel %vm923, %v1594, %v1595
  %v1597 = vrot.slane %v1462, 2
  %v1598 = vrot.slane %v1463, 2
  %v1599 = vsel %vm923, %v1597, %v1598
  %v1600 = vrot.slane %v1464, 2
  %v1601 = vrot.slane %v1465, 2
  %v1602 = vsel %vm923, %v1600, %v1601
  %v1603 = vrot.slane %v1466, 2
  %v1604 = vrot.slane %v1467, 2
  %v1605 = vsel %vm923, %v1603, %v1604
  %v1606 = vrot.slane %v1468, 2
  %v1607 = vrot.slane %v1469, 2
  %v1608 = vsel %vm923, %v1606, %v1607
  %v1609 = vrot.slane %v1470, 2
  %v1610 = vrot.slane %v1471, 2
  %v1611 = vsel %vm923, %v1609, %v1610
  %v1612 = vrot.slane %v1472, 2
  %v1613 = vrot.slane %v1473, 2
  %v1614 = vsel %vm923, %v1612, %v1613
  %v1615 = vrot.slane %v1474, 2
  %v1616 = vrot.slane %v1475, 2
  %v1617 = vsel %vm923, %v1615, %v1616
  %v1618 = vrot.slane %v1476, 2
  %v1619 = vrot.slane %v1477, 2
  %v1620 = vsel %vm923, %v1618, %v1619
  %v1621 = vrot.slane %v1478, 2
  %v1622 = vrot.slane %v1479, 2
  %v1623 = vsel %vm923, %v1621, %v1622
  %v1624 = vrot.slane %v1480, 2
  %v1625 = vrot.slane %v1481, 2
  %v1626 = vsel %vm923, %v1624, %v1625
  %v1627 = vrot.slane %v1482, 2
  %v1628 = vrot.slane %v1483, 2
  %v1629 = vsel %vm923, %v1627, %v1628
  %v1630 = vrot.slane %v1484, 2
  %v1631 = vrot.slane %v1485, 2
  %v1632 = vsel %vm923, %v1630, %v1631
  %v1633 = vrot.slane %v1486, 2
  %v1634 = vrot.slane %v1487, 2
  %v1635 = vsel %vm923, %v1633, %v1634
  %v1636 = vrot.slane %v1488, 2
  %v1637 = vrot.slane %v1489, 2
  %v1638 = vsel %vm923, %v1636, %v1637
  %v1639 = vrot.slane %v1490, 2
  %v1640 = vrot.slane %v1491, 2
  %v1641 = vsel %vm923, %v1639, %v1640
  %v1642 = vrot.slane %v1492, 2
  %v1643 = vrot.slane %v1493, 2
  %v1644 = vsel %vm923, %v1642, %v1643
  %v1645 = vrot.slane %v1494, 2
  %v1646 = vrot.slane %v1495, 2
  %v1647 = vsel %vm923, %v1645, %v1646
  %v1648 = vrot.slane %v1496, 2
  %v1649 = vrot.slane %v1497, 2
  %v1650 = vsel %vm923, %v1648, %v1649
  %v1651 = vrot.slane %v1498, 2
  %v1652 = vrot.slane %v1499, 2
  %v1653 = vsel %vm923, %v1651, %v1652
  %v1654 = vrot.slane %v1500, 2
  %v1655 = vrot.slane %v1501, 2
  %v1656 = vsel %vm923, %v1654, %v1655
  %v1657 = vrot.slane %v1502, 2
  %v1658 = vrot.slane %v1503, 2
  %v1659 = vsel %vm923, %v1657, %v1658
  %v1660 = vrot.slane %v1504, 2
  %v1661 = vrot.slane %v1505, 2
  %v1662 = vsel %vm923, %v1660, %v1661
  %v1663 = vrot.slane %v1506, 2
  %v1664 = vrot.slane %v1507, 2
  %v1665 = vsel %vm923, %v1663, %v1664
  %v1666 = vrot.slane %v1508, 2
  %v1667 = vrot.slane %v1509, 2
  %v1668 = vsel %vm923, %v1666, %v1667
  %v1669 = vrot.slane %v1510, 2
  %v1670 = vrot.slane %v1511, 2
  %v1671 = vsel %vm923, %v1669, %v1670
  %v1704 = vadd.f32 %v1412, %v1578
  %v1705 = vadd.f32 %v1413, %v1581
  %v1706 = vadd.f32 %v1414, %v1584
  %v1707 = vadd.f32 %v1415, %v1587
  %v1708 = vadd.f32 %v1416, %v1590
  %v1709 = vadd.f32 %v1417, %v1593
  %v1710 = vadd.f32 %v1418, %v1596
  %v1711 = vadd.f32 %v1419, %v1599
  %v1712 = vadd.f32 %v1420, %v1602
  %v1713 = vadd.f32 %v1421, %v1605
  %v1714 = vadd.f32 %v1422, %v1608
  %v1715 = vadd.f32 %v1423, %v1611
  %v1716 = vadd.f32 %v1424, %v1614
  %v1717 = vadd.f32 %v1425, %v1617
  %v1718 = vadd.f32 %v1426, %v1620
  %v1719 = vadd.f32 %v1427, %v1623
  %v1720 = vadd.f32 %v1428, %v1626
  %v1721 = vadd.f32 %v1429, %v1629
  %v1722 = vadd.f32 %v1430, %v1632
  %v1723 = vadd.f32 %v1431, %v1635
  %v1724 = vadd.f32 %v1432, %v1638
  %v1725 = vadd.f32 %v1433, %v1641
  %v1726 = vadd.f32 %v1434, %v1644
  %v1727 = vadd.f32 %v1435, %v1647
  %v1728 = vadd.f32 %v1436, %v1650
  %v1729 = vadd.f32 %v1437, %v1653
  %v1730 = vadd.f32 %v1438, %v1656
  %v1731 = vadd.f32 %v1439, %v1659
  %v1732 = vadd.f32 %v1440, %v1662
  %v1733 = vadd.f32 %v1441, %v1665
  %v1734 = vadd.f32 %v1442, %v1668
  %v1735 = vadd.f32 %v1443, %v1671
  %v1736 = vlaneseq
  %v1737 = vshrl.u32 %v1736, 7
  %v1738 = vsub.s32 6, %v1737
  %v1739 = vrot.slane %v420, %v1738
  %v1740 = vmul.f32 %v344, %v1739
  %v1741 = vmul.f32 %v346, %v1739
  %v1742 = vmul.f32 %v348, %v1739
  %v1743 = vmul.f32 %v350, %v1739
  %v1744 = vmul.f32 %v352, %v1739
  %v1745 = vmul.f32 %v354, %v1739
  %v1746 = vmul.f32 %v356, %v1739
  %v1747 = vmul.f32 %v358, %v1739
  %v1748 = vmul.f32 %v364, %v1739
  %v1749 = vmul.f32 %v366, %v1739
  %v1750 = vmul.f32 %v368, %v1739
  %v1751 = vmul.f32 %v370, %v1739
  %v1752 = vmul.f32 %v372, %v1739
  %v1753 = vmul.f32 %v374, %v1739
  %v1754 = vmul.f32 %v376, %v1739
  %v1755 = vmul.f32 %v378, %v1739
  %v1756 = vmul.f32 %v384, %v1739
  %v1757 = vmul.f32 %v386, %v1739
  %v1758 = vmul.f32 %v388, %v1739
  %v1759 = vmul.f32 %v390, %v1739
  %v1760 = vmul.f32 %v392, %v1739
  %v1761 = vmul.f32 %v394, %v1739
  %v1762 = vmul.f32 %v396, %v1739
  %v1763 = vmul.f32 %v398, %v1739
  %v1764 = vmul.f32 %v404, %v1739
  %v1765 = vmul.f32 %v406, %v1739
  %v1766 = vmul.f32 %v408, %v1739
  %v1767 = vmul.f32 %v410, %v1739
  %v1768 = vmul.f32 %v412, %v1739
  %v1769 = vmul.f32 %v414, %v1739
  %v1770 = vmul.f32 %v416, %v1739
  %v1771 = vmul.f32 %v418, %v1739
  %v1772 = vadd.f32 %v1704, %v1740
  %v1773 = vadd.f32 %v1705, %v1741
  %v1774 = vadd.f32 %v1706, %v1742
  %v1775 = vadd.f32 %v1707, %v1743
  %v1776 = vadd.f32 %v1708, %v1744
  %v1777 = vadd.f32 %v1709, %v1745
  %v1778 = vadd.f32 %v1710, %v1746
  %v1779 = vadd.f32 %v1711, %v1747
  %v1780 = vadd.f32 %v1712, %v1748
  %v1781 = vadd.f32 %v1713, %v1749
  %v1782 = vadd.f32 %v1714, %v1750
  %v1783 = vadd.f32 %v1715, %v1751
  %v1784 = vadd.f32 %v1716, %v1752
  %v1785 = vadd.f32 %v1717, %v1753
  %v1786 = vadd.f32 %v1718, %v1754
  %v1787 = vadd.f32 %v1719, %v1755
  %v1788 = vadd.f32 %v1720, %v1756
  %v1789 = vadd.f32 %v1721, %v1757
  %v1790 = vadd.f32 %v1722, %v1758
  %v1791 = vadd.f32 %v1723, %v1759
  %v1792 = vadd.f32 %v1724, %v1760
  %v1793 = vadd.f32 %v1725, %v1761
  %v1794 = vadd.f32 %v1726, %v1762
  %v1795 = vadd.f32 %v1727, %v1763
  %v1796 = vadd.f32 %v1728, %v1764
  %v1797 = vadd.f32 %v1729, %v1765
  %v1798 = vadd.f32 %v1730, %v1766
  %v1799 = vadd.f32 %v1731, %v1767
  %v1800 = vadd.f32 %v1732, %v1768
  %v1801 = vadd.f32 %v1733, %v1769
  %v1802 = vadd.f32 %v1734, %v1770
  %v1803 = vadd.f32 %v1735, %v1771
  %v1804 = vlaneseq
  %v1805 = vshrl.u32 %v1804, 7
  %v1806 = vsub.s32 7, %v1805
  %v1807 = vrot.slane %v420, %v1806
  %v1808 = vmul.f32 %v344, %v1807
  %v1809 = vmul.f32 %v345, %v1807
  %v1810 = vmul.f32 %v346, %v1807
  %v1811 = vmul.f32 %v347, %v1807
  %v1812 = vmul.f32 %v348, %v1807
  %v1813 = vmul.f32 %v349, %v1807
  %v1814 = vmul.f32 %v350, %v1807
  %v1815 = vmul.f32 %v351, %v1807
  %v1816 = vmul.f32 %v352, %v1807
  %v1817 = vmul.f32 %v353, %v1807
  %v1818 = vmul.f32 %v354, %v1807
  %v1819 = vmul.f32 %v355, %v1807
  %v1820 = vmul.f32 %v356, %v1807
  %v1821 = vmul.f32 %v357, %v1807
  %v1822 = vmul.f32 %v358, %v1807
  %v1823 = vmul.f32 %v359, %v1807
  %v1824 = vmul.f32 %v364, %v1807
  %v1825 = vmul.f32 %v365, %v1807
  %v1826 = vmul.f32 %v366, %v1807
  %v1827 = vmul.f32 %v367, %v1807
  %v1828 = vmul.f32 %v368, %v1807
  %v1829 = vmul.f32 %v369, %v1807
  %v1830 = vmul.f32 %v370, %v1807
  %v1831 = vmul.f32 %v371, %v1807
  %v1832 = vmul.f32 %v372, %v1807
  %v1833 = vmul.f32 %v373, %v1807
  %v1834 = vmul.f32 %v374, %v1807
  %v1835 = vmul.f32 %v375, %v1807
  %v1836 = vmul.f32 %v376, %v1807
  %v1837 = vmul.f32 %v377, %v1807
  %v1838 = vmul.f32 %v378, %v1807
  %v1839 = vmul.f32 %v379, %v1807
  %v1840 = vmul.f32 %v384, %v1807
  %v1841 = vmul.f32 %v385, %v1807
  %v1842 = vmul.f32 %v386, %v1807
  %v1843 = vmul.f32 %v387, %v1807
  %v1844 = vmul.f32 %v388, %v1807
  %v1845 = vmul.f32 %v389, %v1807
  %v1846 = vmul.f32 %v390, %v1807
  %v1847 = vmul.f32 %v391, %v1807
  %v1848 = vmul.f32 %v392, %v1807
  %v1849 = vmul.f32 %v393, %v1807
  %v1850 = vmul.f32 %v394, %v1807
  %v1851 = vmul.f32 %v395, %v1807
  %v1852 = vmul.f32 %v396, %v1807
  %v1853 = vmul.f32 %v397, %v1807
  %v1854 = vmul.f32 %v398, %v1807
  %v1855 = vmul.f32 %v399, %v1807
  %v1856 = vmul.f32 %v404, %v1807
  %v1857 = vmul.f32 %v405, %v1807
  %v1858 = vmul.f32 %v406, %v1807
  %v1859 = vmul.f32 %v407, %v1807
  %v1860 = vmul.f32 %v408, %v1807
  %v1861 = vmul.f32 %v409, %v1807
  %v1862 = vmul.f32 %v410, %v1807
  %v1863 = vmul.f32 %v411, %v1807
  %v1864 = vmul.f32 %v412, %v1807
  %v1865 = vmul.f32 %v413, %v1807
  %v1866 = vmul.f32 %v414, %v1807
  %v1867 = vmul.f32 %v415, %v1807
  %v1868 = vmul.f32 %v416, %v1807
  %v1869 = vmul.f32 %v417, %v1807
  %v1870 = vmul.f32 %v418, %v1807
  %v1871 = vmul.f32 %v419, %v1807
  %v1936 = vrot.slane %v1808, 1
  %v1937 = vrot.slane %v1809, 1
  %v1938 = vsel %vm630, %v1936, %v1937
  %v1939 = vrot.slane %v1810, 1
  %v1940 = vrot.slane %v1811, 1
  %v1941 = vsel %vm630, %v1939, %v1940
  %v1942 = vrot.slane %v1812, 1
  %v1943 = vrot.slane %v1813, 1
  %v1944 = vsel %vm630, %v1942, %v1943
  %v1945 = vrot.slane %v1814, 1
  %v1946 = vrot.slane %v1815, 1
  %v1947 = vsel %vm630, %v1945, %v1946
  %v1948 = vrot.slane %v1816, 1
  %v1949 = vrot.slane %v1817, 1
  %v1950 = vsel %vm630, %v1948, %v1949
  %v1951 = vrot.slane %v1818, 1
  %v1952 = vrot.slane %v1819, 1
  %v1953 = vsel %vm630, %v1951, %v1952
  %v1954 = vrot.slane %v1820, 1
  %v1955 = vrot.slane %v1821, 1
  %v1956 = vsel %vm630, %v1954, %v1955
  %v1957 = vrot.slane %v1822, 1
  %v1958 = vrot.slane %v1823, 1
  %v1959 = vsel %vm630, %v1957, %v1958
  %v1960 = vrot.slane %v1824, 1
  %v1961 = vrot.slane %v1825, 1
  %v1962 = vsel %vm630, %v1960, %v1961
  %v1963 = vrot.slane %v1826, 1
  %v1964 = vrot.slane %v1827, 1
  %v1965 = vsel %vm630, %v1963, %v1964
  %v1966 = vrot.slane %v1828, 1
  %v1967 = vrot.slane %v1829, 1
  %v1968 = vsel %vm630, %v1966, %v1967
  %v1969 = vrot.slane %v1830, 1
  %v1970 = vrot.slane %v1831, 1
  %v1971 = vsel %vm630, %v1969, %v1970
  %v1972 = vrot.slane %v1832, 1
  %v1973 = vrot.slane %v1833, 1
  %v1974 = vsel %vm630, %v1972, %v1973
  %v1975 = vrot.slane %v1834, 1
  %v1976 = vrot.slane %v1835, 1
  %v1977 = vsel %vm630, %v1975, %v1976
  %v1978 = vrot.slane %v1836, 1
  %v1979 = vrot.slane %v1837, 1
  %v1980 = vsel %vm630, %v1978, %v1979
  %v1981 = vrot.slane %v1838, 1
  %v1982 = vrot.slane %v1839, 1
  %v1983 = vsel %vm630, %v1981, %v1982
  %v1984 = vrot.slane %v1840, 1
  %v1985 = vrot.slane %v1841, 1
  %v1986 = vsel %vm630, %v1984, %v1985
  %v1987 = vrot.slane %v1842, 1
  %v1988 = vrot.slane %v1843, 1
  %v1989 = vsel %vm630, %v1987, %v1988
  %v1990 = vrot.slane %v1844, 1
  %v1991 = vrot.slane %v1845, 1
  %v1992 = vsel %vm630, %v1990, %v1991
  %v1993 = vrot.slane %v1846, 1
  %v1994 = vrot.slane %v1847, 1
  %v1995 = vsel %vm630, %v1993, %v1994
  %v1996 = vrot.slane %v1848, 1
  %v1997 = vrot.slane %v1849, 1
  %v1998 = vsel %vm630, %v1996, %v1997
  %v1999 = vrot.slane %v1850, 1
  %v2000 = vrot.slane %v1851, 1
  %v2001 = vsel %vm630, %v1999, %v2000
  %v2002 = vrot.slane %v1852, 1
  %v2003 = vrot.slane %v1853, 1
  %v2004 = vsel %vm630, %v2002, %v2003
  %v2005 = vrot.slane %v1854, 1
  %v2006 = vrot.slane %v1855, 1
  %v2007 = vsel %vm630, %v2005, %v2006
  %v2008 = vrot.slane %v1856, 1
  %v2009 = vrot.slane %v1857, 1
  %v2010 = vsel %vm630, %v2008, %v2009
  %v2011 = vrot.slane %v1858, 1
  %v2012 = vrot.slane %v1859, 1
  %v2013 = vsel %vm630, %v2011, %v2012
  %v2014 = vrot.slane %v1860, 1
  %v2015 = vrot.slane %v1861, 1
  %v2016 = vsel %vm630, %v2014, %v2015
  %v2017 = vrot.slane %v1862, 1
  %v2018 = vrot.slane %v1863, 1
  %v2019 = vsel %vm630, %v2017, %v2018
  %v2020 = vrot.slane %v1864, 1
  %v2021 = vrot.slane %v1865, 1
  %v2022 = vsel %vm630, %v2020, %v2021
  %v2023 = vrot.slane %v1866, 1
  %v2024 = vrot.slane %v1867, 1
  %v2025 = vsel %vm630, %v2023, %v2024
  %v2026 = vrot.slane %v1868, 1
  %v2027 = vrot.slane %v1869, 1
  %v2028 = vsel %vm630, %v2026, %v2027
  %v2029 = vrot.slane %v1870, 1
  %v2030 = vrot.slane %v1871, 1
  %v2031 = vsel %vm630, %v2029, %v2030
  %v2064 = vadd.f32 %v1772, %v1938
  %v2065 = vadd.f32 %v1773, %v1941
  %v2066 = vadd.f32 %v1774, %v1944
  %v2067 = vadd.f32 %v1775, %v1947
  %v2068 = vadd.f32 %v1776, %v1950
  %v2069 = vadd.f32 %v1777, %v1953
  %v2070 = vadd.f32 %v1778, %v1956
  %v2071 = vadd.f32 %v1779, %v1959
  %v2072 = vadd.f32 %v1780, %v1962
  %v2073 = vadd.f32 %v1781, %v1965
  %v2074 = vadd.f32 %v1782, %v1968
  %v2075 = vadd.f32 %v1783, %v1971
  %v2076 = vadd.f32 %v1784, %v1974
  %v2077 = vadd.f32 %v1785, %v1977
  %v2078 = vadd.f32 %v1786, %v1980
  %v2079 = vadd.f32 %v1787, %v1983
  %v2080 = vadd.f32 %v1788, %v1986
  %v2081 = vadd.f32 %v1789, %v1989
  %v2082 = vadd.f32 %v1790, %v1992
  %v2083 = vadd.f32 %v1791, %v1995
  %v2084 = vadd.f32 %v1792, %v1998
  %v2085 = vadd.f32 %v1793, %v2001
  %v2086 = vadd.f32 %v1794, %v2004
  %v2087 = vadd.f32 %v1795, %v2007
  %v2088 = vadd.f32 %v1796, %v2010
  %v2089 = vadd.f32 %v1797, %v2013
  %v2090 = vadd.f32 %v1798, %v2016
  %v2091 = vadd.f32 %v1799, %v2019
  %v2092 = vadd.f32 %v1800, %v2022
  %v2093 = vadd.f32 %v1801, %v2025
  %v2094 = vadd.f32 %v1802, %v2028
  %v2095 = vadd.f32 %v1803, %v2031
  %v2096 = vlaneseq
  %v2097 = vshrl.u32 %v2096, 7
  %v2098 = vsub.s32 0, %v2097
  %v2099 = vrot.slane %v421, %v2098
  %v2100 = vmul.f32 %v344, %v2099
  %v2101 = vmul.f32 %v345, %v2099
  %v2102 = vmul.f32 %v346, %v2099
  %v2103 = vmul.f32 %v347, %v2099
  %v2104 = vmul.f32 %v348, %v2099
  %v2105 = vmul.f32 %v349, %v2099
  %v2106 = vmul.f32 %v350, %v2099
  %v2107 = vmul.f32 %v351, %v2099
  %v2108 = vmul.f32 %v352, %v2099
  %v2109 = vmul.f32 %v353, %v2099
  %v2110 = vmul.f32 %v354, %v2099
  %v2111 = vmul.f32 %v355, %v2099
  %v2112 = vmul.f32 %v356, %v2099
  %v2113 = vmul.f32 %v357, %v2099
  %v2114 = vmul.f32 %v358, %v2099
  %v2115 = vmul.f32 %v359, %v2099
  %v2116 = vmul.f32 %v364, %v2099
  %v2117 = vmul.f32 %v365, %v2099
  %v2118 = vmul.f32 %v366, %v2099
  %v2119 = vmul.f32 %v367, %v2099
  %v2120 = vmul.f32 %v368, %v2099
  %v2121 = vmul.f32 %v369, %v2099
  %v2122 = vmul.f32 %v370, %v2099
  %v2123 = vmul.f32 %v371, %v2099
  %v2124 = vmul.f32 %v372, %v2099
  %v2125 = vmul.f32 %v373, %v2099
  %v2126 = vmul.f32 %v374, %v2099
  %v2127 = vmul.f32 %v375, %v2099
  %v2128 = vmul.f32 %v376, %v2099
  %v2129 = vmul.f32 %v377, %v2099
  %v2130 = vmul.f32 %v378, %v2099
  %v2131 = vmul.f32 %v379, %v2099
  %v2132 = vmul.f32 %v384, %v2099
  %v2133 = vmul.f32 %v385, %v2099
  %v2134 = vmul.f32 %v386, %v2099
  %v2135 = vmul.f32 %v387, %v2099
  %v2136 = vmul.f32 %v388, %v2099
  %v2137 = vmul.f32 %v389, %v2099
  %v2138 = vmul.f32 %v390, %v2099
  %v2139 = vmul.f32 %v391, %v2099
  %v2140 = vmul.f32 %v392, %v2099
  %v2141 = vmul.f32 %v393, %v2099
  %v2142 = vmul.f32 %v394, %v2099
  %v2143 = vmul.f32 %v395, %v2099
  %v2144 = vmul.f32 %v396, %v2099
  %v2145 = vmul.f32 %v397, %v2099
  %v2146 = vmul.f32 %v398, %v2099
  %v2147 = vmul.f32 %v399, %v2099
  %v2148 = vmul.f32 %v404, %v2099
  %v2149 = vmul.f32 %v405, %v2099
  %v2150 = vmul.f32 %v406, %v2099
  %v2151 = vmul.f32 %v407, %v2099
  %v2152 = vmul.f32 %v408, %v2099
  %v2153 = vmul.f32 %v409, %v2099
  %v2154 = vmul.f32 %v410, %v2099
  %v2155 = vmul.f32 %v411, %v2099
  %v2156 = vmul.f32 %v412, %v2099
  %v2157 = vmul.f32 %v413, %v2099
  %v2158 = vmul.f32 %v414, %v2099
  %v2159 = vmul.f32 %v415, %v2099
  %v2160 = vmul.f32 %v416, %v2099
  %v2161 = vmul.f32 %v417, %v2099
  %v2162 = vmul.f32 %v418, %v2099
  %v2163 = vmul.f32 %v419, %v2099
  %v2228 = vrot.slane %v2100, 2
  %v2229 = vrot.slane %v2101, 2
  %v2230 = vsel %vm923, %v2228, %v2229
  %v2231 = vrot.slane %v2102, 2
  %v2232 = vrot.slane %v2103, 2
  %v2233 = vsel %vm923, %v2231, %v2232
  %v2234 = vrot.slane %v2104, 2
  %v2235 = vrot.slane %v2105, 2
  %v2236 = vsel %vm923, %v2234, %v2235
  %v2237 = vrot.slane %v2106, 2
  %v2238 = vrot.slane %v2107, 2
  %v2239 = vsel %vm923, %v2237, %v2238
  %v2240 = vrot.slane %v2108, 2
  %v2241 = vrot.slane %v2109, 2
  %v2242 = vsel %vm923, %v2240, %v2241
  %v2243 = vrot.slane %v2110, 2
  %v2244 = vrot.slane %v2111, 2
  %v2245 = vsel %vm923, %v2243, %v2244
  %v2246 = vrot.slane %v2112, 2
  %v2247 = vrot.slane %v2113, 2
  %v2248 = vsel %vm923, %v2246, %v2247
  %v2249 = vrot.slane %v2114, 2
  %v2250 = vrot.slane %v2115, 2
  %v2251 = vsel %vm923, %v2249, %v2250
  %v2252 = vrot.slane %v2116, 2
  %v2253 = vrot.slane %v2117, 2
  %v2254 = vsel %vm923, %v2252, %v2253
  %v2255 = vrot.slane %v2118, 2
  %v2256 = vrot.slane %v2119, 2
  %v2257 = vsel %vm923, %v2255, %v2256
  %v2258 = vrot.slane %v2120, 2
  %v2259 = vrot.slane %v2121, 2
  %v2260 = vsel %vm923, %v2258, %v2259
  %v2261 = vrot.slane %v2122, 2
  %v2262 = vrot.slane %v2123, 2
  %v2263 = vsel %vm923, %v2261, %v2262
  %v2264 = vrot.slane %v2124, 2
  %v2265 = vrot.slane %v2125, 2
  %v2266 = vsel %vm923, %v2264, %v2265
  %v2267 = vrot.slane %v2126, 2
  %v2268 = vrot.slane %v2127, 2
  %v2269 = vsel %vm923, %v2267, %v2268
  %v2270 = vrot.slane %v2128, 2
  %v2271 = vrot.slane %v2129, 2
  %v2272 = vsel %vm923, %v2270, %v2271
  %v2273 = vrot.slane %v2130, 2
  %v2274 = vrot.slane %v2131, 2
  %v2275 = vsel %vm923, %v2273, %v2274
  %v2276 = vrot.slane %v2132, 2
  %v2277 = vrot.slane %v2133, 2
  %v2278 = vsel %vm923, %v2276, %v2277
  %v2279 = vrot.slane %v2134, 2
  %v2280 = vrot.slane %v2135, 2
  %v2281 = vsel %vm923, %v2279, %v2280
  %v2282 = vrot.slane %v2136, 2
  %v2283 = vrot.slane %v2137, 2
  %v2284 = vsel %vm923, %v2282, %v2283
  %v2285 = vrot.slane %v2138, 2
  %v2286 = vrot.slane %v2139, 2
  %v2287 = vsel %vm923, %v2285, %v2286
  %v2288 = vrot.slane %v2140, 2
  %v2289 = vrot.slane %v2141, 2
  %v2290 = vsel %vm923, %v2288, %v2289
  %v2291 = vrot.slane %v2142, 2
  %v2292 = vrot.slane %v2143, 2
  %v2293 = vsel %vm923, %v2291, %v2292
  %v2294 = vrot.slane %v2144, 2
  %v2295 = vrot.slane %v2145, 2
  %v2296 = vsel %vm923, %v2294, %v2295
  %v2297 = vrot.slane %v2146, 2
  %v2298 = vrot.slane %v2147, 2
  %v2299 = vsel %vm923, %v2297, %v2298
  %v2300 = vrot.slane %v2148, 2
  %v2301 = vrot.slane %v2149, 2
  %v2302 = vsel %vm923, %v2300, %v2301
  %v2303 = vrot.slane %v2150, 2
  %v2304 = vrot.slane %v2151, 2
  %v2305 = vsel %vm923, %v2303, %v2304
  %v2306 = vrot.slane %v2152, 2
  %v2307 = vrot.slane %v2153, 2
  %v2308 = vsel %vm923, %v2306, %v2307
  %v2309 = vrot.slane %v2154, 2
  %v2310 = vrot.slane %v2155, 2
  %v2311 = vsel %vm923, %v2309, %v2310
  %v2312 = vrot.slane %v2156, 2
  %v2313 = vrot.slane %v2157, 2
  %v2314 = vsel %vm923, %v2312, %v2313
  %v2315 = vrot.slane %v2158, 2
  %v2316 = vrot.slane %v2159, 2
  %v2317 = vsel %vm923, %v2315, %v2316
  %v2318 = vrot.slane %v2160, 2
  %v2319 = vrot.slane %v2161, 2
  %v2320 = vsel %vm923, %v2318, %v2319
  %v2321 = vrot.slane %v2162, 2
  %v2322 = vrot.slane %v2163, 2
  %v2323 = vsel %vm923, %v2321, %v2322
  %v2356 = vadd.f32 %v2064, %v2230
  %v2357 = vadd.f32 %v2065, %v2233
  %v2358 = vadd.f32 %v2066, %v2236
  %v2359 = vadd.f32 %v2067, %v2239
  %v2360 = vadd.f32 %v2068, %v2242
  %v2361 = vadd.f32 %v2069, %v2245
  %v2362 = vadd.f32 %v2070, %v2248
  %v2363 = vadd.f32 %v2071, %v2251
  %v2364 = vadd.f32 %v2072, %v2254
  %v2365 = vadd.f32 %v2073, %v2257
  %v2366 = vadd.f32 %v2074, %v2260
  %v2367 = vadd.f32 %v2075, %v2263
  %v2368 = vadd.f32 %v2076, %v2266
  %v2369 = vadd.f32 %v2077, %v2269
  %v2370 = vadd.f32 %v2078, %v2272
  %v2371 = vadd.f32 %v2079, %v2275
  %v2372 = vadd.f32 %v2080, %v2278
  %v2373 = vadd.f32 %v2081, %v2281
  %v2374 = vadd.f32 %v2082, %v2284
  %v2375 = vadd.f32 %v2083, %v2287
  %v2376 = vadd.f32 %v2084, %v2290
  %v2377 = vadd.f32 %v2085, %v2293
  %v2378 = vadd.f32 %v2086, %v2296
  %v2379 = vadd.f32 %v2087, %v2299
  %v2380 = vadd.f32 %v2088, %v2302
  %v2381 = vadd.f32 %v2089, %v2305
  %v2382 = vadd.f32 %v2090, %v2308
  %v2383 = vadd.f32 %v2091, %v2311
  %v2384 = vadd.f32 %v2092, %v2314
  %v2385 = vadd.f32 %v2093, %v2317
  %v2386 = vadd.f32 %v2094, %v2320
  %v2387 = vadd.f32 %v2095, %v2323
  %vm2388 = vcmask 64512
  %2389 = vst.msk [vmem:[%s6] sm:$0xff] %vm2388, %v2356
  %2390 = vst.msk [vmem:[%s6 + $0x8] sm:$0xff] %vm2388, %v2357
  %2391 = vst.msk [vmem:[%s6 + $0x10] sm:$0xff] %vm2388, %v2358
  %2392 = vst.msk [vmem:[%s6 + $0x18] sm:$0xff] %vm2388, %v2359
  %2393 = vst.msk [vmem:[%s6 + $0x20] sm:$0xff] %vm2388, %v2360
  %2394 = vst.msk [vmem:[%s6 + $0x28] sm:$0xff] %vm2388, %v2361
  %2395 = vst.msk [vmem:[%s6 + $0x30] sm:$0xff] %vm2388, %v2362
  %2396 = vst.msk [vmem:[%s6 + $0x38] sm:$0xff] %vm2388, %v2363
  %2397 = vst.msk [vmem:[%s6 + $0x40] sm:$0xff] %vm2388, %v2364
  %2398 = vst.msk [vmem:[%s6 + $0x48] sm:$0xff] %vm2388, %v2365
  %2399 = vst.msk [vmem:[%s6 + $0x50] sm:$0xff] %vm2388, %v2366
  %2400 = vst.msk [vmem:[%s6 + $0x58] sm:$0xff] %vm2388, %v2367
  %2401 = vst.msk [vmem:[%s6 + $0x60] sm:$0xff] %vm2388, %v2368
  %2402 = vst.msk [vmem:[%s6 + $0x68] sm:$0xff] %vm2388, %v2369
  %2403 = vst.msk [vmem:[%s6 + $0x70] sm:$0xff] %vm2388, %v2370
  %2404 = vst.msk [vmem:[%s6 + $0x78] sm:$0xff] %vm2388, %v2371
  %2405 = vst.msk [vmem:[%s6 + $0x80] sm:$0xff] %vm2388, %v2372
  %2406 = vst.msk [vmem:[%s6 + $0x88] sm:$0xff] %vm2388, %v2373
  %2407 = vst.msk [vmem:[%s6 + $0x90] sm:$0xff] %vm2388, %v2374
  %2408 = vst.msk [vmem:[%s6 + $0x98] sm:$0xff] %vm2388, %v2375
  %2409 = vst.msk [vmem:[%s6 + $0xa0] sm:$0xff] %vm2388, %v2376
  %2410 = vst.msk [vmem:[%s6 + $0xa8] sm:$0xff] %vm2388, %v2377
  %2411 = vst.msk [vmem:[%s6 + $0xb0] sm:$0xff] %vm2388, %v2378
  %2412 = vst.msk [vmem:[%s6 + $0xb8] sm:$0xff] %vm2388, %v2379
  %2413 = vst.msk [vmem:[%s6 + $0xc0] sm:$0xff] %vm2388, %v2380
  %2414 = vst.msk [vmem:[%s6 + $0xc8] sm:$0xff] %vm2388, %v2381
  %2415 = vst.msk [vmem:[%s6 + $0xd0] sm:$0xff] %vm2388, %v2382
  %2416 = vst.msk [vmem:[%s6 + $0xd8] sm:$0xff] %vm2388, %v2383
  %2417 = vst.msk [vmem:[%s6 + $0xe0] sm:$0xff] %vm2388, %v2384
  %2418 = vst.msk [vmem:[%s6 + $0xe8] sm:$0xff] %vm2388, %v2385
  %2419 = vst.msk [vmem:[%s6 + $0xf0] sm:$0xff] %vm2388, %v2386
  %2420 = vst.msk [vmem:[%s6 + $0xf8] sm:$0xff] %vm2388, %v2387
  %v2421 = vsel %vm2388, %v2356, 0.0
  %v2422 = vrot.slane %v2421, 4
  %v2423 = vadd.f32 %v2421, %v2422
  %v2424 = vrot.slane %v2423, 2
  %v2425 = vadd.f32 %v2423, %v2424
  %v2426 = vrot.slane %v2425, 1
  %v2427 = vadd.f32 %v2425, %v2426
  %v2428 = vsel %vm2388, %v2357, 0.0
  %v2429 = vrot.slane %v2428, 4
  %v2430 = vadd.f32 %v2428, %v2429
  %v2431 = vrot.slane %v2430, 2
  %v2432 = vadd.f32 %v2430, %v2431
  %v2433 = vrot.slane %v2432, 1
  %v2434 = vadd.f32 %v2432, %v2433
  %v2435 = vsel %vm2388, %v2358, 0.0
  %v2436 = vrot.slane %v2435, 4
  %v2437 = vadd.f32 %v2435, %v2436
  %v2438 = vrot.slane %v2437, 2
  %v2439 = vadd.f32 %v2437, %v2438
  %v2440 = vrot.slane %v2439, 1
  %v2441 = vadd.f32 %v2439, %v2440
  %v2442 = vsel %vm2388, %v2359, 0.0
  %v2443 = vrot.slane %v2442, 4
  %v2444 = vadd.f32 %v2442, %v2443
  %v2445 = vrot.slane %v2444, 2
  %v2446 = vadd.f32 %v2444, %v2445
  %v2447 = vrot.slane %v2446, 1
  %v2448 = vadd.f32 %v2446, %v2447
  %v2449 = vsel %vm2388, %v2360, 0.0
  %v2450 = vrot.slane %v2449, 4
  %v2451 = vadd.f32 %v2449, %v2450
  %v2452 = vrot.slane %v2451, 2
  %v2453 = vadd.f32 %v2451, %v2452
  %v2454 = vrot.slane %v2453, 1
  %v2455 = vadd.f32 %v2453, %v2454
  %v2456 = vsel %vm2388, %v2361, 0.0
  %v2457 = vrot.slane %v2456, 4
  %v2458 = vadd.f32 %v2456, %v2457
  %v2459 = vrot.slane %v2458, 2
  %v2460 = vadd.f32 %v2458, %v2459
  %v2461 = vrot.slane %v2460, 1
  %v2462 = vadd.f32 %v2460, %v2461
  %v2463 = vsel %vm2388, %v2362, 0.0
  %v2464 = vrot.slane %v2463, 4
  %v2465 = vadd.f32 %v2463, %v2464
  %v2466 = vrot.slane %v2465, 2
  %v2467 = vadd.f32 %v2465, %v2466
  %v2468 = vrot.slane %v2467, 1
  %v2469 = vadd.f32 %v2467, %v2468
  %v2470 = vsel %vm2388, %v2363, 0.0
  %v2471 = vrot.slane %v2470, 4
  %v2472 = vadd.f32 %v2470, %v2471
  %v2473 = vrot.slane %v2472, 2
  %v2474 = vadd.f32 %v2472, %v2473
  %v2475 = vrot.slane %v2474, 1
  %v2476 = vadd.f32 %v2474, %v2475
  %v2477 = vsel %vm2388, %v2364, 0.0
  %v2478 = vrot.slane %v2477, 4
  %v2479 = vadd.f32 %v2477, %v2478
  %v2480 = vrot.slane %v2479, 2
  %v2481 = vadd.f32 %v2479, %v2480
  %v2482 = vrot.slane %v2481, 1
  %v2483 = vadd.f32 %v2481, %v2482
  %v2484 = vsel %vm2388, %v2365, 0.0
  %v2485 = vrot.slane %v2484, 4
  %v2486 = vadd.f32 %v2484, %v2485
  %v2487 = vrot.slane %v2486, 2
  %v2488 = vadd.f32 %v2486, %v2487
  %v2489 = vrot.slane %v2488, 1
  %v2490 = vadd.f32 %v2488, %v2489
  %v2491 = vsel %vm2388, %v2366, 0.0
  %v2492 = vrot.slane %v2491, 4
  %v2493 = vadd.f32 %v2491, %v2492
  %v2494 = vrot.slane %v2493, 2
  %v2495 = vadd.f32 %v2493, %v2494
  %v2496 = vrot.slane %v2495, 1
  %v2497 = vadd.f32 %v2495, %v2496
  %v2498 = vsel %vm2388, %v2367, 0.0
  %v2499 = vrot.slane %v2498, 4
  %v2500 = vadd.f32 %v2498, %v2499
  %v2501 = vrot.slane %v2500, 2
  %v2502 = vadd.f32 %v2500, %v2501
  %v2503 = vrot.slane %v2502, 1
  %v2504 = vadd.f32 %v2502, %v2503
  %v2505 = vsel %vm2388, %v2368, 0.0
  %v2506 = vrot.slane %v2505, 4
  %v2507 = vadd.f32 %v2505, %v2506
  %v2508 = vrot.slane %v2507, 2
  %v2509 = vadd.f32 %v2507, %v2508
  %v2510 = vrot.slane %v2509, 1
  %v2511 = vadd.f32 %v2509, %v2510
  %v2512 = vsel %vm2388, %v2369, 0.0
  %v2513 = vrot.slane %v2512, 4
  %v2514 = vadd.f32 %v2512, %v2513
  %v2515 = vrot.slane %v2514, 2
  %v2516 = vadd.f32 %v2514, %v2515
  %v2517 = vrot.slane %v2516, 1
  %v2518 = vadd.f32 %v2516, %v2517
  %v2519 = vsel %vm2388, %v2370, 0.0
  %v2520 = vrot.slane %v2519, 4
  %v2521 = vadd.f32 %v2519, %v2520
  %v2522 = vrot.slane %v2521, 2
  %v2523 = vadd.f32 %v2521, %v2522
  %v2524 = vrot.slane %v2523, 1
  %v2525 = vadd.f32 %v2523, %v2524
  %v2526 = vsel %vm2388, %v2371, 0.0
  %v2527 = vrot.slane %v2526, 4
  %v2528 = vadd.f32 %v2526, %v2527
  %v2529 = vrot.slane %v2528, 2
  %v2530 = vadd.f32 %v2528, %v2529
  %v2531 = vrot.slane %v2530, 1
  %v2532 = vadd.f32 %v2530, %v2531
  %v2533 = vsel %vm2388, %v2372, 0.0
  %v2534 = vrot.slane %v2533, 4
  %v2535 = vadd.f32 %v2533, %v2534
  %v2536 = vrot.slane %v2535, 2
  %v2537 = vadd.f32 %v2535, %v2536
  %v2538 = vrot.slane %v2537, 1
  %v2539 = vadd.f32 %v2537, %v2538
  %v2540 = vsel %vm2388, %v2373, 0.0
  %v2541 = vrot.slane %v2540, 4
  %v2542 = vadd.f32 %v2540, %v2541
  %v2543 = vrot.slane %v2542, 2
  %v2544 = vadd.f32 %v2542, %v2543
  %v2545 = vrot.slane %v2544, 1
  %v2546 = vadd.f32 %v2544, %v2545
  %v2547 = vsel %vm2388, %v2374, 0.0
  %v2548 = vrot.slane %v2547, 4
  %v2549 = vadd.f32 %v2547, %v2548
  %v2550 = vrot.slane %v2549, 2
  %v2551 = vadd.f32 %v2549, %v2550
  %v2552 = vrot.slane %v2551, 1
  %v2553 = vadd.f32 %v2551, %v2552
  %v2554 = vsel %vm2388, %v2375, 0.0
  %v2555 = vrot.slane %v2554, 4
  %v2556 = vadd.f32 %v2554, %v2555
  %v2557 = vrot.slane %v2556, 2
  %v2558 = vadd.f32 %v2556, %v2557
  %v2559 = vrot.slane %v2558, 1
  %v2560 = vadd.f32 %v2558, %v2559
  %v2561 = vsel %vm2388, %v2376, 0.0
  %v2562 = vrot.slane %v2561, 4
  %v2563 = vadd.f32 %v2561, %v2562
  %v2564 = vrot.slane %v2563, 2
  %v2565 = vadd.f32 %v2563, %v2564
  %v2566 = vrot.slane %v2565, 1
  %v2567 = vadd.f32 %v2565, %v2566
  %v2568 = vsel %vm2388, %v2377, 0.0
  %v2569 = vrot.slane %v2568, 4
  %v2570 = vadd.f32 %v2568, %v2569
  %v2571 = vrot.slane %v2570, 2
  %v2572 = vadd.f32 %v2570, %v2571
  %v2573 = vrot.slane %v2572, 1
  %v2574 = vadd.f32 %v2572, %v2573
  %v2575 = vsel %vm2388, %v2378, 0.0
  %v2576 = vrot.slane %v2575, 4
  %v2577 = vadd.f32 %v2575, %v2576
  %v2578 = vrot.slane %v2577, 2
  %v2579 = vadd.f32 %v2577, %v2578
  %v2580 = vrot.slane %v2579, 1
  %v2581 = vadd.f32 %v2579, %v2580
  %v2582 = vsel %vm2388, %v2379, 0.0
  %v2583 = vrot.slane %v2582, 4
  %v2584 = vadd.f32 %v2582, %v2583
  %v2585 = vrot.slane %v2584, 2
  %v2586 = vadd.f32 %v2584, %v2585
  %v2587 = vrot.slane %v2586, 1
  %v2588 = vadd.f32 %v2586, %v2587
  %v2589 = vsel %vm2388, %v2380, 0.0
  %v2590 = vrot.slane %v2589, 4
  %v2591 = vadd.f32 %v2589, %v2590
  %v2592 = vrot.slane %v2591, 2
  %v2593 = vadd.f32 %v2591, %v2592
  %v2594 = vrot.slane %v2593, 1
  %v2595 = vadd.f32 %v2593, %v2594
  %v2596 = vsel %vm2388, %v2381, 0.0
  %v2597 = vrot.slane %v2596, 4
  %v2598 = vadd.f32 %v2596, %v2597
  %v2599 = vrot.slane %v2598, 2
  %v2600 = vadd.f32 %v2598, %v2599
  %v2601 = vrot.slane %v2600, 1
  %v2602 = vadd.f32 %v2600, %v2601
  %v2603 = vsel %vm2388, %v2382, 0.0
  %v2604 = vrot.slane %v2603, 4
  %v2605 = vadd.f32 %v2603, %v2604
  %v2606 = vrot.slane %v2605, 2
  %v2607 = vadd.f32 %v2605, %v2606
  %v2608 = vrot.slane %v2607, 1
  %v2609 = vadd.f32 %v2607, %v2608
  %v2610 = vsel %vm2388, %v2383, 0.0
  %v2611 = vrot.slane %v2610, 4
  %v2612 = vadd.f32 %v2610, %v2611
  %v2613 = vrot.slane %v2612, 2
  %v2614 = vadd.f32 %v2612, %v2613
  %v2615 = vrot.slane %v2614, 1
  %v2616 = vadd.f32 %v2614, %v2615
  %v2617 = vsel %vm2388, %v2384, 0.0
  %v2618 = vrot.slane %v2617, 4
  %v2619 = vadd.f32 %v2617, %v2618
  %v2620 = vrot.slane %v2619, 2
  %v2621 = vadd.f32 %v2619, %v2620
  %v2622 = vrot.slane %v2621, 1
  %v2623 = vadd.f32 %v2621, %v2622
  %v2624 = vsel %vm2388, %v2385, 0.0
  %v2625 = vrot.slane %v2624, 4
  %v2626 = vadd.f32 %v2624, %v2625
  %v2627 = vrot.slane %v2626, 2
  %v2628 = vadd.f32 %v2626, %v2627
  %v2629 = vrot.slane %v2628, 1
  %v2630 = vadd.f32 %v2628, %v2629
  %v2631 = vsel %vm2388, %v2386, 0.0
  %v2632 = vrot.slane %v2631, 4
  %v2633 = vadd.f32 %v2631, %v2632
  %v2634 = vrot.slane %v2633, 2
  %v2635 = vadd.f32 %v2633, %v2634
  %v2636 = vrot.slane %v2635, 1
  %v2637 = vadd.f32 %v2635, %v2636
  %v2638 = vsel %vm2388, %v2387, 0.0
  %v2639 = vrot.slane %v2638, 4
  %v2640 = vadd.f32 %v2638, %v2639
  %v2641 = vrot.slane %v2640, 2
  %v2642 = vadd.f32 %v2640, %v2641
  %v2643 = vrot.slane %v2642, 1
  %v2644 = vadd.f32 %v2642, %v2643
  %v2645 = vsel %vm2388, %v2427, 0.0
  %v2646 = vsel %vm2388, %v2434, 0.0
  %v2647 = vadd.f32 %v2645, %v2646
  %v2648 = vsel %vm2388, %v2441, 0.0
  %v2649 = vadd.f32 %v2647, %v2648
  %v2650 = vsel %vm2388, %v2448, 0.0
  %v2651 = vadd.f32 %v2649, %v2650
  %v2652 = vsel %vm2388, %v2455, 0.0
  %v2653 = vadd.f32 %v2651, %v2652
  %v2654 = vsel %vm2388, %v2462, 0.0
  %v2655 = vadd.f32 %v2653, %v2654
  %v2656 = vsel %vm2388, %v2469, 0.0
  %v2657 = vadd.f32 %v2655, %v2656
  %v2658 = vsel %vm2388, %v2476, 0.0
  %v2659 = vadd.f32 %v2657, %v2658
  %v2660 = vsel %vm2388, %v2483, 0.0
  %v2661 = vsel %vm2388, %v2490, 0.0
  %v2662 = vadd.f32 %v2660, %v2661
  %v2663 = vsel %vm2388, %v2497, 0.0
  %v2664 = vadd.f32 %v2662, %v2663
  %v2665 = vsel %vm2388, %v2504, 0.0
  %v2666 = vadd.f32 %v2664, %v2665
  %v2667 = vsel %vm2388, %v2511, 0.0
  %v2668 = vadd.f32 %v2666, %v2667
  %v2669 = vsel %vm2388, %v2518, 0.0
  %v2670 = vadd.f32 %v2668, %v2669
  %v2671 = vsel %vm2388, %v2525, 0.0
  %v2672 = vadd.f32 %v2670, %v2671
  %v2673 = vsel %vm2388, %v2532, 0.0
  %v2674 = vadd.f32 %v2672, %v2673
  %v2675 = vsel %vm2388, %v2539, 0.0
  %v2676 = vsel %vm2388, %v2546, 0.0
  %v2677 = vadd.f32 %v2675, %v2676
  %v2678 = vsel %vm2388, %v2553, 0.0
  %v2679 = vadd.f32 %v2677, %v2678
  %v2680 = vsel %vm2388, %v2560, 0.0
  %v2681 = vadd.f32 %v2679, %v2680
  %v2682 = vsel %vm2388, %v2567, 0.0
  %v2683 = vadd.f32 %v2681, %v2682
  %v2684 = vsel %vm2388, %v2574, 0.0
  %v2685 = vadd.f32 %v2683, %v2684
  %v2686 = vsel %vm2388, %v2581, 0.0
  %v2687 = vadd.f32 %v2685, %v2686
  %v2688 = vsel %vm2388, %v2588, 0.0
  %v2689 = vadd.f32 %v2687, %v2688
  %v2690 = vsel %vm2388, %v2595, 0.0
  %v2691 = vsel %vm2388, %v2602, 0.0
  %v2692 = vadd.f32 %v2690, %v2691
  %v2693 = vsel %vm2388, %v2609, 0.0
  %v2694 = vadd.f32 %v2692, %v2693
  %v2695 = vsel %vm2388, %v2616, 0.0
  %v2696 = vadd.f32 %v2694, %v2695
  %v2697 = vsel %vm2388, %v2623, 0.0
  %v2698 = vadd.f32 %v2696, %v2697
  %v2699 = vsel %vm2388, %v2630, 0.0
  %v2700 = vadd.f32 %v2698, %v2699
  %v2701 = vsel %vm2388, %v2637, 0.0
  %v2702 = vadd.f32 %v2700, %v2701
  %v2703 = vsel %vm2388, %v2644, 0.0
  %v2704 = vadd.f32 %v2702, %v2703
  %v2705 = vsel %vm2388, %v2659, 0.0
  %v2706 = vsel %vm2388, %v2674, 0.0
  %v2707 = vadd.f32 %v2705, %v2706
  %v2708 = vsel %vm2388, %v2689, 0.0
  %v2709 = vadd.f32 %v2707, %v2708
  %v2710 = vsel %vm2388, %v2704, 0.0
  %v2711 = vadd.f32 %v2709, %v2710
  %v2712 = vmul.f32 %v2356, %v2356
  %v2713 = vmul.f32 %v2357, %v2357
  %v2714 = vmul.f32 %v2358, %v2358
  %v2715 = vmul.f32 %v2359, %v2359
  %v2716 = vmul.f32 %v2360, %v2360
  %v2717 = vmul.f32 %v2361, %v2361
  %v2718 = vmul.f32 %v2362, %v2362
  %v2719 = vmul.f32 %v2363, %v2363
  %v2720 = vmul.f32 %v2364, %v2364
  %v2721 = vmul.f32 %v2365, %v2365
  %v2722 = vmul.f32 %v2366, %v2366
  %v2723 = vmul.f32 %v2367, %v2367
  %v2724 = vmul.f32 %v2368, %v2368
  %v2725 = vmul.f32 %v2369, %v2369
  %v2726 = vmul.f32 %v2370, %v2370
  %v2727 = vmul.f32 %v2371, %v2371
  %v2728 = vmul.f32 %v2372, %v2372
  %v2729 = vmul.f32 %v2373, %v2373
  %v2730 = vmul.f32 %v2374, %v2374
  %v2731 = vmul.f32 %v2375, %v2375
  %v2732 = vmul.f32 %v2376, %v2376
  %v2733 = vmul.f32 %v2377, %v2377
  %v2734 = vmul.f32 %v2378, %v2378
  %v2735 = vmul.f32 %v2379, %v2379
  %v2736 = vmul.f32 %v2380, %v2380
  %v2737 = vmul.f32 %v2381, %v2381
  %v2738 = vmul.f32 %v2382, %v2382
  %v2739 = vmul.f32 %v2383, %v2383
  %v2740 = vmul.f32 %v2384, %v2384
  %v2741 = vmul.f32 %v2385, %v2385
  %v2742 = vmul.f32 %v2386, %v2386
  %v2743 = vmul.f32 %v2387, %v2387
  %v2744 = vsel %vm2388, %v2712, 0.0
  %v2745 = vrot.slane %v2744, 4
  %v2746 = vadd.f32 %v2744, %v2745
  %v2747 = vrot.slane %v2746, 2
  %v2748 = vadd.f32 %v2746, %v2747
  %v2749 = vrot.slane %v2748, 1
  %v2750 = vadd.f32 %v2748, %v2749
  %v2751 = vsel %vm2388, %v2713, 0.0
  %v2752 = vrot.slane %v2751, 4
  %v2753 = vadd.f32 %v2751, %v2752
  %v2754 = vrot.slane %v2753, 2
  %v2755 = vadd.f32 %v2753, %v2754
  %v2756 = vrot.slane %v2755, 1
  %v2757 = vadd.f32 %v2755, %v2756
  %v2758 = vsel %vm2388, %v2714, 0.0
  %v2759 = vrot.slane %v2758, 4
  %v2760 = vadd.f32 %v2758, %v2759
  %v2761 = vrot.slane %v2760, 2
  %v2762 = vadd.f32 %v2760, %v2761
  %v2763 = vrot.slane %v2762, 1
  %v2764 = vadd.f32 %v2762, %v2763
  %v2765 = vsel %vm2388, %v2715, 0.0
  %v2766 = vrot.slane %v2765, 4
  %v2767 = vadd.f32 %v2765, %v2766
  %v2768 = vrot.slane %v2767, 2
  %v2769 = vadd.f32 %v2767, %v2768
  %v2770 = vrot.slane %v2769, 1
  %v2771 = vadd.f32 %v2769, %v2770
  %v2772 = vsel %vm2388, %v2716, 0.0
  %v2773 = vrot.slane %v2772, 4
  %v2774 = vadd.f32 %v2772, %v2773
  %v2775 = vrot.slane %v2774, 2
  %v2776 = vadd.f32 %v2774, %v2775
  %v2777 = vrot.slane %v2776, 1
  %v2778 = vadd.f32 %v2776, %v2777
  %v2779 = vsel %vm2388, %v2717, 0.0
  %v2780 = vrot.slane %v2779, 4
  %v2781 = vadd.f32 %v2779, %v2780
  %v2782 = vrot.slane %v2781, 2
  %v2783 = vadd.f32 %v2781, %v2782
  %v2784 = vrot.slane %v2783, 1
  %v2785 = vadd.f32 %v2783, %v2784
  %v2786 = vsel %vm2388, %v2718, 0.0
  %v2787 = vrot.slane %v2786, 4
  %v2788 = vadd.f32 %v2786, %v2787
  %v2789 = vrot.slane %v2788, 2
  %v2790 = vadd.f32 %v2788, %v2789
  %v2791 = vrot.slane %v2790, 1
  %v2792 = vadd.f32 %v2790, %v2791
  %v2793 = vsel %vm2388, %v2719, 0.0
  %v2794 = vrot.slane %v2793, 4
  %v2795 = vadd.f32 %v2793, %v2794
  %v2796 = vrot.slane %v2795, 2
  %v2797 = vadd.f32 %v2795, %v2796
  %v2798 = vrot.slane %v2797, 1
  %v2799 = vadd.f32 %v2797, %v2798
  %v2800 = vsel %vm2388, %v2720, 0.0
  %v2801 = vrot.slane %v2800, 4
  %v2802 = vadd.f32 %v2800, %v2801
  %v2803 = vrot.slane %v2802, 2
  %v2804 = vadd.f32 %v2802, %v2803
  %v2805 = vrot.slane %v2804, 1
  %v2806 = vadd.f32 %v2804, %v2805
  %v2807 = vsel %vm2388, %v2721, 0.0
  %v2808 = vrot.slane %v2807, 4
  %v2809 = vadd.f32 %v2807, %v2808
  %v2810 = vrot.slane %v2809, 2
  %v2811 = vadd.f32 %v2809, %v2810
  %v2812 = vrot.slane %v2811, 1
  %v2813 = vadd.f32 %v2811, %v2812
  %v2814 = vsel %vm2388, %v2722, 0.0
  %v2815 = vrot.slane %v2814, 4
  %v2816 = vadd.f32 %v2814, %v2815
  %v2817 = vrot.slane %v2816, 2
  %v2818 = vadd.f32 %v2816, %v2817
  %v2819 = vrot.slane %v2818, 1
  %v2820 = vadd.f32 %v2818, %v2819
  %v2821 = vsel %vm2388, %v2723, 0.0
  %v2822 = vrot.slane %v2821, 4
  %v2823 = vadd.f32 %v2821, %v2822
  %v2824 = vrot.slane %v2823, 2
  %v2825 = vadd.f32 %v2823, %v2824
  %v2826 = vrot.slane %v2825, 1
  %v2827 = vadd.f32 %v2825, %v2826
  %v2828 = vsel %vm2388, %v2724, 0.0
  %v2829 = vrot.slane %v2828, 4
  %v2830 = vadd.f32 %v2828, %v2829
  %v2831 = vrot.slane %v2830, 2
  %v2832 = vadd.f32 %v2830, %v2831
  %v2833 = vrot.slane %v2832, 1
  %v2834 = vadd.f32 %v2832, %v2833
  %v2835 = vsel %vm2388, %v2725, 0.0
  %v2836 = vrot.slane %v2835, 4
  %v2837 = vadd.f32 %v2835, %v2836
  %v2838 = vrot.slane %v2837, 2
  %v2839 = vadd.f32 %v2837, %v2838
  %v2840 = vrot.slane %v2839, 1
  %v2841 = vadd.f32 %v2839, %v2840
  %v2842 = vsel %vm2388, %v2726, 0.0
  %v2843 = vrot.slane %v2842, 4
  %v2844 = vadd.f32 %v2842, %v2843
  %v2845 = vrot.slane %v2844, 2
  %v2846 = vadd.f32 %v2844, %v2845
  %v2847 = vrot.slane %v2846, 1
  %v2848 = vadd.f32 %v2846, %v2847
  %v2849 = vsel %vm2388, %v2727, 0.0
  %v2850 = vrot.slane %v2849, 4
  %v2851 = vadd.f32 %v2849, %v2850
  %v2852 = vrot.slane %v2851, 2
  %v2853 = vadd.f32 %v2851, %v2852
  %v2854 = vrot.slane %v2853, 1
  %v2855 = vadd.f32 %v2853, %v2854
  %v2856 = vsel %vm2388, %v2728, 0.0
  %v2857 = vrot.slane %v2856, 4
  %v2858 = vadd.f32 %v2856, %v2857
  %v2859 = vrot.slane %v2858, 2
  %v2860 = vadd.f32 %v2858, %v2859
  %v2861 = vrot.slane %v2860, 1
  %v2862 = vadd.f32 %v2860, %v2861
  %v2863 = vsel %vm2388, %v2729, 0.0
  %v2864 = vrot.slane %v2863, 4
  %v2865 = vadd.f32 %v2863, %v2864
  %v2866 = vrot.slane %v2865, 2
  %v2867 = vadd.f32 %v2865, %v2866
  %v2868 = vrot.slane %v2867, 1
  %v2869 = vadd.f32 %v2867, %v2868
  %v2870 = vsel %vm2388, %v2730, 0.0
  %v2871 = vrot.slane %v2870, 4
  %v2872 = vadd.f32 %v2870, %v2871
  %v2873 = vrot.slane %v2872, 2
  %v2874 = vadd.f32 %v2872, %v2873
  %v2875 = vrot.slane %v2874, 1
  %v2876 = vadd.f32 %v2874, %v2875
  %v2877 = vsel %vm2388, %v2731, 0.0
  %v2878 = vrot.slane %v2877, 4
  %v2879 = vadd.f32 %v2877, %v2878
  %v2880 = vrot.slane %v2879, 2
  %v2881 = vadd.f32 %v2879, %v2880
  %v2882 = vrot.slane %v2881, 1
  %v2883 = vadd.f32 %v2881, %v2882
  %v2884 = vsel %vm2388, %v2732, 0.0
  %v2885 = vrot.slane %v2884, 4
  %v2886 = vadd.f32 %v2884, %v2885
  %v2887 = vrot.slane %v2886, 2
  %v2888 = vadd.f32 %v2886, %v2887
  %v2889 = vrot.slane %v2888, 1
  %v2890 = vadd.f32 %v2888, %v2889
  %v2891 = vsel %vm2388, %v2733, 0.0
  %v2892 = vrot.slane %v2891, 4
  %v2893 = vadd.f32 %v2891, %v2892
  %v2894 = vrot.slane %v2893, 2
  %v2895 = vadd.f32 %v2893, %v2894
  %v2896 = vrot.slane %v2895, 1
  %v2897 = vadd.f32 %v2895, %v2896
  %v2898 = vsel %vm2388, %v2734, 0.0
  %v2899 = vrot.slane %v2898, 4
  %v2900 = vadd.f32 %v2898, %v2899
  %v2901 = vrot.slane %v2900, 2
  %v2902 = vadd.f32 %v2900, %v2901
  %v2903 = vrot.slane %v2902, 1
  %v2904 = vadd.f32 %v2902, %v2903
  %v2905 = vsel %vm2388, %v2735, 0.0
  %v2906 = vrot.slane %v2905, 4
  %v2907 = vadd.f32 %v2905, %v2906
  %v2908 = vrot.slane %v2907, 2
  %v2909 = vadd.f32 %v2907, %v2908
  %v2910 = vrot.slane %v2909, 1
  %v2911 = vadd.f32 %v2909, %v2910
  %v2912 = vsel %vm2388, %v2736, 0.0
  %v2913 = vrot.slane %v2912, 4
  %v2914 = vadd.f32 %v2912, %v2913
  %v2915 = vrot.slane %v2914, 2
  %v2916 = vadd.f32 %v2914, %v2915
  %v2917 = vrot.slane %v2916, 1
  %v2918 = vadd.f32 %v2916, %v2917
  %v2919 = vsel %vm2388, %v2737, 0.0
  %v2920 = vrot.slane %v2919, 4
  %v2921 = vadd.f32 %v2919, %v2920
  %v2922 = vrot.slane %v2921, 2
  %v2923 = vadd.f32 %v2921, %v2922
  %v2924 = vrot.slane %v2923, 1
  %v2925 = vadd.f32 %v2923, %v2924
  %v2926 = vsel %vm2388, %v2738, 0.0
  %v2927 = vrot.slane %v2926, 4
  %v2928 = vadd.f32 %v2926, %v2927
  %v2929 = vrot.slane %v2928, 2
  %v2930 = vadd.f32 %v2928, %v2929
  %v2931 = vrot.slane %v2930, 1
  %v2932 = vadd.f32 %v2930, %v2931
  %v2933 = vsel %vm2388, %v2739, 0.0
  %v2934 = vrot.slane %v2933, 4
  %v2935 = vadd.f32 %v2933, %v2934
  %v2936 = vrot.slane %v2935, 2
  %v2937 = vadd.f32 %v2935, %v2936
  %v2938 = vrot.slane %v2937, 1
  %v2939 = vadd.f32 %v2937, %v2938
  %v2940 = vsel %vm2388, %v2740, 0.0
  %v2941 = vrot.slane %v2940, 4
  %v2942 = vadd.f32 %v2940, %v2941
  %v2943 = vrot.slane %v2942, 2
  %v2944 = vadd.f32 %v2942, %v2943
  %v2945 = vrot.slane %v2944, 1
  %v2946 = vadd.f32 %v2944, %v2945
  %v2947 = vsel %vm2388, %v2741, 0.0
  %v2948 = vrot.slane %v2947, 4
  %v2949 = vadd.f32 %v2947, %v2948
  %v2950 = vrot.slane %v2949, 2
  %v2951 = vadd.f32 %v2949, %v2950
  %v2952 = vrot.slane %v2951, 1
  %v2953 = vadd.f32 %v2951, %v2952
  %v2954 = vsel %vm2388, %v2742, 0.0
  %v2955 = vrot.slane %v2954, 4
  %v2956 = vadd.f32 %v2954, %v2955
  %v2957 = vrot.slane %v2956, 2
  %v2958 = vadd.f32 %v2956, %v2957
  %v2959 = vrot.slane %v2958, 1
  %v2960 = vadd.f32 %v2958, %v2959
  %v2961 = vsel %vm2388, %v2743, 0.0
  %v2962 = vrot.slane %v2961, 4
  %v2963 = vadd.f32 %v2961, %v2962
  %v2964 = vrot.slane %v2963, 2
  %v2965 = vadd.f32 %v2963, %v2964
  %v2966 = vrot.slane %v2965, 1
  %v2967 = vadd.f32 %v2965, %v2966
  %v2968 = vsel %vm2388, %v2750, 0.0
  %v2969 = vsel %vm2388, %v2757, 0.0
  %v2970 = vadd.f32 %v2968, %v2969
  %v2971 = vsel %vm2388, %v2764, 0.0
  %v2972 = vadd.f32 %v2970, %v2971
  %v2973 = vsel %vm2388, %v2771, 0.0
  %v2974 = vadd.f32 %v2972, %v2973
  %v2975 = vsel %vm2388, %v2778, 0.0
  %v2976 = vadd.f32 %v2974, %v2975
  %v2977 = vsel %vm2388, %v2785, 0.0
  %v2978 = vadd.f32 %v2976, %v2977
  %v2979 = vsel %vm2388, %v2792, 0.0
  %v2980 = vadd.f32 %v2978, %v2979
  %v2981 = vsel %vm2388, %v2799, 0.0
  %v2982 = vadd.f32 %v2980, %v2981
  %v2983 = vsel %vm2388, %v2806, 0.0
  %v2984 = vsel %vm2388, %v2813, 0.0
  %v2985 = vadd.f32 %v2983, %v2984
  %v2986 = vsel %vm2388, %v2820, 0.0
  %v2987 = vadd.f32 %v2985, %v2986
  %v2988 = vsel %vm2388, %v2827, 0.0
  %v2989 = vadd.f32 %v2987, %v2988
  %v2990 = vsel %vm2388, %v2834, 0.0
  %v2991 = vadd.f32 %v2989, %v2990
  %v2992 = vsel %vm2388, %v2841, 0.0
  %v2993 = vadd.f32 %v2991, %v2992
  %v2994 = vsel %vm2388, %v2848, 0.0
  %v2995 = vadd.f32 %v2993, %v2994
  %v2996 = vsel %vm2388, %v2855, 0.0
  %v2997 = vadd.f32 %v2995, %v2996
  %v2998 = vsel %vm2388, %v2862, 0.0
  %v2999 = vsel %vm2388, %v2869, 0.0
  %v3000 = vadd.f32 %v2998, %v2999
  %v3001 = vsel %vm2388, %v2876, 0.0
  %v3002 = vadd.f32 %v3000, %v3001
  %v3003 = vsel %vm2388, %v2883, 0.0
  %v3004 = vadd.f32 %v3002, %v3003
  %v3005 = vsel %vm2388, %v2890, 0.0
  %v3006 = vadd.f32 %v3004, %v3005
  %v3007 = vsel %vm2388, %v2897, 0.0
  %v3008 = vadd.f32 %v3006, %v3007
  %v3009 = vsel %vm2388, %v2904, 0.0
  %v3010 = vadd.f32 %v3008, %v3009
  %v3011 = vsel %vm2388, %v2911, 0.0
  %v3012 = vadd.f32 %v3010, %v3011
  %v3013 = vsel %vm2388, %v2918, 0.0
  %v3014 = vsel %vm2388, %v2925, 0.0
  %v3015 = vadd.f32 %v3013, %v3014
  %v3016 = vsel %vm2388, %v2932, 0.0
  %v3017 = vadd.f32 %v3015, %v3016
  %v3018 = vsel %vm2388, %v2939, 0.0
  %v3019 = vadd.f32 %v3017, %v3018
  %v3020 = vsel %vm2388, %v2946, 0.0
  %v3021 = vadd.f32 %v3019, %v3020
  %v3022 = vsel %vm2388, %v2953, 0.0
  %v3023 = vadd.f32 %v3021, %v3022
  %v3024 = vsel %vm2388, %v2960, 0.0
  %v3025 = vadd.f32 %v3023, %v3024
  %v3026 = vsel %vm2388, %v2967, 0.0
  %v3027 = vadd.f32 %v3025, %v3026
  %v3028 = vsel %vm2388, %v2982, 0.0
  %v3029 = vsel %vm2388, %v2997, 0.0
  %v3030 = vadd.f32 %v3028, %v3029
  %v3031 = vsel %vm2388, %v3012, 0.0
  %v3032 = vadd.f32 %v3030, %v3031
  %v3033 = vsel %vm2388, %v3027, 0.0
  %v3034 = vadd.f32 %v3032, %v3033
  %vm3035 = vcmask 57344
  %3036 = vst.msk [vmem:[%s7] sm:$0x1] %vm3035, %v2711
  %3037 = vst.msk [vmem:[%s8] sm:$0x1] %vm3035, %v3034
  // Predicated region
  $region26: #{snn_stage_block.7} parent=0 // pred_check
    _
  $region27: #{snn_stage_block.7} parent=0 // pred_check_branch
    %3039 = sbr.rel (0) target = $region29
  $region28: #{snn_stage_block.7} parent=0 // pred_region
    _
  $region29: #{snn_stage_block.7} parent=0 // pred_fallthru
    _
  // Predicated region
  $region30: #{snn_stage_block.7} parent=0 // pred_check
    _
  $region31: #{snn_stage_block.7} parent=0 // pred_check_branch
    %3041 = sbr.rel (0) target = $region33
  $region32: #{snn_stage_block.7} parent=0 // pred_region
    _
  $region33: #{snn_stage_block.7} parent=0 // pred_fallthru
    _
  // Predicated region
  $region34: #{snn_stage_block.7} parent=0 // pred_check
    _
  $region35: #{snn_stage_block.7} parent=0 // pred_check_branch
    %3043 = sbr.rel (0) target = $region37
  $region36: #{snn_stage_block.7} parent=0 // pred_region
    _
  $region37: #{snn_stage_block.7} parent=0 // pred_fallthru
    _
  // Predicated region
  $region38: #{snn_stage_block.7} parent=0 // pred_check
    _
  $region39: #{snn_stage_block.7} parent=0 // pred_check_branch
    %3045 = sbr.rel (0) target = $region41
  $region40: #{snn_stage_block.7} parent=0 // pred_region
    _
  $region41: #{snn_stage_block.7} parent=0 // pred_fallthru
    _
  // Predicated region
  $region42: #{snn_stage_block.7} parent=0 // pred_check
    _
  $region43: #{snn_stage_block.7} parent=0 // pred_check_branch
    %3047 = sbr.rel (0) target = $region45
  $region44: #{snn_stage_block.7} parent=0 // pred_region
    _
  $region45: #{snn_stage_block.7} parent=0 // pred_fallthru
    _
  // Predicated region
  $region46: #{snn_stage_block.7} parent=0 // pred_check
    _
  $region47: #{snn_stage_block.7} parent=0 // pred_check_branch
    %3049 = sbr.rel (0) target = $region49
  $region48: #{snn_stage_block.7} parent=0 // pred_region
    _
  $region49: #{snn_stage_block.7} parent=0 // pred_fallthru
    _

// kernel: snn_stage_block.11
$region0: #{snn_stage_block.11}
  #allocation0 [shape = 'u32[]', space=smem, size = 0x4, offset = 0x4, fixed_abs, tag = 'smem constant byte address 0x4 - core index']
  #allocation1 [shape = 'u32[144,128]{1,0:T(1,128)}', space=vmem, size = 0x12000, scoped, tag = 'internal scratch']
  %s0 = inlined_call_operand.vmem [shape: f32[2,128,8], index: 0, kind: input, shape index: {}]
  %s1 = inlined_call_operand.vmem [shape: f32[2,128,8], index: 1, kind: input, shape index: {}]
  %s2 = inlined_call_operand.vmem [shape: f32[2,128,8], index: 2, kind: input, shape index: {}]
  %s3 = inlined_call_operand.vmem [shape: bf16[8,8], index: 3, kind: input, shape index: {}]
  %s4 = inlined_call_operand.vmem [shape: bf16[8,8], index: 4, kind: input, shape index: {}]
  %s5 = inlined_call_operand.vmem [shape: bf16[8,8], index: 5, kind: input, shape index: {}]
  %s6 = inlined_call_operand.vmem [shape: f32[1,8], index: 6, kind: input, shape index: {}]
  %s7 = inlined_call_operand.vmem [shape: bf16[8,8], index: 7, kind: input, shape index: {}]
  %s8 = inlined_call_operand.vmem [shape: f32[1,8], index: 8, kind: input, shape index: {}]
  %s9 = inlined_call_operand.vmem [shape: bf16[8,8], index: 9, kind: input, shape index: {}]
  %s10 = inlined_call_operand.vmem [shape: f32[1,8], index: 10, kind: input, shape index: {}]
  %s11 = inlined_call_operand.vmem [shape: f32[2,128,8], index: 11, kind: output, shape index: {0}]
  %s12 = inlined_call_operand.hbm [shape: f32[1,1,8], index: 12, kind: output, shape index: {1}]
  %13 = xla_tuple %s11, %s12
  %s14 = sld [smem:[#allocation0]]
  $region62: #{snn_stage_block.11} parent=0
    _
  %s16 = ssub.s32 1, %s14
  %s17 = scalar_select 0, %s16, %s14
  $region1: #{snn_stage_block.11} parent=0
    #allocation2 [shape = 'u8[512]{0}', space=vmem, size = 0x400, scoped, tag = 'output window, operand 1, single buffered']
    #allocation3 [shape = 's32[1]{0}', space=sflag, size = 0x4, scoped, tag = 'scoped memory for snn_stage_block.11']
    %18 = vsyncpa [#allocation3], 0
    // Predicated region
    $region2: #{snn_stage_block.11} parent=1 // pred_check
      _
    $region3: #{snn_stage_block.11} parent=1 // pred_check_branch
      %20 = sbr.rel (0) target = $region5
    $region4: #{snn_stage_block.11} parent=1 // pred_region
      _
    $region5: #{snn_stage_block.11} parent=1 // pred_fallthru
      _
    // Predicated region
    $region6: #{snn_stage_block.11} parent=1 // pred_check
      _
    $region7: #{snn_stage_block.11} parent=1 // pred_check_branch
      %22 = sbr.rel (0) target = $region9
    $region8: #{snn_stage_block.11} parent=1 // pred_region
      _
    $region9: #{snn_stage_block.11} parent=1 // pred_fallthru
      _
    // Predicated region
    $region10: #{snn_stage_block.11} parent=1 // pred_check
      _
    $region11: #{snn_stage_block.11} parent=1 // pred_check_branch
      %24 = sbr.rel (0) target = $region13
    $region12: #{snn_stage_block.11} parent=1 // pred_region
      _
    $region13: #{snn_stage_block.11} parent=1 // pred_fallthru
      _
    // Predicated region
    $region14: #{snn_stage_block.11} parent=1 // pred_check
      _
    $region15: #{snn_stage_block.11} parent=1 // pred_check_branch
      %26 = sbr.rel (0) target = $region17
    $region16: #{snn_stage_block.11} parent=1 // pred_region
      _
    $region17: #{snn_stage_block.11} parent=1 // pred_fallthru
      _
    // Predicated region
    $region18: #{snn_stage_block.11} parent=1 // pred_check
      _
    $region19: #{snn_stage_block.11} parent=1 // pred_check_branch
      %28 = sbr.rel (0) target = $region21
    $region20: #{snn_stage_block.11} parent=1 // pred_region
      _
    $region21: #{snn_stage_block.11} parent=1 // pred_fallthru
      _
    // Predicated region
    $region22: #{snn_stage_block.11} parent=1 // pred_check
      _
    $region23: #{snn_stage_block.11} parent=1 // pred_check_branch
      %30 = sbr.rel (0) target = $region25
    $region24: #{snn_stage_block.11} parent=1 // pred_region
      _
    $region25: #{snn_stage_block.11} parent=1 // pred_fallthru
      _
    // Predicated region
    $region26: #{snn_stage_block.11} parent=1 // pred_check
      _
    $region27: #{snn_stage_block.11} parent=1 // pred_check_branch
      %32 = sbr.rel (0) target = $region29
    $region28: #{snn_stage_block.11} parent=1 // pred_region
      _
    $region29: #{snn_stage_block.11} parent=1 // pred_fallthru
      _
    // Predicated region
    $region30: #{snn_stage_block.11} parent=1 // pred_check
      _
    $region31: #{snn_stage_block.11} parent=1 // pred_check_branch
      %34 = sbr.rel (0) target = $region33
    $region32: #{snn_stage_block.11} parent=1 // pred_region
      _
    $region33: #{snn_stage_block.11} parent=1 // pred_fallthru
      _
    // Predicated region
    $region34: #{snn_stage_block.11} parent=1 // pred_check
      _
    $region35: #{snn_stage_block.11} parent=1 // pred_check_branch
      %36 = sbr.rel (0) target = $region37
    $region36: #{snn_stage_block.11} parent=1 // pred_region
      _
    $region37: #{snn_stage_block.11} parent=1 // pred_fallthru
      _
    // Predicated region
    $region38: #{snn_stage_block.11} parent=1 // pred_check
      _
    $region39: #{snn_stage_block.11} parent=1 // pred_check_branch
      %38 = sbr.rel (0) target = $region41
    $region40: #{snn_stage_block.11} parent=1 // pred_region
      _
    $region41: #{snn_stage_block.11} parent=1 // pred_fallthru
      _
    // Predicated region
    $region42: #{snn_stage_block.11} parent=1 // pred_check
      _
    $region43: #{snn_stage_block.11} parent=1 // pred_check_branch
      %40 = sbr.rel (0) target = $region45
    $region44: #{snn_stage_block.11} parent=1 // pred_region
      _
    $region45: #{snn_stage_block.11} parent=1 // pred_fallthru
      _
    %v42 = vld [vmem:[%s0] sm:$0xff]
    %v43 = vld [vmem:[%s0 + $0x8] sm:$0xff]
    %v44 = vld [vmem:[%s0 + $0x10] sm:$0xff]
    %v45 = vld [vmem:[%s0 + $0x18] sm:$0xff]
    %v46 = vld [vmem:[%s0 + $0x20] sm:$0xff]
    %v47 = vld [vmem:[%s0 + $0x28] sm:$0xff]
    %v48 = vld [vmem:[%s0 + $0x30] sm:$0xff]
    %v49 = vld [vmem:[%s0 + $0x38] sm:$0xff]
    %v50 = vld [vmem:[%s0 + $0x40] sm:$0xff]
    %v51 = vld [vmem:[%s0 + $0x48] sm:$0xff]
    %v52 = vld [vmem:[%s0 + $0x50] sm:$0xff]
    %v53 = vld [vmem:[%s0 + $0x58] sm:$0xff]
    %v54 = vld [vmem:[%s0 + $0x60] sm:$0xff]
    %v55 = vld [vmem:[%s0 + $0x68] sm:$0xff]
    %v56 = vld [vmem:[%s0 + $0x70] sm:$0xff]
    %v57 = vld [vmem:[%s0 + $0x78] sm:$0xff]
    %v58 = vpack.c.bf16 %v43, %v42
    %v59 = vpack.c.bf16 %v45, %v44
    %v60 = vpack.c.bf16 %v47, %v46
    %v61 = vpack.c.bf16 %v49, %v48
    %v62 = vpack.c.bf16 %v51, %v50
    %v63 = vpack.c.bf16 %v53, %v52
    %v64 = vpack.c.bf16 %v55, %v54
    %v65 = vpack.c.bf16 %v57, %v56
    %v66 = vld [vmem:[%s3] sm:$0xf]
    %v67 = vld [vmem:[%s1] sm:$0xff]
    %v68 = vld [vmem:[%s1 + $0x8] sm:$0xff]
    %v69 = vld [vmem:[%s1 + $0x10] sm:$0xff]
    %v70 = vld [vmem:[%s1 + $0x18] sm:$0xff]
    %v71 = vld [vmem:[%s1 + $0x20] sm:$0xff]
    %v72 = vld [vmem:[%s1 + $0x28] sm:$0xff]
    %v73 = vld [vmem:[%s1 + $0x30] sm:$0xff]
    %v74 = vld [vmem:[%s1 + $0x38] sm:$0xff]
    %v75 = vld [vmem:[%s1 + $0x40] sm:$0xff]
    %v76 = vld [vmem:[%s1 + $0x48] sm:$0xff]
    %v77 = vld [vmem:[%s1 + $0x50] sm:$0xff]
    %v78 = vld [vmem:[%s1 + $0x58] sm:$0xff]
    %v79 = vld [vmem:[%s1 + $0x60] sm:$0xff]
    %v80 = vld [vmem:[%s1 + $0x68] sm:$0xff]
    %v81 = vld [vmem:[%s1 + $0x70] sm:$0xff]
    %v82 = vld [vmem:[%s1 + $0x78] sm:$0xff]
    %v83 = vpack.c.bf16 %v68, %v67
    %v84 = vpack.c.bf16 %v70, %v69
    %v85 = vpack.c.bf16 %v72, %v71
    %v86 = vpack.c.bf16 %v74, %v73
    %v87 = vpack.c.bf16 %v76, %v75
    %v88 = vpack.c.bf16 %v78, %v77
    %v89 = vpack.c.bf16 %v80, %v79
    %v90 = vpack.c.bf16 %v82, %v81
    %v91 = vld [vmem:[%s4] sm:$0xf]
    %vm92 = vcmask 64512
    %v94 = vsel %vm92, %v83, 0
    %v97 = vsel %vm92, %v84, 0
    %v100 = vsel %vm92, %v85, 0
    %v103 = vsel %vm92, %v86, 0
    %v106 = vsel %vm92, %v87, 0
    %v109 = vsel %vm92, %v88, 0
    %v112 = vsel %vm92, %v89, 0
    %v115 = vsel %vm92, %v90, 0
    %vm117 = vcmask 1043456
    %v119 = vsel %vm117, %v91, 0
    %121 = vmatprep.subr.bf16.mxu0 0
    %122 = vmatpush1.bf16.msra.mxu0 0
    %123 = vmatprep.subr.bf16.mxu0 0
    %124 = vmatpush1.bf16.msra.mxu0 0
    %125 = vmatprep.subr.bf16.mxu0 0
    %126 = vmatpush1.bf16.msra.mxu0 0
    %127 = vmatprep.subr.bf16.mxu0 0
    %128 = vmatpush1.bf16.msra.mxu0 0
    %129 = vmatprep.subr.bf16.mxu0 0
    %130 = vmatpush1.bf16.msra.mxu0 0
    %131 = vmatprep.subr.bf16.mxu0 0
    %132 = vmatpush1.bf16.msra.mxu0 0
    %133 = vmatprep.subr.bf16.mxu0 0
    %134 = vmatpush1.bf16.msra.mxu0 0
    %135 = vmatprep.subr.bf16.mxu0 0
    %136 = vmatpush1.bf16.msra.mxu0 %v119
    %137 = vmatprep.subr.bf16.mxu0 0
    %138 = vmatpush2.bf16.msra.mxu0 0
    %139 = vmatprep.subr.bf16.mxu0 0
    %140 = vmatpush2.bf16.msra.mxu0 0
    %141 = vmatprep.subr.bf16.mxu0 0
    %142 = vmatpush2.bf16.msra.mxu0 0
    %143 = vmatprep.subr.bf16.mxu0 0
    %144 = vmatpush2.bf16.msra.mxu0 0
    %145 = vmatprep.subr.bf16.mxu0 0
    %146 = vmatpush2.bf16.msra.mxu0 0
    %147 = vmatprep.subr.bf16.mxu0 0
    %148 = vmatpush2.bf16.msra.mxu0 0
    %149 = vmatprep.subr.bf16.mxu0 0
    %150 = vmatpush2.bf16.msra.mxu0 0
    %151 = vmatprep.subr.bf16.mxu0 0
    %152 = vmatpush2.bf16.msra.mxu0 0
    %153 = vmatprep.mubr.bf16.mxu0 0
    %154 = vmatmul.mubr.bf16.gmra.mxu0 %v94
    %v155 = vpop.f32.mrf.mxu0
    %v156 = vadd.f32 0.0, %v155
    %v157 = vpop.f32.mrf.mxu0
    %v158 = vpop.f32.mrf.mxu0
    %v159 = vadd.f32 0.0, %v158
    %v160 = vpop.f32.mrf.mxu0
    %161 = vmatprep.mubr.bf16.mxu0 0
    %162 = vmatmul.mubr.bf16.gmra.mxu0 %v97
    %v163 = vpop.f32.mrf.mxu0
    %v164 = vadd.f32 0.0, %v163
    %v165 = vpop.f32.mrf.mxu0
    %v166 = vpop.f32.mrf.mxu0
    %v167 = vadd.f32 0.0, %v166
    %v168 = vpop.f32.mrf.mxu0
    %169 = vmatprep.mubr.bf16.mxu0 0
    %170 = vmatmul.mubr.bf16.gmra.mxu0 %v100
    %v171 = vpop.f32.mrf.mxu0
    %v172 = vadd.f32 0.0, %v171
    %v173 = vpop.f32.mrf.mxu0
    %v174 = vpop.f32.mrf.mxu0
    %v175 = vadd.f32 0.0, %v174
    %v176 = vpop.f32.mrf.mxu0
    %177 = vmatprep.mubr.bf16.mxu0 0
    %178 = vmatmul.mubr.bf16.gmra.mxu0 %v103
    %v179 = vpop.f32.mrf.mxu0
    %v180 = vadd.f32 0.0, %v179
    %v181 = vpop.f32.mrf.mxu0
    %v182 = vpop.f32.mrf.mxu0
    %v183 = vadd.f32 0.0, %v182
    %v184 = vpop.f32.mrf.mxu0
    %185 = vmatprep.mubr.bf16.mxu0 0
    %186 = vmatmul.mubr.bf16.gmra.mxu0 %v106
    %v187 = vpop.f32.mrf.mxu0
    %v188 = vadd.f32 0.0, %v187
    %v189 = vpop.f32.mrf.mxu0
    %v190 = vpop.f32.mrf.mxu0
    %v191 = vadd.f32 0.0, %v190
    %v192 = vpop.f32.mrf.mxu0
    %193 = vmatprep.mubr.bf16.mxu0 0
    %194 = vmatmul.mubr.bf16.gmra.mxu0 %v109
    %v195 = vpop.f32.mrf.mxu0
    %v196 = vadd.f32 0.0, %v195
    %v197 = vpop.f32.mrf.mxu0
    %v198 = vpop.f32.mrf.mxu0
    %v199 = vadd.f32 0.0, %v198
    %v200 = vpop.f32.mrf.mxu0
    %201 = vmatprep.mubr.bf16.mxu0 0
    %202 = vmatmul.mubr.bf16.gmra.mxu0 %v112
    %v203 = vpop.f32.mrf.mxu0
    %v204 = vadd.f32 0.0, %v203
    %v205 = vpop.f32.mrf.mxu0
    %v206 = vpop.f32.mrf.mxu0
    %v207 = vadd.f32 0.0, %v206
    %v208 = vpop.f32.mrf.mxu0
    %209 = vmatprep.mubr.bf16.mxu0 0
    %210 = vmatmul.mubr.bf16.gmra.mxu0 %v115
    %v211 = vpop.f32.mrf.mxu0
    %v212 = vadd.f32 0.0, %v211
    %v213 = vpop.f32.mrf.mxu0
    %v214 = vpop.f32.mrf.mxu0
    %v215 = vadd.f32 0.0, %v214
    %v216 = vpop.f32.mrf.mxu0
    %217 = vdwg.mxu0
    %v219 = vsel %vm92, %v58, 0
    %v222 = vsel %vm92, %v59, 0
    %v225 = vsel %vm92, %v60, 0
    %v228 = vsel %vm92, %v61, 0
    %v231 = vsel %vm92, %v62, 0
    %v234 = vsel %vm92, %v63, 0
    %v237 = vsel %vm92, %v64, 0
    %v240 = vsel %vm92, %v65, 0
    %v243 = vsel %vm117, %v66, 0
    %245 = vmatprep.subr.bf16.mxu0 0
    %246 = vmatpush1.bf16.msra.mxu0 0
    %247 = vmatprep.subr.bf16.mxu0 0
    %248 = vmatpush1.bf16.msra.mxu0 0
    %249 = vmatprep.subr.bf16.mxu0 0
    %250 = vmatpush1.bf16.msra.mxu0 0
    %251 = vmatprep.subr.bf16.mxu0 0
    %252 = vmatpush1.bf16.msra.mxu0 0
    %253 = vmatprep.subr.bf16.mxu0 0
    %254 = vmatpush1.bf16.msra.mxu0 0
    %255 = vmatprep.subr.bf16.mxu0 0
    %256 = vmatpush1.bf16.msra.mxu0 0
    %257 = vmatprep.subr.bf16.mxu0 0
    %258 = vmatpush1.bf16.msra.mxu0 0
    %259 = vmatprep.subr.bf16.mxu0 0
    %260 = vmatpush1.bf16.msra.mxu0 %v243
    %261 = vmatprep.subr.bf16.mxu0 0
    %262 = vmatpush2.bf16.msra.mxu0 0
    %263 = vmatprep.subr.bf16.mxu0 0
    %264 = vmatpush2.bf16.msra.mxu0 0
    %265 = vmatprep.subr.bf16.mxu0 0
    %266 = vmatpush2.bf16.msra.mxu0 0
    %267 = vmatprep.subr.bf16.mxu0 0
    %268 = vmatpush2.bf16.msra.mxu0 0
    %269 = vmatprep.subr.bf16.mxu0 0
    %270 = vmatpush2.bf16.msra.mxu0 0
    %271 = vmatprep.subr.bf16.mxu0 0
    %272 = vmatpush2.bf16.msra.mxu0 0
    %273 = vmatprep.subr.bf16.mxu0 0
    %274 = vmatpush2.bf16.msra.mxu0 0
    %275 = vmatprep.subr.bf16.mxu0 0
    %276 = vmatpush2.bf16.msra.mxu0 0
    %277 = vmatprep.mubr.bf16.mxu0 0
    %278 = vmatmul.mubr.bf16.gmra.mxu0 %v219
    %v279 = vpop.f32.mrf.mxu0
    %v280 = vadd.f32 %v156, %v279
    %v281 = vpop.f32.mrf.mxu0
    %v282 = vpop.f32.mrf.mxu0
    %v283 = vadd.f32 %v159, %v282
    %v284 = vpop.f32.mrf.mxu0
    %285 = vmatprep.mubr.bf16.mxu0 0
    %286 = vmatmul.mubr.bf16.gmra.mxu0 %v222
    %v287 = vpop.f32.mrf.mxu0
    %v288 = vadd.f32 %v164, %v287
    %v289 = vpop.f32.mrf.mxu0
    %v290 = vpop.f32.mrf.mxu0
    %v291 = vadd.f32 %v167, %v290
    %v292 = vpop.f32.mrf.mxu0
    %293 = vmatprep.mubr.bf16.mxu0 0
    %294 = vmatmul.mubr.bf16.gmra.mxu0 %v225
    %v295 = vpop.f32.mrf.mxu0
    %v296 = vadd.f32 %v172, %v295
    %v297 = vpop.f32.mrf.mxu0
    %v298 = vpop.f32.mrf.mxu0
    %v299 = vadd.f32 %v175, %v298
    %v300 = vpop.f32.mrf.mxu0
    %301 = vmatprep.mubr.bf16.mxu0 0
    %302 = vmatmul.mubr.bf16.gmra.mxu0 %v228
    %v303 = vpop.f32.mrf.mxu0
    %v304 = vadd.f32 %v180, %v303
    %v305 = vpop.f32.mrf.mxu0
    %v306 = vpop.f32.mrf.mxu0
    %v307 = vadd.f32 %v183, %v306
    %v308 = vpop.f32.mrf.mxu0
    %309 = vmatprep.mubr.bf16.mxu0 0
    %310 = vmatmul.mubr.bf16.gmra.mxu0 %v231
    %v311 = vpop.f32.mrf.mxu0
    %v312 = vadd.f32 %v188, %v311
    %v313 = vpop.f32.mrf.mxu0
    %v314 = vpop.f32.mrf.mxu0
    %v315 = vadd.f32 %v191, %v314
    %v316 = vpop.f32.mrf.mxu0
    %317 = vmatprep.mubr.bf16.mxu0 0
    %318 = vmatmul.mubr.bf16.gmra.mxu0 %v234
    %v319 = vpop.f32.mrf.mxu0
    %v320 = vadd.f32 %v196, %v319
    %v321 = vpop.f32.mrf.mxu0
    %v322 = vpop.f32.mrf.mxu0
    %v323 = vadd.f32 %v199, %v322
    %v324 = vpop.f32.mrf.mxu0
    %325 = vmatprep.mubr.bf16.mxu0 0
    %326 = vmatmul.mubr.bf16.gmra.mxu0 %v237
    %v327 = vpop.f32.mrf.mxu0
    %v328 = vadd.f32 %v204, %v327
    %v329 = vpop.f32.mrf.mxu0
    %v330 = vpop.f32.mrf.mxu0
    %v331 = vadd.f32 %v207, %v330
    %v332 = vpop.f32.mrf.mxu0
    %333 = vmatprep.mubr.bf16.mxu0 0
    %334 = vmatmul.mubr.bf16.gmra.mxu0 %v240
    %v335 = vpop.f32.mrf.mxu0
    %v336 = vadd.f32 %v212, %v335
    %v337 = vpop.f32.mrf.mxu0
    %v338 = vpop.f32.mrf.mxu0
    %v339 = vadd.f32 %v215, %v338
    %v340 = vpop.f32.mrf.mxu0
    %341 = vdwg.mxu0
    %v342 = vld [vmem:[%s2] sm:$0xff]
    %v343 = vld [vmem:[%s2 + $0x8] sm:$0xff]
    %v344 = vld [vmem:[%s2 + $0x10] sm:$0xff]
    %v345 = vld [vmem:[%s2 + $0x18] sm:$0xff]
    %v346 = vld [vmem:[%s2 + $0x20] sm:$0xff]
    %v347 = vld [vmem:[%s2 + $0x28] sm:$0xff]
    %v348 = vld [vmem:[%s2 + $0x30] sm:$0xff]
    %v349 = vld [vmem:[%s2 + $0x38] sm:$0xff]
    %v350 = vld [vmem:[%s2 + $0x40] sm:$0xff]
    %v351 = vld [vmem:[%s2 + $0x48] sm:$0xff]
    %v352 = vld [vmem:[%s2 + $0x50] sm:$0xff]
    %v353 = vld [vmem:[%s2 + $0x58] sm:$0xff]
    %v354 = vld [vmem:[%s2 + $0x60] sm:$0xff]
    %v355 = vld [vmem:[%s2 + $0x68] sm:$0xff]
    %v356 = vld [vmem:[%s2 + $0x70] sm:$0xff]
    %v357 = vld [vmem:[%s2 + $0x78] sm:$0xff]
    %v358 = vpack.c.bf16 %v343, %v342
    %v359 = vpack.c.bf16 %v345, %v344
    %v360 = vpack.c.bf16 %v347, %v346
    %v361 = vpack.c.bf16 %v349, %v348
    %v362 = vpack.c.bf16 %v351, %v350
    %v363 = vpack.c.bf16 %v353, %v352
    %v364 = vpack.c.bf16 %v355, %v354
    %v365 = vpack.c.bf16 %v357, %v356
    %v366 = vld [vmem:[%s5] sm:$0xf]
    %v368 = vsel %vm92, %v358, 0
    %v371 = vsel %vm92, %v359, 0
    %v374 = vsel %vm92, %v360, 0
    %v377 = vsel %vm92, %v361, 0
    %v380 = vsel %vm92, %v362, 0
    %v383 = vsel %vm92, %v363, 0
    %v386 = vsel %vm92, %v364, 0
    %v389 = vsel %vm92, %v365, 0
    %v392 = vsel %vm117, %v366, 0
    %394 = vmatprep.subr.bf16.mxu0 0
    %395 = vmatpush1.bf16.msra.mxu0 0
    %396 = vmatprep.subr.bf16.mxu0 0
    %397 = vmatpush1.bf16.msra.mxu0 0
    %398 = vmatprep.subr.bf16.mxu0 0
    %399 = vmatpush1.bf16.msra.mxu0 0
    %400 = vmatprep.subr.bf16.mxu0 0
    %401 = vmatpush1.bf16.msra.mxu0 0
    %402 = vmatprep.subr.bf16.mxu0 0
    %403 = vmatpush1.bf16.msra.mxu0 0
    %404 = vmatprep.subr.bf16.mxu0 0
    %405 = vmatpush1.bf16.msra.mxu0 0
    %406 = vmatprep.subr.bf16.mxu0 0
    %407 = vmatpush1.bf16.msra.mxu0 0
    %408 = vmatprep.subr.bf16.mxu0 0
    %409 = vmatpush1.bf16.msra.mxu0 %v392
    %410 = vmatprep.subr.bf16.mxu0 0
    %411 = vmatpush2.bf16.msra.mxu0 0
    %412 = vmatprep.subr.bf16.mxu0 0
    %413 = vmatpush2.bf16.msra.mxu0 0
    %414 = vmatprep.subr.bf16.mxu0 0
    %415 = vmatpush2.bf16.msra.mxu0 0
    %416 = vmatprep.subr.bf16.mxu0 0
    %417 = vmatpush2.bf16.msra.mxu0 0
    %418 = vmatprep.subr.bf16.mxu0 0
    %419 = vmatpush2.bf16.msra.mxu0 0
    %420 = vmatprep.subr.bf16.mxu0 0
    %421 = vmatpush2.bf16.msra.mxu0 0
    %422 = vmatprep.subr.bf16.mxu0 0
    %423 = vmatpush2.bf16.msra.mxu0 0
    %424 = vmatprep.subr.bf16.mxu0 0
    %425 = vmatpush2.bf16.msra.mxu0 0
    %426 = vmatprep.mubr.bf16.mxu0 0
    %427 = vmatmul.mubr.bf16.gmra.mxu0 %v368
    %v428 = vpop.f32.mrf.mxu0
    %v429 = vadd.f32 0.0, %v428
    %v430 = vpop.f32.mrf.mxu0
    %v431 = vpop.f32.mrf.mxu0
    %v432 = vadd.f32 0.0, %v431
    %v433 = vpop.f32.mrf.mxu0
    %434 = vmatprep.mubr.bf16.mxu0 0
    %435 = vmatmul.mubr.bf16.gmra.mxu0 %v371
    %v436 = vpop.f32.mrf.mxu0
    %v437 = vadd.f32 0.0, %v436
    %v438 = vpop.f32.mrf.mxu0
    %v439 = vpop.f32.mrf.mxu0
    %v440 = vadd.f32 0.0, %v439
    %v441 = vpop.f32.mrf.mxu0
    %442 = vmatprep.mubr.bf16.mxu0 0
    %443 = vmatmul.mubr.bf16.gmra.mxu0 %v374
    %v444 = vpop.f32.mrf.mxu0
    %v445 = vadd.f32 0.0, %v444
    %v446 = vpop.f32.mrf.mxu0
    %v447 = vpop.f32.mrf.mxu0
    %v448 = vadd.f32 0.0, %v447
    %v449 = vpop.f32.mrf.mxu0
    %450 = vmatprep.mubr.bf16.mxu0 0
    %451 = vmatmul.mubr.bf16.gmra.mxu0 %v377
    %v452 = vpop.f32.mrf.mxu0
    %v453 = vadd.f32 0.0, %v452
    %v454 = vpop.f32.mrf.mxu0
    %v455 = vpop.f32.mrf.mxu0
    %v456 = vadd.f32 0.0, %v455
    %v457 = vpop.f32.mrf.mxu0
    %458 = vmatprep.mubr.bf16.mxu0 0
    %459 = vmatmul.mubr.bf16.gmra.mxu0 %v380
    %v460 = vpop.f32.mrf.mxu0
    %v461 = vadd.f32 0.0, %v460
    %v462 = vpop.f32.mrf.mxu0
    %v463 = vpop.f32.mrf.mxu0
    %v464 = vadd.f32 0.0, %v463
    %v465 = vpop.f32.mrf.mxu0
    %466 = vmatprep.mubr.bf16.mxu0 0
    %467 = vmatmul.mubr.bf16.gmra.mxu0 %v383
    %v468 = vpop.f32.mrf.mxu0
    %v469 = vadd.f32 0.0, %v468
    %v470 = vpop.f32.mrf.mxu0
    %v471 = vpop.f32.mrf.mxu0
    %v472 = vadd.f32 0.0, %v471
    %v473 = vpop.f32.mrf.mxu0
    %474 = vmatprep.mubr.bf16.mxu0 0
    %475 = vmatmul.mubr.bf16.gmra.mxu0 %v386
    %v476 = vpop.f32.mrf.mxu0
    %v477 = vadd.f32 0.0, %v476
    %v478 = vpop.f32.mrf.mxu0
    %v479 = vpop.f32.mrf.mxu0
    %v480 = vadd.f32 0.0, %v479
    %v481 = vpop.f32.mrf.mxu0
    %482 = vmatprep.mubr.bf16.mxu0 0
    %483 = vmatmul.mubr.bf16.gmra.mxu0 %v389
    %v484 = vpop.f32.mrf.mxu0
    %v485 = vadd.f32 0.0, %v484
    %v486 = vpop.f32.mrf.mxu0
    %v487 = vpop.f32.mrf.mxu0
    %v488 = vadd.f32 0.0, %v487
    %v489 = vpop.f32.mrf.mxu0
    %490 = vdwg.mxu0
    %v491 = vadd.f32 %v280, %v429
    %v492 = vadd.f32 %v283, %v432
    %v493 = vadd.f32 %v288, %v437
    %v494 = vadd.f32 %v291, %v440
    %v495 = vadd.f32 %v296, %v445
    %v496 = vadd.f32 %v299, %v448
    %v497 = vadd.f32 %v304, %v453
    %v498 = vadd.f32 %v307, %v456
    %v499 = vadd.f32 %v312, %v461
    %v500 = vadd.f32 %v315, %v464
    %v501 = vadd.f32 %v320, %v469
    %v502 = vadd.f32 %v323, %v472
    %v503 = vadd.f32 %v328, %v477
    %v504 = vadd.f32 %v331, %v480
    %v505 = vadd.f32 %v336, %v485
    %v506 = vadd.f32 %v339, %v488
    %v507 = vld [vmem:[%s6] sm:$0x1]
    %v509 = vlaneseq
    %v510 = vshrl.u32 %v509, 7
    %v511 = vsub.s32 0, %v510
    %v512 = vrot.slane %v507, %v511
    %v514 = vadd.f32 %v491, %v512
    %v515 = vadd.f32 %v492, %v512
    %v516 = vadd.f32 %v493, %v512
    %v517 = vadd.f32 %v494, %v512
    %v518 = vadd.f32 %v495, %v512
    %v519 = vadd.f32 %v496, %v512
    %v520 = vadd.f32 %v497, %v512
    %v521 = vadd.f32 %v498, %v512
    %v522 = vadd.f32 %v499, %v512
    %v523 = vadd.f32 %v500, %v512
    %v524 = vadd.f32 %v501, %v512
    %v525 = vadd.f32 %v502, %v512
    %v526 = vadd.f32 %v503, %v512
    %v527 = vadd.f32 %v504, %v512
    %v528 = vadd.f32 %v505, %v512
    %v529 = vadd.f32 %v506, %v512
    %v530 = vpack.c.bf16 %v515, %v514
    %v531 = vpack.c.bf16 %v517, %v516
    %v532 = vpack.c.bf16 %v519, %v518
    %v533 = vpack.c.bf16 %v521, %v520
    %v534 = vpack.c.bf16 %v523, %v522
    %v535 = vpack.c.bf16 %v525, %v524
    %v536 = vpack.c.bf16 %v527, %v526
    %v537 = vpack.c.bf16 %v529, %v528
    %v538 = vld [vmem:[%s7] sm:$0xf]
    %v539 = vld [vmem:[%s8] sm:$0x1]
    %v541 = vlaneseq
    %v542 = vshrl.u32 %v541, 7
    %v543 = vsub.s32 0, %v542
    %v544 = vrot.slane %v539, %v543
    %v547 = vsel %vm92, %v530, 0
    %v550 = vsel %vm92, %v531, 0
    %v553 = vsel %vm92, %v532, 0
    %v556 = vsel %vm92, %v533, 0
    %v559 = vsel %vm92, %v534, 0
    %v562 = vsel %vm92, %v535, 0
    %v565 = vsel %vm92, %v536, 0
    %v568 = vsel %vm92, %v537, 0
    %v571 = vsel %vm117, %v538, 0
    %573 = vmatprep.subr.bf16.mxu0 0
    %574 = vmatpush1.bf16.msra.mxu0 0
    %575 = vmatprep.subr.bf16.mxu0 0
    %576 = vmatpush1.bf16.msra.mxu0 0
    %577 = vmatprep.subr.bf16.mxu0 0
    %578 = vmatpush1.bf16.msra.mxu0 0
    %579 = vmatprep.subr.bf16.mxu0 0
    %580 = vmatpush1.bf16.msra.mxu0 0
    %581 = vmatprep.subr.bf16.mxu0 0
    %582 = vmatpush1.bf16.msra.mxu0 0
    %583 = vmatprep.subr.bf16.mxu0 0
    %584 = vmatpush1.bf16.msra.mxu0 0
    %585 = vmatprep.subr.bf16.mxu0 0
    %586 = vmatpush1.bf16.msra.mxu0 0
    %587 = vmatprep.subr.bf16.mxu0 0
    %588 = vmatpush1.bf16.msra.mxu0 %v571
    %589 = vmatprep.subr.bf16.mxu0 0
    %590 = vmatpush2.bf16.msra.mxu0 0
    %591 = vmatprep.subr.bf16.mxu0 0
    %592 = vmatpush2.bf16.msra.mxu0 0
    %593 = vmatprep.subr.bf16.mxu0 0
    %594 = vmatpush2.bf16.msra.mxu0 0
    %595 = vmatprep.subr.bf16.mxu0 0
    %596 = vmatpush2.bf16.msra.mxu0 0
    %597 = vmatprep.subr.bf16.mxu0 0
    %598 = vmatpush2.bf16.msra.mxu0 0
    %599 = vmatprep.subr.bf16.mxu0 0
    %600 = vmatpush2.bf16.msra.mxu0 0
    %601 = vmatprep.subr.bf16.mxu0 0
    %602 = vmatpush2.bf16.msra.mxu0 0
    %603 = vmatprep.subr.bf16.mxu0 0
    %604 = vmatpush2.bf16.msra.mxu0 0
    %605 = vmatprep.mubr.bf16.mxu0 0
    %606 = vmatmul.mubr.bf16.gmra.mxu0 %v547
    %v607 = vpop.f32.mrf.mxu0
    %v608 = vadd.f32 %v544, %v607
    %v609 = vpop.f32.mrf.mxu0
    %v610 = vpop.f32.mrf.mxu0
    %v611 = vadd.f32 %v544, %v610
    %v612 = vpop.f32.mrf.mxu0
    %613 = vmatprep.mubr.bf16.mxu0 0
    %614 = vmatmul.mubr.bf16.gmra.mxu0 %v550
    %v615 = vpop.f32.mrf.mxu0
    %v616 = vadd.f32 %v544, %v615
    %v617 = vpop.f32.mrf.mxu0
    %v618 = vpop.f32.mrf.mxu0
    %v619 = vadd.f32 %v544, %v618
    %v620 = vpop.f32.mrf.mxu0
    %621 = vmatprep.mubr.bf16.mxu0 0
    %622 = vmatmul.mubr.bf16.gmra.mxu0 %v553
    %v623 = vpop.f32.mrf.mxu0
    %v624 = vadd.f32 %v544, %v623
    %v625 = vpop.f32.mrf.mxu0
    %v626 = vpop.f32.mrf.mxu0
    %v627 = vadd.f32 %v544, %v626
    %v628 = vpop.f32.mrf.mxu0
    %629 = vmatprep.mubr.bf16.mxu0 0
    %630 = vmatmul.mubr.bf16.gmra.mxu0 %v556
    %v631 = vpop.f32.mrf.mxu0
    %v632 = vadd.f32 %v544, %v631
    %v633 = vpop.f32.mrf.mxu0
    %v634 = vpop.f32.mrf.mxu0
    %v635 = vadd.f32 %v544, %v634
    %v636 = vpop.f32.mrf.mxu0
    %637 = vmatprep.mubr.bf16.mxu0 0
    %638 = vmatmul.mubr.bf16.gmra.mxu0 %v559
    %v639 = vpop.f32.mrf.mxu0
    %v640 = vadd.f32 %v544, %v639
    %v641 = vpop.f32.mrf.mxu0
    %v642 = vpop.f32.mrf.mxu0
    %v643 = vadd.f32 %v544, %v642
    %v644 = vpop.f32.mrf.mxu0
    %645 = vmatprep.mubr.bf16.mxu0 0
    %646 = vmatmul.mubr.bf16.gmra.mxu0 %v562
    %v647 = vpop.f32.mrf.mxu0
    %v648 = vadd.f32 %v544, %v647
    %v649 = vpop.f32.mrf.mxu0
    %v650 = vpop.f32.mrf.mxu0
    %v651 = vadd.f32 %v544, %v650
    %v652 = vpop.f32.mrf.mxu0
    %653 = vmatprep.mubr.bf16.mxu0 0
    %654 = vmatmul.mubr.bf16.gmra.mxu0 %v565
    %v655 = vpop.f32.mrf.mxu0
    %v656 = vadd.f32 %v544, %v655
    %v657 = vpop.f32.mrf.mxu0
    %v658 = vpop.f32.mrf.mxu0
    %v659 = vadd.f32 %v544, %v658
    %v660 = vpop.f32.mrf.mxu0
    %661 = vmatprep.mubr.bf16.mxu0 0
    %662 = vmatmul.mubr.bf16.gmra.mxu0 %v568
    %v663 = vpop.f32.mrf.mxu0
    %v664 = vadd.f32 %v544, %v663
    %v665 = vpop.f32.mrf.mxu0
    %v666 = vpop.f32.mrf.mxu0
    %v667 = vadd.f32 %v544, %v666
    %v668 = vpop.f32.mrf.mxu0
    %669 = vdwg.mxu0
    %v670 = vmul.f32 %v608, 0.5
    %v671 = vmul.f32 %v611, 0.5
    %v672 = vmul.f32 %v616, 0.5
    %v673 = vmul.f32 %v619, 0.5
    %v674 = vmul.f32 %v624, 0.5
    %v675 = vmul.f32 %v627, 0.5
    %v676 = vmul.f32 %v632, 0.5
    %v677 = vmul.f32 %v635, 0.5
    %v678 = vmul.f32 %v640, 0.5
    %v679 = vmul.f32 %v643, 0.5
    %v680 = vmul.f32 %v648, 0.5
    %v681 = vmul.f32 %v651, 0.5
    %v682 = vmul.f32 %v656, 0.5
    %v683 = vmul.f32 %v659, 0.5
    %v684 = vmul.f32 %v664, 0.5
    %v685 = vmul.f32 %v667, 0.5
    %v686 = vadd.f32 %v670, 0.0
    %v687 = vadd.f32 %v671, 0.0
    %v688 = vadd.f32 %v672, 0.0
    %v689 = vadd.f32 %v673, 0.0
    %v690 = vadd.f32 %v674, 0.0
    %v691 = vadd.f32 %v675, 0.0
    %v692 = vadd.f32 %v676, 0.0
    %v693 = vadd.f32 %v677, 0.0
    %v694 = vadd.f32 %v678, 0.0
    %v695 = vadd.f32 %v679, 0.0
    %v696 = vadd.f32 %v680, 0.0
    %v697 = vadd.f32 %v681, 0.0
    %v698 = vadd.f32 %v682, 0.0
    %v699 = vadd.f32 %v683, 0.0
    %v700 = vadd.f32 %v684, 0.0
    %v701 = vadd.f32 %v685, 0.0
    %vm702 = vcmp.ge.f32.partialorder %v686, 1.0
    %vm703 = vcmp.ge.f32.partialorder %v687, 1.0
    %vm704 = vcmp.ge.f32.partialorder %v688, 1.0
    %vm705 = vcmp.ge.f32.partialorder %v689, 1.0
    %vm706 = vcmp.ge.f32.partialorder %v690, 1.0
    %vm707 = vcmp.ge.f32.partialorder %v691, 1.0
    %vm708 = vcmp.ge.f32.partialorder %v692, 1.0
    %vm709 = vcmp.ge.f32.partialorder %v693, 1.0
    %vm710 = vcmp.ge.f32.partialorder %v694, 1.0
    %vm711 = vcmp.ge.f32.partialorder %v695, 1.0
    %vm712 = vcmp.ge.f32.partialorder %v696, 1.0
    %vm713 = vcmp.ge.f32.partialorder %v697, 1.0
    %vm714 = vcmp.ge.f32.partialorder %v698, 1.0
    %vm715 = vcmp.ge.f32.partialorder %v699, 1.0
    %vm716 = vcmp.ge.f32.partialorder %v700, 1.0
    %vm717 = vcmp.ge.f32.partialorder %v701, 1.0
    %v718 = vsel %vm702, 1, 0
    %v719 = vsel %vm703, 1, 0
    %v720 = vsel %vm704, 1, 0
    %v721 = vsel %vm705, 1, 0
    %v722 = vsel %vm706, 1, 0
    %v723 = vsel %vm707, 1, 0
    %v724 = vsel %vm708, 1, 0
    %v725 = vsel %vm709, 1, 0
    %v726 = vsel %vm710, 1, 0
    %v727 = vsel %vm711, 1, 0
    %v728 = vsel %vm712, 1, 0
    %v729 = vsel %vm713, 1, 0
    %v730 = vsel %vm714, 1, 0
    %v731 = vsel %vm715, 1, 0
    %v732 = vsel %vm716, 1, 0
    %v733 = vsel %vm717, 1, 0
    %v734 = vcvt.s32.f32 %v718
    %v735 = vcvt.s32.f32 %v719
    %v736 = vcvt.s32.f32 %v720
    %v737 = vcvt.s32.f32 %v721
    %v738 = vcvt.s32.f32 %v722
    %v739 = vcvt.s32.f32 %v723
    %v740 = vcvt.s32.f32 %v724
    %v741 = vcvt.s32.f32 %v725
    %v742 = vcvt.s32.f32 %v726
    %v743 = vcvt.s32.f32 %v727
    %v744 = vcvt.s32.f32 %v728
    %v745 = vcvt.s32.f32 %v729
    %v746 = vcvt.s32.f32 %v730
    %v747 = vcvt.s32.f32 %v731
    %v748 = vcvt.s32.f32 %v732
    %v749 = vcvt.s32.f32 %v733
    %v750 = vsub.f32 1.0, %v734
    %v751 = vsub.f32 1.0, %v735
    %v752 = vsub.f32 1.0, %v736
    %v753 = vsub.f32 1.0, %v737
    %v754 = vsub.f32 1.0, %v738
    %v755 = vsub.f32 1.0, %v739
    %v756 = vsub.f32 1.0, %v740
    %v757 = vsub.f32 1.0, %v741
    %v758 = vsub.f32 1.0, %v742
    %v759 = vsub.f32 1.0, %v743
    %v760 = vsub.f32 1.0, %v744
    %v761 = vsub.f32 1.0, %v745
    %v762 = vsub.f32 1.0, %v746
    %v763 = vsub.f32 1.0, %v747
    %v764 = vsub.f32 1.0, %v748
    %v765 = vsub.f32 1.0, %v749
    %v766 = vmul.f32 %v686, %v750
    %v767 = vmul.f32 %v687, %v751
    %v768 = vmul.f32 %v688, %v752
    %v769 = vmul.f32 %v689, %v753
    %v770 = vmul.f32 %v690, %v754
    %v771 = vmul.f32 %v691, %v755
    %v772 = vmul.f32 %v692, %v756
    %v773 = vmul.f32 %v693, %v757
    %v774 = vmul.f32 %v694, %v758
    %v775 = vmul.f32 %v695, %v759
    %v776 = vmul.f32 %v696, %v760
    %v777 = vmul.f32 %v697, %v761
    %v778 = vmul.f32 %v698, %v762
    %v779 = vmul.f32 %v699, %v763
    %v780 = vmul.f32 %v700, %v764
    %v781 = vmul.f32 %v701, %v765
    %v782 = vpack.c.bf16 %v735, %v734
    %v783 = vpack.c.bf16 %v737, %v736
    %v784 = vpack.c.bf16 %v739, %v738
    %v785 = vpack.c.bf16 %v741, %v740
    %v786 = vpack.c.bf16 %v743, %v742
    %v787 = vpack.c.bf16 %v745, %v744
    %v788 = vpack.c.bf16 %v747, %v746
    %v789 = vpack.c.bf16 %v749, %v748
    %v790 = vld [vmem:[%s9] sm:$0xf]
    %v791 = vld [vmem:[%s10] sm:$0x1]
    %v793 = vlaneseq
    %v794 = vshrl.u32 %v793, 7
    %v795 = vsub.s32 0, %v794
    %v796 = vrot.slane %v791, %v795
    %v799 = vsel %vm92, %v782, 0
    %v802 = vsel %vm92, %v783, 0
    %v805 = vsel %vm92, %v784, 0
    %v808 = vsel %vm92, %v785, 0
    %v811 = vsel %vm92, %v786, 0
    %v814 = vsel %vm92, %v787, 0
    %v817 = vsel %vm92, %v788, 0
    %v820 = vsel %vm92, %v789, 0
    %v823 = vsel %vm117, %v790, 0
    %825 = vmatprep.subr.bf16.mxu0 0
    %826 = vmatpush1.bf16.msra.mxu0 0
    %827 = vmatprep.subr.bf16.mxu0 0
    %828 = vmatpush1.bf16.msra.mxu0 0
    %829 = vmatprep.subr.bf16.mxu0 0
    %830 = vmatpush1.bf16.msra.mxu0 0
    %831 = vmatprep.subr.bf16.mxu0 0
    %832 = vmatpush1.bf16.msra.mxu0 0
    %833 = vmatprep.subr.bf16.mxu0 0
    %834 = vmatpush1.bf16.msra.mxu0 0
    %835 = vmatprep.subr.bf16.mxu0 0
    %836 = vmatpush1.bf16.msra.mxu0 0
    %837 = vmatprep.subr.bf16.mxu0 0
    %838 = vmatpush1.bf16.msra.mxu0 0
    %839 = vmatprep.subr.bf16.mxu0 0
    %840 = vmatpush1.bf16.msra.mxu0 %v823
    %841 = vmatprep.subr.bf16.mxu0 0
    %842 = vmatpush2.bf16.msra.mxu0 0
    %843 = vmatprep.subr.bf16.mxu0 0
    %844 = vmatpush2.bf16.msra.mxu0 0
    %845 = vmatprep.subr.bf16.mxu0 0
    %846 = vmatpush2.bf16.msra.mxu0 0
    %847 = vmatprep.subr.bf16.mxu0 0
    %848 = vmatpush2.bf16.msra.mxu0 0
    %849 = vmatprep.subr.bf16.mxu0 0
    %850 = vmatpush2.bf16.msra.mxu0 0
    %851 = vmatprep.subr.bf16.mxu0 0
    %852 = vmatpush2.bf16.msra.mxu0 0
    %853 = vmatprep.subr.bf16.mxu0 0
    %854 = vmatpush2.bf16.msra.mxu0 0
    %855 = vmatprep.subr.bf16.mxu0 0
    %856 = vmatpush2.bf16.msra.mxu0 0
    %857 = vmatprep.mubr.bf16.mxu0 0
    %858 = vmatmul.mubr.bf16.gmra.mxu0 %v799
    %v859 = vpop.f32.mrf.mxu0
    %v860 = vadd.f32 %v796, %v859
    %v861 = vpop.f32.mrf.mxu0
    %v862 = vpop.f32.mrf.mxu0
    %v863 = vadd.f32 %v796, %v862
    %v864 = vpop.f32.mrf.mxu0
    %865 = vmatprep.mubr.bf16.mxu0 0
    %866 = vmatmul.mubr.bf16.gmra.mxu0 %v802
    %v867 = vpop.f32.mrf.mxu0
    %v868 = vadd.f32 %v796, %v867
    %v869 = vpop.f32.mrf.mxu0
    %v870 = vpop.f32.mrf.mxu0
    %v871 = vadd.f32 %v796, %v870
    %v872 = vpop.f32.mrf.mxu0
    %873 = vmatprep.mubr.bf16.mxu0 0
    %874 = vmatmul.mubr.bf16.gmra.mxu0 %v805
    %v875 = vpop.f32.mrf.mxu0
    %v876 = vadd.f32 %v796, %v875
    %v877 = vpop.f32.mrf.mxu0
    %v878 = vpop.f32.mrf.mxu0
    %v879 = vadd.f32 %v796, %v878
    %v880 = vpop.f32.mrf.mxu0
    %881 = vmatprep.mubr.bf16.mxu0 0
    %882 = vmatmul.mubr.bf16.gmra.mxu0 %v808
    %v883 = vpop.f32.mrf.mxu0
    %v884 = vadd.f32 %v796, %v883
    %v885 = vpop.f32.mrf.mxu0
    %v886 = vpop.f32.mrf.mxu0
    %v887 = vadd.f32 %v796, %v886
    %v888 = vpop.f32.mrf.mxu0
    %889 = vmatprep.mubr.bf16.mxu0 0
    %890 = vmatmul.mubr.bf16.gmra.mxu0 %v811
    %v891 = vpop.f32.mrf.mxu0
    %v892 = vadd.f32 %v796, %v891
    %v893 = vpop.f32.mrf.mxu0
    %v894 = vpop.f32.mrf.mxu0
    %v895 = vadd.f32 %v796, %v894
    %v896 = vpop.f32.mrf.mxu0
    %897 = vmatprep.mubr.bf16.mxu0 0
    %898 = vmatmul.mubr.bf16.gmra.mxu0 %v814
    %v899 = vpop.f32.mrf.mxu0
    %v900 = vadd.f32 %v796, %v899
    %v901 = vpop.f32.mrf.mxu0
    %v902 = vpop.f32.mrf.mxu0
    %v903 = vadd.f32 %v796, %v902
    %v904 = vpop.f32.mrf.mxu0
    %905 = vmatprep.mubr.bf16.mxu0 0
    %906 = vmatmul.mubr.bf16.gmra.mxu0 %v817
    %v907 = vpop.f32.mrf.mxu0
    %v908 = vadd.f32 %v796, %v907
    %v909 = vpop.f32.mrf.mxu0
    %v910 = vpop.f32.mrf.mxu0
    %v911 = vadd.f32 %v796, %v910
    %v912 = vpop.f32.mrf.mxu0
    %913 = vmatprep.mubr.bf16.mxu0 0
    %914 = vmatmul.mubr.bf16.gmra.mxu0 %v820
    %v915 = vpop.f32.mrf.mxu0
    %v916 = vadd.f32 %v796, %v915
    %v917 = vpop.f32.mrf.mxu0
    %v918 = vpop.f32.mrf.mxu0
    %v919 = vadd.f32 %v796, %v918
    %v920 = vpop.f32.mrf.mxu0
    %921 = vdwg.mxu0
    %v922 = vadd.f32 %v860, %v608
    %v923 = vadd.f32 %v863, %v611
    %v924 = vadd.f32 %v868, %v616
    %v925 = vadd.f32 %v871, %v619
    %v926 = vadd.f32 %v876, %v624
    %v927 = vadd.f32 %v879, %v627
    %v928 = vadd.f32 %v884, %v632
    %v929 = vadd.f32 %v887, %v635
    %v930 = vadd.f32 %v892, %v640
    %v931 = vadd.f32 %v895, %v643
    %v932 = vadd.f32 %v900, %v648
    %v933 = vadd.f32 %v903, %v651
    %v934 = vadd.f32 %v908, %v656
    %v935 = vadd.f32 %v911, %v659
    %v936 = vadd.f32 %v916, %v664
    %v937 = vadd.f32 %v919, %v667
    %v938 = vmul.f32 %v922, 0.5
    %v939 = vmul.f32 %v923, 0.5
    %v940 = vmul.f32 %v924, 0.5
    %v941 = vmul.f32 %v925, 0.5
    %v942 = vmul.f32 %v926, 0.5
    %v943 = vmul.f32 %v927, 0.5
    %v944 = vmul.f32 %v928, 0.5
    %v945 = vmul.f32 %v929, 0.5
    %v946 = vmul.f32 %v930, 0.5
    %v947 = vmul.f32 %v931, 0.5
    %v948 = vmul.f32 %v932, 0.5
    %v949 = vmul.f32 %v933, 0.5
    %v950 = vmul.f32 %v934, 0.5
    %v951 = vmul.f32 %v935, 0.5
    %v952 = vmul.f32 %v936, 0.5
    %v953 = vmul.f32 %v937, 0.5
    %v954 = vadd.f32 %v938, 0.0
    %v955 = vadd.f32 %v939, 0.0
    %v956 = vadd.f32 %v940, 0.0
    %v957 = vadd.f32 %v941, 0.0
    %v958 = vadd.f32 %v942, 0.0
    %v959 = vadd.f32 %v943, 0.0
    %v960 = vadd.f32 %v944, 0.0
    %v961 = vadd.f32 %v945, 0.0
    %v962 = vadd.f32 %v946, 0.0
    %v963 = vadd.f32 %v947, 0.0
    %v964 = vadd.f32 %v948, 0.0
    %v965 = vadd.f32 %v949, 0.0
    %v966 = vadd.f32 %v950, 0.0
    %v967 = vadd.f32 %v951, 0.0
    %v968 = vadd.f32 %v952, 0.0
    %v969 = vadd.f32 %v953, 0.0
    %vm970 = vcmp.ge.f32.partialorder %v954, 1.0
    %vm971 = vcmp.ge.f32.partialorder %v955, 1.0
    %vm972 = vcmp.ge.f32.partialorder %v956, 1.0
    %vm973 = vcmp.ge.f32.partialorder %v957, 1.0
    %vm974 = vcmp.ge.f32.partialorder %v958, 1.0
    %vm975 = vcmp.ge.f32.partialorder %v959, 1.0
    %vm976 = vcmp.ge.f32.partialorder %v960, 1.0
    %vm977 = vcmp.ge.f32.partialorder %v961, 1.0
    %vm978 = vcmp.ge.f32.partialorder %v962, 1.0
    %vm979 = vcmp.ge.f32.partialorder %v963, 1.0
    %vm980 = vcmp.ge.f32.partialorder %v964, 1.0
    %vm981 = vcmp.ge.f32.partialorder %v965, 1.0
    %vm982 = vcmp.ge.f32.partialorder %v966, 1.0
    %vm983 = vcmp.ge.f32.partialorder %v967, 1.0
    %vm984 = vcmp.ge.f32.partialorder %v968, 1.0
    %vm985 = vcmp.ge.f32.partialorder %v969, 1.0
    %v986 = vsel %vm970, 1, 0
    %v987 = vsel %vm971, 1, 0
    %v988 = vsel %vm972, 1, 0
    %v989 = vsel %vm973, 1, 0
    %v990 = vsel %vm974, 1, 0
    %v991 = vsel %vm975, 1, 0
    %v992 = vsel %vm976, 1, 0
    %v993 = vsel %vm977, 1, 0
    %v994 = vsel %vm978, 1, 0
    %v995 = vsel %vm979, 1, 0
    %v996 = vsel %vm980, 1, 0
    %v997 = vsel %vm981, 1, 0
    %v998 = vsel %vm982, 1, 0
    %v999 = vsel %vm983, 1, 0
    %v1000 = vsel %vm984, 1, 0
    %v1001 = vsel %vm985, 1, 0
    %v1002 = vcvt.s32.f32 %v986
    %v1003 = vcvt.s32.f32 %v987
    %v1004 = vcvt.s32.f32 %v988
    %v1005 = vcvt.s32.f32 %v989
    %v1006 = vcvt.s32.f32 %v990
    %v1007 = vcvt.s32.f32 %v991
    %v1008 = vcvt.s32.f32 %v992
    %v1009 = vcvt.s32.f32 %v993
    %v1010 = vcvt.s32.f32 %v994
    %v1011 = vcvt.s32.f32 %v995
    %v1012 = vcvt.s32.f32 %v996
    %v1013 = vcvt.s32.f32 %v997
    %v1014 = vcvt.s32.f32 %v998
    %v1015 = vcvt.s32.f32 %v999
    %v1016 = vcvt.s32.f32 %v1000
    %v1017 = vcvt.s32.f32 %v1001
    %v1018 = vsub.f32 1.0, %v1002
    %v1019 = vsub.f32 1.0, %v1003
    %v1020 = vsub.f32 1.0, %v1004
    %v1021 = vsub.f32 1.0, %v1005
    %v1022 = vsub.f32 1.0, %v1006
    %v1023 = vsub.f32 1.0, %v1007
    %v1024 = vsub.f32 1.0, %v1008
    %v1025 = vsub.f32 1.0, %v1009
    %v1026 = vsub.f32 1.0, %v1010
    %v1027 = vsub.f32 1.0, %v1011
    %v1028 = vsub.f32 1.0, %v1012
    %v1029 = vsub.f32 1.0, %v1013
    %v1030 = vsub.f32 1.0, %v1014
    %v1031 = vsub.f32 1.0, %v1015
    %v1032 = vsub.f32 1.0, %v1016
    %v1033 = vsub.f32 1.0, %v1017
    %v1034 = vmul.f32 %v954, %v1018
    %v1035 = vmul.f32 %v955, %v1019
    %v1036 = vmul.f32 %v956, %v1020
    %v1037 = vmul.f32 %v957, %v1021
    %v1038 = vmul.f32 %v958, %v1022
    %v1039 = vmul.f32 %v959, %v1023
    %v1040 = vmul.f32 %v960, %v1024
    %v1041 = vmul.f32 %v961, %v1025
    %v1042 = vmul.f32 %v962, %v1026
    %v1043 = vmul.f32 %v963, %v1027
    %v1044 = vmul.f32 %v964, %v1028
    %v1045 = vmul.f32 %v965, %v1029
    %v1046 = vmul.f32 %v966, %v1030
    %v1047 = vmul.f32 %v967, %v1031
    %v1048 = vmul.f32 %v968, %v1032
    %v1049 = vmul.f32 %v969, %v1033
    %1050 = vst.msk [vmem:[%s11] sm:$0xff] %vm92, %v1002
    %1051 = vst.msk [vmem:[%s11 + $0x8] sm:$0xff] %vm92, %v1003
    %1052 = vst.msk [vmem:[%s11 + $0x10] sm:$0xff] %vm92, %v1004
    %1053 = vst.msk [vmem:[%s11 + $0x18] sm:$0xff] %vm92, %v1005
    %1054 = vst.msk [vmem:[%s11 + $0x20] sm:$0xff] %vm92, %v1006
    %1055 = vst.msk [vmem:[%s11 + $0x28] sm:$0xff] %vm92, %v1007
    %1056 = vst.msk [vmem:[%s11 + $0x30] sm:$0xff] %vm92, %v1008
    %1057 = vst.msk [vmem:[%s11 + $0x38] sm:$0xff] %vm92, %v1009
    %1058 = vst.msk [vmem:[%s11 + $0x40] sm:$0xff] %vm92, %v1010
    %1059 = vst.msk [vmem:[%s11 + $0x48] sm:$0xff] %vm92, %v1011
    %1060 = vst.msk [vmem:[%s11 + $0x50] sm:$0xff] %vm92, %v1012
    %1061 = vst.msk [vmem:[%s11 + $0x58] sm:$0xff] %vm92, %v1013
    %1062 = vst.msk [vmem:[%s11 + $0x60] sm:$0xff] %vm92, %v1014
    %1063 = vst.msk [vmem:[%s11 + $0x68] sm:$0xff] %vm92, %v1015
    %1064 = vst.msk [vmem:[%s11 + $0x70] sm:$0xff] %vm92, %v1016
    %1065 = vst.msk [vmem:[%s11 + $0x78] sm:$0xff] %vm92, %v1017
    %v1066 = vsel %vm92, %v1002, 0.0
    %v1067 = vsel %vm92, %v1003, 0.0
    %v1068 = vadd.f32 %v1066, %v1067
    %v1069 = vsel %vm92, %v1004, 0.0
    %v1070 = vadd.f32 %v1068, %v1069
    %v1071 = vsel %vm92, %v1005, 0.0
    %v1072 = vadd.f32 %v1070, %v1071
    %v1073 = vsel %vm92, %v1006, 0.0
    %v1074 = vadd.f32 %v1072, %v1073
    %v1075 = vsel %vm92, %v1007, 0.0
    %v1076 = vadd.f32 %v1074, %v1075
    %v1077 = vsel %vm92, %v1008, 0.0
    %v1078 = vadd.f32 %v1076, %v1077
    %v1079 = vsel %vm92, %v1009, 0.0
    %v1080 = vadd.f32 %v1078, %v1079
    %v1081 = vsel %vm92, %v1010, 0.0
    %v1082 = vadd.f32 %v1080, %v1081
    %v1083 = vsel %vm92, %v1011, 0.0
    %v1084 = vadd.f32 %v1082, %v1083
    %v1085 = vsel %vm92, %v1012, 0.0
    %v1086 = vadd.f32 %v1084, %v1085
    %v1087 = vsel %vm92, %v1013, 0.0
    %v1088 = vadd.f32 %v1086, %v1087
    %v1089 = vsel %vm92, %v1014, 0.0
    %v1090 = vadd.f32 %v1088, %v1089
    %v1091 = vsel %vm92, %v1015, 0.0
    %v1092 = vadd.f32 %v1090, %v1091
    %v1093 = vsel %vm92, %v1016, 0.0
    %v1094 = vadd.f32 %v1092, %v1093
    %v1095 = vsel %vm92, %v1017, 0.0
    %v1096 = vadd.f32 %v1094, %v1095
    %v1097 = vrot.slane %v1096, 4
    %v1098 = vadd.f32 %v1096, %v1097
    %v1099 = vrot.slane %v1098, 2
    %v1100 = vadd.f32 %v1098, %v1099
    %v1101 = vrot.slane %v1100, 1
    %v1102 = vadd.f32 %v1100, %v1101
    %v1103 = vadd.f32 %v1102, 0.0
    %s1104 = scalar_lea.vmem %s0, 128
    %v1105 = vld [vmem:[%s1104] sm:$0xff]
    %v1106 = vld [vmem:[%s1104 + $0x8] sm:$0xff]
    %v1107 = vld [vmem:[%s1104 + $0x10] sm:$0xff]
    %v1108 = vld [vmem:[%s1104 + $0x18] sm:$0xff]
    %v1109 = vld [vmem:[%s1104 + $0x20] sm:$0xff]
    %v1110 = vld [vmem:[%s1104 + $0x28] sm:$0xff]
    %v1111 = vld [vmem:[%s1104 + $0x30] sm:$0xff]
    %v1112 = vld [vmem:[%s1104 + $0x38] sm:$0xff]
    %v1113 = vld [vmem:[%s1104 + $0x40] sm:$0xff]
    %v1114 = vld [vmem:[%s1104 + $0x48] sm:$0xff]
    %v1115 = vld [vmem:[%s1104 + $0x50] sm:$0xff]
    %v1116 = vld [vmem:[%s1104 + $0x58] sm:$0xff]
    %v1117 = vld [vmem:[%s1104 + $0x60] sm:$0xff]
    %v1118 = vld [vmem:[%s1104 + $0x68] sm:$0xff]
    %v1119 = vld [vmem:[%s1104 + $0x70] sm:$0xff]
    %v1120 = vld [vmem:[%s1104 + $0x78] sm:$0xff]
    %v1121 = vpack.c.bf16 %v1106, %v1105
    %v1122 = vpack.c.bf16 %v1108, %v1107
    %v1123 = vpack.c.bf16 %v1110, %v1109
    %v1124 = vpack.c.bf16 %v1112, %v1111
    %v1125 = vpack.c.bf16 %v1114, %v1113
    %v1126 = vpack.c.bf16 %v1116, %v1115
    %v1127 = vpack.c.bf16 %v1118, %v1117
    %v1128 = vpack.c.bf16 %v1120, %v1119
    %v1129 = vld [vmem:[%s3] sm:$0xf]
    %s1130 = scalar_lea.vmem %s1, 128
    %v1131 = vld [vmem:[%s1130] sm:$0xff]
    %v1132 = vld [vmem:[%s1130 + $0x8] sm:$0xff]
    %v1133 = vld [vmem:[%s1130 + $0x10] sm:$0xff]
    %v1134 = vld [vmem:[%s1130 + $0x18] sm:$0xff]
    %v1135 = vld [vmem:[%s1130 + $0x20] sm:$0xff]
    %v1136 = vld [vmem:[%s1130 + $0x28] sm:$0xff]
    %v1137 = vld [vmem:[%s1130 + $0x30] sm:$0xff]
    %v1138 = vld [vmem:[%s1130 + $0x38] sm:$0xff]
    %v1139 = vld [vmem:[%s1130 + $0x40] sm:$0xff]
    %v1140 = vld [vmem:[%s1130 + $0x48] sm:$0xff]
    %v1141 = vld [vmem:[%s1130 + $0x50] sm:$0xff]
    %v1142 = vld [vmem:[%s1130 + $0x58] sm:$0xff]
    %v1143 = vld [vmem:[%s1130 + $0x60] sm:$0xff]
    %v1144 = vld [vmem:[%s1130 + $0x68] sm:$0xff]
    %v1145 = vld [vmem:[%s1130 + $0x70] sm:$0xff]
    %v1146 = vld [vmem:[%s1130 + $0x78] sm:$0xff]
    %v1147 = vpack.c.bf16 %v1132, %v1131
    %v1148 = vpack.c.bf16 %v1134, %v1133
    %v1149 = vpack.c.bf16 %v1136, %v1135
    %v1150 = vpack.c.bf16 %v1138, %v1137
    %v1151 = vpack.c.bf16 %v1140, %v1139
    %v1152 = vpack.c.bf16 %v1142, %v1141
    %v1153 = vpack.c.bf16 %v1144, %v1143
    %v1154 = vpack.c.bf16 %v1146, %v1145
    %v1155 = vld [vmem:[%s4] sm:$0xf]
    %v1157 = vsel %vm92, %v1147, 0
    %v1160 = vsel %vm92, %v1148, 0
    %v1163 = vsel %vm92, %v1149, 0
    %v1166 = vsel %vm92, %v1150, 0
    %v1169 = vsel %vm92, %v1151, 0
    %v1172 = vsel %vm92, %v1152, 0
    %v1175 = vsel %vm92, %v1153, 0
    %v1178 = vsel %vm92, %v1154, 0
    %v1181 = vsel %vm117, %v1155, 0
    %1183 = vmatprep.subr.bf16.mxu0 0
    %1184 = vmatpush1.bf16.msra.mxu0 0
    %1185 = vmatprep.subr.bf16.mxu0 0
    %1186 = vmatpush1.bf16.msra.mxu0 0
    %1187 = vmatprep.subr.bf16.mxu0 0
    %1188 = vmatpush1.bf16.msra.mxu0 0
    %1189 = vmatprep.subr.bf16.mxu0 0
    %1190 = vmatpush1.bf16.msra.mxu0 0
    %1191 = vmatprep.subr.bf16.mxu0 0
    %1192 = vmatpush1.bf16.msra.mxu0 0
    %1193 = vmatprep.subr.bf16.mxu0 0
    %1194 = vmatpush1.bf16.msra.mxu0 0
    %1195 = vmatprep.subr.bf16.mxu0 0
    %1196 = vmatpush1.bf16.msra.mxu0 0
    %1197 = vmatprep.subr.bf16.mxu0 0
    %1198 = vmatpush1.bf16.msra.mxu0 %v1181
    %1199 = vmatprep.subr.bf16.mxu0 0
    %1200 = vmatpush2.bf16.msra.mxu0 0
    %1201 = vmatprep.subr.bf16.mxu0 0
    %1202 = vmatpush2.bf16.msra.mxu0 0
    %1203 = vmatprep.subr.bf16.mxu0 0
    %1204 = vmatpush2.bf16.msra.mxu0 0
    %1205 = vmatprep.subr.bf16.mxu0 0
    %1206 = vmatpush2.bf16.msra.mxu0 0
    %1207 = vmatprep.subr.bf16.mxu0 0
    %1208 = vmatpush2.bf16.msra.mxu0 0
    %1209 = vmatprep.subr.bf16.mxu0 0
    %1210 = vmatpush2.bf16.msra.mxu0 0
    %1211 = vmatprep.subr.bf16.mxu0 0
    %1212 = vmatpush2.bf16.msra.mxu0 0
    %1213 = vmatprep.subr.bf16.mxu0 0
    %1214 = vmatpush2.bf16.msra.mxu0 0
    %1215 = vmatprep.mubr.bf16.mxu0 0
    %1216 = vmatmul.mubr.bf16.gmra.mxu0 %v1157
    %v1217 = vpop.f32.mrf.mxu0
    %v1218 = vadd.f32 0.0, %v1217
    %v1219 = vpop.f32.mrf.mxu0
    %v1220 = vpop.f32.mrf.mxu0
    %v1221 = vadd.f32 0.0, %v1220
    %v1222 = vpop.f32.mrf.mxu0
    %1223 = vmatprep.mubr.bf16.mxu0 0
    %1224 = vmatmul.mubr.bf16.gmra.mxu0 %v1160
    %v1225 = vpop.f32.mrf.mxu0
    %v1226 = vadd.f32 0.0, %v1225
    %v1227 = vpop.f32.mrf.mxu0
    %v1228 = vpop.f32.mrf.mxu0
    %v1229 = vadd.f32 0.0, %v1228
    %v1230 = vpop.f32.mrf.mxu0
    %1231 = vmatprep.mubr.bf16.mxu0 0
    %1232 = vmatmul.mubr.bf16.gmra.mxu0 %v1163
    %v1233 = vpop.f32.mrf.mxu0
    %v1234 = vadd.f32 0.0, %v1233
    %v1235 = vpop.f32.mrf.mxu0
    %v1236 = vpop.f32.mrf.mxu0
    %v1237 = vadd.f32 0.0, %v1236
    %v1238 = vpop.f32.mrf.mxu0
    %1239 = vmatprep.mubr.bf16.mxu0 0
    %1240 = vmatmul.mubr.bf16.gmra.mxu0 %v1166
    %v1241 = vpop.f32.mrf.mxu0
    %v1242 = vadd.f32 0.0, %v1241
    %v1243 = vpop.f32.mrf.mxu0
    %v1244 = vpop.f32.mrf.mxu0
    %v1245 = vadd.f32 0.0, %v1244
    %v1246 = vpop.f32.mrf.mxu0
    %1247 = vmatprep.mubr.bf16.mxu0 0
    %1248 = vmatmul.mubr.bf16.gmra.mxu0 %v1169
    %v1249 = vpop.f32.mrf.mxu0
    %v1250 = vadd.f32 0.0, %v1249
    %v1251 = vpop.f32.mrf.mxu0
    %v1252 = vpop.f32.mrf.mxu0
    %v1253 = vadd.f32 0.0, %v1252
    %v1254 = vpop.f32.mrf.mxu0
    %1255 = vmatprep.mubr.bf16.mxu0 0
    %1256 = vmatmul.mubr.bf16.gmra.mxu0 %v1172
    %v1257 = vpop.f32.mrf.mxu0
    %v1258 = vadd.f32 0.0, %v1257
    %v1259 = vpop.f32.mrf.mxu0
    %v1260 = vpop.f32.mrf.mxu0
    %v1261 = vadd.f32 0.0, %v1260
    %v1262 = vpop.f32.mrf.mxu0
    %1263 = vmatprep.mubr.bf16.mxu0 0
    %1264 = vmatmul.mubr.bf16.gmra.mxu0 %v1175
    %v1265 = vpop.f32.mrf.mxu0
    %v1266 = vadd.f32 0.0, %v1265
    %v1267 = vpop.f32.mrf.mxu0
    %v1268 = vpop.f32.mrf.mxu0
    %v1269 = vadd.f32 0.0, %v1268
    %v1270 = vpop.f32.mrf.mxu0
    %1271 = vmatprep.mubr.bf16.mxu0 0
    %1272 = vmatmul.mubr.bf16.gmra.mxu0 %v1178
    %v1273 = vpop.f32.mrf.mxu0
    %v1274 = vadd.f32 0.0, %v1273
    %v1275 = vpop.f32.mrf.mxu0
    %v1276 = vpop.f32.mrf.mxu0
    %v1277 = vadd.f32 0.0, %v1276
    %v1278 = vpop.f32.mrf.mxu0
    %1279 = vdwg.mxu0
    %v1281 = vsel %vm92, %v1121, 0
    %v1284 = vsel %vm92, %v1122, 0
    %v1287 = vsel %vm92, %v1123, 0
    %v1290 = vsel %vm92, %v1124, 0
    %v1293 = vsel %vm92, %v1125, 0
    %v1296 = vsel %vm92, %v1126, 0
    %v1299 = vsel %vm92, %v1127, 0
    %v1302 = vsel %vm92, %v1128, 0
    %v1305 = vsel %vm117, %v1129, 0
    %1307 = vmatprep.subr.bf16.mxu0 0
    %1308 = vmatpush1.bf16.msra.mxu0 0
    %1309 = vmatprep.subr.bf16.mxu0 0
    %1310 = vmatpush1.bf16.msra.mxu0 0
    %1311 = vmatprep.subr.bf16.mxu0 0
    %1312 = vmatpush1.bf16.msra.mxu0 0
    %1313 = vmatprep.subr.bf16.mxu0 0
    %1314 = vmatpush1.bf16.msra.mxu0 0
    %1315 = vmatprep.subr.bf16.mxu0 0
    %1316 = vmatpush1.bf16.msra.mxu0 0
    %1317 = vmatprep.subr.bf16.mxu0 0
    %1318 = vmatpush1.bf16.msra.mxu0 0
    %1319 = vmatprep.subr.bf16.mxu0 0
    %1320 = vmatpush1.bf16.msra.mxu0 0
    %1321 = vmatprep.subr.bf16.mxu0 0
    %1322 = vmatpush1.bf16.msra.mxu0 %v1305
    %1323 = vmatprep.subr.bf16.mxu0 0
    %1324 = vmatpush2.bf16.msra.mxu0 0
    %1325 = vmatprep.subr.bf16.mxu0 0
    %1326 = vmatpush2.bf16.msra.mxu0 0
    %1327 = vmatprep.subr.bf16.mxu0 0
    %1328 = vmatpush2.bf16.msra.mxu0 0
    %1329 = vmatprep.subr.bf16.mxu0 0
    %1330 = vmatpush2.bf16.msra.mxu0 0
    %1331 = vmatprep.subr.bf16.mxu0 0
    %1332 = vmatpush2.bf16.msra.mxu0 0
    %1333 = vmatprep.subr.bf16.mxu0 0
    %1334 = vmatpush2.bf16.msra.mxu0 0
    %1335 = vmatprep.subr.bf16.mxu0 0
    %1336 = vmatpush2.bf16.msra.mxu0 0
    %1337 = vmatprep.subr.bf16.mxu0 0
    %1338 = vmatpush2.bf16.msra.mxu0 0
    %1339 = vmatprep.mubr.bf16.mxu0 0
    %1340 = vmatmul.mubr.bf16.gmra.mxu0 %v1281
    %v1341 = vpop.f32.mrf.mxu0
    %v1342 = vadd.f32 %v1218, %v1341
    %v1343 = vpop.f32.mrf.mxu0
    %v1344 = vpop.f32.mrf.mxu0
    %v1345 = vadd.f32 %v1221, %v1344
    %v1346 = vpop.f32.mrf.mxu0
    %1347 = vmatprep.mubr.bf16.mxu0 0
    %1348 = vmatmul.mubr.bf16.gmra.mxu0 %v1284
    %v1349 = vpop.f32.mrf.mxu0
    %v1350 = vadd.f32 %v1226, %v1349
    %v1351 = vpop.f32.mrf.mxu0
    %v1352 = vpop.f32.mrf.mxu0
    %v1353 = vadd.f32 %v1229, %v1352
    %v1354 = vpop.f32.mrf.mxu0
    %1355 = vmatprep.mubr.bf16.mxu0 0
    %1356 = vmatmul.mubr.bf16.gmra.mxu0 %v1287
    %v1357 = vpop.f32.mrf.mxu0
    %v1358 = vadd.f32 %v1234, %v1357
    %v1359 = vpop.f32.mrf.mxu0
    %v1360 = vpop.f32.mrf.mxu0
    %v1361 = vadd.f32 %v1237, %v1360
    %v1362 = vpop.f32.mrf.mxu0
    %1363 = vmatprep.mubr.bf16.mxu0 0
    %1364 = vmatmul.mubr.bf16.gmra.mxu0 %v1290
    %v1365 = vpop.f32.mrf.mxu0
    %v1366 = vadd.f32 %v1242, %v1365
    %v1367 = vpop.f32.mrf.mxu0
    %v1368 = vpop.f32.mrf.mxu0
    %v1369 = vadd.f32 %v1245, %v1368
    %v1370 = vpop.f32.mrf.mxu0
    %1371 = vmatprep.mubr.bf16.mxu0 0
    %1372 = vmatmul.mubr.bf16.gmra.mxu0 %v1293
    %v1373 = vpop.f32.mrf.mxu0
    %v1374 = vadd.f32 %v1250, %v1373
    %v1375 = vpop.f32.mrf.mxu0
    %v1376 = vpop.f32.mrf.mxu0
    %v1377 = vadd.f32 %v1253, %v1376
    %v1378 = vpop.f32.mrf.mxu0
    %1379 = vmatprep.mubr.bf16.mxu0 0
    %1380 = vmatmul.mubr.bf16.gmra.mxu0 %v1296
    %v1381 = vpop.f32.mrf.mxu0
    %v1382 = vadd.f32 %v1258, %v1381
    %v1383 = vpop.f32.mrf.mxu0
    %v1384 = vpop.f32.mrf.mxu0
    %v1385 = vadd.f32 %v1261, %v1384
    %v1386 = vpop.f32.mrf.mxu0
    %1387 = vmatprep.mubr.bf16.mxu0 0
    %1388 = vmatmul.mubr.bf16.gmra.mxu0 %v1299
    %v1389 = vpop.f32.mrf.mxu0
    %v1390 = vadd.f32 %v1266, %v1389
    %v1391 = vpop.f32.mrf.mxu0
    %v1392 = vpop.f32.mrf.mxu0
    %v1393 = vadd.f32 %v1269, %v1392
    %v1394 = vpop.f32.mrf.mxu0
    %1395 = vmatprep.mubr.bf16.mxu0 0
    %1396 = vmatmul.mubr.bf16.gmra.mxu0 %v1302
    %v1397 = vpop.f32.mrf.mxu0
    %v1398 = vadd.f32 %v1274, %v1397
    %v1399 = vpop.f32.mrf.mxu0
    %v1400 = vpop.f32.mrf.mxu0
    %v1401 = vadd.f32 %v1277, %v1400
    %v1402 = vpop.f32.mrf.mxu0
    %1403 = vdwg.mxu0
    %s1404 = scalar_lea.vmem %s2, 128
    %v1405 = vld [vmem:[%s1404] sm:$0xff]
    %v1406 = vld [vmem:[%s1404 + $0x8] sm:$0xff]
    %v1407 = vld [vmem:[%s1404 + $0x10] sm:$0xff]
    %v1408 = vld [vmem:[%s1404 + $0x18] sm:$0xff]
    %v1409 = vld [vmem:[%s1404 + $0x20] sm:$0xff]
    %v1410 = vld [vmem:[%s1404 + $0x28] sm:$0xff]
    %v1411 = vld [vmem:[%s1404 + $0x30] sm:$0xff]
    %v1412 = vld [vmem:[%s1404 + $0x38] sm:$0xff]
    %v1413 = vld [vmem:[%s1404 + $0x40] sm:$0xff]
    %v1414 = vld [vmem:[%s1404 + $0x48] sm:$0xff]
    %v1415 = vld [vmem:[%s1404 + $0x50] sm:$0xff]
    %v1416 = vld [vmem:[%s1404 + $0x58] sm:$0xff]
    %v1417 = vld [vmem:[%s1404 + $0x60] sm:$0xff]
    %v1418 = vld [vmem:[%s1404 + $0x68] sm:$0xff]
    %v1419 = vld [vmem:[%s1404 + $0x70] sm:$0xff]
    %v1420 = vld [vmem:[%s1404 + $0x78] sm:$0xff]
    %v1421 = vpack.c.bf16 %v1406, %v1405
    %v1422 = vpack.c.bf16 %v1408, %v1407
    %v1423 = vpack.c.bf16 %v1410, %v1409
    %v1424 = vpack.c.bf16 %v1412, %v1411
    %v1425 = vpack.c.bf16 %v1414, %v1413
    %v1426 = vpack.c.bf16 %v1416, %v1415
    %v1427 = vpack.c.bf16 %v1418, %v1417
    %v1428 = vpack.c.bf16 %v1420, %v1419
    %v1429 = vld [vmem:[%s5] sm:$0xf]
    %v1431 = vsel %vm92, %v1421, 0
    %v1434 = vsel %vm92, %v1422, 0
    %v1437 = vsel %vm92, %v1423, 0
    %v1440 = vsel %vm92, %v1424, 0
    %v1443 = vsel %vm92, %v1425, 0
    %v1446 = vsel %vm92, %v1426, 0
    %v1449 = vsel %vm92, %v1427, 0
    %v1452 = vsel %vm92, %v1428, 0
    %v1455 = vsel %vm117, %v1429, 0
    %1457 = vmatprep.subr.bf16.mxu0 0
    %1458 = vmatpush1.bf16.msra.mxu0 0
    %1459 = vmatprep.subr.bf16.mxu0 0
    %1460 = vmatpush1.bf16.msra.mxu0 0
    %1461 = vmatprep.subr.bf16.mxu0 0
    %1462 = vmatpush1.bf16.msra.mxu0 0
    %1463 = vmatprep.subr.bf16.mxu0 0
    %1464 = vmatpush1.bf16.msra.mxu0 0
    %1465 = vmatprep.subr.bf16.mxu0 0
    %1466 = vmatpush1.bf16.msra.mxu0 0
    %1467 = vmatprep.subr.bf16.mxu0 0
    %1468 = vmatpush1.bf16.msra.mxu0 0
    %1469 = vmatprep.subr.bf16.mxu0 0
    %1470 = vmatpush1.bf16.msra.mxu0 0
    %1471 = vmatprep.subr.bf16.mxu0 0
    %1472 = vmatpush1.bf16.msra.mxu0 %v1455
    %1473 = vmatprep.subr.bf16.mxu0 0
    %1474 = vmatpush2.bf16.msra.mxu0 0
    %1475 = vmatprep.subr.bf16.mxu0 0
    %1476 = vmatpush2.bf16.msra.mxu0 0
    %1477 = vmatprep.subr.bf16.mxu0 0
    %1478 = vmatpush2.bf16.msra.mxu0 0
    %1479 = vmatprep.subr.bf16.mxu0 0
    %1480 = vmatpush2.bf16.msra.mxu0 0
    %1481 = vmatprep.subr.bf16.mxu0 0
    %1482 = vmatpush2.bf16.msra.mxu0 0
    %1483 = vmatprep.subr.bf16.mxu0 0
    %1484 = vmatpush2.bf16.msra.mxu0 0
    %1485 = vmatprep.subr.bf16.mxu0 0
    %1486 = vmatpush2.bf16.msra.mxu0 0
    %1487 = vmatprep.subr.bf16.mxu0 0
    %1488 = vmatpush2.bf16.msra.mxu0 0
    %1489 = vmatprep.mubr.bf16.mxu0 0
    %1490 = vmatmul.mubr.bf16.gmra.mxu0 %v1431
    %v1491 = vpop.f32.mrf.mxu0
    %v1492 = vadd.f32 0.0, %v1491
    %v1493 = vpop.f32.mrf.mxu0
    %v1494 = vpop.f32.mrf.mxu0
    %v1495 = vadd.f32 0.0, %v1494
    %v1496 = vpop.f32.mrf.mxu0
    %1497 = vmatprep.mubr.bf16.mxu0 0
    %1498 = vmatmul.mubr.bf16.gmra.mxu0 %v1434
    %v1499 = vpop.f32.mrf.mxu0
    %v1500 = vadd.f32 0.0, %v1499
    %v1501 = vpop.f32.mrf.mxu0
    %v1502 = vpop.f32.mrf.mxu0
    %v1503 = vadd.f32 0.0, %v1502
    %v1504 = vpop.f32.mrf.mxu0
    %1505 = vmatprep.mubr.bf16.mxu0 0
    %1506 = vmatmul.mubr.bf16.gmra.mxu0 %v1437
    %v1507 = vpop.f32.mrf.mxu0
    %v1508 = vadd.f32 0.0, %v1507
    %v1509 = vpop.f32.mrf.mxu0
    %v1510 = vpop.f32.mrf.mxu0
    %v1511 = vadd.f32 0.0, %v1510
    %v1512 = vpop.f32.mrf.mxu0
    %1513 = vmatprep.mubr.bf16.mxu0 0
    %1514 = vmatmul.mubr.bf16.gmra.mxu0 %v1440
    %v1515 = vpop.f32.mrf.mxu0
    %v1516 = vadd.f32 0.0, %v1515
    %v1517 = vpop.f32.mrf.mxu0
    %v1518 = vpop.f32.mrf.mxu0
    %v1519 = vadd.f32 0.0, %v1518
    %v1520 = vpop.f32.mrf.mxu0
    %1521 = vmatprep.mubr.bf16.mxu0 0
    %1522 = vmatmul.mubr.bf16.gmra.mxu0 %v1443
    %v1523 = vpop.f32.mrf.mxu0
    %v1524 = vadd.f32 0.0, %v1523
    %v1525 = vpop.f32.mrf.mxu0
    %v1526 = vpop.f32.mrf.mxu0
    %v1527 = vadd.f32 0.0, %v1526
    %v1528 = vpop.f32.mrf.mxu0
    %1529 = vmatprep.mubr.bf16.mxu0 0
    %1530 = vmatmul.mubr.bf16.gmra.mxu0 %v1446
    %v1531 = vpop.f32.mrf.mxu0
    %v1532 = vadd.f32 0.0, %v1531
    %v1533 = vpop.f32.mrf.mxu0
    %v1534 = vpop.f32.mrf.mxu0
    %v1535 = vadd.f32 0.0, %v1534
    %v1536 = vpop.f32.mrf.mxu0
    %1537 = vmatprep.mubr.bf16.mxu0 0
    %1538 = vmatmul.mubr.bf16.gmra.mxu0 %v1449
    %v1539 = vpop.f32.mrf.mxu0
    %v1540 = vadd.f32 0.0, %v1539
    %v1541 = vpop.f32.mrf.mxu0
    %v1542 = vpop.f32.mrf.mxu0
    %v1543 = vadd.f32 0.0, %v1542
    %v1544 = vpop.f32.mrf.mxu0
    %1545 = vmatprep.mubr.bf16.mxu0 0
    %1546 = vmatmul.mubr.bf16.gmra.mxu0 %v1452
    %v1547 = vpop.f32.mrf.mxu0
    %v1548 = vadd.f32 0.0, %v1547
    %v1549 = vpop.f32.mrf.mxu0
    %v1550 = vpop.f32.mrf.mxu0
    %v1551 = vadd.f32 0.0, %v1550
    %v1552 = vpop.f32.mrf.mxu0
    %1553 = vdwg.mxu0
    %v1554 = vadd.f32 %v1342, %v1492
    %v1555 = vadd.f32 %v1345, %v1495
    %v1556 = vadd.f32 %v1350, %v1500
    %v1557 = vadd.f32 %v1353, %v1503
    %v1558 = vadd.f32 %v1358, %v1508
    %v1559 = vadd.f32 %v1361, %v1511
    %v1560 = vadd.f32 %v1366, %v1516
    %v1561 = vadd.f32 %v1369, %v1519
    %v1562 = vadd.f32 %v1374, %v1524
    %v1563 = vadd.f32 %v1377, %v1527
    %v1564 = vadd.f32 %v1382, %v1532
    %v1565 = vadd.f32 %v1385, %v1535
    %v1566 = vadd.f32 %v1390, %v1540
    %v1567 = vadd.f32 %v1393, %v1543
    %v1568 = vadd.f32 %v1398, %v1548
    %v1569 = vadd.f32 %v1401, %v1551
    %v1570 = vld [vmem:[%s6] sm:$0x1]
    %v1572 = vlaneseq
    %v1573 = vshrl.u32 %v1572, 7
    %v1574 = vsub.s32 0, %v1573
    %v1575 = vrot.slane %v1570, %v1574
    %v1577 = vadd.f32 %v1554, %v1575
    %v1578 = vadd.f32 %v1555, %v1575
    %v1579 = vadd.f32 %v1556, %v1575
    %v1580 = vadd.f32 %v1557, %v1575
    %v1581 = vadd.f32 %v1558, %v1575
    %v1582 = vadd.f32 %v1559, %v1575
    %v1583 = vadd.f32 %v1560, %v1575
    %v1584 = vadd.f32 %v1561, %v1575
    %v1585 = vadd.f32 %v1562, %v1575
    %v1586 = vadd.f32 %v1563, %v1575
    %v1587 = vadd.f32 %v1564, %v1575
    %v1588 = vadd.f32 %v1565, %v1575
    %v1589 = vadd.f32 %v1566, %v1575
    %v1590 = vadd.f32 %v1567, %v1575
    %v1591 = vadd.f32 %v1568, %v1575
    %v1592 = vadd.f32 %v1569, %v1575
    %v1593 = vpack.c.bf16 %v1578, %v1577
    %v1594 = vpack.c.bf16 %v1580, %v1579
    %v1595 = vpack.c.bf16 %v1582, %v1581
    %v1596 = vpack.c.bf16 %v1584, %v1583
    %v1597 = vpack.c.bf16 %v1586, %v1585
    %v1598 = vpack.c.bf16 %v1588, %v1587
    %v1599 = vpack.c.bf16 %v1590, %v1589
    %v1600 = vpack.c.bf16 %v1592, %v1591
    %v1601 = vld [vmem:[%s7] sm:$0xf]
    %v1602 = vld [vmem:[%s8] sm:$0x1]
    %v1604 = vlaneseq
    %v1605 = vshrl.u32 %v1604, 7
    %v1606 = vsub.s32 0, %v1605
    %v1607 = vrot.slane %v1602, %v1606
    %v1610 = vsel %vm92, %v1593, 0
    %v1613 = vsel %vm92, %v1594, 0
    %v1616 = vsel %vm92, %v1595, 0
    %v1619 = vsel %vm92, %v1596, 0
    %v1622 = vsel %vm92, %v1597, 0
    %v1625 = vsel %vm92, %v1598, 0
    %v1628 = vsel %vm92, %v1599, 0
    %v1631 = vsel %vm92, %v1600, 0
    %v1634 = vsel %vm117, %v1601, 0
    %1636 = vmatprep.subr.bf16.mxu0 0
    %1637 = vmatpush1.bf16.msra.mxu0 0
    %1638 = vmatprep.subr.bf16.mxu0 0
    %1639 = vmatpush1.bf16.msra.mxu0 0
    %1640 = vmatprep.subr.bf16.mxu0 0
    %1641 = vmatpush1.bf16.msra.mxu0 0
    %1642 = vmatprep.subr.bf16.mxu0 0
    %1643 = vmatpush1.bf16.msra.mxu0 0
    %1644 = vmatprep.subr.bf16.mxu0 0
    %1645 = vmatpush1.bf16.msra.mxu0 0
    %1646 = vmatprep.subr.bf16.mxu0 0
    %1647 = vmatpush1.bf16.msra.mxu0 0
    %1648 = vmatprep.subr.bf16.mxu0 0
    %1649 = vmatpush1.bf16.msra.mxu0 0
    %1650 = vmatprep.subr.bf16.mxu0 0
    %1651 = vmatpush1.bf16.msra.mxu0 %v1634
    %1652 = vmatprep.subr.bf16.mxu0 0
    %1653 = vmatpush2.bf16.msra.mxu0 0
    %1654 = vmatprep.subr.bf16.mxu0 0
    %1655 = vmatpush2.bf16.msra.mxu0 0
    %1656 = vmatprep.subr.bf16.mxu0 0
    %1657 = vmatpush2.bf16.msra.mxu0 0
    %1658 = vmatprep.subr.bf16.mxu0 0
    %1659 = vmatpush2.bf16.msra.mxu0 0
    %1660 = vmatprep.subr.bf16.mxu0 0
    %1661 = vmatpush2.bf16.msra.mxu0 0
    %1662 = vmatprep.subr.bf16.mxu0 0
    %1663 = vmatpush2.bf16.msra.mxu0 0
    %1664 = vmatprep.subr.bf16.mxu0 0
    %1665 = vmatpush2.bf16.msra.mxu0 0
    %1666 = vmatprep.subr.bf16.mxu0 0
    %1667 = vmatpush2.bf16.msra.mxu0 0
    %1668 = vmatprep.mubr.bf16.mxu0 0
    %1669 = vmatmul.mubr.bf16.gmra.mxu0 %v1610
    %v1670 = vpop.f32.mrf.mxu0
    %v1671 = vadd.f32 %v1607, %v1670
    %v1672 = vpop.f32.mrf.mxu0
    %v1673 = vpop.f32.mrf.mxu0
    %v1674 = vadd.f32 %v1607, %v1673
    %v1675 = vpop.f32.mrf.mxu0
    %1676 = vmatprep.mubr.bf16.mxu0 0
    %1677 = vmatmul.mubr.bf16.gmra.mxu0 %v1613
    %v1678 = vpop.f32.mrf.mxu0
    %v1679 = vadd.f32 %v1607, %v1678
    %v1680 = vpop.f32.mrf.mxu0
    %v1681 = vpop.f32.mrf.mxu0
    %v1682 = vadd.f32 %v1607, %v1681
    %v1683 = vpop.f32.mrf.mxu0
    %1684 = vmatprep.mubr.bf16.mxu0 0
    %1685 = vmatmul.mubr.bf16.gmra.mxu0 %v1616
    %v1686 = vpop.f32.mrf.mxu0
    %v1687 = vadd.f32 %v1607, %v1686
    %v1688 = vpop.f32.mrf.mxu0
    %v1689 = vpop.f32.mrf.mxu0
    %v1690 = vadd.f32 %v1607, %v1689
    %v1691 = vpop.f32.mrf.mxu0
    %1692 = vmatprep.mubr.bf16.mxu0 0
    %1693 = vmatmul.mubr.bf16.gmra.mxu0 %v1619
    %v1694 = vpop.f32.mrf.mxu0
    %v1695 = vadd.f32 %v1607, %v1694
    %v1696 = vpop.f32.mrf.mxu0
    %v1697 = vpop.f32.mrf.mxu0
    %v1698 = vadd.f32 %v1607, %v1697
    %v1699 = vpop.f32.mrf.mxu0
    %1700 = vmatprep.mubr.bf16.mxu0 0
    %1701 = vmatmul.mubr.bf16.gmra.mxu0 %v1622
    %v1702 = vpop.f32.mrf.mxu0
    %v1703 = vadd.f32 %v1607, %v1702
    %v1704 = vpop.f32.mrf.mxu0
    %v1705 = vpop.f32.mrf.mxu0
    %v1706 = vadd.f32 %v1607, %v1705
    %v1707 = vpop.f32.mrf.mxu0
    %1708 = vmatprep.mubr.bf16.mxu0 0
    %1709 = vmatmul.mubr.bf16.gmra.mxu0 %v1625
    %v1710 = vpop.f32.mrf.mxu0
    %v1711 = vadd.f32 %v1607, %v1710
    %v1712 = vpop.f32.mrf.mxu0
    %v1713 = vpop.f32.mrf.mxu0
    %v1714 = vadd.f32 %v1607, %v1713
    %v1715 = vpop.f32.mrf.mxu0
    %1716 = vmatprep.mubr.bf16.mxu0 0
    %1717 = vmatmul.mubr.bf16.gmra.mxu0 %v1628
    %v1718 = vpop.f32.mrf.mxu0
    %v1719 = vadd.f32 %v1607, %v1718
    %v1720 = vpop.f32.mrf.mxu0
    %v1721 = vpop.f32.mrf.mxu0
    %v1722 = vadd.f32 %v1607, %v1721
    %v1723 = vpop.f32.mrf.mxu0
    %1724 = vmatprep.mubr.bf16.mxu0 0
    %1725 = vmatmul.mubr.bf16.gmra.mxu0 %v1631
    %v1726 = vpop.f32.mrf.mxu0
    %v1727 = vadd.f32 %v1607, %v1726
    %v1728 = vpop.f32.mrf.mxu0
    %v1729 = vpop.f32.mrf.mxu0
    %v1730 = vadd.f32 %v1607, %v1729
    %v1731 = vpop.f32.mrf.mxu0
    %1732 = vdwg.mxu0
    %v1733 = vsub.f32 %v1671, %v766
    %v1734 = vsub.f32 %v1674, %v767
    %v1735 = vsub.f32 %v1679, %v768
    %v1736 = vsub.f32 %v1682, %v769
    %v1737 = vsub.f32 %v1687, %v770
    %v1738 = vsub.f32 %v1690, %v771
    %v1739 = vsub.f32 %v1695, %v772
    %v1740 = vsub.f32 %v1698, %v773
    %v1741 = vsub.f32 %v1703, %v774
    %v1742 = vsub.f32 %v1706, %v775
    %v1743 = vsub.f32 %v1711, %v776
    %v1744 = vsub.f32 %v1714, %v777
    %v1745 = vsub.f32 %v1719, %v778
    %v1746 = vsub.f32 %v1722, %v779
    %v1747 = vsub.f32 %v1727, %v780
    %v1748 = vsub.f32 %v1730, %v781
    %v1749 = vmul.f32 %v1733, 0.5
    %v1750 = vmul.f32 %v1734, 0.5
    %v1751 = vmul.f32 %v1735, 0.5
    %v1752 = vmul.f32 %v1736, 0.5
    %v1753 = vmul.f32 %v1737, 0.5
    %v1754 = vmul.f32 %v1738, 0.5
    %v1755 = vmul.f32 %v1739, 0.5
    %v1756 = vmul.f32 %v1740, 0.5
    %v1757 = vmul.f32 %v1741, 0.5
    %v1758 = vmul.f32 %v1742, 0.5
    %v1759 = vmul.f32 %v1743, 0.5
    %v1760 = vmul.f32 %v1744, 0.5
    %v1761 = vmul.f32 %v1745, 0.5
    %v1762 = vmul.f32 %v1746, 0.5
    %v1763 = vmul.f32 %v1747, 0.5
    %v1764 = vmul.f32 %v1748, 0.5
    %v1765 = vadd.f32 %v766, %v1749
    %v1766 = vadd.f32 %v767, %v1750
    %v1767 = vadd.f32 %v768, %v1751
    %v1768 = vadd.f32 %v769, %v1752
    %v1769 = vadd.f32 %v770, %v1753
    %v1770 = vadd.f32 %v771, %v1754
    %v1771 = vadd.f32 %v772, %v1755
    %v1772 = vadd.f32 %v773, %v1756
    %v1773 = vadd.f32 %v774, %v1757
    %v1774 = vadd.f32 %v775, %v1758
    %v1775 = vadd.f32 %v776, %v1759
    %v1776 = vadd.f32 %v777, %v1760
    %v1777 = vadd.f32 %v778, %v1761
    %v1778 = vadd.f32 %v779, %v1762
    %v1779 = vadd.f32 %v780, %v1763
    %v1780 = vadd.f32 %v781, %v1764
    %vm1781 = vcmp.ge.f32.partialorder %v1765, 1.0
    %vm1782 = vcmp.ge.f32.partialorder %v1766, 1.0
    %vm1783 = vcmp.ge.f32.partialorder %v1767, 1.0
    %vm1784 = vcmp.ge.f32.partialorder %v1768, 1.0
    %vm1785 = vcmp.ge.f32.partialorder %v1769, 1.0
    %vm1786 = vcmp.ge.f32.partialorder %v1770, 1.0
    %vm1787 = vcmp.ge.f32.partialorder %v1771, 1.0
    %vm1788 = vcmp.ge.f32.partialorder %v1772, 1.0
    %vm1789 = vcmp.ge.f32.partialorder %v1773, 1.0
    %vm1790 = vcmp.ge.f32.partialorder %v1774, 1.0
    %vm1791 = vcmp.ge.f32.partialorder %v1775, 1.0
    %vm1792 = vcmp.ge.f32.partialorder %v1776, 1.0
    %vm1793 = vcmp.ge.f32.partialorder %v1777, 1.0
    %vm1794 = vcmp.ge.f32.partialorder %v1778, 1.0
    %vm1795 = vcmp.ge.f32.partialorder %v1779, 1.0
    %vm1796 = vcmp.ge.f32.partialorder %v1780, 1.0
    %v1797 = vsel %vm1781, 1, 0
    %v1798 = vsel %vm1782, 1, 0
    %v1799 = vsel %vm1783, 1, 0
    %v1800 = vsel %vm1784, 1, 0
    %v1801 = vsel %vm1785, 1, 0
    %v1802 = vsel %vm1786, 1, 0
    %v1803 = vsel %vm1787, 1, 0
    %v1804 = vsel %vm1788, 1, 0
    %v1805 = vsel %vm1789, 1, 0
    %v1806 = vsel %vm1790, 1, 0
    %v1807 = vsel %vm1791, 1, 0
    %v1808 = vsel %vm1792, 1, 0
    %v1809 = vsel %vm1793, 1, 0
    %v1810 = vsel %vm1794, 1, 0
    %v1811 = vsel %vm1795, 1, 0
    %v1812 = vsel %vm1796, 1, 0
    %v1813 = vcvt.s32.f32 %v1797
    %v1814 = vcvt.s32.f32 %v1798
    %v1815 = vcvt.s32.f32 %v1799
    %v1816 = vcvt.s32.f32 %v1800
    %v1817 = vcvt.s32.f32 %v1801
    %v1818 = vcvt.s32.f32 %v1802
    %v1819 = vcvt.s32.f32 %v1803
    %v1820 = vcvt.s32.f32 %v1804
    %v1821 = vcvt.s32.f32 %v1805
    %v1822 = vcvt.s32.f32 %v1806
    %v1823 = vcvt.s32.f32 %v1807
    %v1824 = vcvt.s32.f32 %v1808
    %v1825 = vcvt.s32.f32 %v1809
    %v1826 = vcvt.s32.f32 %v1810
    %v1827 = vcvt.s32.f32 %v1811
    %v1828 = vcvt.s32.f32 %v1812
    %v1829 = vpack.c.bf16 %v1814, %v1813
    %v1830 = vpack.c.bf16 %v1816, %v1815
    %v1831 = vpack.c.bf16 %v1818, %v1817
    %v1832 = vpack.c.bf16 %v1820, %v1819
    %v1833 = vpack.c.bf16 %v1822, %v1821
    %v1834 = vpack.c.bf16 %v1824, %v1823
    %v1835 = vpack.c.bf16 %v1826, %v1825
    %v1836 = vpack.c.bf16 %v1828, %v1827
    %v1837 = vld [vmem:[%s9] sm:$0xf]
    %v1838 = vld [vmem:[%s10] sm:$0x1]
    %v1840 = vlaneseq
    %v1841 = vshrl.u32 %v1840, 7
    %v1842 = vsub.s32 0, %v1841
    %v1843 = vrot.slane %v1838, %v1842
    %v1846 = vsel %vm92, %v1829, 0
    %v1849 = vsel %vm92, %v1830, 0
    %v1852 = vsel %vm92, %v1831, 0
    %v1855 = vsel %vm92, %v1832, 0
    %v1858 = vsel %vm92, %v1833, 0
    %v1861 = vsel %vm92, %v1834, 0
    %v1864 = vsel %vm92, %v1835, 0
    %v1867 = vsel %vm92, %v1836, 0
    %v1870 = vsel %vm117, %v1837, 0
    %1872 = vmatprep.subr.bf16.mxu0 0
    %1873 = vmatpush1.bf16.msra.mxu0 0
    %1874 = vmatprep.subr.bf16.mxu0 0
    %1875 = vmatpush1.bf16.msra.mxu0 0
    %1876 = vmatprep.subr.bf16.mxu0 0
    %1877 = vmatpush1.bf16.msra.mxu0 0
    %1878 = vmatprep.subr.bf16.mxu0 0
    %1879 = vmatpush1.bf16.msra.mxu0 0
    %1880 = vmatprep.subr.bf16.mxu0 0
    %1881 = vmatpush1.bf16.msra.mxu0 0
    %1882 = vmatprep.subr.bf16.mxu0 0
    %1883 = vmatpush1.bf16.msra.mxu0 0
    %1884 = vmatprep.subr.bf16.mxu0 0
    %1885 = vmatpush1.bf16.msra.mxu0 0
    %1886 = vmatprep.subr.bf16.mxu0 0
    %1887 = vmatpush1.bf16.msra.mxu0 %v1870
    %1888 = vmatprep.subr.bf16.mxu0 0
    %1889 = vmatpush2.bf16.msra.mxu0 0
    %1890 = vmatprep.subr.bf16.mxu0 0
    %1891 = vmatpush2.bf16.msra.mxu0 0
    %1892 = vmatprep.subr.bf16.mxu0 0
    %1893 = vmatpush2.bf16.msra.mxu0 0
    %1894 = vmatprep.subr.bf16.mxu0 0
    %1895 = vmatpush2.bf16.msra.mxu0 0
    %1896 = vmatprep.subr.bf16.mxu0 0
    %1897 = vmatpush2.bf16.msra.mxu0 0
    %1898 = vmatprep.subr.bf16.mxu0 0
    %1899 = vmatpush2.bf16.msra.mxu0 0
    %1900 = vmatprep.subr.bf16.mxu0 0
    %1901 = vmatpush2.bf16.msra.mxu0 0
    %1902 = vmatprep.subr.bf16.mxu0 0
    %1903 = vmatpush2.bf16.msra.mxu0 0
    %1904 = vmatprep.mubr.bf16.mxu0 0
    %1905 = vmatmul.mubr.bf16.gmra.mxu0 %v1846
    %v1906 = vpop.f32.mrf.mxu0
    %v1907 = vadd.f32 %v1843, %v1906
    %v1908 = vpop.f32.mrf.mxu0
    %v1909 = vpop.f32.mrf.mxu0
    %v1910 = vadd.f32 %v1843, %v1909
    %v1911 = vpop.f32.mrf.mxu0
    %1912 = vmatprep.mubr.bf16.mxu0 0
    %1913 = vmatmul.mubr.bf16.gmra.mxu0 %v1849
    %v1914 = vpop.f32.mrf.mxu0
    %v1915 = vadd.f32 %v1843, %v1914
    %v1916 = vpop.f32.mrf.mxu0
    %v1917 = vpop.f32.mrf.mxu0
    %v1918 = vadd.f32 %v1843, %v1917
    %v1919 = vpop.f32.mrf.mxu0
    %1920 = vmatprep.mubr.bf16.mxu0 0
    %1921 = vmatmul.mubr.bf16.gmra.mxu0 %v1852
    %v1922 = vpop.f32.mrf.mxu0
    %v1923 = vadd.f32 %v1843, %v1922
    %v1924 = vpop.f32.mrf.mxu0
    %v1925 = vpop.f32.mrf.mxu0
    %v1926 = vadd.f32 %v1843, %v1925
    %v1927 = vpop.f32.mrf.mxu0
    %1928 = vmatprep.mubr.bf16.mxu0 0
    %1929 = vmatmul.mubr.bf16.gmra.mxu0 %v1855
    %v1930 = vpop.f32.mrf.mxu0
    %v1931 = vadd.f32 %v1843, %v1930
    %v1932 = vpop.f32.mrf.mxu0
    %v1933 = vpop.f32.mrf.mxu0
    %v1934 = vadd.f32 %v1843, %v1933
    %v1935 = vpop.f32.mrf.mxu0
    %1936 = vmatprep.mubr.bf16.mxu0 0
    %1937 = vmatmul.mubr.bf16.gmra.mxu0 %v1858
    %v1938 = vpop.f32.mrf.mxu0
    %v1939 = vadd.f32 %v1843, %v1938
    %v1940 = vpop.f32.mrf.mxu0
    %v1941 = vpop.f32.mrf.mxu0
    %v1942 = vadd.f32 %v1843, %v1941
    %v1943 = vpop.f32.mrf.mxu0
    %1944 = vmatprep.mubr.bf16.mxu0 0
    %1945 = vmatmul.mubr.bf16.gmra.mxu0 %v1861
    %v1946 = vpop.f32.mrf.mxu0
    %v1947 = vadd.f32 %v1843, %v1946
    %v1948 = vpop.f32.mrf.mxu0
    %v1949 = vpop.f32.mrf.mxu0
    %v1950 = vadd.f32 %v1843, %v1949
    %v1951 = vpop.f32.mrf.mxu0
    %1952 = vmatprep.mubr.bf16.mxu0 0
    %1953 = vmatmul.mubr.bf16.gmra.mxu0 %v1864
    %v1954 = vpop.f32.mrf.mxu0
    %v1955 = vadd.f32 %v1843, %v1954
    %v1956 = vpop.f32.mrf.mxu0
    %v1957 = vpop.f32.mrf.mxu0
    %v1958 = vadd.f32 %v1843, %v1957
    %v1959 = vpop.f32.mrf.mxu0
    %1960 = vmatprep.mubr.bf16.mxu0 0
    %1961 = vmatmul.mubr.bf16.gmra.mxu0 %v1867
    %v1962 = vpop.f32.mrf.mxu0
    %v1963 = vadd.f32 %v1843, %v1962
    %v1964 = vpop.f32.mrf.mxu0
    %v1965 = vpop.f32.mrf.mxu0
    %v1966 = vadd.f32 %v1843, %v1965
    %v1967 = vpop.f32.mrf.mxu0
    %1968 = vdwg.mxu0
    %v1969 = vadd.f32 %v1907, %v1671
    %v1970 = vadd.f32 %v1910, %v1674
    %v1971 = vadd.f32 %v1915, %v1679
    %v1972 = vadd.f32 %v1918, %v1682
    %v1973 = vadd.f32 %v1923, %v1687
    %v1974 = vadd.f32 %v1926, %v1690
    %v1975 = vadd.f32 %v1931, %v1695
    %v1976 = vadd.f32 %v1934, %v1698
    %v1977 = vadd.f32 %v1939, %v1703
    %v1978 = vadd.f32 %v1942, %v1706
    %v1979 = vadd.f32 %v1947, %v1711
    %v1980 = vadd.f32 %v1950, %v1714
    %v1981 = vadd.f32 %v1955, %v1719
    %v1982 = vadd.f32 %v1958, %v1722
    %v1983 = vadd.f32 %v1963, %v1727
    %v1984 = vadd.f32 %v1966, %v1730
    %v1985 = vsub.f32 %v1969, %v1034
    %v1986 = vsub.f32 %v1970, %v1035
    %v1987 = vsub.f32 %v1971, %v1036
    %v1988 = vsub.f32 %v1972, %v1037
    %v1989 = vsub.f32 %v1973, %v1038
    %v1990 = vsub.f32 %v1974, %v1039
    %v1991 = vsub.f32 %v1975, %v1040
    %v1992 = vsub.f32 %v1976, %v1041
    %v1993 = vsub.f32 %v1977, %v1042
    %v1994 = vsub.f32 %v1978, %v1043
    %v1995 = vsub.f32 %v1979, %v1044
    %v1996 = vsub.f32 %v1980, %v1045
    %v1997 = vsub.f32 %v1981, %v1046
    %v1998 = vsub.f32 %v1982, %v1047
    %v1999 = vsub.f32 %v1983, %v1048
    %v2000 = vsub.f32 %v1984, %v1049
    %v2001 = vmul.f32 %v1985, 0.5
    %v2002 = vmul.f32 %v1986, 0.5
    %v2003 = vmul.f32 %v1987, 0.5
    %v2004 = vmul.f32 %v1988, 0.5
    %v2005 = vmul.f32 %v1989, 0.5
    %v2006 = vmul.f32 %v1990, 0.5
    %v2007 = vmul.f32 %v1991, 0.5
    %v2008 = vmul.f32 %v1992, 0.5
    %v2009 = vmul.f32 %v1993, 0.5
    %v2010 = vmul.f32 %v1994, 0.5
    %v2011 = vmul.f32 %v1995, 0.5
    %v2012 = vmul.f32 %v1996, 0.5
    %v2013 = vmul.f32 %v1997, 0.5
    %v2014 = vmul.f32 %v1998, 0.5
    %v2015 = vmul.f32 %v1999, 0.5
    %v2016 = vmul.f32 %v2000, 0.5
    %v2017 = vadd.f32 %v1034, %v2001
    %v2018 = vadd.f32 %v1035, %v2002
    %v2019 = vadd.f32 %v1036, %v2003
    %v2020 = vadd.f32 %v1037, %v2004
    %v2021 = vadd.f32 %v1038, %v2005
    %v2022 = vadd.f32 %v1039, %v2006
    %v2023 = vadd.f32 %v1040, %v2007
    %v2024 = vadd.f32 %v1041, %v2008
    %v2025 = vadd.f32 %v1042, %v2009
    %v2026 = vadd.f32 %v1043, %v2010
    %v2027 = vadd.f32 %v1044, %v2011
    %v2028 = vadd.f32 %v1045, %v2012
    %v2029 = vadd.f32 %v1046, %v2013
    %v2030 = vadd.f32 %v1047, %v2014
    %v2031 = vadd.f32 %v1048, %v2015
    %v2032 = vadd.f32 %v1049, %v2016
    %vm2033 = vcmp.ge.f32.partialorder %v2017, 1.0
    %vm2034 = vcmp.ge.f32.partialorder %v2018, 1.0
    %vm2035 = vcmp.ge.f32.partialorder %v2019, 1.0
    %vm2036 = vcmp.ge.f32.partialorder %v2020, 1.0
    %vm2037 = vcmp.ge.f32.partialorder %v2021, 1.0
    %vm2038 = vcmp.ge.f32.partialorder %v2022, 1.0
    %vm2039 = vcmp.ge.f32.partialorder %v2023, 1.0
    %vm2040 = vcmp.ge.f32.partialorder %v2024, 1.0
    %vm2041 = vcmp.ge.f32.partialorder %v2025, 1.0
    %vm2042 = vcmp.ge.f32.partialorder %v2026, 1.0
    %vm2043 = vcmp.ge.f32.partialorder %v2027, 1.0
    %vm2044 = vcmp.ge.f32.partialorder %v2028, 1.0
    %vm2045 = vcmp.ge.f32.partialorder %v2029, 1.0
    %vm2046 = vcmp.ge.f32.partialorder %v2030, 1.0
    %vm2047 = vcmp.ge.f32.partialorder %v2031, 1.0
    %vm2048 = vcmp.ge.f32.partialorder %v2032, 1.0
    %v2049 = vsel %vm2033, 1, 0
    %v2050 = vsel %vm2034, 1, 0
    %v2051 = vsel %vm2035, 1, 0
    %v2052 = vsel %vm2036, 1, 0
    %v2053 = vsel %vm2037, 1, 0
    %v2054 = vsel %vm2038, 1, 0
    %v2055 = vsel %vm2039, 1, 0
    %v2056 = vsel %vm2040, 1, 0
    %v2057 = vsel %vm2041, 1, 0
    %v2058 = vsel %vm2042, 1, 0
    %v2059 = vsel %vm2043, 1, 0
    %v2060 = vsel %vm2044, 1, 0
    %v2061 = vsel %vm2045, 1, 0
    %v2062 = vsel %vm2046, 1, 0
    %v2063 = vsel %vm2047, 1, 0
    %v2064 = vsel %vm2048, 1, 0
    %v2065 = vcvt.s32.f32 %v2049
    %v2066 = vcvt.s32.f32 %v2050
    %v2067 = vcvt.s32.f32 %v2051
    %v2068 = vcvt.s32.f32 %v2052
    %v2069 = vcvt.s32.f32 %v2053
    %v2070 = vcvt.s32.f32 %v2054
    %v2071 = vcvt.s32.f32 %v2055
    %v2072 = vcvt.s32.f32 %v2056
    %v2073 = vcvt.s32.f32 %v2057
    %v2074 = vcvt.s32.f32 %v2058
    %v2075 = vcvt.s32.f32 %v2059
    %v2076 = vcvt.s32.f32 %v2060
    %v2077 = vcvt.s32.f32 %v2061
    %v2078 = vcvt.s32.f32 %v2062
    %v2079 = vcvt.s32.f32 %v2063
    %v2080 = vcvt.s32.f32 %v2064
    %s2081 = scalar_lea.vmem %s11, 128
    %2082 = vst.msk [vmem:[%s2081] sm:$0xff] %vm92, %v2065
    %2083 = vst.msk [vmem:[%s2081 + $0x8] sm:$0xff] %vm92, %v2066
    %2084 = vst.msk [vmem:[%s2081 + $0x10] sm:$0xff] %vm92, %v2067
    %2085 = vst.msk [vmem:[%s2081 + $0x18] sm:$0xff] %vm92, %v2068
    %2086 = vst.msk [vmem:[%s2081 + $0x20] sm:$0xff] %vm92, %v2069
    %2087 = vst.msk [vmem:[%s2081 + $0x28] sm:$0xff] %vm92, %v2070
    %2088 = vst.msk [vmem:[%s2081 + $0x30] sm:$0xff] %vm92, %v2071
    %2089 = vst.msk [vmem:[%s2081 + $0x38] sm:$0xff] %vm92, %v2072
    %2090 = vst.msk [vmem:[%s2081 + $0x40] sm:$0xff] %vm92, %v2073
    %2091 = vst.msk [vmem:[%s2081 + $0x48] sm:$0xff] %vm92, %v2074
    %2092 = vst.msk [vmem:[%s2081 + $0x50] sm:$0xff] %vm92, %v2075
    %2093 = vst.msk [vmem:[%s2081 + $0x58] sm:$0xff] %vm92, %v2076
    %2094 = vst.msk [vmem:[%s2081 + $0x60] sm:$0xff] %vm92, %v2077
    %2095 = vst.msk [vmem:[%s2081 + $0x68] sm:$0xff] %vm92, %v2078
    %2096 = vst.msk [vmem:[%s2081 + $0x70] sm:$0xff] %vm92, %v2079
    %2097 = vst.msk [vmem:[%s2081 + $0x78] sm:$0xff] %vm92, %v2080
    %v2098 = vsel %vm92, %v2065, 0.0
    %v2099 = vsel %vm92, %v2066, 0.0
    %v2100 = vadd.f32 %v2098, %v2099
    %v2101 = vsel %vm92, %v2067, 0.0
    %v2102 = vadd.f32 %v2100, %v2101
    %v2103 = vsel %vm92, %v2068, 0.0
    %v2104 = vadd.f32 %v2102, %v2103
    %v2105 = vsel %vm92, %v2069, 0.0
    %v2106 = vadd.f32 %v2104, %v2105
    %v2107 = vsel %vm92, %v2070, 0.0
    %v2108 = vadd.f32 %v2106, %v2107
    %v2109 = vsel %vm92, %v2071, 0.0
    %v2110 = vadd.f32 %v2108, %v2109
    %v2111 = vsel %vm92, %v2072, 0.0
    %v2112 = vadd.f32 %v2110, %v2111
    %v2113 = vsel %vm92, %v2073, 0.0
    %v2114 = vadd.f32 %v2112, %v2113
    %v2115 = vsel %vm92, %v2074, 0.0
    %v2116 = vadd.f32 %v2114, %v2115
    %v2117 = vsel %vm92, %v2075, 0.0
    %v2118 = vadd.f32 %v2116, %v2117
    %v2119 = vsel %vm92, %v2076, 0.0
    %v2120 = vadd.f32 %v2118, %v2119
    %v2121 = vsel %vm92, %v2077, 0.0
    %v2122 = vadd.f32 %v2120, %v2121
    %v2123 = vsel %vm92, %v2078, 0.0
    %v2124 = vadd.f32 %v2122, %v2123
    %v2125 = vsel %vm92, %v2079, 0.0
    %v2126 = vadd.f32 %v2124, %v2125
    %v2127 = vsel %vm92, %v2080, 0.0
    %v2128 = vadd.f32 %v2126, %v2127
    %v2129 = vrot.slane %v2128, 4
    %v2130 = vadd.f32 %v2128, %v2129
    %v2131 = vrot.slane %v2130, 2
    %v2132 = vadd.f32 %v2130, %v2131
    %v2133 = vrot.slane %v2132, 1
    %v2134 = vadd.f32 %v2132, %v2133
    %v2135 = vadd.f32 %v1103, %v2134
    %vm2136 = vcmask 57344
    %2137 = vst.msk [vmem:[#allocation2] sm:$0x1] %vm2136, %v2135
    // Predicated region
    $region46: #{snn_stage_block.11} parent=1 // pred_check
      _
    $region47: #{snn_stage_block.11} parent=1 // pred_check_branch
      %2139 = sbr.rel (0) target = $region49
    $region48: #{snn_stage_block.11} parent=1 // pred_region
      _
    $region49: #{snn_stage_block.11} parent=1 // pred_fallthru
      _
    // Predicated region
    $region50: #{snn_stage_block.11} parent=1 // pred_check
      _
    $region51: #{snn_stage_block.11} parent=1 // pred_check_branch
      %2141 = sbr.rel (0) target = $region53
    $region52: #{snn_stage_block.11} parent=1 // pred_region
      %s2143 = ssub.s32 16, 16
      %2144 = vsyncadd [#allocation3], %s2143
      %s2146 = sshll.u32 [#allocation2], 4
      %s2147 = int_to_ptr.vmem [resolvable:$true] %s2146
      %2149 = dma.vmem_to_hbm [thread:$0]  %s2147, 16, %s12, [#allocation3]
    $region53: #{snn_stage_block.11} parent=1 // pred_fallthru
      _
    // Predicated region
    $region54: #{snn_stage_block.11} parent=1 // pred_check
      _
    $region55: #{snn_stage_block.11} parent=1 // pred_check_branch
      %2151 = sbr.rel (0) target = $region57
    $region56: #{snn_stage_block.11} parent=1 // pred_region
      _
    $region57: #{snn_stage_block.11} parent=1 // pred_fallthru
      _
    // Predicated region
    $region58: #{snn_stage_block.11} parent=1 // pred_check
      _
    $region59: #{snn_stage_block.11} parent=1 // pred_check_branch
      %2153 = sbr.rel (0) target = $region61
    $region60: #{snn_stage_block.11} parent=1 // pred_region
      %2154 = dma.done [#allocation3], 16
    $region61: #{snn_stage_block.11} parent=1 // pred_fallthru
      _
    %2155 = vsyncpa [#allocation3], 1

</llo_original>
